<compile_context>
chip_gen: v7x
topology: tpu7x:2x2x1
jax: 0.10.0
libtpu: 0.0.40
codegen_flags: <defaults>
</compile_context>

<pallas_src>
import functools
import math

import jax
import jax.numpy as jnp
from jax import lax
from jax.experimental import pallas as pl
from jax.experimental.pallas import tpu as pltpu

BN_EPS = 1e-5


def _round_up(x, m):
    return (x + m - 1) // m * m


# ---------------------------------------------------------------------------
# Pure-JAX helpers (also used on the host to fold the affine frequency branch)
# ---------------------------------------------------------------------------
def _bn_eval(x, bn):
    s = bn['gamma'] / jnp.sqrt(bn['rv'] + BN_EPS)
    t = bn['beta'] - bn['rm'] * s
    return x * s[None, :, None, None] + t[None, :, None, None]


def _sub_spectral_norm(x, bn, sub_bands=4):
    N, C, F, T = x.shape
    xr = x.reshape(N, C * sub_bands, F // sub_bands, T)
    xr = _bn_eval(xr, bn)
    return xr.reshape(N, C, F, T)


def _conv2d_ref(x, w, b, pad_h, pad_w):
    y = lax.conv_general_dilated(
        x, w, window_strides=(1, 1), padding=((pad_h, pad_h), (pad_w, pad_w)),
        dimension_numbers=('NCHW', 'OIHW', 'NCHW'), precision=lax.Precision.HIGHEST)
    return y + b[None, :, None, None]


# ---------------------------------------------------------------------------
# Fused Pallas kernel: `batch_block` batch elements per grid step.
# ---------------------------------------------------------------------------
def _normal_block_kernel(x_ref, a_res_ref, c_res_ref, a_mean_ref, c_mean_ref,
                         tw_ref, tb_ref, o_ref, *, width, n_freq, n_time, batch_block):
    """NormalBlock_res2 forward for a block of batch elements.

    x_ref / o_ref : (B, C, F, T)  f32 VMEM
    a_res_ref     : (C*F, C*F)    f32 VMEM   folded  x + x1   = a_res  @ x_flat + c_res
    c_res_ref     : (C*F, 1)      f32 VMEM
    a_mean_ref    : (C, C*F)      f32 VMEM   folded  mean_F(x1) = a_mean @ x_flat + c_mean
    c_mean_ref    : (C, 1)        f32 VMEM
    tw_ref        : (4, CO_PAD, K_PAD) f32 VMEM  packed / zero-padded (1,3) time-conv weights
    tb_ref        : (4, CO_PAD, 1)     f32 VMEM  zero-padded time-conv bias
    """
    C = 4 * width
    F, T = n_freq, n_time
    CF = C * F
    k_real = 3 * width
    k_pad = tw_ref.shape[2]
    hi = lax.Precision.HIGHEST

    lane = lax.broadcasted_iota(jnp.int32, (width, T), 1)
    has_left = lane != 0            # position t-1 exists
    has_right = lane != T - 1       # position t+1 exists

    for b in range(batch_block):
        x_flat = x_ref[b].reshape(CF, T)                     # layout-free merge (F % 8 == 0)

        # ---- frequency res2 branch (+ x residual): one precomputed-affine MXU matmul ----
        partial = jnp.dot(a_res_ref[...], x_flat,
                          preferred_element_type=jnp.float32, precision=hi) + c_res_ref[...]
        o_ref[b] = partial.reshape(C, F, T)                  # park x + x1; frees live range

        # ---- mean over frequency of x1, folded into a second (small) matmul ----
        xmean = jnp.dot(a_mean_ref[...], x_flat,
                        preferred_element_type=jnp.float32, precision=hi) + c_mean_ref[...]

        # ---- time-direction res2 stage: (1,3) 'same' conv + ReLU, all co per split ----
        prev = None
        x2_rows = []
        for i in range(4):
            cur = xmean[i * width:(i + 1) * width, :]        # (width, T)
            if prev is not None:
                cur = cur + prev
            # 'same' padding via lane rotation + boundary masks (dense 128-lane vregs)
            t_m1 = jnp.where(has_left, pltpu.roll(cur, 1, 1), 0.0)        # in[t-1]
            t_p1 = jnp.where(has_right, pltpu.roll(cur, T - 1, 1), 0.0)   # in[t+1]
            pieces = [t_m1, cur, t_p1]
            if k_pad > k_real:
                pieces.append(jnp.zeros((k_pad - k_real, T), jnp.float32))
            stacked = jnp.concatenate(pieces, axis=0)        # (K_PAD, T)
            conv = jnp.dot(tw_ref[i], stacked,
                           preferred_element_type=jnp.float32, precision=hi)
            out = jnp.maximum(conv + tb_ref[i], 0.0)[:width]  # (width, T)
            prev = out
            x2_rows.append(out)
        x2 = jnp.concatenate(x2_rows, axis=0)                 # (C, T)

        # ---- out = relu((x + x1) + repeat_F(x2)) ----
        o_ref[b] = jnp.maximum(o_ref[b] + x2[:, None, :], 0.0)


# ---------------------------------------------------------------------------
# Host-side parameter folding (tiny, traced under jit)
# ---------------------------------------------------------------------------
def _fold_params(params, n_chan, n_freq):
    C, F = n_chan, n_freq
    width = C // 4
    CF = C * F

    # The frequency branch (sequential convs + SSN eval affines) is jointly affine in x per
    # time column: probe it with an identity basis (+ one zero column) along the T axis.
    probe = jnp.concatenate([jnp.eye(CF, dtype=jnp.float32),
                             jnp.zeros((CF, 1), jnp.float32)], axis=1)     # (CF, CF+1)
    xb = probe.reshape(1, C, F, CF + 1)
    f_sp, f_out = None, []
    for i in range(4):
        part = xb[:, i * width:(i + 1) * width]
        f_sp = part if i == 0 else f_sp + part
        f_sp = _conv2d_ref(f_sp, params['f_convs'][i]['w'], params['f_convs'][i]['b'], 1, 0)
        f_sp = _sub_spectral_norm(f_sp, params['f_ssn'][i])
        f_out.append(f_sp)
    yb = jnp.concatenate(f_out, axis=1).reshape(CF, CF + 1)
    c = yb[:, -1]                                    # shift:  x1 = A @ x_flat + c
    A = yb[:, :-1] - c[:, None]                      # (CF, CF)
    a_res = A + jnp.eye(CF, dtype=jnp.float32)       # x + x1 = (I + A) @ x_flat + c
    a_mean = jnp.mean(A.reshape(C, F, CF), axis=1)   # mean_F(x1) = a_mean @ x_flat + c_mean
    c_mean = jnp.mean(c.reshape(C, F), axis=1)

    # Time branch: pack each split's (1,3) conv as one (CO_PAD, K_PAD) matrix, column index
    # j = kw*width + ci matching the in-kernel [in[t-1]; in[t]; in[t+1]] row stacking.
    co_pad = _round_up(width, 8)
    k_pad = _round_up(3 * width, 8)
    tw, tb = [], []
    for p in params['t_convs']:
        w = jnp.transpose(p['w'][:, :, 0, :], (0, 2, 1)).reshape(width, 3 * width)
        tw.append(jnp.pad(w, ((0, co_pad - width), (0, k_pad - 3 * width))))
        tb.append(jnp.pad(p['b'], (0, co_pad - width)))
    return (a_res, c[:, None], a_mean, c_mean[:, None],
            jnp.stack(tw), jnp.stack(tb)[..., None])


def _pick_batch_block(n):
    """Largest batch block (<= 8) dividing N while keeping >= 2 grid steps (v7x 2-TC split)."""
    for bb in (8, 4, 2):
        if n % bb == 0 and n // bb >= 2:
            return bb
    return 1


@jax.jit
def normal_block_res2(x, params):
    """Pallas forward of NormalBlock_res2 (eval mode). x: (N, C, F, T) float32 (NCHW)."""
    N, C, F, T = x.shape
    assert C % 4 == 0, "res2 split requires channels divisible by 4"
    assert F % 8 == 0, "layout-free (C,F)->(C*F) merge needs F % 8 == 0 (covers SSN's F % 4)"
    assert C * F <= 4096, "folded-affine freq branch materializes a (C*F)^2 matrix"
    width = C // 4
    CF = C * F

    a_res, c_res, a_mean, c_mean, tw, tb = _fold_params(params, C, F)
    co_pad, k_pad = tw.shape[1], tw.shape[2]

    bb = _pick_batch_block(N)
    kernel = functools.partial(_normal_block_kernel, width=width, n_freq=F, n_time=T,
                               batch_block=bb)
    return pl.pallas_call(
        kernel,
        out_shape=jax.ShapeDtypeStruct((N, C, F, T), jnp.float32),
        grid=(N // bb,),
        in_specs=[
            pl.BlockSpec((bb, C, F, T), lambda i: (i, 0, 0, 0)),        # x
            pl.BlockSpec((CF, CF), lambda i: (0, 0)),                   # I + A   (freq branch)
            pl.BlockSpec((CF, 1), lambda i: (0, 0)),                    # c       (freq branch)
            pl.BlockSpec((C, CF), lambda i: (0, 0)),                    # mean-folded A
            pl.BlockSpec((C, 1), lambda i: (0, 0)),                     # mean-folded c
            pl.BlockSpec((4, co_pad, k_pad), lambda i: (0, 0, 0)),      # time-conv weights
            pl.BlockSpec((4, co_pad, 1), lambda i: (0, 0, 0)),          # time-conv bias
        ],
        out_specs=pl.BlockSpec((bb, C, F, T), lambda i: (i, 0, 0, 0)),
        compiler_params=pltpu.CompilerParams(
            dimension_semantics=("parallel",)),     # batch blocks split across TCs on v7x
    )(x.astype(jnp.float32), a_res, c_res, a_mean, c_mean, tw, tb)


# ---------------------------------------------------------------------------
# Pure-JAX reference (mirrors the PyTorch forward, eval-mode BatchNorm)
# ---------------------------------------------------------------------------
@jax.jit
def normal_block_res2_reference(x, params):
    N, C, F, T = x.shape
    width = C // 4
    f_sp, f_out = None, []
    for i in range(4):
        part = x[:, i * width:(i + 1) * width]
        f_sp = part if i == 0 else f_sp + part
        f_sp = _conv2d_ref(f_sp, params['f_convs'][i]['w'], params['f_convs'][i]['b'], 1, 0)
        f_sp = _sub_spectral_norm(f_sp, params['f_ssn'][i])
        f_out.append(f_sp)
    x1 = jnp.concatenate(f_out, axis=1)
    x2 = jnp.mean(x1, axis=2, keepdims=True)
    t_sp, t_out = None, []
    for i in range(4):
        part = x2[:, i * width:(i + 1) * width]
        t_sp = part if i == 0 else t_sp + part
        t_sp = _conv2d_ref(t_sp, params['t_convs'][i]['w'], params['t_convs'][i]['b'], 0, 1)
        t_sp = jnp.maximum(t_sp, 0.0)
        t_out.append(t_sp)
    x2 = jnp.concatenate(t_out, axis=1)
    return jnp.maximum(x + x1 + x2, 0.0)     # x2 broadcasts over F == repeat(1, 1, F, 1)


# ---------------------------------------------------------------------------
# Deterministic synthetic parameters (PyTorch weight layouts, eval-mode BN stats)
# ---------------------------------------------------------------------------
def make_params(n_chan, key):
    width = n_chan // 4
    keys = iter(jax.random.split(key, 64))

    def conv(cout, cin, kh, kw):
        fan_in = cin * kh * kw
        return {
            'w': jax.random.normal(next(keys), (cout, cin, kh, kw), jnp.float32)
                 / math.sqrt(fan_in),
            'b': 0.1 * jax.random.normal(next(keys), (cout,), jnp.float32),
        }

    def bn(c):
        return {
            'gamma': 1.0 + 0.1 * jax.random.normal(next(keys), (c,), jnp.float32),
            'beta': 0.1 * jax.random.normal(next(keys), (c,), jnp.float32),
            'rm': 0.1 * jax.random.normal(next(keys), (c,), jnp.float32),
            'rv': 0.5 + jax.random.uniform(next(keys), (c,), jnp.float32),
        }

    return {
        'f_convs': [conv(width, width, 3, 1) for _ in range(4)],
        'f_ssn': [bn(width * 4) for _ in range(4)],
        't_convs': [conv(width, width, 1, 3) for _ in range(4)],
        # self.t_ssn (BatchNorm list) exists in the PyTorch module but is never used in forward.
    }


if __name__ == "__main__":
    # x: (N, C, F, T) — width = C // 4 = 4; F % 8 == 0; T = 128 keeps the lane axis dense,
    # and C*F = 256 matches the 256-wide MXU tile for the folded frequency branch.
    N, C, F, T = 2, 16, 16, 128
    key = jax.random.PRNGKey(0)
    kx, kp = jax.random.split(key)
    x = jax.random.normal(kx, (N, C, F, T), jnp.float32)
    params = make_params(C, kp)

    out = normal_block_res2(x, params)
    jax.block_until_ready(out)

    ref = normal_block_res2_reference(x, params)
    jax.block_until_ready(ref)

    assert out.shape == (N, C, F, T)
    err = float(jnp.max(jnp.abs(out - ref)))
    assert err < 1e-3, f"mismatch vs pure-JAX reference: max abs err = {err}"
    print("KERNEL_OK")
</pallas_src>

<mosaic_0001>
module attributes {stable_mosaic.version = 11 : i64} {
  func.func @_normal_block_kernel(%arg0: i32, %arg1: memref<1x16x16x128xf32, #tpu.memory_space<vmem>>, %arg2: memref<256x256xf32, #tpu.memory_space<vmem>>, %arg3: memref<256x1xf32, #tpu.memory_space<vmem>>, %arg4: memref<16x256xf32, #tpu.memory_space<vmem>>, %arg5: memref<16x1xf32, #tpu.memory_space<vmem>>, %arg6: memref<4x8x16xf32, #tpu.memory_space<vmem>>, %arg7: memref<4x8x1xf32, #tpu.memory_space<vmem>>, %arg8: memref<1x16x16x128xf32, #tpu.memory_space<vmem>>) attributes {dimension_semantics = [#tpu.dimension_semantics<parallel>], iteration_bounds = array<i64: 2>, scalar_prefetch = 0 : i64, scratch_operands = 0 : i64, tpu.core_type = #tpu.core_type<tc>, window_params = [{transform_indices = @transform_0, window_bounds = array<i64: 1, 16, 16, 128>}, {pipeline_mode = #tpu.pipeline_mode<synchronous>, transform_indices = @transform_1, window_bounds = array<i64: 256, 256>}, {pipeline_mode = #tpu.pipeline_mode<synchronous>, transform_indices = @transform_2, window_bounds = array<i64: 256, 1>}, {pipeline_mode = #tpu.pipeline_mode<synchronous>, transform_indices = @transform_3, window_bounds = array<i64: 16, 256>}, {pipeline_mode = #tpu.pipeline_mode<synchronous>, transform_indices = @transform_4, window_bounds = array<i64: 16, 1>}, {pipeline_mode = #tpu.pipeline_mode<synchronous>, transform_indices = @transform_5, window_bounds = array<i64: 4, 8, 16>}, {pipeline_mode = #tpu.pipeline_mode<synchronous>, transform_indices = @transform_6, window_bounds = array<i64: 4, 8, 1>}, {transform_indices = @transform_7, window_bounds = array<i64: 1, 16, 16, 128>}]} {
    %0 = tpu.iota {dimensions = array<i32: 1>} : vector<4x128xi32>
    %c0_i32 = arith.constant 0 : i32
    %1 = vector.broadcast %c0_i32 : i32 to vector<4x128xi32>
    %2 = arith.cmpi ne, %0, %1 : vector<4x128xi32>
    %c127_i32 = arith.constant 127 : i32
    %3 = vector.broadcast %c127_i32 : i32 to vector<4x128xi32>
    %4 = arith.cmpi ne, %0, %3 : vector<4x128xi32>
    %c0 = arith.constant 0 : index
    %c0_0 = arith.constant 0 : index
    %c0_1 = arith.constant 0 : index
    %c0_2 = arith.constant 0 : index
    %5 = vector.load %arg1[%c0, %c0_0, %c0_1, %c0_2] : memref<1x16x16x128xf32, #tpu.memory_space<vmem>>, vector<1x16x16x128xf32>
    %6 = vector.shape_cast %5 : vector<1x16x16x128xf32> to vector<16x16x128xf32>
    %7 = vector.shape_cast %6 : vector<16x16x128xf32> to vector<256x128xf32>
    %c0_3 = arith.constant 0 : index
    %c0_4 = arith.constant 0 : index
    %8 = vector.load %arg2[%c0_3, %c0_4] : memref<256x256xf32, #tpu.memory_space<vmem>>, vector<256x256xf32>
    %cst = arith.constant dense<0.000000e+00> : vector<256x128xf32>
    %9 = tpu.matmul %8, %7, %cst {dimension_numbers = #tpu.dot_dimension_numbers<[1], [0], [0], [1], [0, 0, 1, 1], [], []>, precision = #tpu.contract_precision<fp32>} : vector<256x256xf32>, vector<256x128xf32>, vector<256x128xf32> -> vector<256x128xf32>
    %c0_5 = arith.constant 0 : index
    %c0_6 = arith.constant 0 : index
    %10 = vector.load %arg3[%c0_5, %c0_6] : memref<256x1xf32, #tpu.memory_space<vmem>>, vector<256x1xf32>
    %11 = vector.broadcast %10 : vector<256x1xf32> to vector<256x128xf32>
    %12 = arith.addf %9, %11 : vector<256x128xf32>
    %13 = vector.shape_cast %12 : vector<256x128xf32> to vector<16x16x128xf32>
    %c0_7 = arith.constant 0 : index
    %c0_8 = arith.constant 0 : index
    %c0_9 = arith.constant 0 : index
    %c0_10 = arith.constant 0 : index
    %14 = vector.load %arg8[%c0_7, %c0_8, %c0_9, %c0_10] : memref<1x16x16x128xf32, #tpu.memory_space<vmem>>, vector<1x16x16x128xf32>
    %15 = vector.shape_cast %14 : vector<1x16x16x128xf32> to vector<16x16x128xf32>
    %16 = vector.shape_cast %13 : vector<16x16x128xf32> to vector<1x16x16x128xf32>
    tpu.vector_store %arg8[%c0_7, %c0_8, %c0_9, %c0_10], %16 {strides = array<i32>} : memref<1x16x16x128xf32, #tpu.memory_space<vmem>>, vector<1x16x16x128xf32>,
    %c0_11 = arith.constant 0 : index
    %c0_12 = arith.constant 0 : index
    %17 = vector.load %arg4[%c0_11, %c0_12] : memref<16x256xf32, #tpu.memory_space<vmem>>, vector<16x256xf32>
    %cst_13 = arith.constant dense<0.000000e+00> : vector<16x128xf32>
    %18 = tpu.matmul %17, %7, %cst_13 {dimension_numbers = #tpu.dot_dimension_numbers<[1], [0], [0], [1], [0, 0, 1, 1], [], []>, precision = #tpu.contract_precision<fp32>} : vector<16x256xf32>, vector<256x128xf32>, vector<16x128xf32> -> vector<16x128xf32>
    %c0_14 = arith.constant 0 : index
    %c0_15 = arith.constant 0 : index
    %19 = vector.load %arg5[%c0_14, %c0_15] : memref<16x1xf32, #tpu.memory_space<vmem>>, vector<16x1xf32>
    %20 = vector.broadcast %19 : vector<16x1xf32> to vector<16x128xf32>
    %21 = arith.addf %18, %20 : vector<16x128xf32>
    %22 = vector.extract_strided_slice %21 {offsets = [0, 0], sizes = [4, 128], strides = [1, 1]} : vector<16x128xf32> to vector<4x128xf32>
    %c1_i32 = arith.constant 1 : i32
    %23 = tpu.dynamic_rotate %22 by %c1_i32 dim 1 : vector<4x128xf32>, i32 -> vector<4x128xf32>
    %cst_16 = arith.constant 0.000000e+00 : f32
    %24 = vector.broadcast %cst_16 : f32 to vector<4x128xf32>
    %25 = arith.select %2, %23, %24 : vector<4x128xi1>, vector<4x128xf32>
    %c127_i32_17 = arith.constant 127 : i32
    %26 = tpu.dynamic_rotate %22 by %c127_i32_17 dim 1 : vector<4x128xf32>, i32 -> vector<4x128xf32>
    %cst_18 = arith.constant 0.000000e+00 : f32
    %27 = vector.broadcast %cst_18 : f32 to vector<4x128xf32>
    %28 = arith.select %4, %26, %27 : vector<4x128xi1>, vector<4x128xf32>
    %cst_19 = arith.constant 0.000000e+00 : f32
    %29 = vector.broadcast %cst_19 : f32 to vector<4x128xf32>
    %30 = tpu.concatenate %25, %22, %28, %29 in 0 : vector<4x128xf32>, vector<4x128xf32>, vector<4x128xf32>, vector<4x128xf32> -> vector<16x128xf32>
    %c0_20 = arith.constant 0 : index
    %c0_21 = arith.constant 0 : index
    %c0_22 = arith.constant 0 : index
    %31 = vector.load %arg6[%c0_20, %c0_21, %c0_22] : memref<4x8x16xf32, #tpu.memory_space<vmem>>, vector<1x8x16xf32>
    %32 = vector.shape_cast %31 : vector<1x8x16xf32> to vector<8x16xf32>
    %cst_23 = arith.constant dense<0.000000e+00> : vector<8x128xf32>
    %33 = tpu.matmul %32, %30, %cst_23 {dimension_numbers = #tpu.dot_dimension_numbers<[1], [0], [0], [1], [0, 0, 1, 1], [], []>, precision = #tpu.contract_precision<fp32>} : vector<8x16xf32>, vector<16x128xf32>, vector<8x128xf32> -> vector<8x128xf32>
    %c0_24 = arith.constant 0 : index
    %c0_25 = arith.constant 0 : index
    %c0_26 = arith.constant 0 : index
    %34 = vector.load %arg7[%c0_24, %c0_25, %c0_26] : memref<4x8x1xf32, #tpu.memory_space<vmem>>, vector<1x8x1xf32>
    %35 = vector.shape_cast %34 : vector<1x8x1xf32> to vector<8x1xf32>
    %36 = vector.broadcast %35 : vector<8x1xf32> to vector<8x128xf32>
    %37 = arith.addf %33, %36 : vector<8x128xf32>
    %cst_27 = arith.constant 0.000000e+00 : f32
    %38 = vector.broadcast %cst_27 : f32 to vector<8x128xf32>
    %39 = arith.maximumf %37, %38 : vector<8x128xf32>
    %40 = vector.extract_strided_slice %39 {offsets = [0, 0], sizes = [4, 128], strides = [1, 1]} : vector<8x128xf32> to vector<4x128xf32>
    %41 = vector.extract_strided_slice %21 {offsets = [4, 0], sizes = [4, 128], strides = [1, 1]} : vector<16x128xf32> to vector<4x128xf32>
    %42 = arith.addf %41, %40 : vector<4x128xf32>
    %c1_i32_28 = arith.constant 1 : i32
    %43 = tpu.dynamic_rotate %42 by %c1_i32_28 dim 1 : vector<4x128xf32>, i32 -> vector<4x128xf32>
    %cst_29 = arith.constant 0.000000e+00 : f32
    %44 = vector.broadcast %cst_29 : f32 to vector<4x128xf32>
    %45 = arith.select %2, %43, %44 : vector<4x128xi1>, vector<4x128xf32>
    %c127_i32_30 = arith.constant 127 : i32
    %46 = tpu.dynamic_rotate %42 by %c127_i32_30 dim 1 : vector<4x128xf32>, i32 -> vector<4x128xf32>
    %cst_31 = arith.constant 0.000000e+00 : f32
    %47 = vector.broadcast %cst_31 : f32 to vector<4x128xf32>
    %48 = arith.select %4, %46, %47 : vector<4x128xi1>, vector<4x128xf32>
    %cst_32 = arith.constant 0.000000e+00 : f32
    %49 = vector.broadcast %cst_32 : f32 to vector<4x128xf32>
    %50 = tpu.concatenate %45, %42, %48, %49 in 0 : vector<4x128xf32>, vector<4x128xf32>, vector<4x128xf32>, vector<4x128xf32> -> vector<16x128xf32>
    %c1 = arith.constant 1 : index
    %c0_33 = arith.constant 0 : index
    %c0_34 = arith.constant 0 : index
    %51 = vector.load %arg6[%c1, %c0_33, %c0_34] : memref<4x8x16xf32, #tpu.memory_space<vmem>>, vector<1x8x16xf32>
    %52 = vector.shape_cast %51 : vector<1x8x16xf32> to vector<8x16xf32>
    %cst_35 = arith.constant dense<0.000000e+00> : vector<8x128xf32>
    %53 = tpu.matmul %52, %50, %cst_35 {dimension_numbers = #tpu.dot_dimension_numbers<[1], [0], [0], [1], [0, 0, 1, 1], [], []>, precision = #tpu.contract_precision<fp32>} : vector<8x16xf32>, vector<16x128xf32>, vector<8x128xf32> -> vector<8x128xf32>
    %c1_36 = arith.constant 1 : index
    %c0_37 = arith.constant 0 : index
    %c0_38 = arith.constant 0 : index
    %54 = vector.load %arg7[%c1_36, %c0_37, %c0_38] : memref<4x8x1xf32, #tpu.memory_space<vmem>>, vector<1x8x1xf32>
    %55 = vector.shape_cast %54 : vector<1x8x1xf32> to vector<8x1xf32>
    %56 = vector.broadcast %55 : vector<8x1xf32> to vector<8x128xf32>
    %57 = arith.addf %53, %56 : vector<8x128xf32>
    %cst_39 = arith.constant 0.000000e+00 : f32
    %58 = vector.broadcast %cst_39 : f32 to vector<8x128xf32>
    %59 = arith.maximumf %57, %58 : vector<8x128xf32>
    %60 = vector.extract_strided_slice %59 {offsets = [0, 0], sizes = [4, 128], strides = [1, 1]} : vector<8x128xf32> to vector<4x128xf32>
    %61 = vector.extract_strided_slice %21 {offsets = [8, 0], sizes = [4, 128], strides = [1, 1]} : vector<16x128xf32> to vector<4x128xf32>
    %62 = arith.addf %61, %60 : vector<4x128xf32>
    %c1_i32_40 = arith.constant 1 : i32
    %63 = tpu.dynamic_rotate %62 by %c1_i32_40 dim 1 : vector<4x128xf32>, i32 -> vector<4x128xf32>
    %cst_41 = arith.constant 0.000000e+00 : f32
    %64 = vector.broadcast %cst_41 : f32 to vector<4x128xf32>
    %65 = arith.select %2, %63, %64 : vector<4x128xi1>, vector<4x128xf32>
    %c127_i32_42 = arith.constant 127 : i32
    %66 = tpu.dynamic_rotate %62 by %c127_i32_42 dim 1 : vector<4x128xf32>, i32 -> vector<4x128xf32>
    %cst_43 = arith.constant 0.000000e+00 : f32
    %67 = vector.broadcast %cst_43 : f32 to vector<4x128xf32>
    %68 = arith.select %4, %66, %67 : vector<4x128xi1>, vector<4x128xf32>
    %cst_44 = arith.constant 0.000000e+00 : f32
    %69 = vector.broadcast %cst_44 : f32 to vector<4x128xf32>
    %70 = tpu.concatenate %65, %62, %68, %69 in 0 : vector<4x128xf32>, vector<4x128xf32>, vector<4x128xf32>, vector<4x128xf32> -> vector<16x128xf32>
    %c2 = arith.constant 2 : index
    %c0_45 = arith.constant 0 : index
    %c0_46 = arith.constant 0 : index
    %71 = vector.load %arg6[%c2, %c0_45, %c0_46] : memref<4x8x16xf32, #tpu.memory_space<vmem>>, vector<1x8x16xf32>
    %72 = vector.shape_cast %71 : vector<1x8x16xf32> to vector<8x16xf32>
    %cst_47 = arith.constant dense<0.000000e+00> : vector<8x128xf32>
    %73 = tpu.matmul %72, %70, %cst_47 {dimension_numbers = #tpu.dot_dimension_numbers<[1], [0], [0], [1], [0, 0, 1, 1], [], []>, precision = #tpu.contract_precision<fp32>} : vector<8x16xf32>, vector<16x128xf32>, vector<8x128xf32> -> vector<8x128xf32>
    %c2_48 = arith.constant 2 : index
    %c0_49 = arith.constant 0 : index
    %c0_50 = arith.constant 0 : index
    %74 = vector.load %arg7[%c2_48, %c0_49, %c0_50] : memref<4x8x1xf32, #tpu.memory_space<vmem>>, vector<1x8x1xf32>
    %75 = vector.shape_cast %74 : vector<1x8x1xf32> to vector<8x1xf32>
    %76 = vector.broadcast %75 : vector<8x1xf32> to vector<8x128xf32>
    %77 = arith.addf %73, %76 : vector<8x128xf32>
    %cst_51 = arith.constant 0.000000e+00 : f32
    %78 = vector.broadcast %cst_51 : f32 to vector<8x128xf32>
    %79 = arith.maximumf %77, %78 : vector<8x128xf32>
    %80 = vector.extract_strided_slice %79 {offsets = [0, 0], sizes = [4, 128], strides = [1, 1]} : vector<8x128xf32> to vector<4x128xf32>
    %81 = vector.extract_strided_slice %21 {offsets = [12, 0], sizes = [4, 128], strides = [1, 1]} : vector<16x128xf32> to vector<4x128xf32>
    %82 = arith.addf %81, %80 : vector<4x128xf32>
    %c1_i32_52 = arith.constant 1 : i32
    %83 = tpu.dynamic_rotate %82 by %c1_i32_52 dim 1 : vector<4x128xf32>, i32 -> vector<4x128xf32>
    %cst_53 = arith.constant 0.000000e+00 : f32
    %84 = vector.broadcast %cst_53 : f32 to vector<4x128xf32>
    %85 = arith.select %2, %83, %84 : vector<4x128xi1>, vector<4x128xf32>
    %c127_i32_54 = arith.constant 127 : i32
    %86 = tpu.dynamic_rotate %82 by %c127_i32_54 dim 1 : vector<4x128xf32>, i32 -> vector<4x128xf32>
    %cst_55 = arith.constant 0.000000e+00 : f32
    %87 = vector.broadcast %cst_55 : f32 to vector<4x128xf32>
    %88 = arith.select %4, %86, %87 : vector<4x128xi1>, vector<4x128xf32>
    %cst_56 = arith.constant 0.000000e+00 : f32
    %89 = vector.broadcast %cst_56 : f32 to vector<4x128xf32>
    %90 = tpu.concatenate %85, %82, %88, %89 in 0 : vector<4x128xf32>, vector<4x128xf32>, vector<4x128xf32>, vector<4x128xf32> -> vector<16x128xf32>
    %c3 = arith.constant 3 : index
    %c0_57 = arith.constant 0 : index
    %c0_58 = arith.constant 0 : index
    %91 = vector.load %arg6[%c3, %c0_57, %c0_58] : memref<4x8x16xf32, #tpu.memory_space<vmem>>, vector<1x8x16xf32>
    %92 = vector.shape_cast %91 : vector<1x8x16xf32> to vector<8x16xf32>
    %cst_59 = arith.constant dense<0.000000e+00> : vector<8x128xf32>
    %93 = tpu.matmul %92, %90, %cst_59 {dimension_numbers = #tpu.dot_dimension_numbers<[1], [0], [0], [1], [0, 0, 1, 1], [], []>, precision = #tpu.contract_precision<fp32>} : vector<8x16xf32>, vector<16x128xf32>, vector<8x128xf32> -> vector<8x128xf32>
    %c3_60 = arith.constant 3 : index
    %c0_61 = arith.constant 0 : index
    %c0_62 = arith.constant 0 : index
    %94 = vector.load %arg7[%c3_60, %c0_61, %c0_62] : memref<4x8x1xf32, #tpu.memory_space<vmem>>, vector<1x8x1xf32>
    %95 = vector.shape_cast %94 : vector<1x8x1xf32> to vector<8x1xf32>
    %96 = vector.broadcast %95 : vector<8x1xf32> to vector<8x128xf32>
    %97 = arith.addf %93, %96 : vector<8x128xf32>
    %cst_63 = arith.constant 0.000000e+00 : f32
    %98 = vector.broadcast %cst_63 : f32 to vector<8x128xf32>
    %99 = arith.maximumf %97, %98 : vector<8x128xf32>
    %100 = vector.extract_strided_slice %99 {offsets = [0, 0], sizes = [4, 128], strides = [1, 1]} : vector<8x128xf32> to vector<4x128xf32>
    %101 = tpu.concatenate %40, %60, %80, %100 in 0 : vector<4x128xf32>, vector<4x128xf32>, vector<4x128xf32>, vector<4x128xf32> -> vector<16x128xf32>
    %c0_64 = arith.constant 0 : index
    %c0_65 = arith.constant 0 : index
    %c0_66 = arith.constant 0 : index
    %c0_67 = arith.constant 0 : index
    %102 = vector.load %arg8[%c0_64, %c0_65, %c0_66, %c0_67] : memref<1x16x16x128xf32, #tpu.memory_space<vmem>>, vector<1x16x16x128xf32>
    %103 = vector.shape_cast %102 : vector<1x16x16x128xf32> to vector<16x16x128xf32>
    %104 = vector.shape_cast %101 : vector<16x128xf32> to vector<16x1x128xf32>
    %105 = vector.broadcast %104 : vector<16x1x128xf32> to vector<16x16x128xf32>
    %106 = arith.addf %103, %105 : vector<16x16x128xf32>
    %cst_68 = arith.constant 0.000000e+00 : f32
    %107 = vector.broadcast %cst_68 : f32 to vector<16x16x128xf32>
    %108 = arith.maximumf %106, %107 : vector<16x16x128xf32>
    %c0_69 = arith.constant 0 : index
    %c0_70 = arith.constant 0 : index
    %c0_71 = arith.constant 0 : index
    %c0_72 = arith.constant 0 : index
    %109 = vector.load %arg8[%c0_69, %c0_70, %c0_71, %c0_72] : memref<1x16x16x128xf32, #tpu.memory_space<vmem>>, vector<1x16x16x128xf32>
    %110 = vector.shape_cast %109 : vector<1x16x16x128xf32> to vector<16x16x128xf32>
    %111 = vector.shape_cast %108 : vector<16x16x128xf32> to vector<1x16x16x128xf32>
    tpu.vector_store %arg8[%c0_69, %c0_70, %c0_71, %c0_72], %111 {strides = array<i32>} : memref<1x16x16x128xf32, #tpu.memory_space<vmem>>, vector<1x16x16x128xf32>,
    return
  }
  func.func @transform_0(%arg0: i32) -> (i32, i32, i32, i32) {
    %c0_i32 = arith.constant 0 : i32
    %c0_i32_0 = arith.constant 0 : i32
    %c0_i32_1 = arith.constant 0 : i32
    %c0_i32_2 = arith.constant 0 : i32
    return %arg0, %c0_i32, %c0_i32_0, %c0_i32_1 : i32, i32, i32, i32
  }
  func.func @transform_1(%arg0: i32) -> (i32, i32) {
    %c0_i32 = arith.constant 0 : i32
    %c0_i32_0 = arith.constant 0 : i32
    %c0_i32_1 = arith.constant 0 : i32
    return %c0_i32, %c0_i32_0 : i32, i32
  }
  func.func @transform_2(%arg0: i32) -> (i32, i32) {
    %c0_i32 = arith.constant 0 : i32
    %c0_i32_0 = arith.constant 0 : i32
    %c0_i32_1 = arith.constant 0 : i32
    return %c0_i32, %c0_i32_0 : i32, i32
  }
  func.func @transform_3(%arg0: i32) -> (i32, i32) {
    %c0_i32 = arith.constant 0 : i32
    %c0_i32_0 = arith.constant 0 : i32
    %c0_i32_1 = arith.constant 0 : i32
    return %c0_i32, %c0_i32_0 : i32, i32
  }
  func.func @transform_4(%arg0: i32) -> (i32, i32) {
    %c0_i32 = arith.constant 0 : i32
    %c0_i32_0 = arith.constant 0 : i32
    %c0_i32_1 = arith.constant 0 : i32
    return %c0_i32, %c0_i32_0 : i32, i32
  }
  func.func @transform_5(%arg0: i32) -> (i32, i32, i32) {
    %c0_i32 = arith.constant 0 : i32
    %c0_i32_0 = arith.constant 0 : i32
    %c0_i32_1 = arith.constant 0 : i32
    %c0_i32_2 = arith.constant 0 : i32
    return %c0_i32, %c0_i32_0, %c0_i32_1 : i32, i32, i32
  }
  func.func @transform_6(%arg0: i32) -> (i32, i32, i32) {
    %c0_i32 = arith.constant 0 : i32
    %c0_i32_0 = arith.constant 0 : i32
    %c0_i32_1 = arith.constant 0 : i32
    %c0_i32_2 = arith.constant 0 : i32
    return %c0_i32, %c0_i32_0, %c0_i32_1 : i32, i32, i32
  }
  func.func @transform_7(%arg0: i32) -> (i32, i32, i32, i32) {
    %c0_i32 = arith.constant 0 : i32
    %c0_i32_0 = arith.constant 0 : i32
    %c0_i32_1 = arith.constant 0 : i32
    %c0_i32_2 = arith.constant 0 : i32
    return %arg0, %c0_i32, %c0_i32_0, %c0_i32_1 : i32, i32, i32, i32
  }
}

</mosaic_0001>

<llo_original>
// kernel: squeeze.5
$region0: #{squeeze.5}
  %s0 = inlined_call_operand.vmem [shape: f32[256], index: 0, kind: input, shape index: {}]
  %s1 = inlined_call_operand.vmem [shape: f32[16,16], index: 1, kind: output, shape index: {}]
  $region1: #{squeeze.5} parent=0
    #allocation0 [shape = 'u8[4096]{0}', space=vmem, size = 0x1000, scoped, tag = 'scoped mem for input reshape']
    %s3 = sshllo.u32 0, 2
    %v4 = vld [vmem:[%s0] sm:%s3]
    %5 = vst [vmem:[#allocation0] sm:%s3] %v4
    %v6 = vld [vmem:[#allocation0] sm:$0x3]
    %vm7 = vcmask 130048
    %8 = vst.msk [vmem:[%s1] ss:$8 sm:$0x3] %vm7, %v6
    %v9 = vld [vmem:[#allocation0] sm:$0x3]
    %10 = vrot.lane.b32.xlu0 %v9, 112
    %v11 = vpop.permute.xlu0 %10
    %vm12 = vcmask 130048
    %s13 = scalar_lea.vmem %s1, 1
    %14 = vst.msk [vmem:[%s13] ss:$8 sm:$0x3] %vm12, %v11
    %v15 = vld [vmem:[#allocation0] sm:$0x3]
    %16 = vrot.lane.b32.xlu0 %v15, 96
    %v17 = vpop.permute.xlu0 %16
    %vm18 = vcmask 130048
    %s19 = scalar_lea.vmem %s1, 2
    %20 = vst.msk [vmem:[%s19] ss:$8 sm:$0x3] %vm18, %v17
    %v21 = vld [vmem:[#allocation0] sm:$0x3]
    %22 = vrot.lane.b32.xlu0 %v21, 80
    %v23 = vpop.permute.xlu0 %22
    %vm24 = vcmask 130048
    %s25 = scalar_lea.vmem %s1, 3
    %26 = vst.msk [vmem:[%s25] ss:$8 sm:$0x3] %vm24, %v23
    %v27 = vld [vmem:[#allocation0] sm:$0x3]
    %28 = vrot.lane.b32.xlu0 %v27, 64
    %v29 = vpop.permute.xlu0 %28
    %vm30 = vcmask 130048
    %s31 = scalar_lea.vmem %s1, 4
    %32 = vst.msk [vmem:[%s31] ss:$8 sm:$0x3] %vm30, %v29
    %v33 = vld [vmem:[#allocation0] sm:$0x3]
    %34 = vrot.lane.b32.xlu0 %v33, 48
    %v35 = vpop.permute.xlu0 %34
    %vm36 = vcmask 130048
    %s37 = scalar_lea.vmem %s1, 5
    %38 = vst.msk [vmem:[%s37] ss:$8 sm:$0x3] %vm36, %v35
    %v39 = vld [vmem:[#allocation0] sm:$0x3]
    %40 = vrot.lane.b32.xlu0 %v39, 32
    %v41 = vpop.permute.xlu0 %40
    %vm42 = vcmask 130048
    %s43 = scalar_lea.vmem %s1, 6
    %44 = vst.msk [vmem:[%s43] ss:$8 sm:$0x3] %vm42, %v41
    %v45 = vld [vmem:[#allocation0] sm:$0x3]
    %46 = vrot.lane.b32.xlu0 %v45, 16
    %v47 = vpop.permute.xlu0 %46
    %vm48 = vcmask 130048
    %s49 = scalar_lea.vmem %s1, 7
    %50 = vst.msk [vmem:[%s49] ss:$8 sm:$0x3] %vm48, %v47

// kernel: normal_block_res2.1
$region0: #{normal_block_res2.1}
  #allocation0 [shape = 'u32[]', space=smem, size = 0x4, offset = 0x4, fixed_abs, tag = 'smem constant byte address 0x4 - core index']
  #allocation1 [shape = 'u32[144,128]{1,0:T(1,128)}', space=vmem, size = 0x12000, scoped, tag = 'internal scratch']
  %s0 = inlined_call_operand.vmem [shape: f32[2,16,16,128], index: 0, kind: input, shape index: {}]
  %s1 = inlined_call_operand.vmem [shape: f32[256,256], index: 1, kind: input, shape index: {}]
  %s2 = inlined_call_operand.vmem [shape: f32[256,1], index: 2, kind: input, shape index: {}]
  %s3 = inlined_call_operand.vmem [shape: f32[16,256], index: 3, kind: input, shape index: {}]
  %s4 = inlined_call_operand.vmem [shape: f32[16,1], index: 4, kind: input, shape index: {}]
  %s5 = inlined_call_operand.vmem [shape: f32[4,8,16], index: 5, kind: input, shape index: {}]
  %s6 = inlined_call_operand.vmem [shape: f32[4,8,1], index: 6, kind: input, shape index: {}]
  %s7 = inlined_call_operand.hbm [shape: f32[2,16,16,128], index: 7, kind: output, shape index: {}]
  %s8 = sld [smem:[#allocation0]]
  $region61: #{normal_block_res2.1} parent=0
    _
  %s10 = ssub.s32 1, %s8
  %s11 = scalar_select 0, %s10, %s8
  $region1: #{normal_block_res2.1} parent=0
    #allocation2 [shape = 'u8[262144]{0}', space=vmem, size = 0x40000, scoped, tag = 'output window, operand 0']
    #allocation3 [shape = 's32[2]{0}', space=sflag, size = 0x8, scoped, tag = 'scoped memory for normal_block_res2.1']
    %12 = vsyncpa [#allocation3], 0
    %s13 = scalar_lea.sflag [#allocation3], 1
    %14 = vsyncpa %s13, 0
    loop: start=0, step=1, limit=4
    $region2: #{normal_block_res2.1} parent=1 // loop_pre_header
      _
    $region3: #{normal_block_res2.1} parent=1 // loop_header
      %s16 = sphi 0, %s20
      %p17 = scmp.ge.s32.totalorder %s16, 4
      %s26 = sphi 0, %s28
      %s29 = sphi 0, %s26
      %s30 = sphi 0, %s29
      %s46 = sphi 0, %s30
      %s50 = sphi 0, %s50
      %s52 = sphi 0, %s50
      %s53 = sphi 0, %s52
      %s67 = sphi 0, %s53
      %s71 = sphi 0, %s71
      %s73 = sphi 0, %s71
      %s74 = sphi 0, %s73
      %s88 = sphi 0, %s74
      %s92 = sphi 0, %s92
      %s94 = sphi 0, %s92
      %s95 = sphi 0, %s94
      %s109 = sphi 0, %s95
      %s113 = sphi 0, %s113
      %s115 = sphi 0, %s113
      %s116 = sphi 0, %s115
      %s130 = sphi 0, %s116
      %s134 = sphi 0, %s134
      %s136 = sphi 0, %s134
      %s137 = sphi 0, %s136
      %s151 = sphi 0, %s137
      %s155 = sphi 0, %s155
      %s157 = sphi 0, %s155
      %s158 = sphi 0, %s157
      %s172 = sphi 0, %s158
      %s178 = sphi 0, %s180
      %s181 = sphi 0, %s178
      %s182 = sphi 0, %s181
      %s198 = sphi 0, %s182
    $region4: #{normal_block_res2.1} parent=1 // loop_header_branch
      %19 = sbr.rel (%p17) target = $region8
    $region5: #{normal_block_res2.1} parent=1 // loop_body
      %s21 = ssub.s32 %s16, 1
      %s22 = ssub.s32 %s16, 2
      %s23 = sadd.s32 %s16, 1
      %s24 = ssub.s32 %s16, %s23
      %p25 = scmp.eq.s32.totalorder %s24, 0
      %s27 = sadd.s32 %s26, 1
      %s28 = scalar_select %p25, %s26, %s27
      %p31 = pneg %p25
      %p32 = scmp.eq.s32.totalorder %s16, 1
      %p33 = por %p31, %p32
      %p34 = scmp.ne.s32.totalorder %s26, %s29
      %p35 = scmp.eq.s32.totalorder %s16, 0
      %p36 = por %p34, %p35
      %p37 = scmp.ne.s32.totalorder %s26, %s29
      %p38 = scmp.eq.s32.totalorder %s21, 1
      %p39 = por %p37, %p38
      %p40 = scmp.ne.s32.totalorder %s29, %s30
      %p41 = scmp.eq.s32.totalorder %s21, 0
      %p42 = por %p40, %p41
      %p43 = scmp.ne.s32.totalorder %s29, %s30
      %p44 = scmp.eq.s32.totalorder %s22, 1
      %p45 = por %p43, %p44
      %p47 = scmp.ne.s32.totalorder %s30, %s46
      %p48 = scmp.eq.s32.totalorder %s22, 0
      %p49 = por %p47, %p48
      %s51 = sadd.s32 %s50, 1
      %p54 = scmp.eq.s32.totalorder %s16, 1
      %p55 = scmp.ne.s32.totalorder %s50, %s52
      %p56 = scmp.eq.s32.totalorder %s16, 0
      %p57 = por %p55, %p56
      %p58 = scmp.ne.s32.totalorder %s50, %s52
      %p59 = scmp.eq.s32.totalorder %s21, 1
      %p60 = por %p58, %p59
      %p61 = scmp.ne.s32.totalorder %s52, %s53
      %p62 = scmp.eq.s32.totalorder %s21, 0
      %p63 = por %p61, %p62
      %p64 = scmp.ne.s32.totalorder %s52, %s53
      %p65 = scmp.eq.s32.totalorder %s22, 1
      %p66 = por %p64, %p65
      %p68 = scmp.ne.s32.totalorder %s53, %s67
      %p69 = scmp.eq.s32.totalorder %s22, 0
      %p70 = por %p68, %p69
      %s72 = sadd.s32 %s71, 1
      %p75 = scmp.eq.s32.totalorder %s16, 1
      %p76 = scmp.ne.s32.totalorder %s71, %s73
      %p77 = scmp.eq.s32.totalorder %s16, 0
      %p78 = por %p76, %p77
      %p79 = scmp.ne.s32.totalorder %s71, %s73
      %p80 = scmp.eq.s32.totalorder %s21, 1
      %p81 = por %p79, %p80
      %p82 = scmp.ne.s32.totalorder %s73, %s74
      %p83 = scmp.eq.s32.totalorder %s21, 0
      %p84 = por %p82, %p83
      %p85 = scmp.ne.s32.totalorder %s73, %s74
      %p86 = scmp.eq.s32.totalorder %s22, 1
      %p87 = por %p85, %p86
      %p89 = scmp.ne.s32.totalorder %s74, %s88
      %p90 = scmp.eq.s32.totalorder %s22, 0
      %p91 = por %p89, %p90
      %s93 = sadd.s32 %s92, 1
      %p96 = scmp.eq.s32.totalorder %s16, 1
      %p97 = scmp.ne.s32.totalorder %s92, %s94
      %p98 = scmp.eq.s32.totalorder %s16, 0
      %p99 = por %p97, %p98
      %p100 = scmp.ne.s32.totalorder %s92, %s94
      %p101 = scmp.eq.s32.totalorder %s21, 1
      %p102 = por %p100, %p101
      %p103 = scmp.ne.s32.totalorder %s94, %s95
      %p104 = scmp.eq.s32.totalorder %s21, 0
      %p105 = por %p103, %p104
      %p106 = scmp.ne.s32.totalorder %s94, %s95
      %p107 = scmp.eq.s32.totalorder %s22, 1
      %p108 = por %p106, %p107
      %p110 = scmp.ne.s32.totalorder %s95, %s109
      %p111 = scmp.eq.s32.totalorder %s22, 0
      %p112 = por %p110, %p111
      %s114 = sadd.s32 %s113, 1
      %p117 = scmp.eq.s32.totalorder %s16, 1
      %p118 = scmp.ne.s32.totalorder %s113, %s115
      %p119 = scmp.eq.s32.totalorder %s16, 0
      %p120 = por %p118, %p119
      %p121 = scmp.ne.s32.totalorder %s113, %s115
      %p122 = scmp.eq.s32.totalorder %s21, 1
      %p123 = por %p121, %p122
      %p124 = scmp.ne.s32.totalorder %s115, %s116
      %p125 = scmp.eq.s32.totalorder %s21, 0
      %p126 = por %p124, %p125
      %p127 = scmp.ne.s32.totalorder %s115, %s116
      %p128 = scmp.eq.s32.totalorder %s22, 1
      %p129 = por %p127, %p128
      %p131 = scmp.ne.s32.totalorder %s116, %s130
      %p132 = scmp.eq.s32.totalorder %s22, 0
      %p133 = por %p131, %p132
      %s135 = sadd.s32 %s134, 1
      %p138 = scmp.eq.s32.totalorder %s16, 1
      %p139 = scmp.ne.s32.totalorder %s134, %s136
      %p140 = scmp.eq.s32.totalorder %s16, 0
      %p141 = por %p139, %p140
      %p142 = scmp.ne.s32.totalorder %s134, %s136
      %p143 = scmp.eq.s32.totalorder %s21, 1
      %p144 = por %p142, %p143
      %p145 = scmp.ne.s32.totalorder %s136, %s137
      %p146 = scmp.eq.s32.totalorder %s21, 0
      %p147 = por %p145, %p146
      %p148 = scmp.ne.s32.totalorder %s136, %s137
      %p149 = scmp.eq.s32.totalorder %s22, 1
      %p150 = por %p148, %p149
      %p152 = scmp.ne.s32.totalorder %s137, %s151
      %p153 = scmp.eq.s32.totalorder %s22, 0
      %p154 = por %p152, %p153
      %s156 = sadd.s32 %s155, 1
      %p159 = scmp.eq.s32.totalorder %s16, 1
      %p160 = scmp.ne.s32.totalorder %s155, %s157
      %p161 = scmp.eq.s32.totalorder %s16, 0
      %p162 = por %p160, %p161
      %p163 = scmp.ne.s32.totalorder %s155, %s157
      %p164 = scmp.eq.s32.totalorder %s21, 1
      %p165 = por %p163, %p164
      %p166 = scmp.ne.s32.totalorder %s157, %s158
      %p167 = scmp.eq.s32.totalorder %s21, 0
      %p168 = por %p166, %p167
      %p169 = scmp.ne.s32.totalorder %s157, %s158
      %p170 = scmp.eq.s32.totalorder %s22, 1
      %p171 = por %p169, %p170
      %p173 = scmp.ne.s32.totalorder %s158, %s172
      %p174 = scmp.eq.s32.totalorder %s22, 0
      %p175 = por %p173, %p174
      %s176 = ssub.s32 %s16, %s23
      %p177 = scmp.eq.s32.totalorder %s176, 0
      %s179 = sadd.s32 %s178, 1
      %s180 = scalar_select %p177, %s178, %s179
      %p183 = pneg %p177
      %p184 = scmp.eq.s32.totalorder %s16, 1
      %p185 = por %p183, %p184
      %p186 = scmp.ne.s32.totalorder %s178, %s181
      %p187 = scmp.eq.s32.totalorder %s16, 0
      %p188 = por %p186, %p187
      %p189 = scmp.ne.s32.totalorder %s178, %s181
      %p190 = scmp.eq.s32.totalorder %s21, 1
      %p191 = por %p189, %p190
      %p192 = scmp.ne.s32.totalorder %s181, %s182
      %p193 = scmp.eq.s32.totalorder %s21, 0
      %p194 = por %p192, %p193
      %p195 = scmp.ne.s32.totalorder %s181, %s182
      %p196 = scmp.eq.s32.totalorder %s22, 1
      %p197 = por %p195, %p196
      %p199 = scmp.ne.s32.totalorder %s182, %s198
      %p200 = scmp.eq.s32.totalorder %s22, 0
      %p201 = por %p199, %p200
      %p202 = scmp.le.s32.totalorder 1, %s16
      %p203 = scmp.lt.s32.totalorder %s16, 3
      %p204 = pnand %p202, %p203
      %p205 = pneg %p204
      // Predicated region
      $region9: #{normal_block_res2.1} parent=5 // pred_check
        _
      $region10: #{normal_block_res2.1} parent=5 // pred_check_branch
        %207 = sbr.rel (%p204) target = $region12
      $region11: #{normal_block_res2.1} parent=5 // pred_region
        %s208 = ssub.s32 %s16, 1
        // Predicated region
        $region13: #{normal_block_res2.1} parent=11 // pred_check
          %p209 = pneg %p63
        $region14: #{normal_block_res2.1} parent=11 // pred_check_branch
          %211 = sbr.rel (%p209) target = $region16
        $region15: #{normal_block_res2.1} parent=11 // pred_region
          _
        $region16: #{normal_block_res2.1} parent=11 // pred_fallthru
          _
        // Predicated region
        $region17: #{normal_block_res2.1} parent=11 // pred_check
          %p212 = pneg %p84
        $region18: #{normal_block_res2.1} parent=11 // pred_check_branch
          %214 = sbr.rel (%p212) target = $region20
        $region19: #{normal_block_res2.1} parent=11 // pred_region
          _
        $region20: #{normal_block_res2.1} parent=11 // pred_fallthru
          _
        // Predicated region
        $region21: #{normal_block_res2.1} parent=11 // pred_check
          %p215 = pneg %p105
        $region22: #{normal_block_res2.1} parent=11 // pred_check_branch
          %217 = sbr.rel (%p215) target = $region24
        $region23: #{normal_block_res2.1} parent=11 // pred_region
          _
        $region24: #{normal_block_res2.1} parent=11 // pred_fallthru
          _
        // Predicated region
        $region25: #{normal_block_res2.1} parent=11 // pred_check
          %p218 = pneg %p126
        $region26: #{normal_block_res2.1} parent=11 // pred_check_branch
          %220 = sbr.rel (%p218) target = $region28
        $region27: #{normal_block_res2.1} parent=11 // pred_region
          _
        $region28: #{normal_block_res2.1} parent=11 // pred_fallthru
          _
        // Predicated region
        $region29: #{normal_block_res2.1} parent=11 // pred_check
          %p221 = pneg %p147
        $region30: #{normal_block_res2.1} parent=11 // pred_check_branch
          %223 = sbr.rel (%p221) target = $region32
        $region31: #{normal_block_res2.1} parent=11 // pred_region
          _
        $region32: #{normal_block_res2.1} parent=11 // pred_fallthru
          _
        // Predicated region
        $region33: #{normal_block_res2.1} parent=11 // pred_check
          %p224 = pneg %p168
        $region34: #{normal_block_res2.1} parent=11 // pred_check_branch
          %226 = sbr.rel (%p224) target = $region36
        $region35: #{normal_block_res2.1} parent=11 // pred_region
          _
        $region36: #{normal_block_res2.1} parent=11 // pred_fallthru
          _
      $region12: #{normal_block_res2.1} parent=5 // pred_fallthru
        _
      %p227 = scmp.lt.s32.totalorder %s16, 2
      // Predicated region
      $region37: #{normal_block_res2.1} parent=5 // pred_check
        %p228 = pneg %p227
      $region38: #{normal_block_res2.1} parent=5 // pred_check_branch
        %230 = sbr.rel (%p228) target = $region40
      $region39: #{normal_block_res2.1} parent=5 // pred_region
        // Predicated region
        $region41: #{normal_block_res2.1} parent=39 // pred_check
          %p231 = pneg %p36
        $region42: #{normal_block_res2.1} parent=39 // pred_check_branch
          %233 = sbr.rel (%p231) target = $region44
        $region43: #{normal_block_res2.1} parent=39 // pred_region
          %p234 = scmp.lt.s32.totalorder %s16, 1
          %s235 = scalar_select %p234, %s16, 1
          %s236 = smul.addr %s235, 32
          %s237 = smul.addr %s236, 8
          %s238 = scalar_lea.vmem %s0, %s237
        $region44: #{normal_block_res2.1} parent=39 // pred_fallthru
          _
      $region40: #{normal_block_res2.1} parent=5 // pred_fallthru
        _
      %p239 = scmp.le.s32.totalorder 1, %s16
      %p240 = scmp.lt.s32.totalorder %s16, 3
      %p241 = pnand %p239, %p240
      %p242 = pneg %p241
      // Predicated region
      $region45: #{normal_block_res2.1} parent=5 // pred_check
        _
      $region46: #{normal_block_res2.1} parent=5 // pred_check_branch
        %244 = sbr.rel (%p241) target = $region48
      $region47: #{normal_block_res2.1} parent=5 // pred_region
        %s245 = ssub.s32 %s16, 1
        %p246 = scmp.lt.s32.totalorder %s21, 1
        %s247 = scalar_select %p246, %s21, 1
        %s248 = smul.addr %s247, 32
        %s249 = smul.addr %s248, 8
        %s250 = scalar_lea.vmem %s0, %s249
        %p251 = pneg %p42
        %p252 = pneg %p39
        %p253 = pneg %p63
        %p254 = pneg %p60
        %p255 = pneg %p84
        %p256 = pneg %p81
        %p257 = pneg %p105
        %p258 = pneg %p102
        %p259 = pneg %p126
        %p260 = pneg %p123
        %p261 = pneg %p147
        %p262 = pneg %p144
        %p263 = pneg %p168
        %p264 = pneg %p165
        %p265 = pneg %p194
        %p266 = pneg %p191
        %s267 = sand.u32 %s181, 1
        %s268 = scalar_lea.sflag [#allocation3], %s267
        %s269 = sand.u32 %s181, 1
        %s270 = smul.addr %s269, 256
        %s271 = scalar_lea.vmem [#allocation2], %s270
        %p272 = scmp.lt.s32.totalorder %s21, 1
        %s273 = scalar_select %p272, %s21, 1
        %s274 = smul.addr %s273, 32
        %s275 = smul.addr %s274, 8
        %s276 = scalar_lea.vmem %s0, %s275
        %v277 = vlaneseq
        %v278 = vand.u32 %v277, 127
        %vm279 = vcmp.ne.s32.totalorder %v278, 0
        %vm280 = vcmp.ne.s32.totalorder %v278, 127
        %v281 = vld [vmem:[%s276] sm:$0xff]
        %v282 = vld [vmem:[%s276 + $0x8] sm:$0xff]
        %v283 = vld [vmem:[%s276 + $0x10] sm:$0xff]
        %v284 = vld [vmem:[%s276 + $0x18] sm:$0xff]
        %v285 = vld [vmem:[%s276 + $0x20] sm:$0xff]
        %v286 = vld [vmem:[%s276 + $0x28] sm:$0xff]
        %v287 = vld [vmem:[%s276 + $0x30] sm:$0xff]
        %v288 = vld [vmem:[%s276 + $0x38] sm:$0xff]
        %v289 = vld [vmem:[%s276 + $0x40] sm:$0xff]
        %v290 = vld [vmem:[%s276 + $0x48] sm:$0xff]
        %v291 = vld [vmem:[%s276 + $0x50] sm:$0xff]
        %v292 = vld [vmem:[%s276 + $0x58] sm:$0xff]
        %v293 = vld [vmem:[%s276 + $0x60] sm:$0xff]
        %v294 = vld [vmem:[%s276 + $0x68] sm:$0xff]
        %v295 = vld [vmem:[%s276 + $0x70] sm:$0xff]
        %v296 = vld [vmem:[%s276 + $0x78] sm:$0xff]
        %v297 = vld [vmem:[%s276 + $0x80] sm:$0xff]
        %v298 = vld [vmem:[%s276 + $0x88] sm:$0xff]
        %v299 = vld [vmem:[%s276 + $0x90] sm:$0xff]
        %v300 = vld [vmem:[%s276 + $0x98] sm:$0xff]
        %v301 = vld [vmem:[%s276 + $0xa0] sm:$0xff]
        %v302 = vld [vmem:[%s276 + $0xa8] sm:$0xff]
        %v303 = vld [vmem:[%s276 + $0xb0] sm:$0xff]
        %v304 = vld [vmem:[%s276 + $0xb8] sm:$0xff]
        %v305 = vld [vmem:[%s276 + $0xc0] sm:$0xff]
        %v306 = vld [vmem:[%s276 + $0xc8] sm:$0xff]
        %v307 = vld [vmem:[%s276 + $0xd0] sm:$0xff]
        %v308 = vld [vmem:[%s276 + $0xd8] sm:$0xff]
        %v309 = vld [vmem:[%s276 + $0xe0] sm:$0xff]
        %v310 = vld [vmem:[%s276 + $0xe8] sm:$0xff]
        %v311 = vld [vmem:[%s276 + $0xf0] sm:$0xff]
        %v312 = vld [vmem:[%s276 + $0xf8] sm:$0xff]
        %v313 = vld [vmem:[%s1] sm:$0xff]
        %v314 = vld [vmem:[%s1 + $0x8] sm:$0xff]
        %v315 = vld [vmem:[%s1 + $0x10] sm:$0xff]
        %v316 = vld [vmem:[%s1 + $0x18] sm:$0xff]
        %v317 = vld [vmem:[%s1 + $0x20] sm:$0xff]
        %v318 = vld [vmem:[%s1 + $0x28] sm:$0xff]
        %v319 = vld [vmem:[%s1 + $0x30] sm:$0xff]
        %v320 = vld [vmem:[%s1 + $0x38] sm:$0xff]
        %v321 = vld [vmem:[%s1 + $0x40] sm:$0xff]
        %v322 = vld [vmem:[%s1 + $0x48] sm:$0xff]
        %v323 = vld [vmem:[%s1 + $0x50] sm:$0xff]
        %v324 = vld [vmem:[%s1 + $0x58] sm:$0xff]
        %v325 = vld [vmem:[%s1 + $0x60] sm:$0xff]
        %v326 = vld [vmem:[%s1 + $0x68] sm:$0xff]
        %v327 = vld [vmem:[%s1 + $0x70] sm:$0xff]
        %v328 = vld [vmem:[%s1 + $0x78] sm:$0xff]
        %v329 = vld [vmem:[%s1 + $0x80] sm:$0xff]
        %v330 = vld [vmem:[%s1 + $0x88] sm:$0xff]
        %v331 = vld [vmem:[%s1 + $0x90] sm:$0xff]
        %v332 = vld [vmem:[%s1 + $0x98] sm:$0xff]
        %v333 = vld [vmem:[%s1 + $0xa0] sm:$0xff]
        %v334 = vld [vmem:[%s1 + $0xa8] sm:$0xff]
        %v335 = vld [vmem:[%s1 + $0xb0] sm:$0xff]
        %v336 = vld [vmem:[%s1 + $0xb8] sm:$0xff]
        %v337 = vld [vmem:[%s1 + $0xc0] sm:$0xff]
        %v338 = vld [vmem:[%s1 + $0xc8] sm:$0xff]
        %v339 = vld [vmem:[%s1 + $0xd0] sm:$0xff]
        %v340 = vld [vmem:[%s1 + $0xd8] sm:$0xff]
        %v341 = vld [vmem:[%s1 + $0xe0] sm:$0xff]
        %v342 = vld [vmem:[%s1 + $0xe8] sm:$0xff]
        %v343 = vld [vmem:[%s1 + $0xf0] sm:$0xff]
        %v344 = vld [vmem:[%s1 + $0xf8] sm:$0xff]
        %v345 = vld [vmem:[%s1 + $0x100] sm:$0xff]
        %v346 = vld [vmem:[%s1 + $0x108] sm:$0xff]
        %v347 = vld [vmem:[%s1 + $0x110] sm:$0xff]
        %v348 = vld [vmem:[%s1 + $0x118] sm:$0xff]
        %v349 = vld [vmem:[%s1 + $0x120] sm:$0xff]
        %v350 = vld [vmem:[%s1 + $0x128] sm:$0xff]
        %v351 = vld [vmem:[%s1 + $0x130] sm:$0xff]
        %v352 = vld [vmem:[%s1 + $0x138] sm:$0xff]
        %v353 = vld [vmem:[%s1 + $0x140] sm:$0xff]
        %v354 = vld [vmem:[%s1 + $0x148] sm:$0xff]
        %v355 = vld [vmem:[%s1 + $0x150] sm:$0xff]
        %v356 = vld [vmem:[%s1 + $0x158] sm:$0xff]
        %v357 = vld [vmem:[%s1 + $0x160] sm:$0xff]
        %v358 = vld [vmem:[%s1 + $0x168] sm:$0xff]
        %v359 = vld [vmem:[%s1 + $0x170] sm:$0xff]
        %v360 = vld [vmem:[%s1 + $0x178] sm:$0xff]
        %v361 = vld [vmem:[%s1 + $0x180] sm:$0xff]
        %v362 = vld [vmem:[%s1 + $0x188] sm:$0xff]
        %v363 = vld [vmem:[%s1 + $0x190] sm:$0xff]
        %v364 = vld [vmem:[%s1 + $0x198] sm:$0xff]
        %v365 = vld [vmem:[%s1 + $0x1a0] sm:$0xff]
        %v366 = vld [vmem:[%s1 + $0x1a8] sm:$0xff]
        %v367 = vld [vmem:[%s1 + $0x1b0] sm:$0xff]
        %v368 = vld [vmem:[%s1 + $0x1b8] sm:$0xff]
        %v369 = vld [vmem:[%s1 + $0x1c0] sm:$0xff]
        %v370 = vld [vmem:[%s1 + $0x1c8] sm:$0xff]
        %v371 = vld [vmem:[%s1 + $0x1d0] sm:$0xff]
        %v372 = vld [vmem:[%s1 + $0x1d8] sm:$0xff]
        %v373 = vld [vmem:[%s1 + $0x1e0] sm:$0xff]
        %v374 = vld [vmem:[%s1 + $0x1e8] sm:$0xff]
        %v375 = vld [vmem:[%s1 + $0x1f0] sm:$0xff]
        %v376 = vld [vmem:[%s1 + $0x1f8] sm:$0xff]
        %v377 = vld [vmem:[%s2] sm:$0xff]
        %v378 = vld [vmem:[%s2 + $0x8] sm:$0xff]
        %v379 = vld [vmem:[%s2 + $0x10] sm:$0xff]
        %v380 = vld [vmem:[%s2 + $0x18] sm:$0xff]
        %v381 = vld [vmem:[%s2 + $0x20] sm:$0xff]
        %v382 = vld [vmem:[%s2 + $0x28] sm:$0xff]
        %v383 = vld [vmem:[%s2 + $0x30] sm:$0xff]
        %v384 = vld [vmem:[%s2 + $0x38] sm:$0xff]
        %v385 = vld [vmem:[%s2 + $0x40] sm:$0xff]
        %v386 = vld [vmem:[%s2 + $0x48] sm:$0xff]
        %v387 = vld [vmem:[%s2 + $0x50] sm:$0xff]
        %v388 = vld [vmem:[%s2 + $0x58] sm:$0xff]
        %v389 = vld [vmem:[%s2 + $0x60] sm:$0xff]
        %v390 = vld [vmem:[%s2 + $0x68] sm:$0xff]
        %v391 = vld [vmem:[%s2 + $0x70] sm:$0xff]
        %v392 = vld [vmem:[%s2 + $0x78] sm:$0xff]
        %v393 = vld [vmem:[%s2 + $0x80] sm:$0xff]
        %v394 = vld [vmem:[%s2 + $0x88] sm:$0xff]
        %v395 = vld [vmem:[%s2 + $0x90] sm:$0xff]
        %v396 = vld [vmem:[%s2 + $0x98] sm:$0xff]
        %v397 = vld [vmem:[%s2 + $0xa0] sm:$0xff]
        %v398 = vld [vmem:[%s2 + $0xa8] sm:$0xff]
        %v399 = vld [vmem:[%s2 + $0xb0] sm:$0xff]
        %v400 = vld [vmem:[%s2 + $0xb8] sm:$0xff]
        %v401 = vld [vmem:[%s2 + $0xc0] sm:$0xff]
        %v402 = vld [vmem:[%s2 + $0xc8] sm:$0xff]
        %v403 = vld [vmem:[%s2 + $0xd0] sm:$0xff]
        %v404 = vld [vmem:[%s2 + $0xd8] sm:$0xff]
        %v405 = vld [vmem:[%s2 + $0xe0] sm:$0xff]
        %v406 = vld [vmem:[%s2 + $0xe8] sm:$0xff]
        %v407 = vld [vmem:[%s2 + $0xf0] sm:$0xff]
        %v408 = vld [vmem:[%s2 + $0xf8] sm:$0xff]
        %410 = vset.pattern.permute.xlu0 0
        %411 = vperm.xlu0 %410, %v377
        %v412 = vpop.permute.xlu0 %411
        %415 = vset.pattern.permute.xlu0 0
        %416 = vperm.xlu0 %415, %v378
        %v417 = vpop.permute.xlu0 %416
        %420 = vset.pattern.permute.xlu0 0
        %421 = vperm.xlu0 %420, %v379
        %v422 = vpop.permute.xlu0 %421
        %425 = vset.pattern.permute.xlu0 0
        %426 = vperm.xlu0 %425, %v380
        %v427 = vpop.permute.xlu0 %426
        %430 = vset.pattern.permute.xlu0 0
        %431 = vperm.xlu0 %430, %v381
        %v432 = vpop.permute.xlu0 %431
        %435 = vset.pattern.permute.xlu0 0
        %436 = vperm.xlu0 %435, %v382
        %v437 = vpop.permute.xlu0 %436
        %440 = vset.pattern.permute.xlu0 0
        %441 = vperm.xlu0 %440, %v383
        %v442 = vpop.permute.xlu0 %441
        %445 = vset.pattern.permute.xlu0 0
        %446 = vperm.xlu0 %445, %v384
        %v447 = vpop.permute.xlu0 %446
        %450 = vset.pattern.permute.xlu0 0
        %451 = vperm.xlu0 %450, %v385
        %v452 = vpop.permute.xlu0 %451
        %455 = vset.pattern.permute.xlu0 0
        %456 = vperm.xlu0 %455, %v386
        %v457 = vpop.permute.xlu0 %456
        %460 = vset.pattern.permute.xlu0 0
        %461 = vperm.xlu0 %460, %v387
        %v462 = vpop.permute.xlu0 %461
        %465 = vset.pattern.permute.xlu0 0
        %466 = vperm.xlu0 %465, %v388
        %v467 = vpop.permute.xlu0 %466
        %470 = vset.pattern.permute.xlu0 0
        %471 = vperm.xlu0 %470, %v389
        %v472 = vpop.permute.xlu0 %471
        %475 = vset.pattern.permute.xlu0 0
        %476 = vperm.xlu0 %475, %v390
        %v477 = vpop.permute.xlu0 %476
        %480 = vset.pattern.permute.xlu0 0
        %481 = vperm.xlu0 %480, %v391
        %v482 = vpop.permute.xlu0 %481
        %485 = vset.pattern.permute.xlu0 0
        %486 = vperm.xlu0 %485, %v392
        %v487 = vpop.permute.xlu0 %486
        %490 = vset.pattern.permute.xlu0 0
        %491 = vperm.xlu0 %490, %v393
        %v492 = vpop.permute.xlu0 %491
        %495 = vset.pattern.permute.xlu0 0
        %496 = vperm.xlu0 %495, %v394
        %v497 = vpop.permute.xlu0 %496
        %500 = vset.pattern.permute.xlu0 0
        %501 = vperm.xlu0 %500, %v395
        %v502 = vpop.permute.xlu0 %501
        %505 = vset.pattern.permute.xlu0 0
        %506 = vperm.xlu0 %505, %v396
        %v507 = vpop.permute.xlu0 %506
        %510 = vset.pattern.permute.xlu0 0
        %511 = vperm.xlu0 %510, %v397
        %v512 = vpop.permute.xlu0 %511
        %515 = vset.pattern.permute.xlu0 0
        %516 = vperm.xlu0 %515, %v398
        %v517 = vpop.permute.xlu0 %516
        %520 = vset.pattern.permute.xlu0 0
        %521 = vperm.xlu0 %520, %v399
        %v522 = vpop.permute.xlu0 %521
        %525 = vset.pattern.permute.xlu0 0
        %526 = vperm.xlu0 %525, %v400
        %v527 = vpop.permute.xlu0 %526
        %530 = vset.pattern.permute.xlu0 0
        %531 = vperm.xlu0 %530, %v401
        %v532 = vpop.permute.xlu0 %531
        %535 = vset.pattern.permute.xlu0 0
        %536 = vperm.xlu0 %535, %v402
        %v537 = vpop.permute.xlu0 %536
        %540 = vset.pattern.permute.xlu0 0
        %541 = vperm.xlu0 %540, %v403
        %v542 = vpop.permute.xlu0 %541
        %545 = vset.pattern.permute.xlu0 0
        %546 = vperm.xlu0 %545, %v404
        %v547 = vpop.permute.xlu0 %546
        %550 = vset.pattern.permute.xlu0 0
        %551 = vperm.xlu0 %550, %v405
        %v552 = vpop.permute.xlu0 %551
        %555 = vset.pattern.permute.xlu0 0
        %556 = vperm.xlu0 %555, %v406
        %v557 = vpop.permute.xlu0 %556
        %560 = vset.pattern.permute.xlu0 0
        %561 = vperm.xlu0 %560, %v407
        %v562 = vpop.permute.xlu0 %561
        %565 = vset.pattern.permute.xlu0 0
        %566 = vperm.xlu0 %565, %v408
        %v567 = vpop.permute.xlu0 %566
        %569 = vmatprep.subr.mxu0 0.0
        %v570 = vand.u32 %v281, 4294901760
        %571 = vmatpush1.msra.mxu0 %v570
        %572 = vmatprep.subr.mxu0 0.0
        %v573 = vand.u32 %v282, 4294901760
        %574 = vmatpush1.msra.mxu0 %v573
        %575 = vmatprep.subr.mxu0 0.0
        %v576 = vand.u32 %v283, 4294901760
        %577 = vmatpush1.msra.mxu0 %v576
        %578 = vmatprep.subr.mxu0 0.0
        %v579 = vand.u32 %v284, 4294901760
        %580 = vmatpush1.msra.mxu0 %v579
        %581 = vmatprep.subr.mxu0 0.0
        %v582 = vand.u32 %v285, 4294901760
        %583 = vmatpush1.msra.mxu0 %v582
        %584 = vmatprep.subr.mxu0 0.0
        %v585 = vand.u32 %v286, 4294901760
        %586 = vmatpush1.msra.mxu0 %v585
        %587 = vmatprep.subr.mxu0 0.0
        %v588 = vand.u32 %v287, 4294901760
        %589 = vmatpush1.msra.mxu0 %v588
        %590 = vmatprep.subr.mxu0 0.0
        %v591 = vand.u32 %v288, 4294901760
        %592 = vmatpush1.msra.mxu0 %v591
        %593 = vmatprep.subr.mxu0 0.0
        %v594 = vand.u32 %v289, 4294901760
        %595 = vmatpush1.msra.mxu0 %v594
        %596 = vmatprep.subr.mxu0 0.0
        %v597 = vand.u32 %v290, 4294901760
        %598 = vmatpush1.msra.mxu0 %v597
        %599 = vmatprep.subr.mxu0 0.0
        %v600 = vand.u32 %v291, 4294901760
        %601 = vmatpush1.msra.mxu0 %v600
        %602 = vmatprep.subr.mxu0 0.0
        %v603 = vand.u32 %v292, 4294901760
        %604 = vmatpush1.msra.mxu0 %v603
        %605 = vmatprep.subr.mxu0 0.0
        %v606 = vand.u32 %v293, 4294901760
        %607 = vmatpush1.msra.mxu0 %v606
        %608 = vmatprep.subr.mxu0 0.0
        %v609 = vand.u32 %v294, 4294901760
        %610 = vmatpush1.msra.mxu0 %v609
        %611 = vmatprep.subr.mxu0 0.0
        %v612 = vand.u32 %v295, 4294901760
        %613 = vmatpush1.msra.mxu0 %v612
        %614 = vmatprep.subr.mxu0 0.0
        %v615 = vand.u32 %v296, 4294901760
        %616 = vmatpush1.msra.mxu0 %v615
        %617 = vmatprep.subr.mxu0 0.0
        %v618 = vand.u32 %v297, 4294901760
        %619 = vmatpush1.msra.mxu0 %v618
        %620 = vmatprep.subr.mxu0 0.0
        %v621 = vand.u32 %v298, 4294901760
        %622 = vmatpush1.msra.mxu0 %v621
        %623 = vmatprep.subr.mxu0 0.0
        %v624 = vand.u32 %v299, 4294901760
        %625 = vmatpush1.msra.mxu0 %v624
        %626 = vmatprep.subr.mxu0 0.0
        %v627 = vand.u32 %v300, 4294901760
        %628 = vmatpush1.msra.mxu0 %v627
        %629 = vmatprep.subr.mxu0 0.0
        %v630 = vand.u32 %v301, 4294901760
        %631 = vmatpush1.msra.mxu0 %v630
        %632 = vmatprep.subr.mxu0 0.0
        %v633 = vand.u32 %v302, 4294901760
        %634 = vmatpush1.msra.mxu0 %v633
        %635 = vmatprep.subr.mxu0 0.0
        %v636 = vand.u32 %v303, 4294901760
        %637 = vmatpush1.msra.mxu0 %v636
        %638 = vmatprep.subr.mxu0 0.0
        %v639 = vand.u32 %v304, 4294901760
        %640 = vmatpush1.msra.mxu0 %v639
        %641 = vmatprep.subr.mxu0 0.0
        %v642 = vand.u32 %v305, 4294901760
        %643 = vmatpush1.msra.mxu0 %v642
        %644 = vmatprep.subr.mxu0 0.0
        %v645 = vand.u32 %v306, 4294901760
        %646 = vmatpush1.msra.mxu0 %v645
        %647 = vmatprep.subr.mxu0 0.0
        %v648 = vand.u32 %v307, 4294901760
        %649 = vmatpush1.msra.mxu0 %v648
        %650 = vmatprep.subr.mxu0 0.0
        %v651 = vand.u32 %v308, 4294901760
        %652 = vmatpush1.msra.mxu0 %v651
        %653 = vmatprep.subr.mxu0 0.0
        %v654 = vand.u32 %v309, 4294901760
        %655 = vmatpush1.msra.mxu0 %v654
        %656 = vmatprep.subr.mxu0 0.0
        %v657 = vand.u32 %v310, 4294901760
        %658 = vmatpush1.msra.mxu0 %v657
        %659 = vmatprep.subr.mxu0 0.0
        %v660 = vand.u32 %v311, 4294901760
        %661 = vmatpush1.msra.mxu0 %v660
        %662 = vmatprep.subr.mxu0 0.0
        %v663 = vand.u32 %v312, 4294901760
        %664 = vmatpush1.msra.mxu0 %v663
        %v665 = vand.u32 %v314, 4294901760
        %v666 = vsub.f32 %v314, %v665
        %v667 = vand.u32 %v666, 4294901760
        %v668 = vsub.f32 %v666, %v667
        %v669 = vand.u32 %v668, 4294901760
        %670 = vmatprep.mubr.f32.mxu0 %v669
        %v671 = vand.u32 %v313, 4294901760
        %v672 = vsub.f32 %v313, %v671
        %v673 = vand.u32 %v672, 4294901760
        %v674 = vsub.f32 %v672, %v673
        %v675 = vand.u32 %v674, 4294901760
        %676 = vmatmul.mubr.f32.gmra.mrb[0].mxu0 %v675
        %v677 = vpop.f32.mrb[0].mxu0
        %v678 = vadd.f32 %v412, %v677
        %v679 = vpop.f32.mrb[0].mxu0
        %v680 = vand.u32 %v316, 4294901760
        %v681 = vsub.f32 %v316, %v680
        %v682 = vand.u32 %v681, 4294901760
        %v683 = vsub.f32 %v681, %v682
        %v684 = vand.u32 %v683, 4294901760
        %685 = vmatprep.mubr.f32.mxu0 %v684
        %v686 = vand.u32 %v315, 4294901760
        %v687 = vsub.f32 %v315, %v686
        %v688 = vand.u32 %v687, 4294901760
        %v689 = vsub.f32 %v687, %v688
        %v690 = vand.u32 %v689, 4294901760
        %691 = vmatmul.mubr.f32.gmra.mrb[0].mxu0 %v690
        %v692 = vpop.f32.mrb[0].mxu0
        %v693 = vadd.f32 %v417, %v692
        %v694 = vpop.f32.mrb[0].mxu0
        %v695 = vand.u32 %v318, 4294901760
        %v696 = vsub.f32 %v318, %v695
        %v697 = vand.u32 %v696, 4294901760
        %v698 = vsub.f32 %v696, %v697
        %v699 = vand.u32 %v698, 4294901760
        %700 = vmatprep.mubr.f32.mxu0 %v699
        %v701 = vand.u32 %v317, 4294901760
        %v702 = vsub.f32 %v317, %v701
        %v703 = vand.u32 %v702, 4294901760
        %v704 = vsub.f32 %v702, %v703
        %v705 = vand.u32 %v704, 4294901760
        %706 = vmatmul.mubr.f32.gmra.mrb[0].mxu0 %v705
        %v707 = vpop.f32.mrb[0].mxu0
        %v708 = vadd.f32 %v422, %v707
        %v709 = vpop.f32.mrb[0].mxu0
        %v710 = vand.u32 %v320, 4294901760
        %v711 = vsub.f32 %v320, %v710
        %v712 = vand.u32 %v711, 4294901760
        %v713 = vsub.f32 %v711, %v712
        %v714 = vand.u32 %v713, 4294901760
        %715 = vmatprep.mubr.f32.mxu0 %v714
        %v716 = vand.u32 %v319, 4294901760
        %v717 = vsub.f32 %v319, %v716
        %v718 = vand.u32 %v717, 4294901760
        %v719 = vsub.f32 %v717, %v718
        %v720 = vand.u32 %v719, 4294901760
        %721 = vmatmul.mubr.f32.gmra.mrb[0].mxu0 %v720
        %v722 = vpop.f32.mrb[0].mxu0
        %v723 = vadd.f32 %v427, %v722
        %v724 = vpop.f32.mrb[0].mxu0
        %v725 = vand.u32 %v322, 4294901760
        %v726 = vsub.f32 %v322, %v725
        %v727 = vand.u32 %v726, 4294901760
        %v728 = vsub.f32 %v726, %v727
        %v729 = vand.u32 %v728, 4294901760
        %730 = vmatprep.mubr.f32.mxu0 %v729
        %v731 = vand.u32 %v321, 4294901760
        %v732 = vsub.f32 %v321, %v731
        %v733 = vand.u32 %v732, 4294901760
        %v734 = vsub.f32 %v732, %v733
        %v735 = vand.u32 %v734, 4294901760
        %736 = vmatmul.mubr.f32.gmra.mrb[0].mxu0 %v735
        %v737 = vpop.f32.mrb[0].mxu0
        %v738 = vadd.f32 %v432, %v737
        %v739 = vpop.f32.mrb[0].mxu0
        %v740 = vand.u32 %v324, 4294901760
        %v741 = vsub.f32 %v324, %v740
        %v742 = vand.u32 %v741, 4294901760
        %v743 = vsub.f32 %v741, %v742
        %v744 = vand.u32 %v743, 4294901760
        %745 = vmatprep.mubr.f32.mxu0 %v744
        %v746 = vand.u32 %v323, 4294901760
        %v747 = vsub.f32 %v323, %v746
        %v748 = vand.u32 %v747, 4294901760
        %v749 = vsub.f32 %v747, %v748
        %v750 = vand.u32 %v749, 4294901760
        %751 = vmatmul.mubr.f32.gmra.mrb[0].mxu0 %v750
        %v752 = vpop.f32.mrb[0].mxu0
        %v753 = vadd.f32 %v437, %v752
        %v754 = vpop.f32.mrb[0].mxu0
        %v755 = vand.u32 %v326, 4294901760
        %v756 = vsub.f32 %v326, %v755
        %v757 = vand.u32 %v756, 4294901760
        %v758 = vsub.f32 %v756, %v757
        %v759 = vand.u32 %v758, 4294901760
        %760 = vmatprep.mubr.f32.mxu0 %v759
        %v761 = vand.u32 %v325, 4294901760
        %v762 = vsub.f32 %v325, %v761
        %v763 = vand.u32 %v762, 4294901760
        %v764 = vsub.f32 %v762, %v763
        %v765 = vand.u32 %v764, 4294901760
        %766 = vmatmul.mubr.f32.gmra.mrb[0].mxu0 %v765
        %v767 = vpop.f32.mrb[0].mxu0
        %v768 = vadd.f32 %v442, %v767
        %v769 = vpop.f32.mrb[0].mxu0
        %v770 = vand.u32 %v328, 4294901760
        %v771 = vsub.f32 %v328, %v770
        %v772 = vand.u32 %v771, 4294901760
        %v773 = vsub.f32 %v771, %v772
        %v774 = vand.u32 %v773, 4294901760
        %775 = vmatprep.mubr.f32.mxu0 %v774
        %v776 = vand.u32 %v327, 4294901760
        %v777 = vsub.f32 %v327, %v776
        %v778 = vand.u32 %v777, 4294901760
        %v779 = vsub.f32 %v777, %v778
        %v780 = vand.u32 %v779, 4294901760
        %781 = vmatmul.mubr.f32.gmra.mrb[0].mxu0 %v780
        %v782 = vpop.f32.mrb[0].mxu0
        %v783 = vadd.f32 %v447, %v782
        %v784 = vpop.f32.mrb[0].mxu0
        %v785 = vand.u32 %v330, 4294901760
        %v786 = vsub.f32 %v330, %v785
        %v787 = vand.u32 %v786, 4294901760
        %v788 = vsub.f32 %v786, %v787
        %v789 = vand.u32 %v788, 4294901760
        %790 = vmatprep.mubr.f32.mxu0 %v789
        %v791 = vand.u32 %v329, 4294901760
        %v792 = vsub.f32 %v329, %v791
        %v793 = vand.u32 %v792, 4294901760
        %v794 = vsub.f32 %v792, %v793
        %v795 = vand.u32 %v794, 4294901760
        %796 = vmatmul.mubr.f32.gmra.mrb[0].mxu0 %v795
        %v797 = vpop.f32.mrb[0].mxu0
        %v798 = vadd.f32 %v452, %v797
        %v799 = vpop.f32.mrb[0].mxu0
        %v800 = vand.u32 %v332, 4294901760
        %v801 = vsub.f32 %v332, %v800
        %v802 = vand.u32 %v801, 4294901760
        %v803 = vsub.f32 %v801, %v802
        %v804 = vand.u32 %v803, 4294901760
        %805 = vmatprep.mubr.f32.mxu0 %v804
        %v806 = vand.u32 %v331, 4294901760
        %v807 = vsub.f32 %v331, %v806
        %v808 = vand.u32 %v807, 4294901760
        %v809 = vsub.f32 %v807, %v808
        %v810 = vand.u32 %v809, 4294901760
        %811 = vmatmul.mubr.f32.gmra.mrb[0].mxu0 %v810
        %v812 = vpop.f32.mrb[0].mxu0
        %v813 = vadd.f32 %v457, %v812
        %v814 = vpop.f32.mrb[0].mxu0
        %v815 = vand.u32 %v334, 4294901760
        %v816 = vsub.f32 %v334, %v815
        %v817 = vand.u32 %v816, 4294901760
        %v818 = vsub.f32 %v816, %v817
        %v819 = vand.u32 %v818, 4294901760
        %820 = vmatprep.mubr.f32.mxu0 %v819
        %v821 = vand.u32 %v333, 4294901760
        %v822 = vsub.f32 %v333, %v821
        %v823 = vand.u32 %v822, 4294901760
        %v824 = vsub.f32 %v822, %v823
        %v825 = vand.u32 %v824, 4294901760
        %826 = vmatmul.mubr.f32.gmra.mrb[0].mxu0 %v825
        %v827 = vpop.f32.mrb[0].mxu0
        %v828 = vadd.f32 %v462, %v827
        %v829 = vpop.f32.mrb[0].mxu0
        %v830 = vand.u32 %v336, 4294901760
        %v831 = vsub.f32 %v336, %v830
        %v832 = vand.u32 %v831, 4294901760
        %v833 = vsub.f32 %v831, %v832
        %v834 = vand.u32 %v833, 4294901760
        %835 = vmatprep.mubr.f32.mxu0 %v834
        %v836 = vand.u32 %v335, 4294901760
        %v837 = vsub.f32 %v335, %v836
        %v838 = vand.u32 %v837, 4294901760
        %v839 = vsub.f32 %v837, %v838
        %v840 = vand.u32 %v839, 4294901760
        %841 = vmatmul.mubr.f32.gmra.mrb[0].mxu0 %v840
        %v842 = vpop.f32.mrb[0].mxu0
        %v843 = vadd.f32 %v467, %v842
        %v844 = vpop.f32.mrb[0].mxu0
        %v845 = vand.u32 %v338, 4294901760
        %v846 = vsub.f32 %v338, %v845
        %v847 = vand.u32 %v846, 4294901760
        %v848 = vsub.f32 %v846, %v847
        %v849 = vand.u32 %v848, 4294901760
        %850 = vmatprep.mubr.f32.mxu0 %v849
        %v851 = vand.u32 %v337, 4294901760
        %v852 = vsub.f32 %v337, %v851
        %v853 = vand.u32 %v852, 4294901760
        %v854 = vsub.f32 %v852, %v853
        %v855 = vand.u32 %v854, 4294901760
        %856 = vmatmul.mubr.f32.gmra.mrb[0].mxu0 %v855
        %v857 = vpop.f32.mrb[0].mxu0
        %v858 = vadd.f32 %v472, %v857
        %v859 = vpop.f32.mrb[0].mxu0
        %v860 = vand.u32 %v340, 4294901760
        %v861 = vsub.f32 %v340, %v860
        %v862 = vand.u32 %v861, 4294901760
        %v863 = vsub.f32 %v861, %v862
        %v864 = vand.u32 %v863, 4294901760
        %865 = vmatprep.mubr.f32.mxu0 %v864
        %v866 = vand.u32 %v339, 4294901760
        %v867 = vsub.f32 %v339, %v866
        %v868 = vand.u32 %v867, 4294901760
        %v869 = vsub.f32 %v867, %v868
        %v870 = vand.u32 %v869, 4294901760
        %871 = vmatmul.mubr.f32.gmra.mrb[0].mxu0 %v870
        %v872 = vpop.f32.mrb[0].mxu0
        %v873 = vadd.f32 %v477, %v872
        %v874 = vpop.f32.mrb[0].mxu0
        %v875 = vand.u32 %v342, 4294901760
        %v876 = vsub.f32 %v342, %v875
        %v877 = vand.u32 %v876, 4294901760
        %v878 = vsub.f32 %v876, %v877
        %v879 = vand.u32 %v878, 4294901760
        %880 = vmatprep.mubr.f32.mxu0 %v879
        %v881 = vand.u32 %v341, 4294901760
        %v882 = vsub.f32 %v341, %v881
        %v883 = vand.u32 %v882, 4294901760
        %v884 = vsub.f32 %v882, %v883
        %v885 = vand.u32 %v884, 4294901760
        %886 = vmatmul.mubr.f32.gmra.mrb[0].mxu0 %v885
        %v887 = vpop.f32.mrb[0].mxu0
        %v888 = vadd.f32 %v482, %v887
        %v889 = vpop.f32.mrb[0].mxu0
        %v890 = vand.u32 %v344, 4294901760
        %v891 = vsub.f32 %v344, %v890
        %v892 = vand.u32 %v891, 4294901760
        %v893 = vsub.f32 %v891, %v892
        %v894 = vand.u32 %v893, 4294901760
        %895 = vmatprep.mubr.f32.mxu0 %v894
        %v896 = vand.u32 %v343, 4294901760
        %v897 = vsub.f32 %v343, %v896
        %v898 = vand.u32 %v897, 4294901760
        %v899 = vsub.f32 %v897, %v898
        %v900 = vand.u32 %v899, 4294901760
        %901 = vmatmul.mubr.f32.gmra.mrb[0].mxu0 %v900
        %v902 = vpop.f32.mrb[0].mxu0
        %v903 = vadd.f32 %v487, %v902
        %v904 = vpop.f32.mrb[0].mxu0
        %v905 = vand.u32 %v346, 4294901760
        %v906 = vsub.f32 %v346, %v905
        %v907 = vand.u32 %v906, 4294901760
        %v908 = vsub.f32 %v906, %v907
        %v909 = vand.u32 %v908, 4294901760
        %910 = vmatprep.mubr.f32.mxu0 %v909
        %v911 = vand.u32 %v345, 4294901760
        %v912 = vsub.f32 %v345, %v911
        %v913 = vand.u32 %v912, 4294901760
        %v914 = vsub.f32 %v912, %v913
        %v915 = vand.u32 %v914, 4294901760
        %916 = vmatmul.mubr.f32.gmra.mrb[0].mxu0 %v915
        %v917 = vpop.f32.mrb[0].mxu0
        %v918 = vadd.f32 %v492, %v917
        %v919 = vpop.f32.mrb[0].mxu0
        %v920 = vand.u32 %v348, 4294901760
        %v921 = vsub.f32 %v348, %v920
        %v922 = vand.u32 %v921, 4294901760
        %v923 = vsub.f32 %v921, %v922
        %v924 = vand.u32 %v923, 4294901760
        %925 = vmatprep.mubr.f32.mxu0 %v924
        %v926 = vand.u32 %v347, 4294901760
        %v927 = vsub.f32 %v347, %v926
        %v928 = vand.u32 %v927, 4294901760
        %v929 = vsub.f32 %v927, %v928
        %v930 = vand.u32 %v929, 4294901760
        %931 = vmatmul.mubr.f32.gmra.mrb[0].mxu0 %v930
        %v932 = vpop.f32.mrb[0].mxu0
        %v933 = vadd.f32 %v497, %v932
        %v934 = vpop.f32.mrb[0].mxu0
        %v935 = vand.u32 %v350, 4294901760
        %v936 = vsub.f32 %v350, %v935
        %v937 = vand.u32 %v936, 4294901760
        %v938 = vsub.f32 %v936, %v937
        %v939 = vand.u32 %v938, 4294901760
        %940 = vmatprep.mubr.f32.mxu0 %v939
        %v941 = vand.u32 %v349, 4294901760
        %v942 = vsub.f32 %v349, %v941
        %v943 = vand.u32 %v942, 4294901760
        %v944 = vsub.f32 %v942, %v943
        %v945 = vand.u32 %v944, 4294901760
        %946 = vmatmul.mubr.f32.gmra.mrb[0].mxu0 %v945
        %v947 = vpop.f32.mrb[0].mxu0
        %v948 = vadd.f32 %v502, %v947
        %v949 = vpop.f32.mrb[0].mxu0
        %v950 = vand.u32 %v352, 4294901760
        %v951 = vsub.f32 %v352, %v950
        %v952 = vand.u32 %v951, 4294901760
        %v953 = vsub.f32 %v951, %v952
        %v954 = vand.u32 %v953, 4294901760
        %955 = vmatprep.mubr.f32.mxu0 %v954
        %v956 = vand.u32 %v351, 4294901760
        %v957 = vsub.f32 %v351, %v956
        %v958 = vand.u32 %v957, 4294901760
        %v959 = vsub.f32 %v957, %v958
        %v960 = vand.u32 %v959, 4294901760
        %961 = vmatmul.mubr.f32.gmra.mrb[0].mxu0 %v960
        %v962 = vpop.f32.mrb[0].mxu0
        %v963 = vadd.f32 %v507, %v962
        %v964 = vpop.f32.mrb[0].mxu0
        %v965 = vand.u32 %v354, 4294901760
        %v966 = vsub.f32 %v354, %v965
        %v967 = vand.u32 %v966, 4294901760
        %v968 = vsub.f32 %v966, %v967
        %v969 = vand.u32 %v968, 4294901760
        %970 = vmatprep.mubr.f32.mxu0 %v969
        %v971 = vand.u32 %v353, 4294901760
        %v972 = vsub.f32 %v353, %v971
        %v973 = vand.u32 %v972, 4294901760
        %v974 = vsub.f32 %v972, %v973
        %v975 = vand.u32 %v974, 4294901760
        %976 = vmatmul.mubr.f32.gmra.mrb[0].mxu0 %v975
        %v977 = vpop.f32.mrb[0].mxu0
        %v978 = vadd.f32 %v512, %v977
        %v979 = vpop.f32.mrb[0].mxu0
        %v980 = vand.u32 %v356, 4294901760
        %v981 = vsub.f32 %v356, %v980
        %v982 = vand.u32 %v981, 4294901760
        %v983 = vsub.f32 %v981, %v982
        %v984 = vand.u32 %v983, 4294901760
        %985 = vmatprep.mubr.f32.mxu0 %v984
        %v986 = vand.u32 %v355, 4294901760
        %v987 = vsub.f32 %v355, %v986
        %v988 = vand.u32 %v987, 4294901760
        %v989 = vsub.f32 %v987, %v988
        %v990 = vand.u32 %v989, 4294901760
        %991 = vmatmul.mubr.f32.gmra.mrb[0].mxu0 %v990
        %v992 = vpop.f32.mrb[0].mxu0
        %v993 = vadd.f32 %v517, %v992
        %v994 = vpop.f32.mrb[0].mxu0
        %v995 = vand.u32 %v358, 4294901760
        %v996 = vsub.f32 %v358, %v995
        %v997 = vand.u32 %v996, 4294901760
        %v998 = vsub.f32 %v996, %v997
        %v999 = vand.u32 %v998, 4294901760
        %1000 = vmatprep.mubr.f32.mxu0 %v999
        %v1001 = vand.u32 %v357, 4294901760
        %v1002 = vsub.f32 %v357, %v1001
        %v1003 = vand.u32 %v1002, 4294901760
        %v1004 = vsub.f32 %v1002, %v1003
        %v1005 = vand.u32 %v1004, 4294901760
        %1006 = vmatmul.mubr.f32.gmra.mrb[0].mxu0 %v1005
        %v1007 = vpop.f32.mrb[0].mxu0
        %v1008 = vadd.f32 %v522, %v1007
        %v1009 = vpop.f32.mrb[0].mxu0
        %v1010 = vand.u32 %v360, 4294901760
        %v1011 = vsub.f32 %v360, %v1010
        %v1012 = vand.u32 %v1011, 4294901760
        %v1013 = vsub.f32 %v1011, %v1012
        %v1014 = vand.u32 %v1013, 4294901760
        %1015 = vmatprep.mubr.f32.mxu0 %v1014
        %v1016 = vand.u32 %v359, 4294901760
        %v1017 = vsub.f32 %v359, %v1016
        %v1018 = vand.u32 %v1017, 4294901760
        %v1019 = vsub.f32 %v1017, %v1018
        %v1020 = vand.u32 %v1019, 4294901760
        %1021 = vmatmul.mubr.f32.gmra.mrb[0].mxu0 %v1020
        %v1022 = vpop.f32.mrb[0].mxu0
        %v1023 = vadd.f32 %v527, %v1022
        %v1024 = vpop.f32.mrb[0].mxu0
        %v1025 = vand.u32 %v362, 4294901760
        %v1026 = vsub.f32 %v362, %v1025
        %v1027 = vand.u32 %v1026, 4294901760
        %v1028 = vsub.f32 %v1026, %v1027
        %v1029 = vand.u32 %v1028, 4294901760
        %1030 = vmatprep.mubr.f32.mxu0 %v1029
        %v1031 = vand.u32 %v361, 4294901760
        %v1032 = vsub.f32 %v361, %v1031
        %v1033 = vand.u32 %v1032, 4294901760
        %v1034 = vsub.f32 %v1032, %v1033
        %v1035 = vand.u32 %v1034, 4294901760
        %1036 = vmatmul.mubr.f32.gmra.mrb[0].mxu0 %v1035
        %v1037 = vpop.f32.mrb[0].mxu0
        %v1038 = vadd.f32 %v532, %v1037
        %v1039 = vpop.f32.mrb[0].mxu0
        %v1040 = vand.u32 %v364, 4294901760
        %v1041 = vsub.f32 %v364, %v1040
        %v1042 = vand.u32 %v1041, 4294901760
        %v1043 = vsub.f32 %v1041, %v1042
        %v1044 = vand.u32 %v1043, 4294901760
        %1045 = vmatprep.mubr.f32.mxu0 %v1044
        %v1046 = vand.u32 %v363, 4294901760
        %v1047 = vsub.f32 %v363, %v1046
        %v1048 = vand.u32 %v1047, 4294901760
        %v1049 = vsub.f32 %v1047, %v1048
        %v1050 = vand.u32 %v1049, 4294901760
        %1051 = vmatmul.mubr.f32.gmra.mrb[0].mxu0 %v1050
        %v1052 = vpop.f32.mrb[0].mxu0
        %v1053 = vadd.f32 %v537, %v1052
        %v1054 = vpop.f32.mrb[0].mxu0
        %v1055 = vand.u32 %v366, 4294901760
        %v1056 = vsub.f32 %v366, %v1055
        %v1057 = vand.u32 %v1056, 4294901760
        %v1058 = vsub.f32 %v1056, %v1057
        %v1059 = vand.u32 %v1058, 4294901760
        %1060 = vmatprep.mubr.f32.mxu0 %v1059
        %v1061 = vand.u32 %v365, 4294901760
        %v1062 = vsub.f32 %v365, %v1061
        %v1063 = vand.u32 %v1062, 4294901760
        %v1064 = vsub.f32 %v1062, %v1063
        %v1065 = vand.u32 %v1064, 4294901760
        %1066 = vmatmul.mubr.f32.gmra.mrb[0].mxu0 %v1065
        %v1067 = vpop.f32.mrb[0].mxu0
        %v1068 = vadd.f32 %v542, %v1067
        %v1069 = vpop.f32.mrb[0].mxu0
        %v1070 = vand.u32 %v368, 4294901760
        %v1071 = vsub.f32 %v368, %v1070
        %v1072 = vand.u32 %v1071, 4294901760
        %v1073 = vsub.f32 %v1071, %v1072
        %v1074 = vand.u32 %v1073, 4294901760
        %1075 = vmatprep.mubr.f32.mxu0 %v1074
        %v1076 = vand.u32 %v367, 4294901760
        %v1077 = vsub.f32 %v367, %v1076
        %v1078 = vand.u32 %v1077, 4294901760
        %v1079 = vsub.f32 %v1077, %v1078
        %v1080 = vand.u32 %v1079, 4294901760
        %1081 = vmatmul.mubr.f32.gmra.mrb[0].mxu0 %v1080
        %v1082 = vpop.f32.mrb[0].mxu0
        %v1083 = vadd.f32 %v547, %v1082
        %v1084 = vpop.f32.mrb[0].mxu0
        %v1085 = vand.u32 %v370, 4294901760
        %v1086 = vsub.f32 %v370, %v1085
        %v1087 = vand.u32 %v1086, 4294901760
        %v1088 = vsub.f32 %v1086, %v1087
        %v1089 = vand.u32 %v1088, 4294901760
        %1090 = vmatprep.mubr.f32.mxu0 %v1089
        %v1091 = vand.u32 %v369, 4294901760
        %v1092 = vsub.f32 %v369, %v1091
        %v1093 = vand.u32 %v1092, 4294901760
        %v1094 = vsub.f32 %v1092, %v1093
        %v1095 = vand.u32 %v1094, 4294901760
        %1096 = vmatmul.mubr.f32.gmra.mrb[0].mxu0 %v1095
        %v1097 = vpop.f32.mrb[0].mxu0
        %v1098 = vadd.f32 %v552, %v1097
        %v1099 = vpop.f32.mrb[0].mxu0
        %v1100 = vand.u32 %v372, 4294901760
        %v1101 = vsub.f32 %v372, %v1100
        %v1102 = vand.u32 %v1101, 4294901760
        %v1103 = vsub.f32 %v1101, %v1102
        %v1104 = vand.u32 %v1103, 4294901760
        %1105 = vmatprep.mubr.f32.mxu0 %v1104
        %v1106 = vand.u32 %v371, 4294901760
        %v1107 = vsub.f32 %v371, %v1106
        %v1108 = vand.u32 %v1107, 4294901760
        %v1109 = vsub.f32 %v1107, %v1108
        %v1110 = vand.u32 %v1109, 4294901760
        %1111 = vmatmul.mubr.f32.gmra.mrb[0].mxu0 %v1110
        %v1112 = vpop.f32.mrb[0].mxu0
        %v1113 = vadd.f32 %v557, %v1112
        %v1114 = vpop.f32.mrb[0].mxu0
        %v1115 = vand.u32 %v374, 4294901760
        %v1116 = vsub.f32 %v374, %v1115
        %v1117 = vand.u32 %v1116, 4294901760
        %v1118 = vsub.f32 %v1116, %v1117
        %v1119 = vand.u32 %v1118, 4294901760
        %1120 = vmatprep.mubr.f32.mxu0 %v1119
        %v1121 = vand.u32 %v373, 4294901760
        %v1122 = vsub.f32 %v373, %v1121
        %v1123 = vand.u32 %v1122, 4294901760
        %v1124 = vsub.f32 %v1122, %v1123
        %v1125 = vand.u32 %v1124, 4294901760
        %1126 = vmatmul.mubr.f32.gmra.mrb[0].mxu0 %v1125
        %v1127 = vpop.f32.mrb[0].mxu0
        %v1128 = vadd.f32 %v562, %v1127
        %v1129 = vpop.f32.mrb[0].mxu0
        %v1130 = vand.u32 %v376, 4294901760
        %v1131 = vsub.f32 %v376, %v1130
        %v1132 = vand.u32 %v1131, 4294901760
        %v1133 = vsub.f32 %v1131, %v1132
        %v1134 = vand.u32 %v1133, 4294901760
        %1135 = vmatprep.mubr.f32.mxu0 %v1134
        %v1136 = vand.u32 %v375, 4294901760
        %v1137 = vsub.f32 %v375, %v1136
        %v1138 = vand.u32 %v1137, 4294901760
        %v1139 = vsub.f32 %v1137, %v1138
        %v1140 = vand.u32 %v1139, 4294901760
        %1141 = vmatmul.mubr.f32.gmra.mrb[0].mxu0 %v1140
        %v1142 = vpop.f32.mrb[0].mxu0
        %v1143 = vadd.f32 %v567, %v1142
        %v1144 = vpop.f32.mrb[0].mxu0
        %1145 = vdwg.mxu0
        %1146 = vmatprep.subr.mxu0 0.0
        %v1147 = vand.u32 %v281, 4294901760
        %v1148 = vsub.f32 %v281, %v1147
        %v1149 = vand.u32 %v1148, 4294901760
        %v1150 = vsub.f32 %v1148, %v1149
        %v1151 = vand.u32 %v1150, 4294901760
        %1152 = vmatpush1.msra.mxu0 %v1151
        %1153 = vmatprep.subr.mxu0 0.0
        %v1154 = vand.u32 %v282, 4294901760
        %v1155 = vsub.f32 %v282, %v1154
        %v1156 = vand.u32 %v1155, 4294901760
        %v1157 = vsub.f32 %v1155, %v1156
        %v1158 = vand.u32 %v1157, 4294901760
        %1159 = vmatpush1.msra.mxu0 %v1158
        %1160 = vmatprep.subr.mxu0 0.0
        %v1161 = vand.u32 %v283, 4294901760
        %v1162 = vsub.f32 %v283, %v1161
        %v1163 = vand.u32 %v1162, 4294901760
        %v1164 = vsub.f32 %v1162, %v1163
        %v1165 = vand.u32 %v1164, 4294901760
        %1166 = vmatpush1.msra.mxu0 %v1165
        %1167 = vmatprep.subr.mxu0 0.0
        %v1168 = vand.u32 %v284, 4294901760
        %v1169 = vsub.f32 %v284, %v1168
        %v1170 = vand.u32 %v1169, 4294901760
        %v1171 = vsub.f32 %v1169, %v1170
        %v1172 = vand.u32 %v1171, 4294901760
        %1173 = vmatpush1.msra.mxu0 %v1172
        %1174 = vmatprep.subr.mxu0 0.0
        %v1175 = vand.u32 %v285, 4294901760
        %v1176 = vsub.f32 %v285, %v1175
        %v1177 = vand.u32 %v1176, 4294901760
        %v1178 = vsub.f32 %v1176, %v1177
        %v1179 = vand.u32 %v1178, 4294901760
        %1180 = vmatpush1.msra.mxu0 %v1179
        %1181 = vmatprep.subr.mxu0 0.0
        %v1182 = vand.u32 %v286, 4294901760
        %v1183 = vsub.f32 %v286, %v1182
        %v1184 = vand.u32 %v1183, 4294901760
        %v1185 = vsub.f32 %v1183, %v1184
        %v1186 = vand.u32 %v1185, 4294901760
        %1187 = vmatpush1.msra.mxu0 %v1186
        %1188 = vmatprep.subr.mxu0 0.0
        %v1189 = vand.u32 %v287, 4294901760
        %v1190 = vsub.f32 %v287, %v1189
        %v1191 = vand.u32 %v1190, 4294901760
        %v1192 = vsub.f32 %v1190, %v1191
        %v1193 = vand.u32 %v1192, 4294901760
        %1194 = vmatpush1.msra.mxu0 %v1193
        %1195 = vmatprep.subr.mxu0 0.0
        %v1196 = vand.u32 %v288, 4294901760
        %v1197 = vsub.f32 %v288, %v1196
        %v1198 = vand.u32 %v1197, 4294901760
        %v1199 = vsub.f32 %v1197, %v1198
        %v1200 = vand.u32 %v1199, 4294901760
        %1201 = vmatpush1.msra.mxu0 %v1200
        %1202 = vmatprep.subr.mxu0 0.0
        %v1203 = vand.u32 %v289, 4294901760
        %v1204 = vsub.f32 %v289, %v1203
        %v1205 = vand.u32 %v1204, 4294901760
        %v1206 = vsub.f32 %v1204, %v1205
        %v1207 = vand.u32 %v1206, 4294901760
        %1208 = vmatpush1.msra.mxu0 %v1207
        %1209 = vmatprep.subr.mxu0 0.0
        %v1210 = vand.u32 %v290, 4294901760
        %v1211 = vsub.f32 %v290, %v1210
        %v1212 = vand.u32 %v1211, 4294901760
        %v1213 = vsub.f32 %v1211, %v1212
        %v1214 = vand.u32 %v1213, 4294901760
        %1215 = vmatpush1.msra.mxu0 %v1214
        %1216 = vmatprep.subr.mxu0 0.0
        %v1217 = vand.u32 %v291, 4294901760
        %v1218 = vsub.f32 %v291, %v1217
        %v1219 = vand.u32 %v1218, 4294901760
        %v1220 = vsub.f32 %v1218, %v1219
        %v1221 = vand.u32 %v1220, 4294901760
        %1222 = vmatpush1.msra.mxu0 %v1221
        %1223 = vmatprep.subr.mxu0 0.0
        %v1224 = vand.u32 %v292, 4294901760
        %v1225 = vsub.f32 %v292, %v1224
        %v1226 = vand.u32 %v1225, 4294901760
        %v1227 = vsub.f32 %v1225, %v1226
        %v1228 = vand.u32 %v1227, 4294901760
        %1229 = vmatpush1.msra.mxu0 %v1228
        %1230 = vmatprep.subr.mxu0 0.0
        %v1231 = vand.u32 %v293, 4294901760
        %v1232 = vsub.f32 %v293, %v1231
        %v1233 = vand.u32 %v1232, 4294901760
        %v1234 = vsub.f32 %v1232, %v1233
        %v1235 = vand.u32 %v1234, 4294901760
        %1236 = vmatpush1.msra.mxu0 %v1235
        %1237 = vmatprep.subr.mxu0 0.0
        %v1238 = vand.u32 %v294, 4294901760
        %v1239 = vsub.f32 %v294, %v1238
        %v1240 = vand.u32 %v1239, 4294901760
        %v1241 = vsub.f32 %v1239, %v1240
        %v1242 = vand.u32 %v1241, 4294901760
        %1243 = vmatpush1.msra.mxu0 %v1242
        %1244 = vmatprep.subr.mxu0 0.0
        %v1245 = vand.u32 %v295, 4294901760
        %v1246 = vsub.f32 %v295, %v1245
        %v1247 = vand.u32 %v1246, 4294901760
        %v1248 = vsub.f32 %v1246, %v1247
        %v1249 = vand.u32 %v1248, 4294901760
        %1250 = vmatpush1.msra.mxu0 %v1249
        %1251 = vmatprep.subr.mxu0 0.0
        %v1252 = vand.u32 %v296, 4294901760
        %v1253 = vsub.f32 %v296, %v1252
        %v1254 = vand.u32 %v1253, 4294901760
        %v1255 = vsub.f32 %v1253, %v1254
        %v1256 = vand.u32 %v1255, 4294901760
        %1257 = vmatpush1.msra.mxu0 %v1256
        %1258 = vmatprep.subr.mxu0 0.0
        %v1259 = vand.u32 %v297, 4294901760
        %v1260 = vsub.f32 %v297, %v1259
        %v1261 = vand.u32 %v1260, 4294901760
        %v1262 = vsub.f32 %v1260, %v1261
        %v1263 = vand.u32 %v1262, 4294901760
        %1264 = vmatpush1.msra.mxu0 %v1263
        %1265 = vmatprep.subr.mxu0 0.0
        %v1266 = vand.u32 %v298, 4294901760
        %v1267 = vsub.f32 %v298, %v1266
        %v1268 = vand.u32 %v1267, 4294901760
        %v1269 = vsub.f32 %v1267, %v1268
        %v1270 = vand.u32 %v1269, 4294901760
        %1271 = vmatpush1.msra.mxu0 %v1270
        %1272 = vmatprep.subr.mxu0 0.0
        %v1273 = vand.u32 %v299, 4294901760
        %v1274 = vsub.f32 %v299, %v1273
        %v1275 = vand.u32 %v1274, 4294901760
        %v1276 = vsub.f32 %v1274, %v1275
        %v1277 = vand.u32 %v1276, 4294901760
        %1278 = vmatpush1.msra.mxu0 %v1277
        %1279 = vmatprep.subr.mxu0 0.0
        %v1280 = vand.u32 %v300, 4294901760
        %v1281 = vsub.f32 %v300, %v1280
        %v1282 = vand.u32 %v1281, 4294901760
        %v1283 = vsub.f32 %v1281, %v1282
        %v1284 = vand.u32 %v1283, 4294901760
        %1285 = vmatpush1.msra.mxu0 %v1284
        %1286 = vmatprep.subr.mxu0 0.0
        %v1287 = vand.u32 %v301, 4294901760
        %v1288 = vsub.f32 %v301, %v1287
        %v1289 = vand.u32 %v1288, 4294901760
        %v1290 = vsub.f32 %v1288, %v1289
        %v1291 = vand.u32 %v1290, 4294901760
        %1292 = vmatpush1.msra.mxu0 %v1291
        %1293 = vmatprep.subr.mxu0 0.0
        %v1294 = vand.u32 %v302, 4294901760
        %v1295 = vsub.f32 %v302, %v1294
        %v1296 = vand.u32 %v1295, 4294901760
        %v1297 = vsub.f32 %v1295, %v1296
        %v1298 = vand.u32 %v1297, 4294901760
        %1299 = vmatpush1.msra.mxu0 %v1298
        %1300 = vmatprep.subr.mxu0 0.0
        %v1301 = vand.u32 %v303, 4294901760
        %v1302 = vsub.f32 %v303, %v1301
        %v1303 = vand.u32 %v1302, 4294901760
        %v1304 = vsub.f32 %v1302, %v1303
        %v1305 = vand.u32 %v1304, 4294901760
        %1306 = vmatpush1.msra.mxu0 %v1305
        %1307 = vmatprep.subr.mxu0 0.0
        %v1308 = vand.u32 %v304, 4294901760
        %v1309 = vsub.f32 %v304, %v1308
        %v1310 = vand.u32 %v1309, 4294901760
        %v1311 = vsub.f32 %v1309, %v1310
        %v1312 = vand.u32 %v1311, 4294901760
        %1313 = vmatpush1.msra.mxu0 %v1312
        %1314 = vmatprep.subr.mxu0 0.0
        %v1315 = vand.u32 %v305, 4294901760
        %v1316 = vsub.f32 %v305, %v1315
        %v1317 = vand.u32 %v1316, 4294901760
        %v1318 = vsub.f32 %v1316, %v1317
        %v1319 = vand.u32 %v1318, 4294901760
        %1320 = vmatpush1.msra.mxu0 %v1319
        %1321 = vmatprep.subr.mxu0 0.0
        %v1322 = vand.u32 %v306, 4294901760
        %v1323 = vsub.f32 %v306, %v1322
        %v1324 = vand.u32 %v1323, 4294901760
        %v1325 = vsub.f32 %v1323, %v1324
        %v1326 = vand.u32 %v1325, 4294901760
        %1327 = vmatpush1.msra.mxu0 %v1326
        %1328 = vmatprep.subr.mxu0 0.0
        %v1329 = vand.u32 %v307, 4294901760
        %v1330 = vsub.f32 %v307, %v1329
        %v1331 = vand.u32 %v1330, 4294901760
        %v1332 = vsub.f32 %v1330, %v1331
        %v1333 = vand.u32 %v1332, 4294901760
        %1334 = vmatpush1.msra.mxu0 %v1333
        %1335 = vmatprep.subr.mxu0 0.0
        %v1336 = vand.u32 %v308, 4294901760
        %v1337 = vsub.f32 %v308, %v1336
        %v1338 = vand.u32 %v1337, 4294901760
        %v1339 = vsub.f32 %v1337, %v1338
        %v1340 = vand.u32 %v1339, 4294901760
        %1341 = vmatpush1.msra.mxu0 %v1340
        %1342 = vmatprep.subr.mxu0 0.0
        %v1343 = vand.u32 %v309, 4294901760
        %v1344 = vsub.f32 %v309, %v1343
        %v1345 = vand.u32 %v1344, 4294901760
        %v1346 = vsub.f32 %v1344, %v1345
        %v1347 = vand.u32 %v1346, 4294901760
        %1348 = vmatpush1.msra.mxu0 %v1347
        %1349 = vmatprep.subr.mxu0 0.0
        %v1350 = vand.u32 %v310, 4294901760
        %v1351 = vsub.f32 %v310, %v1350
        %v1352 = vand.u32 %v1351, 4294901760
        %v1353 = vsub.f32 %v1351, %v1352
        %v1354 = vand.u32 %v1353, 4294901760
        %1355 = vmatpush1.msra.mxu0 %v1354
        %1356 = vmatprep.subr.mxu0 0.0
        %v1357 = vand.u32 %v311, 4294901760
        %v1358 = vsub.f32 %v311, %v1357
        %v1359 = vand.u32 %v1358, 4294901760
        %v1360 = vsub.f32 %v1358, %v1359
        %v1361 = vand.u32 %v1360, 4294901760
        %1362 = vmatpush1.msra.mxu0 %v1361
        %1363 = vmatprep.subr.mxu0 0.0
        %v1364 = vand.u32 %v312, 4294901760
        %v1365 = vsub.f32 %v312, %v1364
        %v1366 = vand.u32 %v1365, 4294901760
        %v1367 = vsub.f32 %v1365, %v1366
        %v1368 = vand.u32 %v1367, 4294901760
        %1369 = vmatpush1.msra.mxu0 %v1368
        %v1370 = vand.u32 %v314, 4294901760
        %1371 = vmatprep.mubr.f32.mxu0 %v1370
        %v1372 = vand.u32 %v313, 4294901760
        %1373 = vmatmul.mubr.f32.gmra.mrb[0].mxu0 %v1372
        %v1374 = vpop.f32.mrb[0].mxu0
        %v1375 = vadd.f32 %v678, %v1374
        %v1376 = vpop.f32.mrb[0].mxu0
        %v1377 = vand.u32 %v316, 4294901760
        %1378 = vmatprep.mubr.f32.mxu0 %v1377
        %v1379 = vand.u32 %v315, 4294901760
        %1380 = vmatmul.mubr.f32.gmra.mrb[0].mxu0 %v1379
        %v1381 = vpop.f32.mrb[0].mxu0
        %v1382 = vadd.f32 %v693, %v1381
        %v1383 = vpop.f32.mrb[0].mxu0
        %v1384 = vand.u32 %v318, 4294901760
        %1385 = vmatprep.mubr.f32.mxu0 %v1384
        %v1386 = vand.u32 %v317, 4294901760
        %1387 = vmatmul.mubr.f32.gmra.mrb[0].mxu0 %v1386
        %v1388 = vpop.f32.mrb[0].mxu0
        %v1389 = vadd.f32 %v708, %v1388
        %v1390 = vpop.f32.mrb[0].mxu0
        %v1391 = vand.u32 %v320, 4294901760
        %1392 = vmatprep.mubr.f32.mxu0 %v1391
        %v1393 = vand.u32 %v319, 4294901760
        %1394 = vmatmul.mubr.f32.gmra.mrb[0].mxu0 %v1393
        %v1395 = vpop.f32.mrb[0].mxu0
        %v1396 = vadd.f32 %v723, %v1395
        %v1397 = vpop.f32.mrb[0].mxu0
        %v1398 = vand.u32 %v322, 4294901760
        %1399 = vmatprep.mubr.f32.mxu0 %v1398
        %v1400 = vand.u32 %v321, 4294901760
        %1401 = vmatmul.mubr.f32.gmra.mrb[0].mxu0 %v1400
        %v1402 = vpop.f32.mrb[0].mxu0
        %v1403 = vadd.f32 %v738, %v1402
        %v1404 = vpop.f32.mrb[0].mxu0
        %v1405 = vand.u32 %v324, 4294901760
        %1406 = vmatprep.mubr.f32.mxu0 %v1405
        %v1407 = vand.u32 %v323, 4294901760
        %1408 = vmatmul.mubr.f32.gmra.mrb[0].mxu0 %v1407
        %v1409 = vpop.f32.mrb[0].mxu0
        %v1410 = vadd.f32 %v753, %v1409
        %v1411 = vpop.f32.mrb[0].mxu0
        %v1412 = vand.u32 %v326, 4294901760
        %1413 = vmatprep.mubr.f32.mxu0 %v1412
        %v1414 = vand.u32 %v325, 4294901760
        %1415 = vmatmul.mubr.f32.gmra.mrb[0].mxu0 %v1414
        %v1416 = vpop.f32.mrb[0].mxu0
        %v1417 = vadd.f32 %v768, %v1416
        %v1418 = vpop.f32.mrb[0].mxu0
        %v1419 = vand.u32 %v328, 4294901760
        %1420 = vmatprep.mubr.f32.mxu0 %v1419
        %v1421 = vand.u32 %v327, 4294901760
        %1422 = vmatmul.mubr.f32.gmra.mrb[0].mxu0 %v1421
        %v1423 = vpop.f32.mrb[0].mxu0
        %v1424 = vadd.f32 %v783, %v1423
        %v1425 = vpop.f32.mrb[0].mxu0
        %v1426 = vand.u32 %v330, 4294901760
        %1427 = vmatprep.mubr.f32.mxu0 %v1426
        %v1428 = vand.u32 %v329, 4294901760
        %1429 = vmatmul.mubr.f32.gmra.mrb[0].mxu0 %v1428
        %v1430 = vpop.f32.mrb[0].mxu0
        %v1431 = vadd.f32 %v798, %v1430
        %v1432 = vpop.f32.mrb[0].mxu0
        %v1433 = vand.u32 %v332, 4294901760
        %1434 = vmatprep.mubr.f32.mxu0 %v1433
        %v1435 = vand.u32 %v331, 4294901760
        %1436 = vmatmul.mubr.f32.gmra.mrb[0].mxu0 %v1435
        %v1437 = vpop.f32.mrb[0].mxu0
        %v1438 = vadd.f32 %v813, %v1437
        %v1439 = vpop.f32.mrb[0].mxu0
        %v1440 = vand.u32 %v334, 4294901760
        %1441 = vmatprep.mubr.f32.mxu0 %v1440
        %v1442 = vand.u32 %v333, 4294901760
        %1443 = vmatmul.mubr.f32.gmra.mrb[0].mxu0 %v1442
        %v1444 = vpop.f32.mrb[0].mxu0
        %v1445 = vadd.f32 %v828, %v1444
        %v1446 = vpop.f32.mrb[0].mxu0
        %v1447 = vand.u32 %v336, 4294901760
        %1448 = vmatprep.mubr.f32.mxu0 %v1447
        %v1449 = vand.u32 %v335, 4294901760
        %1450 = vmatmul.mubr.f32.gmra.mrb[0].mxu0 %v1449
        %v1451 = vpop.f32.mrb[0].mxu0
        %v1452 = vadd.f32 %v843, %v1451
        %v1453 = vpop.f32.mrb[0].mxu0
        %v1454 = vand.u32 %v338, 4294901760
        %1455 = vmatprep.mubr.f32.mxu0 %v1454
        %v1456 = vand.u32 %v337, 4294901760
        %1457 = vmatmul.mubr.f32.gmra.mrb[0].mxu0 %v1456
        %v1458 = vpop.f32.mrb[0].mxu0
        %v1459 = vadd.f32 %v858, %v1458
        %v1460 = vpop.f32.mrb[0].mxu0
        %v1461 = vand.u32 %v340, 4294901760
        %1462 = vmatprep.mubr.f32.mxu0 %v1461
        %v1463 = vand.u32 %v339, 4294901760
        %1464 = vmatmul.mubr.f32.gmra.mrb[0].mxu0 %v1463
        %v1465 = vpop.f32.mrb[0].mxu0
        %v1466 = vadd.f32 %v873, %v1465
        %v1467 = vpop.f32.mrb[0].mxu0
        %v1468 = vand.u32 %v342, 4294901760
        %1469 = vmatprep.mubr.f32.mxu0 %v1468
        %v1470 = vand.u32 %v341, 4294901760
        %1471 = vmatmul.mubr.f32.gmra.mrb[0].mxu0 %v1470
        %v1472 = vpop.f32.mrb[0].mxu0
        %v1473 = vadd.f32 %v888, %v1472
        %v1474 = vpop.f32.mrb[0].mxu0
        %v1475 = vand.u32 %v344, 4294901760
        %1476 = vmatprep.mubr.f32.mxu0 %v1475
        %v1477 = vand.u32 %v343, 4294901760
        %1478 = vmatmul.mubr.f32.gmra.mrb[0].mxu0 %v1477
        %v1479 = vpop.f32.mrb[0].mxu0
        %v1480 = vadd.f32 %v903, %v1479
        %v1481 = vpop.f32.mrb[0].mxu0
        %v1482 = vand.u32 %v346, 4294901760
        %1483 = vmatprep.mubr.f32.mxu0 %v1482
        %v1484 = vand.u32 %v345, 4294901760
        %1485 = vmatmul.mubr.f32.gmra.mrb[0].mxu0 %v1484
        %v1486 = vpop.f32.mrb[0].mxu0
        %v1487 = vadd.f32 %v918, %v1486
        %v1488 = vpop.f32.mrb[0].mxu0
        %v1489 = vand.u32 %v348, 4294901760
        %1490 = vmatprep.mubr.f32.mxu0 %v1489
        %v1491 = vand.u32 %v347, 4294901760
        %1492 = vmatmul.mubr.f32.gmra.mrb[0].mxu0 %v1491
        %v1493 = vpop.f32.mrb[0].mxu0
        %v1494 = vadd.f32 %v933, %v1493
        %v1495 = vpop.f32.mrb[0].mxu0
        %v1496 = vand.u32 %v350, 4294901760
        %1497 = vmatprep.mubr.f32.mxu0 %v1496
        %v1498 = vand.u32 %v349, 4294901760
        %1499 = vmatmul.mubr.f32.gmra.mrb[0].mxu0 %v1498
        %v1500 = vpop.f32.mrb[0].mxu0
        %v1501 = vadd.f32 %v948, %v1500
        %v1502 = vpop.f32.mrb[0].mxu0
        %v1503 = vand.u32 %v352, 4294901760
        %1504 = vmatprep.mubr.f32.mxu0 %v1503
        %v1505 = vand.u32 %v351, 4294901760
        %1506 = vmatmul.mubr.f32.gmra.mrb[0].mxu0 %v1505
        %v1507 = vpop.f32.mrb[0].mxu0
        %v1508 = vadd.f32 %v963, %v1507
        %v1509 = vpop.f32.mrb[0].mxu0
        %v1510 = vand.u32 %v354, 4294901760
        %1511 = vmatprep.mubr.f32.mxu0 %v1510
        %v1512 = vand.u32 %v353, 4294901760
        %1513 = vmatmul.mubr.f32.gmra.mrb[0].mxu0 %v1512
        %v1514 = vpop.f32.mrb[0].mxu0
        %v1515 = vadd.f32 %v978, %v1514
        %v1516 = vpop.f32.mrb[0].mxu0
        %v1517 = vand.u32 %v356, 4294901760
        %1518 = vmatprep.mubr.f32.mxu0 %v1517
        %v1519 = vand.u32 %v355, 4294901760
        %1520 = vmatmul.mubr.f32.gmra.mrb[0].mxu0 %v1519
        %v1521 = vpop.f32.mrb[0].mxu0
        %v1522 = vadd.f32 %v993, %v1521
        %v1523 = vpop.f32.mrb[0].mxu0
        %v1524 = vand.u32 %v358, 4294901760
        %1525 = vmatprep.mubr.f32.mxu0 %v1524
        %v1526 = vand.u32 %v357, 4294901760
        %1527 = vmatmul.mubr.f32.gmra.mrb[0].mxu0 %v1526
        %v1528 = vpop.f32.mrb[0].mxu0
        %v1529 = vadd.f32 %v1008, %v1528
        %v1530 = vpop.f32.mrb[0].mxu0
        %v1531 = vand.u32 %v360, 4294901760
        %1532 = vmatprep.mubr.f32.mxu0 %v1531
        %v1533 = vand.u32 %v359, 4294901760
        %1534 = vmatmul.mubr.f32.gmra.mrb[0].mxu0 %v1533
        %v1535 = vpop.f32.mrb[0].mxu0
        %v1536 = vadd.f32 %v1023, %v1535
        %v1537 = vpop.f32.mrb[0].mxu0
        %v1538 = vand.u32 %v362, 4294901760
        %1539 = vmatprep.mubr.f32.mxu0 %v1538
        %v1540 = vand.u32 %v361, 4294901760
        %1541 = vmatmul.mubr.f32.gmra.mrb[0].mxu0 %v1540
        %v1542 = vpop.f32.mrb[0].mxu0
        %v1543 = vadd.f32 %v1038, %v1542
        %v1544 = vpop.f32.mrb[0].mxu0
        %v1545 = vand.u32 %v364, 4294901760
        %1546 = vmatprep.mubr.f32.mxu0 %v1545
        %v1547 = vand.u32 %v363, 4294901760
        %1548 = vmatmul.mubr.f32.gmra.mrb[0].mxu0 %v1547
        %v1549 = vpop.f32.mrb[0].mxu0
        %v1550 = vadd.f32 %v1053, %v1549
        %v1551 = vpop.f32.mrb[0].mxu0
        %v1552 = vand.u32 %v366, 4294901760
        %1553 = vmatprep.mubr.f32.mxu0 %v1552
        %v1554 = vand.u32 %v365, 4294901760
        %1555 = vmatmul.mubr.f32.gmra.mrb[0].mxu0 %v1554
        %v1556 = vpop.f32.mrb[0].mxu0
        %v1557 = vadd.f32 %v1068, %v1556
        %v1558 = vpop.f32.mrb[0].mxu0
        %v1559 = vand.u32 %v368, 4294901760
        %1560 = vmatprep.mubr.f32.mxu0 %v1559
        %v1561 = vand.u32 %v367, 4294901760
        %1562 = vmatmul.mubr.f32.gmra.mrb[0].mxu0 %v1561
        %v1563 = vpop.f32.mrb[0].mxu0
        %v1564 = vadd.f32 %v1083, %v1563
        %v1565 = vpop.f32.mrb[0].mxu0
        %v1566 = vand.u32 %v370, 4294901760
        %1567 = vmatprep.mubr.f32.mxu0 %v1566
        %v1568 = vand.u32 %v369, 4294901760
        %1569 = vmatmul.mubr.f32.gmra.mrb[0].mxu0 %v1568
        %v1570 = vpop.f32.mrb[0].mxu0
        %v1571 = vadd.f32 %v1098, %v1570
        %v1572 = vpop.f32.mrb[0].mxu0
        %v1573 = vand.u32 %v372, 4294901760
        %1574 = vmatprep.mubr.f32.mxu0 %v1573
        %v1575 = vand.u32 %v371, 4294901760
        %1576 = vmatmul.mubr.f32.gmra.mrb[0].mxu0 %v1575
        %v1577 = vpop.f32.mrb[0].mxu0
        %v1578 = vadd.f32 %v1113, %v1577
        %v1579 = vpop.f32.mrb[0].mxu0
        %v1580 = vand.u32 %v374, 4294901760
        %1581 = vmatprep.mubr.f32.mxu0 %v1580
        %v1582 = vand.u32 %v373, 4294901760
        %1583 = vmatmul.mubr.f32.gmra.mrb[0].mxu0 %v1582
        %v1584 = vpop.f32.mrb[0].mxu0
        %v1585 = vadd.f32 %v1128, %v1584
        %v1586 = vpop.f32.mrb[0].mxu0
        %v1587 = vand.u32 %v376, 4294901760
        %1588 = vmatprep.mubr.f32.mxu0 %v1587
        %v1589 = vand.u32 %v375, 4294901760
        %1590 = vmatmul.mubr.f32.gmra.mrb[0].mxu0 %v1589
        %v1591 = vpop.f32.mrb[0].mxu0
        %v1592 = vadd.f32 %v1143, %v1591
        %v1593 = vpop.f32.mrb[0].mxu0
        %1594 = vdwg.mxu0
        %1595 = vmatprep.subr.mxu0 0.0
        %v1596 = vand.u32 %v281, 4294901760
        %v1597 = vsub.f32 %v281, %v1596
        %1598 = vmatpush1.msra.mxu0 %v1597
        %1599 = vmatprep.subr.mxu0 0.0
        %v1600 = vand.u32 %v282, 4294901760
        %v1601 = vsub.f32 %v282, %v1600
        %1602 = vmatpush1.msra.mxu0 %v1601
        %1603 = vmatprep.subr.mxu0 0.0
        %v1604 = vand.u32 %v283, 4294901760
        %v1605 = vsub.f32 %v283, %v1604
        %1606 = vmatpush1.msra.mxu0 %v1605
        %1607 = vmatprep.subr.mxu0 0.0
        %v1608 = vand.u32 %v284, 4294901760
        %v1609 = vsub.f32 %v284, %v1608
        %1610 = vmatpush1.msra.mxu0 %v1609
        %1611 = vmatprep.subr.mxu0 0.0
        %v1612 = vand.u32 %v285, 4294901760
        %v1613 = vsub.f32 %v285, %v1612
        %1614 = vmatpush1.msra.mxu0 %v1613
        %1615 = vmatprep.subr.mxu0 0.0
        %v1616 = vand.u32 %v286, 4294901760
        %v1617 = vsub.f32 %v286, %v1616
        %1618 = vmatpush1.msra.mxu0 %v1617
        %1619 = vmatprep.subr.mxu0 0.0
        %v1620 = vand.u32 %v287, 4294901760
        %v1621 = vsub.f32 %v287, %v1620
        %1622 = vmatpush1.msra.mxu0 %v1621
        %1623 = vmatprep.subr.mxu0 0.0
        %v1624 = vand.u32 %v288, 4294901760
        %v1625 = vsub.f32 %v288, %v1624
        %1626 = vmatpush1.msra.mxu0 %v1625
        %1627 = vmatprep.subr.mxu0 0.0
        %v1628 = vand.u32 %v289, 4294901760
        %v1629 = vsub.f32 %v289, %v1628
        %1630 = vmatpush1.msra.mxu0 %v1629
        %1631 = vmatprep.subr.mxu0 0.0
        %v1632 = vand.u32 %v290, 4294901760
        %v1633 = vsub.f32 %v290, %v1632
        %1634 = vmatpush1.msra.mxu0 %v1633
        %1635 = vmatprep.subr.mxu0 0.0
        %v1636 = vand.u32 %v291, 4294901760
        %v1637 = vsub.f32 %v291, %v1636
        %1638 = vmatpush1.msra.mxu0 %v1637
        %1639 = vmatprep.subr.mxu0 0.0
        %v1640 = vand.u32 %v292, 4294901760
        %v1641 = vsub.f32 %v292, %v1640
        %1642 = vmatpush1.msra.mxu0 %v1641
        %1643 = vmatprep.subr.mxu0 0.0
        %v1644 = vand.u32 %v293, 4294901760
        %v1645 = vsub.f32 %v293, %v1644
        %1646 = vmatpush1.msra.mxu0 %v1645
        %1647 = vmatprep.subr.mxu0 0.0
        %v1648 = vand.u32 %v294, 4294901760
        %v1649 = vsub.f32 %v294, %v1648
        %1650 = vmatpush1.msra.mxu0 %v1649
        %1651 = vmatprep.subr.mxu0 0.0
        %v1652 = vand.u32 %v295, 4294901760
        %v1653 = vsub.f32 %v295, %v1652
        %1654 = vmatpush1.msra.mxu0 %v1653
        %1655 = vmatprep.subr.mxu0 0.0
        %v1656 = vand.u32 %v296, 4294901760
        %v1657 = vsub.f32 %v296, %v1656
        %1658 = vmatpush1.msra.mxu0 %v1657
        %1659 = vmatprep.subr.mxu0 0.0
        %v1660 = vand.u32 %v297, 4294901760
        %v1661 = vsub.f32 %v297, %v1660
        %1662 = vmatpush1.msra.mxu0 %v1661
        %1663 = vmatprep.subr.mxu0 0.0
        %v1664 = vand.u32 %v298, 4294901760
        %v1665 = vsub.f32 %v298, %v1664
        %1666 = vmatpush1.msra.mxu0 %v1665
        %1667 = vmatprep.subr.mxu0 0.0
        %v1668 = vand.u32 %v299, 4294901760
        %v1669 = vsub.f32 %v299, %v1668
        %1670 = vmatpush1.msra.mxu0 %v1669
        %1671 = vmatprep.subr.mxu0 0.0
        %v1672 = vand.u32 %v300, 4294901760
        %v1673 = vsub.f32 %v300, %v1672
        %1674 = vmatpush1.msra.mxu0 %v1673
        %1675 = vmatprep.subr.mxu0 0.0
        %v1676 = vand.u32 %v301, 4294901760
        %v1677 = vsub.f32 %v301, %v1676
        %1678 = vmatpush1.msra.mxu0 %v1677
        %1679 = vmatprep.subr.mxu0 0.0
        %v1680 = vand.u32 %v302, 4294901760
        %v1681 = vsub.f32 %v302, %v1680
        %1682 = vmatpush1.msra.mxu0 %v1681
        %1683 = vmatprep.subr.mxu0 0.0
        %v1684 = vand.u32 %v303, 4294901760
        %v1685 = vsub.f32 %v303, %v1684
        %1686 = vmatpush1.msra.mxu0 %v1685
        %1687 = vmatprep.subr.mxu0 0.0
        %v1688 = vand.u32 %v304, 4294901760
        %v1689 = vsub.f32 %v304, %v1688
        %1690 = vmatpush1.msra.mxu0 %v1689
        %1691 = vmatprep.subr.mxu0 0.0
        %v1692 = vand.u32 %v305, 4294901760
        %v1693 = vsub.f32 %v305, %v1692
        %1694 = vmatpush1.msra.mxu0 %v1693
        %1695 = vmatprep.subr.mxu0 0.0
        %v1696 = vand.u32 %v306, 4294901760
        %v1697 = vsub.f32 %v306, %v1696
        %1698 = vmatpush1.msra.mxu0 %v1697
        %1699 = vmatprep.subr.mxu0 0.0
        %v1700 = vand.u32 %v307, 4294901760
        %v1701 = vsub.f32 %v307, %v1700
        %1702 = vmatpush1.msra.mxu0 %v1701
        %1703 = vmatprep.subr.mxu0 0.0
        %v1704 = vand.u32 %v308, 4294901760
        %v1705 = vsub.f32 %v308, %v1704
        %1706 = vmatpush1.msra.mxu0 %v1705
        %1707 = vmatprep.subr.mxu0 0.0
        %v1708 = vand.u32 %v309, 4294901760
        %v1709 = vsub.f32 %v309, %v1708
        %1710 = vmatpush1.msra.mxu0 %v1709
        %1711 = vmatprep.subr.mxu0 0.0
        %v1712 = vand.u32 %v310, 4294901760
        %v1713 = vsub.f32 %v310, %v1712
        %1714 = vmatpush1.msra.mxu0 %v1713
        %1715 = vmatprep.subr.mxu0 0.0
        %v1716 = vand.u32 %v311, 4294901760
        %v1717 = vsub.f32 %v311, %v1716
        %1718 = vmatpush1.msra.mxu0 %v1717
        %1719 = vmatprep.subr.mxu0 0.0
        %v1720 = vand.u32 %v312, 4294901760
        %v1721 = vsub.f32 %v312, %v1720
        %1722 = vmatpush1.msra.mxu0 %v1721
        %v1723 = vand.u32 %v314, 4294901760
        %v1724 = vsub.f32 %v314, %v1723
        %1725 = vmatprep.mubr.f32.mxu0 %v1724
        %v1726 = vand.u32 %v313, 4294901760
        %v1727 = vsub.f32 %v313, %v1726
        %1728 = vmatmul.mubr.f32.gmra.mrb[0].mxu0 %v1727
        %v1729 = vpop.f32.mrb[0].mxu0
        %v1730 = vadd.f32 %v1375, %v1729
        %v1731 = vpop.f32.mrb[0].mxu0
        %v1732 = vand.u32 %v316, 4294901760
        %v1733 = vsub.f32 %v316, %v1732
        %1734 = vmatprep.mubr.f32.mxu0 %v1733
        %v1735 = vand.u32 %v315, 4294901760
        %v1736 = vsub.f32 %v315, %v1735
        %1737 = vmatmul.mubr.f32.gmra.mrb[0].mxu0 %v1736
        %v1738 = vpop.f32.mrb[0].mxu0
        %v1739 = vadd.f32 %v1382, %v1738
        %v1740 = vpop.f32.mrb[0].mxu0
        %v1741 = vand.u32 %v318, 4294901760
        %v1742 = vsub.f32 %v318, %v1741
        %1743 = vmatprep.mubr.f32.mxu0 %v1742
        %v1744 = vand.u32 %v317, 4294901760
        %v1745 = vsub.f32 %v317, %v1744
        %1746 = vmatmul.mubr.f32.gmra.mrb[0].mxu0 %v1745
        %v1747 = vpop.f32.mrb[0].mxu0
        %v1748 = vadd.f32 %v1389, %v1747
        %v1749 = vpop.f32.mrb[0].mxu0
        %v1750 = vand.u32 %v320, 4294901760
        %v1751 = vsub.f32 %v320, %v1750
        %1752 = vmatprep.mubr.f32.mxu0 %v1751
        %v1753 = vand.u32 %v319, 4294901760
        %v1754 = vsub.f32 %v319, %v1753
        %1755 = vmatmul.mubr.f32.gmra.mrb[0].mxu0 %v1754
        %v1756 = vpop.f32.mrb[0].mxu0
        %v1757 = vadd.f32 %v1396, %v1756
        %v1758 = vpop.f32.mrb[0].mxu0
        %v1759 = vand.u32 %v322, 4294901760
        %v1760 = vsub.f32 %v322, %v1759
        %1761 = vmatprep.mubr.f32.mxu0 %v1760
        %v1762 = vand.u32 %v321, 4294901760
        %v1763 = vsub.f32 %v321, %v1762
        %1764 = vmatmul.mubr.f32.gmra.mrb[0].mxu0 %v1763
        %v1765 = vpop.f32.mrb[0].mxu0
        %v1766 = vadd.f32 %v1403, %v1765
        %v1767 = vpop.f32.mrb[0].mxu0
        %v1768 = vand.u32 %v324, 4294901760
        %v1769 = vsub.f32 %v324, %v1768
        %1770 = vmatprep.mubr.f32.mxu0 %v1769
        %v1771 = vand.u32 %v323, 4294901760
        %v1772 = vsub.f32 %v323, %v1771
        %1773 = vmatmul.mubr.f32.gmra.mrb[0].mxu0 %v1772
        %v1774 = vpop.f32.mrb[0].mxu0
        %v1775 = vadd.f32 %v1410, %v1774
        %v1776 = vpop.f32.mrb[0].mxu0
        %v1777 = vand.u32 %v326, 4294901760
        %v1778 = vsub.f32 %v326, %v1777
        %1779 = vmatprep.mubr.f32.mxu0 %v1778
        %v1780 = vand.u32 %v325, 4294901760
        %v1781 = vsub.f32 %v325, %v1780
        %1782 = vmatmul.mubr.f32.gmra.mrb[0].mxu0 %v1781
        %v1783 = vpop.f32.mrb[0].mxu0
        %v1784 = vadd.f32 %v1417, %v1783
        %v1785 = vpop.f32.mrb[0].mxu0
        %v1786 = vand.u32 %v328, 4294901760
        %v1787 = vsub.f32 %v328, %v1786
        %1788 = vmatprep.mubr.f32.mxu0 %v1787
        %v1789 = vand.u32 %v327, 4294901760
        %v1790 = vsub.f32 %v327, %v1789
        %1791 = vmatmul.mubr.f32.gmra.mrb[0].mxu0 %v1790
        %v1792 = vpop.f32.mrb[0].mxu0
        %v1793 = vadd.f32 %v1424, %v1792
        %v1794 = vpop.f32.mrb[0].mxu0
        %v1795 = vand.u32 %v330, 4294901760
        %v1796 = vsub.f32 %v330, %v1795
        %1797 = vmatprep.mubr.f32.mxu0 %v1796
        %v1798 = vand.u32 %v329, 4294901760
        %v1799 = vsub.f32 %v329, %v1798
        %1800 = vmatmul.mubr.f32.gmra.mrb[0].mxu0 %v1799
        %v1801 = vpop.f32.mrb[0].mxu0
        %v1802 = vadd.f32 %v1431, %v1801
        %v1803 = vpop.f32.mrb[0].mxu0
        %v1804 = vand.u32 %v332, 4294901760
        %v1805 = vsub.f32 %v332, %v1804
        %1806 = vmatprep.mubr.f32.mxu0 %v1805
        %v1807 = vand.u32 %v331, 4294901760
        %v1808 = vsub.f32 %v331, %v1807
        %1809 = vmatmul.mubr.f32.gmra.mrb[0].mxu0 %v1808
        %v1810 = vpop.f32.mrb[0].mxu0
        %v1811 = vadd.f32 %v1438, %v1810
        %v1812 = vpop.f32.mrb[0].mxu0
        %v1813 = vand.u32 %v334, 4294901760
        %v1814 = vsub.f32 %v334, %v1813
        %1815 = vmatprep.mubr.f32.mxu0 %v1814
        %v1816 = vand.u32 %v333, 4294901760
        %v1817 = vsub.f32 %v333, %v1816
        %1818 = vmatmul.mubr.f32.gmra.mrb[0].mxu0 %v1817
        %v1819 = vpop.f32.mrb[0].mxu0
        %v1820 = vadd.f32 %v1445, %v1819
        %v1821 = vpop.f32.mrb[0].mxu0
        %v1822 = vand.u32 %v336, 4294901760
        %v1823 = vsub.f32 %v336, %v1822
        %1824 = vmatprep.mubr.f32.mxu0 %v1823
        %v1825 = vand.u32 %v335, 4294901760
        %v1826 = vsub.f32 %v335, %v1825
        %1827 = vmatmul.mubr.f32.gmra.mrb[0].mxu0 %v1826
        %v1828 = vpop.f32.mrb[0].mxu0
        %v1829 = vadd.f32 %v1452, %v1828
        %v1830 = vpop.f32.mrb[0].mxu0
        %v1831 = vand.u32 %v338, 4294901760
        %v1832 = vsub.f32 %v338, %v1831
        %1833 = vmatprep.mubr.f32.mxu0 %v1832
        %v1834 = vand.u32 %v337, 4294901760
        %v1835 = vsub.f32 %v337, %v1834
        %1836 = vmatmul.mubr.f32.gmra.mrb[0].mxu0 %v1835
        %v1837 = vpop.f32.mrb[0].mxu0
        %v1838 = vadd.f32 %v1459, %v1837
        %v1839 = vpop.f32.mrb[0].mxu0
        %v1840 = vand.u32 %v340, 4294901760
        %v1841 = vsub.f32 %v340, %v1840
        %1842 = vmatprep.mubr.f32.mxu0 %v1841
        %v1843 = vand.u32 %v339, 4294901760
        %v1844 = vsub.f32 %v339, %v1843
        %1845 = vmatmul.mubr.f32.gmra.mrb[0].mxu0 %v1844
        %v1846 = vpop.f32.mrb[0].mxu0
        %v1847 = vadd.f32 %v1466, %v1846
        %v1848 = vpop.f32.mrb[0].mxu0
        %v1849 = vand.u32 %v342, 4294901760
        %v1850 = vsub.f32 %v342, %v1849
        %1851 = vmatprep.mubr.f32.mxu0 %v1850
        %v1852 = vand.u32 %v341, 4294901760
        %v1853 = vsub.f32 %v341, %v1852
        %1854 = vmatmul.mubr.f32.gmra.mrb[0].mxu0 %v1853
        %v1855 = vpop.f32.mrb[0].mxu0
        %v1856 = vadd.f32 %v1473, %v1855
        %v1857 = vpop.f32.mrb[0].mxu0
        %v1858 = vand.u32 %v344, 4294901760
        %v1859 = vsub.f32 %v344, %v1858
        %1860 = vmatprep.mubr.f32.mxu0 %v1859
        %v1861 = vand.u32 %v343, 4294901760
        %v1862 = vsub.f32 %v343, %v1861
        %1863 = vmatmul.mubr.f32.gmra.mrb[0].mxu0 %v1862
        %v1864 = vpop.f32.mrb[0].mxu0
        %v1865 = vadd.f32 %v1480, %v1864
        %v1866 = vpop.f32.mrb[0].mxu0
        %v1867 = vand.u32 %v346, 4294901760
        %v1868 = vsub.f32 %v346, %v1867
        %1869 = vmatprep.mubr.f32.mxu0 %v1868
        %v1870 = vand.u32 %v345, 4294901760
        %v1871 = vsub.f32 %v345, %v1870
        %1872 = vmatmul.mubr.f32.gmra.mrb[0].mxu0 %v1871
        %v1873 = vpop.f32.mrb[0].mxu0
        %v1874 = vadd.f32 %v1487, %v1873
        %v1875 = vpop.f32.mrb[0].mxu0
        %v1876 = vand.u32 %v348, 4294901760
        %v1877 = vsub.f32 %v348, %v1876
        %1878 = vmatprep.mubr.f32.mxu0 %v1877
        %v1879 = vand.u32 %v347, 4294901760
        %v1880 = vsub.f32 %v347, %v1879
        %1881 = vmatmul.mubr.f32.gmra.mrb[0].mxu0 %v1880
        %v1882 = vpop.f32.mrb[0].mxu0
        %v1883 = vadd.f32 %v1494, %v1882
        %v1884 = vpop.f32.mrb[0].mxu0
        %v1885 = vand.u32 %v350, 4294901760
        %v1886 = vsub.f32 %v350, %v1885
        %1887 = vmatprep.mubr.f32.mxu0 %v1886
        %v1888 = vand.u32 %v349, 4294901760
        %v1889 = vsub.f32 %v349, %v1888
        %1890 = vmatmul.mubr.f32.gmra.mrb[0].mxu0 %v1889
        %v1891 = vpop.f32.mrb[0].mxu0
        %v1892 = vadd.f32 %v1501, %v1891
        %v1893 = vpop.f32.mrb[0].mxu0
        %v1894 = vand.u32 %v352, 4294901760
        %v1895 = vsub.f32 %v352, %v1894
        %1896 = vmatprep.mubr.f32.mxu0 %v1895
        %v1897 = vand.u32 %v351, 4294901760
        %v1898 = vsub.f32 %v351, %v1897
        %1899 = vmatmul.mubr.f32.gmra.mrb[0].mxu0 %v1898
        %v1900 = vpop.f32.mrb[0].mxu0
        %v1901 = vadd.f32 %v1508, %v1900
        %v1902 = vpop.f32.mrb[0].mxu0
        %v1903 = vand.u32 %v354, 4294901760
        %v1904 = vsub.f32 %v354, %v1903
        %1905 = vmatprep.mubr.f32.mxu0 %v1904
        %v1906 = vand.u32 %v353, 4294901760
        %v1907 = vsub.f32 %v353, %v1906
        %1908 = vmatmul.mubr.f32.gmra.mrb[0].mxu0 %v1907
        %v1909 = vpop.f32.mrb[0].mxu0
        %v1910 = vadd.f32 %v1515, %v1909
        %v1911 = vpop.f32.mrb[0].mxu0
        %v1912 = vand.u32 %v356, 4294901760
        %v1913 = vsub.f32 %v356, %v1912
        %1914 = vmatprep.mubr.f32.mxu0 %v1913
        %v1915 = vand.u32 %v355, 4294901760
        %v1916 = vsub.f32 %v355, %v1915
        %1917 = vmatmul.mubr.f32.gmra.mrb[0].mxu0 %v1916
        %v1918 = vpop.f32.mrb[0].mxu0
        %v1919 = vadd.f32 %v1522, %v1918
        %v1920 = vpop.f32.mrb[0].mxu0
        %v1921 = vand.u32 %v358, 4294901760
        %v1922 = vsub.f32 %v358, %v1921
        %1923 = vmatprep.mubr.f32.mxu0 %v1922
        %v1924 = vand.u32 %v357, 4294901760
        %v1925 = vsub.f32 %v357, %v1924
        %1926 = vmatmul.mubr.f32.gmra.mrb[0].mxu0 %v1925
        %v1927 = vpop.f32.mrb[0].mxu0
        %v1928 = vadd.f32 %v1529, %v1927
        %v1929 = vpop.f32.mrb[0].mxu0
        %v1930 = vand.u32 %v360, 4294901760
        %v1931 = vsub.f32 %v360, %v1930
        %1932 = vmatprep.mubr.f32.mxu0 %v1931
        %v1933 = vand.u32 %v359, 4294901760
        %v1934 = vsub.f32 %v359, %v1933
        %1935 = vmatmul.mubr.f32.gmra.mrb[0].mxu0 %v1934
        %v1936 = vpop.f32.mrb[0].mxu0
        %v1937 = vadd.f32 %v1536, %v1936
        %v1938 = vpop.f32.mrb[0].mxu0
        %v1939 = vand.u32 %v362, 4294901760
        %v1940 = vsub.f32 %v362, %v1939
        %1941 = vmatprep.mubr.f32.mxu0 %v1940
        %v1942 = vand.u32 %v361, 4294901760
        %v1943 = vsub.f32 %v361, %v1942
        %1944 = vmatmul.mubr.f32.gmra.mrb[0].mxu0 %v1943
        %v1945 = vpop.f32.mrb[0].mxu0
        %v1946 = vadd.f32 %v1543, %v1945
        %v1947 = vpop.f32.mrb[0].mxu0
        %v1948 = vand.u32 %v364, 4294901760
        %v1949 = vsub.f32 %v364, %v1948
        %1950 = vmatprep.mubr.f32.mxu0 %v1949
        %v1951 = vand.u32 %v363, 4294901760
        %v1952 = vsub.f32 %v363, %v1951
        %1953 = vmatmul.mubr.f32.gmra.mrb[0].mxu0 %v1952
        %v1954 = vpop.f32.mrb[0].mxu0
        %v1955 = vadd.f32 %v1550, %v1954
        %v1956 = vpop.f32.mrb[0].mxu0
        %v1957 = vand.u32 %v366, 4294901760
        %v1958 = vsub.f32 %v366, %v1957
        %1959 = vmatprep.mubr.f32.mxu0 %v1958
        %v1960 = vand.u32 %v365, 4294901760
        %v1961 = vsub.f32 %v365, %v1960
        %1962 = vmatmul.mubr.f32.gmra.mrb[0].mxu0 %v1961
        %v1963 = vpop.f32.mrb[0].mxu0
        %v1964 = vadd.f32 %v1557, %v1963
        %v1965 = vpop.f32.mrb[0].mxu0
        %v1966 = vand.u32 %v368, 4294901760
        %v1967 = vsub.f32 %v368, %v1966
        %1968 = vmatprep.mubr.f32.mxu0 %v1967
        %v1969 = vand.u32 %v367, 4294901760
        %v1970 = vsub.f32 %v367, %v1969
        %1971 = vmatmul.mubr.f32.gmra.mrb[0].mxu0 %v1970
        %v1972 = vpop.f32.mrb[0].mxu0
        %v1973 = vadd.f32 %v1564, %v1972
        %v1974 = vpop.f32.mrb[0].mxu0
        %v1975 = vand.u32 %v370, 4294901760
        %v1976 = vsub.f32 %v370, %v1975
        %1977 = vmatprep.mubr.f32.mxu0 %v1976
        %v1978 = vand.u32 %v369, 4294901760
        %v1979 = vsub.f32 %v369, %v1978
        %1980 = vmatmul.mubr.f32.gmra.mrb[0].mxu0 %v1979
        %v1981 = vpop.f32.mrb[0].mxu0
        %v1982 = vadd.f32 %v1571, %v1981
        %v1983 = vpop.f32.mrb[0].mxu0
        %v1984 = vand.u32 %v372, 4294901760
        %v1985 = vsub.f32 %v372, %v1984
        %1986 = vmatprep.mubr.f32.mxu0 %v1985
        %v1987 = vand.u32 %v371, 4294901760
        %v1988 = vsub.f32 %v371, %v1987
        %1989 = vmatmul.mubr.f32.gmra.mrb[0].mxu0 %v1988
        %v1990 = vpop.f32.mrb[0].mxu0
        %v1991 = vadd.f32 %v1578, %v1990
        %v1992 = vpop.f32.mrb[0].mxu0
        %v1993 = vand.u32 %v374, 4294901760
        %v1994 = vsub.f32 %v374, %v1993
        %1995 = vmatprep.mubr.f32.mxu0 %v1994
        %v1996 = vand.u32 %v373, 4294901760
        %v1997 = vsub.f32 %v373, %v1996
        %1998 = vmatmul.mubr.f32.gmra.mrb[0].mxu0 %v1997
        %v1999 = vpop.f32.mrb[0].mxu0
        %v2000 = vadd.f32 %v1585, %v1999
        %v2001 = vpop.f32.mrb[0].mxu0
        %v2002 = vand.u32 %v376, 4294901760
        %v2003 = vsub.f32 %v376, %v2002
        %2004 = vmatprep.mubr.f32.mxu0 %v2003
        %v2005 = vand.u32 %v375, 4294901760
        %v2006 = vsub.f32 %v375, %v2005
        %2007 = vmatmul.mubr.f32.gmra.mrb[0].mxu0 %v2006
        %v2008 = vpop.f32.mrb[0].mxu0
        %v2009 = vadd.f32 %v1592, %v2008
        %v2010 = vpop.f32.mrb[0].mxu0
        %2011 = vdwg.mxu0
        %2012 = vmatprep.subr.mxu0 0.0
        %v2013 = vand.u32 %v281, 4294901760
        %2014 = vmatpush1.msra.mxu0 %v2013
        %2015 = vmatprep.subr.mxu0 0.0
        %v2016 = vand.u32 %v282, 4294901760
        %2017 = vmatpush1.msra.mxu0 %v2016
        %2018 = vmatprep.subr.mxu0 0.0
        %v2019 = vand.u32 %v283, 4294901760
        %2020 = vmatpush1.msra.mxu0 %v2019
        %2021 = vmatprep.subr.mxu0 0.0
        %v2022 = vand.u32 %v284, 4294901760
        %2023 = vmatpush1.msra.mxu0 %v2022
        %2024 = vmatprep.subr.mxu0 0.0
        %v2025 = vand.u32 %v285, 4294901760
        %2026 = vmatpush1.msra.mxu0 %v2025
        %2027 = vmatprep.subr.mxu0 0.0
        %v2028 = vand.u32 %v286, 4294901760
        %2029 = vmatpush1.msra.mxu0 %v2028
        %2030 = vmatprep.subr.mxu0 0.0
        %v2031 = vand.u32 %v287, 4294901760
        %2032 = vmatpush1.msra.mxu0 %v2031
        %2033 = vmatprep.subr.mxu0 0.0
        %v2034 = vand.u32 %v288, 4294901760
        %2035 = vmatpush1.msra.mxu0 %v2034
        %2036 = vmatprep.subr.mxu0 0.0
        %v2037 = vand.u32 %v289, 4294901760
        %2038 = vmatpush1.msra.mxu0 %v2037
        %2039 = vmatprep.subr.mxu0 0.0
        %v2040 = vand.u32 %v290, 4294901760
        %2041 = vmatpush1.msra.mxu0 %v2040
        %2042 = vmatprep.subr.mxu0 0.0
        %v2043 = vand.u32 %v291, 4294901760
        %2044 = vmatpush1.msra.mxu0 %v2043
        %2045 = vmatprep.subr.mxu0 0.0
        %v2046 = vand.u32 %v292, 4294901760
        %2047 = vmatpush1.msra.mxu0 %v2046
        %2048 = vmatprep.subr.mxu0 0.0
        %v2049 = vand.u32 %v293, 4294901760
        %2050 = vmatpush1.msra.mxu0 %v2049
        %2051 = vmatprep.subr.mxu0 0.0
        %v2052 = vand.u32 %v294, 4294901760
        %2053 = vmatpush1.msra.mxu0 %v2052
        %2054 = vmatprep.subr.mxu0 0.0
        %v2055 = vand.u32 %v295, 4294901760
        %2056 = vmatpush1.msra.mxu0 %v2055
        %2057 = vmatprep.subr.mxu0 0.0
        %v2058 = vand.u32 %v296, 4294901760
        %2059 = vmatpush1.msra.mxu0 %v2058
        %2060 = vmatprep.subr.mxu0 0.0
        %v2061 = vand.u32 %v297, 4294901760
        %2062 = vmatpush1.msra.mxu0 %v2061
        %2063 = vmatprep.subr.mxu0 0.0
        %v2064 = vand.u32 %v298, 4294901760
        %2065 = vmatpush1.msra.mxu0 %v2064
        %2066 = vmatprep.subr.mxu0 0.0
        %v2067 = vand.u32 %v299, 4294901760
        %2068 = vmatpush1.msra.mxu0 %v2067
        %2069 = vmatprep.subr.mxu0 0.0
        %v2070 = vand.u32 %v300, 4294901760
        %2071 = vmatpush1.msra.mxu0 %v2070
        %2072 = vmatprep.subr.mxu0 0.0
        %v2073 = vand.u32 %v301, 4294901760
        %2074 = vmatpush1.msra.mxu0 %v2073
        %2075 = vmatprep.subr.mxu0 0.0
        %v2076 = vand.u32 %v302, 4294901760
        %2077 = vmatpush1.msra.mxu0 %v2076
        %2078 = vmatprep.subr.mxu0 0.0
        %v2079 = vand.u32 %v303, 4294901760
        %2080 = vmatpush1.msra.mxu0 %v2079
        %2081 = vmatprep.subr.mxu0 0.0
        %v2082 = vand.u32 %v304, 4294901760
        %2083 = vmatpush1.msra.mxu0 %v2082
        %2084 = vmatprep.subr.mxu0 0.0
        %v2085 = vand.u32 %v305, 4294901760
        %2086 = vmatpush1.msra.mxu0 %v2085
        %2087 = vmatprep.subr.mxu0 0.0
        %v2088 = vand.u32 %v306, 4294901760
        %2089 = vmatpush1.msra.mxu0 %v2088
        %2090 = vmatprep.subr.mxu0 0.0
        %v2091 = vand.u32 %v307, 4294901760
        %2092 = vmatpush1.msra.mxu0 %v2091
        %2093 = vmatprep.subr.mxu0 0.0
        %v2094 = vand.u32 %v308, 4294901760
        %2095 = vmatpush1.msra.mxu0 %v2094
        %2096 = vmatprep.subr.mxu0 0.0
        %v2097 = vand.u32 %v309, 4294901760
        %2098 = vmatpush1.msra.mxu0 %v2097
        %2099 = vmatprep.subr.mxu0 0.0
        %v2100 = vand.u32 %v310, 4294901760
        %2101 = vmatpush1.msra.mxu0 %v2100
        %2102 = vmatprep.subr.mxu0 0.0
        %v2103 = vand.u32 %v311, 4294901760
        %2104 = vmatpush1.msra.mxu0 %v2103
        %2105 = vmatprep.subr.mxu0 0.0
        %v2106 = vand.u32 %v312, 4294901760
        %2107 = vmatpush1.msra.mxu0 %v2106
        %v2108 = vand.u32 %v314, 4294901760
        %v2109 = vsub.f32 %v314, %v2108
        %v2110 = vand.u32 %v2109, 4294901760
        %2111 = vmatprep.mubr.f32.mxu0 %v2110
        %v2112 = vand.u32 %v313, 4294901760
        %v2113 = vsub.f32 %v313, %v2112
        %v2114 = vand.u32 %v2113, 4294901760
        %2115 = vmatmul.mubr.f32.gmra.mrb[0].mxu0 %v2114
        %v2116 = vpop.f32.mrb[0].mxu0
        %v2117 = vadd.f32 %v1730, %v2116
        %v2118 = vpop.f32.mrb[0].mxu0
        %v2119 = vand.u32 %v316, 4294901760
        %v2120 = vsub.f32 %v316, %v2119
        %v2121 = vand.u32 %v2120, 4294901760
        %2122 = vmatprep.mubr.f32.mxu0 %v2121
        %v2123 = vand.u32 %v315, 4294901760
        %v2124 = vsub.f32 %v315, %v2123
        %v2125 = vand.u32 %v2124, 4294901760
        %2126 = vmatmul.mubr.f32.gmra.mrb[0].mxu0 %v2125
        %v2127 = vpop.f32.mrb[0].mxu0
        %v2128 = vadd.f32 %v1739, %v2127
        %v2129 = vpop.f32.mrb[0].mxu0
        %v2130 = vand.u32 %v318, 4294901760
        %v2131 = vsub.f32 %v318, %v2130
        %v2132 = vand.u32 %v2131, 4294901760
        %2133 = vmatprep.mubr.f32.mxu0 %v2132
        %v2134 = vand.u32 %v317, 4294901760
        %v2135 = vsub.f32 %v317, %v2134
        %v2136 = vand.u32 %v2135, 4294901760
        %2137 = vmatmul.mubr.f32.gmra.mrb[0].mxu0 %v2136
        %v2138 = vpop.f32.mrb[0].mxu0
        %v2139 = vadd.f32 %v1748, %v2138
        %v2140 = vpop.f32.mrb[0].mxu0
        %v2141 = vand.u32 %v320, 4294901760
        %v2142 = vsub.f32 %v320, %v2141
        %v2143 = vand.u32 %v2142, 4294901760
        %2144 = vmatprep.mubr.f32.mxu0 %v2143
        %v2145 = vand.u32 %v319, 4294901760
        %v2146 = vsub.f32 %v319, %v2145
        %v2147 = vand.u32 %v2146, 4294901760
        %2148 = vmatmul.mubr.f32.gmra.mrb[0].mxu0 %v2147
        %v2149 = vpop.f32.mrb[0].mxu0
        %v2150 = vadd.f32 %v1757, %v2149
        %v2151 = vpop.f32.mrb[0].mxu0
        %v2152 = vand.u32 %v322, 4294901760
        %v2153 = vsub.f32 %v322, %v2152
        %v2154 = vand.u32 %v2153, 4294901760
        %2155 = vmatprep.mubr.f32.mxu0 %v2154
        %v2156 = vand.u32 %v321, 4294901760
        %v2157 = vsub.f32 %v321, %v2156
        %v2158 = vand.u32 %v2157, 4294901760
        %2159 = vmatmul.mubr.f32.gmra.mrb[0].mxu0 %v2158
        %v2160 = vpop.f32.mrb[0].mxu0
        %v2161 = vadd.f32 %v1766, %v2160
        %v2162 = vpop.f32.mrb[0].mxu0
        %v2163 = vand.u32 %v324, 4294901760
        %v2164 = vsub.f32 %v324, %v2163
        %v2165 = vand.u32 %v2164, 4294901760
        %2166 = vmatprep.mubr.f32.mxu0 %v2165
        %v2167 = vand.u32 %v323, 4294901760
        %v2168 = vsub.f32 %v323, %v2167
        %v2169 = vand.u32 %v2168, 4294901760
        %2170 = vmatmul.mubr.f32.gmra.mrb[0].mxu0 %v2169
        %v2171 = vpop.f32.mrb[0].mxu0
        %v2172 = vadd.f32 %v1775, %v2171
        %v2173 = vpop.f32.mrb[0].mxu0
        %v2174 = vand.u32 %v326, 4294901760
        %v2175 = vsub.f32 %v326, %v2174
        %v2176 = vand.u32 %v2175, 4294901760
        %2177 = vmatprep.mubr.f32.mxu0 %v2176
        %v2178 = vand.u32 %v325, 4294901760
        %v2179 = vsub.f32 %v325, %v2178
        %v2180 = vand.u32 %v2179, 4294901760
        %2181 = vmatmul.mubr.f32.gmra.mrb[0].mxu0 %v2180
        %v2182 = vpop.f32.mrb[0].mxu0
        %v2183 = vadd.f32 %v1784, %v2182
        %v2184 = vpop.f32.mrb[0].mxu0
        %v2185 = vand.u32 %v328, 4294901760
        %v2186 = vsub.f32 %v328, %v2185
        %v2187 = vand.u32 %v2186, 4294901760
        %2188 = vmatprep.mubr.f32.mxu0 %v2187
        %v2189 = vand.u32 %v327, 4294901760
        %v2190 = vsub.f32 %v327, %v2189
        %v2191 = vand.u32 %v2190, 4294901760
        %2192 = vmatmul.mubr.f32.gmra.mrb[0].mxu0 %v2191
        %v2193 = vpop.f32.mrb[0].mxu0
        %v2194 = vadd.f32 %v1793, %v2193
        %v2195 = vpop.f32.mrb[0].mxu0
        %v2196 = vand.u32 %v330, 4294901760
        %v2197 = vsub.f32 %v330, %v2196
        %v2198 = vand.u32 %v2197, 4294901760
        %2199 = vmatprep.mubr.f32.mxu0 %v2198
        %v2200 = vand.u32 %v329, 4294901760
        %v2201 = vsub.f32 %v329, %v2200
        %v2202 = vand.u32 %v2201, 4294901760
        %2203 = vmatmul.mubr.f32.gmra.mrb[0].mxu0 %v2202
        %v2204 = vpop.f32.mrb[0].mxu0
        %v2205 = vadd.f32 %v1802, %v2204
        %v2206 = vpop.f32.mrb[0].mxu0
        %v2207 = vand.u32 %v332, 4294901760
        %v2208 = vsub.f32 %v332, %v2207
        %v2209 = vand.u32 %v2208, 4294901760
        %2210 = vmatprep.mubr.f32.mxu0 %v2209
        %v2211 = vand.u32 %v331, 4294901760
        %v2212 = vsub.f32 %v331, %v2211
        %v2213 = vand.u32 %v2212, 4294901760
        %2214 = vmatmul.mubr.f32.gmra.mrb[0].mxu0 %v2213
        %v2215 = vpop.f32.mrb[0].mxu0
        %v2216 = vadd.f32 %v1811, %v2215
        %v2217 = vpop.f32.mrb[0].mxu0
        %v2218 = vand.u32 %v334, 4294901760
        %v2219 = vsub.f32 %v334, %v2218
        %v2220 = vand.u32 %v2219, 4294901760
        %2221 = vmatprep.mubr.f32.mxu0 %v2220
        %v2222 = vand.u32 %v333, 4294901760
        %v2223 = vsub.f32 %v333, %v2222
        %v2224 = vand.u32 %v2223, 4294901760
        %2225 = vmatmul.mubr.f32.gmra.mrb[0].mxu0 %v2224
        %v2226 = vpop.f32.mrb[0].mxu0
        %v2227 = vadd.f32 %v1820, %v2226
        %v2228 = vpop.f32.mrb[0].mxu0
        %v2229 = vand.u32 %v336, 4294901760
        %v2230 = vsub.f32 %v336, %v2229
        %v2231 = vand.u32 %v2230, 4294901760
        %2232 = vmatprep.mubr.f32.mxu0 %v2231
        %v2233 = vand.u32 %v335, 4294901760
        %v2234 = vsub.f32 %v335, %v2233
        %v2235 = vand.u32 %v2234, 4294901760
        %2236 = vmatmul.mubr.f32.gmra.mrb[0].mxu0 %v2235
        %v2237 = vpop.f32.mrb[0].mxu0
        %v2238 = vadd.f32 %v1829, %v2237
        %v2239 = vpop.f32.mrb[0].mxu0
        %v2240 = vand.u32 %v338, 4294901760
        %v2241 = vsub.f32 %v338, %v2240
        %v2242 = vand.u32 %v2241, 4294901760
        %2243 = vmatprep.mubr.f32.mxu0 %v2242
        %v2244 = vand.u32 %v337, 4294901760
        %v2245 = vsub.f32 %v337, %v2244
        %v2246 = vand.u32 %v2245, 4294901760
        %2247 = vmatmul.mubr.f32.gmra.mrb[0].mxu0 %v2246
        %v2248 = vpop.f32.mrb[0].mxu0
        %v2249 = vadd.f32 %v1838, %v2248
        %v2250 = vpop.f32.mrb[0].mxu0
        %v2251 = vand.u32 %v340, 4294901760
        %v2252 = vsub.f32 %v340, %v2251
        %v2253 = vand.u32 %v2252, 4294901760
        %2254 = vmatprep.mubr.f32.mxu0 %v2253
        %v2255 = vand.u32 %v339, 4294901760
        %v2256 = vsub.f32 %v339, %v2255
        %v2257 = vand.u32 %v2256, 4294901760
        %2258 = vmatmul.mubr.f32.gmra.mrb[0].mxu0 %v2257
        %v2259 = vpop.f32.mrb[0].mxu0
        %v2260 = vadd.f32 %v1847, %v2259
        %v2261 = vpop.f32.mrb[0].mxu0
        %v2262 = vand.u32 %v342, 4294901760
        %v2263 = vsub.f32 %v342, %v2262
        %v2264 = vand.u32 %v2263, 4294901760
        %2265 = vmatprep.mubr.f32.mxu0 %v2264
        %v2266 = vand.u32 %v341, 4294901760
        %v2267 = vsub.f32 %v341, %v2266
        %v2268 = vand.u32 %v2267, 4294901760
        %2269 = vmatmul.mubr.f32.gmra.mrb[0].mxu0 %v2268
        %v2270 = vpop.f32.mrb[0].mxu0
        %v2271 = vadd.f32 %v1856, %v2270
        %v2272 = vpop.f32.mrb[0].mxu0
        %v2273 = vand.u32 %v344, 4294901760
        %v2274 = vsub.f32 %v344, %v2273
        %v2275 = vand.u32 %v2274, 4294901760
        %2276 = vmatprep.mubr.f32.mxu0 %v2275
        %v2277 = vand.u32 %v343, 4294901760
        %v2278 = vsub.f32 %v343, %v2277
        %v2279 = vand.u32 %v2278, 4294901760
        %2280 = vmatmul.mubr.f32.gmra.mrb[0].mxu0 %v2279
        %v2281 = vpop.f32.mrb[0].mxu0
        %v2282 = vadd.f32 %v1865, %v2281
        %v2283 = vpop.f32.mrb[0].mxu0
        %v2284 = vand.u32 %v346, 4294901760
        %v2285 = vsub.f32 %v346, %v2284
        %v2286 = vand.u32 %v2285, 4294901760
        %2287 = vmatprep.mubr.f32.mxu0 %v2286
        %v2288 = vand.u32 %v345, 4294901760
        %v2289 = vsub.f32 %v345, %v2288
        %v2290 = vand.u32 %v2289, 4294901760
        %2291 = vmatmul.mubr.f32.gmra.mrb[0].mxu0 %v2290
        %v2292 = vpop.f32.mrb[0].mxu0
        %v2293 = vadd.f32 %v1874, %v2292
        %v2294 = vpop.f32.mrb[0].mxu0
        %v2295 = vand.u32 %v348, 4294901760
        %v2296 = vsub.f32 %v348, %v2295
        %v2297 = vand.u32 %v2296, 4294901760
        %2298 = vmatprep.mubr.f32.mxu0 %v2297
        %v2299 = vand.u32 %v347, 4294901760
        %v2300 = vsub.f32 %v347, %v2299
        %v2301 = vand.u32 %v2300, 4294901760
        %2302 = vmatmul.mubr.f32.gmra.mrb[0].mxu0 %v2301
        %v2303 = vpop.f32.mrb[0].mxu0
        %v2304 = vadd.f32 %v1883, %v2303
        %v2305 = vpop.f32.mrb[0].mxu0
        %v2306 = vand.u32 %v350, 4294901760
        %v2307 = vsub.f32 %v350, %v2306
        %v2308 = vand.u32 %v2307, 4294901760
        %2309 = vmatprep.mubr.f32.mxu0 %v2308
        %v2310 = vand.u32 %v349, 4294901760
        %v2311 = vsub.f32 %v349, %v2310
        %v2312 = vand.u32 %v2311, 4294901760
        %2313 = vmatmul.mubr.f32.gmra.mrb[0].mxu0 %v2312
        %v2314 = vpop.f32.mrb[0].mxu0
        %v2315 = vadd.f32 %v1892, %v2314
        %v2316 = vpop.f32.mrb[0].mxu0
        %v2317 = vand.u32 %v352, 4294901760
        %v2318 = vsub.f32 %v352, %v2317
        %v2319 = vand.u32 %v2318, 4294901760
        %2320 = vmatprep.mubr.f32.mxu0 %v2319
        %v2321 = vand.u32 %v351, 4294901760
        %v2322 = vsub.f32 %v351, %v2321
        %v2323 = vand.u32 %v2322, 4294901760
        %2324 = vmatmul.mubr.f32.gmra.mrb[0].mxu0 %v2323
        %v2325 = vpop.f32.mrb[0].mxu0
        %v2326 = vadd.f32 %v1901, %v2325
        %v2327 = vpop.f32.mrb[0].mxu0
        %v2328 = vand.u32 %v354, 4294901760
        %v2329 = vsub.f32 %v354, %v2328
        %v2330 = vand.u32 %v2329, 4294901760
        %2331 = vmatprep.mubr.f32.mxu0 %v2330
        %v2332 = vand.u32 %v353, 4294901760
        %v2333 = vsub.f32 %v353, %v2332
        %v2334 = vand.u32 %v2333, 4294901760
        %2335 = vmatmul.mubr.f32.gmra.mrb[0].mxu0 %v2334
        %v2336 = vpop.f32.mrb[0].mxu0
        %v2337 = vadd.f32 %v1910, %v2336
        %v2338 = vpop.f32.mrb[0].mxu0
        %v2339 = vand.u32 %v356, 4294901760
        %v2340 = vsub.f32 %v356, %v2339
        %v2341 = vand.u32 %v2340, 4294901760
        %2342 = vmatprep.mubr.f32.mxu0 %v2341
        %v2343 = vand.u32 %v355, 4294901760
        %v2344 = vsub.f32 %v355, %v2343
        %v2345 = vand.u32 %v2344, 4294901760
        %2346 = vmatmul.mubr.f32.gmra.mrb[0].mxu0 %v2345
        %v2347 = vpop.f32.mrb[0].mxu0
        %v2348 = vadd.f32 %v1919, %v2347
        %v2349 = vpop.f32.mrb[0].mxu0
        %v2350 = vand.u32 %v358, 4294901760
        %v2351 = vsub.f32 %v358, %v2350
        %v2352 = vand.u32 %v2351, 4294901760
        %2353 = vmatprep.mubr.f32.mxu0 %v2352
        %v2354 = vand.u32 %v357, 4294901760
        %v2355 = vsub.f32 %v357, %v2354
        %v2356 = vand.u32 %v2355, 4294901760
        %2357 = vmatmul.mubr.f32.gmra.mrb[0].mxu0 %v2356
        %v2358 = vpop.f32.mrb[0].mxu0
        %v2359 = vadd.f32 %v1928, %v2358
        %v2360 = vpop.f32.mrb[0].mxu0
        %v2361 = vand.u32 %v360, 4294901760
        %v2362 = vsub.f32 %v360, %v2361
        %v2363 = vand.u32 %v2362, 4294901760
        %2364 = vmatprep.mubr.f32.mxu0 %v2363
        %v2365 = vand.u32 %v359, 4294901760
        %v2366 = vsub.f32 %v359, %v2365
        %v2367 = vand.u32 %v2366, 4294901760
        %2368 = vmatmul.mubr.f32.gmra.mrb[0].mxu0 %v2367
        %v2369 = vpop.f32.mrb[0].mxu0
        %v2370 = vadd.f32 %v1937, %v2369
        %v2371 = vpop.f32.mrb[0].mxu0
        %v2372 = vand.u32 %v362, 4294901760
        %v2373 = vsub.f32 %v362, %v2372
        %v2374 = vand.u32 %v2373, 4294901760
        %2375 = vmatprep.mubr.f32.mxu0 %v2374
        %v2376 = vand.u32 %v361, 4294901760
        %v2377 = vsub.f32 %v361, %v2376
        %v2378 = vand.u32 %v2377, 4294901760
        %2379 = vmatmul.mubr.f32.gmra.mrb[0].mxu0 %v2378
        %v2380 = vpop.f32.mrb[0].mxu0
        %v2381 = vadd.f32 %v1946, %v2380
        %v2382 = vpop.f32.mrb[0].mxu0
        %v2383 = vand.u32 %v364, 4294901760
        %v2384 = vsub.f32 %v364, %v2383
        %v2385 = vand.u32 %v2384, 4294901760
        %2386 = vmatprep.mubr.f32.mxu0 %v2385
        %v2387 = vand.u32 %v363, 4294901760
        %v2388 = vsub.f32 %v363, %v2387
        %v2389 = vand.u32 %v2388, 4294901760
        %2390 = vmatmul.mubr.f32.gmra.mrb[0].mxu0 %v2389
        %v2391 = vpop.f32.mrb[0].mxu0
        %v2392 = vadd.f32 %v1955, %v2391
        %v2393 = vpop.f32.mrb[0].mxu0
        %v2394 = vand.u32 %v366, 4294901760
        %v2395 = vsub.f32 %v366, %v2394
        %v2396 = vand.u32 %v2395, 4294901760
        %2397 = vmatprep.mubr.f32.mxu0 %v2396
        %v2398 = vand.u32 %v365, 4294901760
        %v2399 = vsub.f32 %v365, %v2398
        %v2400 = vand.u32 %v2399, 4294901760
        %2401 = vmatmul.mubr.f32.gmra.mrb[0].mxu0 %v2400
        %v2402 = vpop.f32.mrb[0].mxu0
        %v2403 = vadd.f32 %v1964, %v2402
        %v2404 = vpop.f32.mrb[0].mxu0
        %v2405 = vand.u32 %v368, 4294901760
        %v2406 = vsub.f32 %v368, %v2405
        %v2407 = vand.u32 %v2406, 4294901760
        %2408 = vmatprep.mubr.f32.mxu0 %v2407
        %v2409 = vand.u32 %v367, 4294901760
        %v2410 = vsub.f32 %v367, %v2409
        %v2411 = vand.u32 %v2410, 4294901760
        %2412 = vmatmul.mubr.f32.gmra.mrb[0].mxu0 %v2411
        %v2413 = vpop.f32.mrb[0].mxu0
        %v2414 = vadd.f32 %v1973, %v2413
        %v2415 = vpop.f32.mrb[0].mxu0
        %v2416 = vand.u32 %v370, 4294901760
        %v2417 = vsub.f32 %v370, %v2416
        %v2418 = vand.u32 %v2417, 4294901760
        %2419 = vmatprep.mubr.f32.mxu0 %v2418
        %v2420 = vand.u32 %v369, 4294901760
        %v2421 = vsub.f32 %v369, %v2420
        %v2422 = vand.u32 %v2421, 4294901760
        %2423 = vmatmul.mubr.f32.gmra.mrb[0].mxu0 %v2422
        %v2424 = vpop.f32.mrb[0].mxu0
        %v2425 = vadd.f32 %v1982, %v2424
        %v2426 = vpop.f32.mrb[0].mxu0
        %v2427 = vand.u32 %v372, 4294901760
        %v2428 = vsub.f32 %v372, %v2427
        %v2429 = vand.u32 %v2428, 4294901760
        %2430 = vmatprep.mubr.f32.mxu0 %v2429
        %v2431 = vand.u32 %v371, 4294901760
        %v2432 = vsub.f32 %v371, %v2431
        %v2433 = vand.u32 %v2432, 4294901760
        %2434 = vmatmul.mubr.f32.gmra.mrb[0].mxu0 %v2433
        %v2435 = vpop.f32.mrb[0].mxu0
        %v2436 = vadd.f32 %v1991, %v2435
        %v2437 = vpop.f32.mrb[0].mxu0
        %v2438 = vand.u32 %v374, 4294901760
        %v2439 = vsub.f32 %v374, %v2438
        %v2440 = vand.u32 %v2439, 4294901760
        %2441 = vmatprep.mubr.f32.mxu0 %v2440
        %v2442 = vand.u32 %v373, 4294901760
        %v2443 = vsub.f32 %v373, %v2442
        %v2444 = vand.u32 %v2443, 4294901760
        %2445 = vmatmul.mubr.f32.gmra.mrb[0].mxu0 %v2444
        %v2446 = vpop.f32.mrb[0].mxu0
        %v2447 = vadd.f32 %v2000, %v2446
        %v2448 = vpop.f32.mrb[0].mxu0
        %v2449 = vand.u32 %v376, 4294901760
        %v2450 = vsub.f32 %v376, %v2449
        %v2451 = vand.u32 %v2450, 4294901760
        %2452 = vmatprep.mubr.f32.mxu0 %v2451
        %v2453 = vand.u32 %v375, 4294901760
        %v2454 = vsub.f32 %v375, %v2453
        %v2455 = vand.u32 %v2454, 4294901760
        %2456 = vmatmul.mubr.f32.gmra.mrb[0].mxu0 %v2455
        %v2457 = vpop.f32.mrb[0].mxu0
        %v2458 = vadd.f32 %v2009, %v2457
        %v2459 = vpop.f32.mrb[0].mxu0
        %2460 = vdwg.mxu0
        %2461 = vmatprep.subr.mxu0 0.0
        %v2462 = vand.u32 %v281, 4294901760
        %v2463 = vsub.f32 %v281, %v2462
        %v2464 = vand.u32 %v2463, 4294901760
        %2465 = vmatpush1.msra.mxu0 %v2464
        %2466 = vmatprep.subr.mxu0 0.0
        %v2467 = vand.u32 %v282, 4294901760
        %v2468 = vsub.f32 %v282, %v2467
        %v2469 = vand.u32 %v2468, 4294901760
        %2470 = vmatpush1.msra.mxu0 %v2469
        %2471 = vmatprep.subr.mxu0 0.0
        %v2472 = vand.u32 %v283, 4294901760
        %v2473 = vsub.f32 %v283, %v2472
        %v2474 = vand.u32 %v2473, 4294901760
        %2475 = vmatpush1.msra.mxu0 %v2474
        %2476 = vmatprep.subr.mxu0 0.0
        %v2477 = vand.u32 %v284, 4294901760
        %v2478 = vsub.f32 %v284, %v2477
        %v2479 = vand.u32 %v2478, 4294901760
        %2480 = vmatpush1.msra.mxu0 %v2479
        %2481 = vmatprep.subr.mxu0 0.0
        %v2482 = vand.u32 %v285, 4294901760
        %v2483 = vsub.f32 %v285, %v2482
        %v2484 = vand.u32 %v2483, 4294901760
        %2485 = vmatpush1.msra.mxu0 %v2484
        %2486 = vmatprep.subr.mxu0 0.0
        %v2487 = vand.u32 %v286, 4294901760
        %v2488 = vsub.f32 %v286, %v2487
        %v2489 = vand.u32 %v2488, 4294901760
        %2490 = vmatpush1.msra.mxu0 %v2489
        %2491 = vmatprep.subr.mxu0 0.0
        %v2492 = vand.u32 %v287, 4294901760
        %v2493 = vsub.f32 %v287, %v2492
        %v2494 = vand.u32 %v2493, 4294901760
        %2495 = vmatpush1.msra.mxu0 %v2494
        %2496 = vmatprep.subr.mxu0 0.0
        %v2497 = vand.u32 %v288, 4294901760
        %v2498 = vsub.f32 %v288, %v2497
        %v2499 = vand.u32 %v2498, 4294901760
        %2500 = vmatpush1.msra.mxu0 %v2499
        %2501 = vmatprep.subr.mxu0 0.0
        %v2502 = vand.u32 %v289, 4294901760
        %v2503 = vsub.f32 %v289, %v2502
        %v2504 = vand.u32 %v2503, 4294901760
        %2505 = vmatpush1.msra.mxu0 %v2504
        %2506 = vmatprep.subr.mxu0 0.0
        %v2507 = vand.u32 %v290, 4294901760
        %v2508 = vsub.f32 %v290, %v2507
        %v2509 = vand.u32 %v2508, 4294901760
        %2510 = vmatpush1.msra.mxu0 %v2509
        %2511 = vmatprep.subr.mxu0 0.0
        %v2512 = vand.u32 %v291, 4294901760
        %v2513 = vsub.f32 %v291, %v2512
        %v2514 = vand.u32 %v2513, 4294901760
        %2515 = vmatpush1.msra.mxu0 %v2514
        %2516 = vmatprep.subr.mxu0 0.0
        %v2517 = vand.u32 %v292, 4294901760
        %v2518 = vsub.f32 %v292, %v2517
        %v2519 = vand.u32 %v2518, 4294901760
        %2520 = vmatpush1.msra.mxu0 %v2519
        %2521 = vmatprep.subr.mxu0 0.0
        %v2522 = vand.u32 %v293, 4294901760
        %v2523 = vsub.f32 %v293, %v2522
        %v2524 = vand.u32 %v2523, 4294901760
        %2525 = vmatpush1.msra.mxu0 %v2524
        %2526 = vmatprep.subr.mxu0 0.0
        %v2527 = vand.u32 %v294, 4294901760
        %v2528 = vsub.f32 %v294, %v2527
        %v2529 = vand.u32 %v2528, 4294901760
        %2530 = vmatpush1.msra.mxu0 %v2529
        %2531 = vmatprep.subr.mxu0 0.0
        %v2532 = vand.u32 %v295, 4294901760
        %v2533 = vsub.f32 %v295, %v2532
        %v2534 = vand.u32 %v2533, 4294901760
        %2535 = vmatpush1.msra.mxu0 %v2534
        %2536 = vmatprep.subr.mxu0 0.0
        %v2537 = vand.u32 %v296, 4294901760
        %v2538 = vsub.f32 %v296, %v2537
        %v2539 = vand.u32 %v2538, 4294901760
        %2540 = vmatpush1.msra.mxu0 %v2539
        %2541 = vmatprep.subr.mxu0 0.0
        %v2542 = vand.u32 %v297, 4294901760
        %v2543 = vsub.f32 %v297, %v2542
        %v2544 = vand.u32 %v2543, 4294901760
        %2545 = vmatpush1.msra.mxu0 %v2544
        %2546 = vmatprep.subr.mxu0 0.0
        %v2547 = vand.u32 %v298, 4294901760
        %v2548 = vsub.f32 %v298, %v2547
        %v2549 = vand.u32 %v2548, 4294901760
        %2550 = vmatpush1.msra.mxu0 %v2549
        %2551 = vmatprep.subr.mxu0 0.0
        %v2552 = vand.u32 %v299, 4294901760
        %v2553 = vsub.f32 %v299, %v2552
        %v2554 = vand.u32 %v2553, 4294901760
        %2555 = vmatpush1.msra.mxu0 %v2554
        %2556 = vmatprep.subr.mxu0 0.0
        %v2557 = vand.u32 %v300, 4294901760
        %v2558 = vsub.f32 %v300, %v2557
        %v2559 = vand.u32 %v2558, 4294901760
        %2560 = vmatpush1.msra.mxu0 %v2559
        %2561 = vmatprep.subr.mxu0 0.0
        %v2562 = vand.u32 %v301, 4294901760
        %v2563 = vsub.f32 %v301, %v2562
        %v2564 = vand.u32 %v2563, 4294901760
        %2565 = vmatpush1.msra.mxu0 %v2564
        %2566 = vmatprep.subr.mxu0 0.0
        %v2567 = vand.u32 %v302, 4294901760
        %v2568 = vsub.f32 %v302, %v2567
        %v2569 = vand.u32 %v2568, 4294901760
        %2570 = vmatpush1.msra.mxu0 %v2569
        %2571 = vmatprep.subr.mxu0 0.0
        %v2572 = vand.u32 %v303, 4294901760
        %v2573 = vsub.f32 %v303, %v2572
        %v2574 = vand.u32 %v2573, 4294901760
        %2575 = vmatpush1.msra.mxu0 %v2574
        %2576 = vmatprep.subr.mxu0 0.0
        %v2577 = vand.u32 %v304, 4294901760
        %v2578 = vsub.f32 %v304, %v2577
        %v2579 = vand.u32 %v2578, 4294901760
        %2580 = vmatpush1.msra.mxu0 %v2579
        %2581 = vmatprep.subr.mxu0 0.0
        %v2582 = vand.u32 %v305, 4294901760
        %v2583 = vsub.f32 %v305, %v2582
        %v2584 = vand.u32 %v2583, 4294901760
        %2585 = vmatpush1.msra.mxu0 %v2584
        %2586 = vmatprep.subr.mxu0 0.0
        %v2587 = vand.u32 %v306, 4294901760
        %v2588 = vsub.f32 %v306, %v2587
        %v2589 = vand.u32 %v2588, 4294901760
        %2590 = vmatpush1.msra.mxu0 %v2589
        %2591 = vmatprep.subr.mxu0 0.0
        %v2592 = vand.u32 %v307, 4294901760
        %v2593 = vsub.f32 %v307, %v2592
        %v2594 = vand.u32 %v2593, 4294901760
        %2595 = vmatpush1.msra.mxu0 %v2594
        %2596 = vmatprep.subr.mxu0 0.0
        %v2597 = vand.u32 %v308, 4294901760
        %v2598 = vsub.f32 %v308, %v2597
        %v2599 = vand.u32 %v2598, 4294901760
        %2600 = vmatpush1.msra.mxu0 %v2599
        %2601 = vmatprep.subr.mxu0 0.0
        %v2602 = vand.u32 %v309, 4294901760
        %v2603 = vsub.f32 %v309, %v2602
        %v2604 = vand.u32 %v2603, 4294901760
        %2605 = vmatpush1.msra.mxu0 %v2604
        %2606 = vmatprep.subr.mxu0 0.0
        %v2607 = vand.u32 %v310, 4294901760
        %v2608 = vsub.f32 %v310, %v2607
        %v2609 = vand.u32 %v2608, 4294901760
        %2610 = vmatpush1.msra.mxu0 %v2609
        %2611 = vmatprep.subr.mxu0 0.0
        %v2612 = vand.u32 %v311, 4294901760
        %v2613 = vsub.f32 %v311, %v2612
        %v2614 = vand.u32 %v2613, 4294901760
        %2615 = vmatpush1.msra.mxu0 %v2614
        %2616 = vmatprep.subr.mxu0 0.0
        %v2617 = vand.u32 %v312, 4294901760
        %v2618 = vsub.f32 %v312, %v2617
        %v2619 = vand.u32 %v2618, 4294901760
        %2620 = vmatpush1.msra.mxu0 %v2619
        %v2621 = vand.u32 %v314, 4294901760
        %2622 = vmatprep.mubr.f32.mxu0 %v2621
        %v2623 = vand.u32 %v313, 4294901760
        %2624 = vmatmul.mubr.f32.gmra.mrb[0].mxu0 %v2623
        %v2625 = vpop.f32.mrb[0].mxu0
        %v2626 = vadd.f32 %v2117, %v2625
        %v2627 = vpop.f32.mrb[0].mxu0
        %v2628 = vand.u32 %v316, 4294901760
        %2629 = vmatprep.mubr.f32.mxu0 %v2628
        %v2630 = vand.u32 %v315, 4294901760
        %2631 = vmatmul.mubr.f32.gmra.mrb[0].mxu0 %v2630
        %v2632 = vpop.f32.mrb[0].mxu0
        %v2633 = vadd.f32 %v2128, %v2632
        %v2634 = vpop.f32.mrb[0].mxu0
        %v2635 = vand.u32 %v318, 4294901760
        %2636 = vmatprep.mubr.f32.mxu0 %v2635
        %v2637 = vand.u32 %v317, 4294901760
        %2638 = vmatmul.mubr.f32.gmra.mrb[0].mxu0 %v2637
        %v2639 = vpop.f32.mrb[0].mxu0
        %v2640 = vadd.f32 %v2139, %v2639
        %v2641 = vpop.f32.mrb[0].mxu0
        %v2642 = vand.u32 %v320, 4294901760
        %2643 = vmatprep.mubr.f32.mxu0 %v2642
        %v2644 = vand.u32 %v319, 4294901760
        %2645 = vmatmul.mubr.f32.gmra.mrb[0].mxu0 %v2644
        %v2646 = vpop.f32.mrb[0].mxu0
        %v2647 = vadd.f32 %v2150, %v2646
        %v2648 = vpop.f32.mrb[0].mxu0
        %v2649 = vand.u32 %v322, 4294901760
        %2650 = vmatprep.mubr.f32.mxu0 %v2649
        %v2651 = vand.u32 %v321, 4294901760
        %2652 = vmatmul.mubr.f32.gmra.mrb[0].mxu0 %v2651
        %v2653 = vpop.f32.mrb[0].mxu0
        %v2654 = vadd.f32 %v2161, %v2653
        %v2655 = vpop.f32.mrb[0].mxu0
        %v2656 = vand.u32 %v324, 4294901760
        %2657 = vmatprep.mubr.f32.mxu0 %v2656
        %v2658 = vand.u32 %v323, 4294901760
        %2659 = vmatmul.mubr.f32.gmra.mrb[0].mxu0 %v2658
        %v2660 = vpop.f32.mrb[0].mxu0
        %v2661 = vadd.f32 %v2172, %v2660
        %v2662 = vpop.f32.mrb[0].mxu0
        %v2663 = vand.u32 %v326, 4294901760
        %2664 = vmatprep.mubr.f32.mxu0 %v2663
        %v2665 = vand.u32 %v325, 4294901760
        %2666 = vmatmul.mubr.f32.gmra.mrb[0].mxu0 %v2665
        %v2667 = vpop.f32.mrb[0].mxu0
        %v2668 = vadd.f32 %v2183, %v2667
        %v2669 = vpop.f32.mrb[0].mxu0
        %v2670 = vand.u32 %v328, 4294901760
        %2671 = vmatprep.mubr.f32.mxu0 %v2670
        %v2672 = vand.u32 %v327, 4294901760
        %2673 = vmatmul.mubr.f32.gmra.mrb[0].mxu0 %v2672
        %v2674 = vpop.f32.mrb[0].mxu0
        %v2675 = vadd.f32 %v2194, %v2674
        %v2676 = vpop.f32.mrb[0].mxu0
        %v2677 = vand.u32 %v330, 4294901760
        %2678 = vmatprep.mubr.f32.mxu0 %v2677
        %v2679 = vand.u32 %v329, 4294901760
        %2680 = vmatmul.mubr.f32.gmra.mrb[0].mxu0 %v2679
        %v2681 = vpop.f32.mrb[0].mxu0
        %v2682 = vadd.f32 %v2205, %v2681
        %v2683 = vpop.f32.mrb[0].mxu0
        %v2684 = vand.u32 %v332, 4294901760
        %2685 = vmatprep.mubr.f32.mxu0 %v2684
        %v2686 = vand.u32 %v331, 4294901760
        %2687 = vmatmul.mubr.f32.gmra.mrb[0].mxu0 %v2686
        %v2688 = vpop.f32.mrb[0].mxu0
        %v2689 = vadd.f32 %v2216, %v2688
        %v2690 = vpop.f32.mrb[0].mxu0
        %v2691 = vand.u32 %v334, 4294901760
        %2692 = vmatprep.mubr.f32.mxu0 %v2691
        %v2693 = vand.u32 %v333, 4294901760
        %2694 = vmatmul.mubr.f32.gmra.mrb[0].mxu0 %v2693
        %v2695 = vpop.f32.mrb[0].mxu0
        %v2696 = vadd.f32 %v2227, %v2695
        %v2697 = vpop.f32.mrb[0].mxu0
        %v2698 = vand.u32 %v336, 4294901760
        %2699 = vmatprep.mubr.f32.mxu0 %v2698
        %v2700 = vand.u32 %v335, 4294901760
        %2701 = vmatmul.mubr.f32.gmra.mrb[0].mxu0 %v2700
        %v2702 = vpop.f32.mrb[0].mxu0
        %v2703 = vadd.f32 %v2238, %v2702
        %v2704 = vpop.f32.mrb[0].mxu0
        %v2705 = vand.u32 %v338, 4294901760
        %2706 = vmatprep.mubr.f32.mxu0 %v2705
        %v2707 = vand.u32 %v337, 4294901760
        %2708 = vmatmul.mubr.f32.gmra.mrb[0].mxu0 %v2707
        %v2709 = vpop.f32.mrb[0].mxu0
        %v2710 = vadd.f32 %v2249, %v2709
        %v2711 = vpop.f32.mrb[0].mxu0
        %v2712 = vand.u32 %v340, 4294901760
        %2713 = vmatprep.mubr.f32.mxu0 %v2712
        %v2714 = vand.u32 %v339, 4294901760
        %2715 = vmatmul.mubr.f32.gmra.mrb[0].mxu0 %v2714
        %v2716 = vpop.f32.mrb[0].mxu0
        %v2717 = vadd.f32 %v2260, %v2716
        %v2718 = vpop.f32.mrb[0].mxu0
        %v2719 = vand.u32 %v342, 4294901760
        %2720 = vmatprep.mubr.f32.mxu0 %v2719
        %v2721 = vand.u32 %v341, 4294901760
        %2722 = vmatmul.mubr.f32.gmra.mrb[0].mxu0 %v2721
        %v2723 = vpop.f32.mrb[0].mxu0
        %v2724 = vadd.f32 %v2271, %v2723
        %v2725 = vpop.f32.mrb[0].mxu0
        %v2726 = vand.u32 %v344, 4294901760
        %2727 = vmatprep.mubr.f32.mxu0 %v2726
        %v2728 = vand.u32 %v343, 4294901760
        %2729 = vmatmul.mubr.f32.gmra.mrb[0].mxu0 %v2728
        %v2730 = vpop.f32.mrb[0].mxu0
        %v2731 = vadd.f32 %v2282, %v2730
        %v2732 = vpop.f32.mrb[0].mxu0
        %v2733 = vand.u32 %v346, 4294901760
        %2734 = vmatprep.mubr.f32.mxu0 %v2733
        %v2735 = vand.u32 %v345, 4294901760
        %2736 = vmatmul.mubr.f32.gmra.mrb[0].mxu0 %v2735
        %v2737 = vpop.f32.mrb[0].mxu0
        %v2738 = vadd.f32 %v2293, %v2737
        %v2739 = vpop.f32.mrb[0].mxu0
        %v2740 = vand.u32 %v348, 4294901760
        %2741 = vmatprep.mubr.f32.mxu0 %v2740
        %v2742 = vand.u32 %v347, 4294901760
        %2743 = vmatmul.mubr.f32.gmra.mrb[0].mxu0 %v2742
        %v2744 = vpop.f32.mrb[0].mxu0
        %v2745 = vadd.f32 %v2304, %v2744
        %v2746 = vpop.f32.mrb[0].mxu0
        %v2747 = vand.u32 %v350, 4294901760
        %2748 = vmatprep.mubr.f32.mxu0 %v2747
        %v2749 = vand.u32 %v349, 4294901760
        %2750 = vmatmul.mubr.f32.gmra.mrb[0].mxu0 %v2749
        %v2751 = vpop.f32.mrb[0].mxu0
        %v2752 = vadd.f32 %v2315, %v2751
        %v2753 = vpop.f32.mrb[0].mxu0
        %v2754 = vand.u32 %v352, 4294901760
        %2755 = vmatprep.mubr.f32.mxu0 %v2754
        %v2756 = vand.u32 %v351, 4294901760
        %2757 = vmatmul.mubr.f32.gmra.mrb[0].mxu0 %v2756
        %v2758 = vpop.f32.mrb[0].mxu0
        %v2759 = vadd.f32 %v2326, %v2758
        %v2760 = vpop.f32.mrb[0].mxu0
        %v2761 = vand.u32 %v354, 4294901760
        %2762 = vmatprep.mubr.f32.mxu0 %v2761
        %v2763 = vand.u32 %v353, 4294901760
        %2764 = vmatmul.mubr.f32.gmra.mrb[0].mxu0 %v2763
        %v2765 = vpop.f32.mrb[0].mxu0
        %v2766 = vadd.f32 %v2337, %v2765
        %v2767 = vpop.f32.mrb[0].mxu0
        %v2768 = vand.u32 %v356, 4294901760
        %2769 = vmatprep.mubr.f32.mxu0 %v2768
        %v2770 = vand.u32 %v355, 4294901760
        %2771 = vmatmul.mubr.f32.gmra.mrb[0].mxu0 %v2770
        %v2772 = vpop.f32.mrb[0].mxu0
        %v2773 = vadd.f32 %v2348, %v2772
        %v2774 = vpop.f32.mrb[0].mxu0
        %v2775 = vand.u32 %v358, 4294901760
        %2776 = vmatprep.mubr.f32.mxu0 %v2775
        %v2777 = vand.u32 %v357, 4294901760
        %2778 = vmatmul.mubr.f32.gmra.mrb[0].mxu0 %v2777
        %v2779 = vpop.f32.mrb[0].mxu0
        %v2780 = vadd.f32 %v2359, %v2779
        %v2781 = vpop.f32.mrb[0].mxu0
        %v2782 = vand.u32 %v360, 4294901760
        %2783 = vmatprep.mubr.f32.mxu0 %v2782
        %v2784 = vand.u32 %v359, 4294901760
        %2785 = vmatmul.mubr.f32.gmra.mrb[0].mxu0 %v2784
        %v2786 = vpop.f32.mrb[0].mxu0
        %v2787 = vadd.f32 %v2370, %v2786
        %v2788 = vpop.f32.mrb[0].mxu0
        %v2789 = vand.u32 %v362, 4294901760
        %2790 = vmatprep.mubr.f32.mxu0 %v2789
        %v2791 = vand.u32 %v361, 4294901760
        %2792 = vmatmul.mubr.f32.gmra.mrb[0].mxu0 %v2791
        %v2793 = vpop.f32.mrb[0].mxu0
        %v2794 = vadd.f32 %v2381, %v2793
        %v2795 = vpop.f32.mrb[0].mxu0
        %v2796 = vand.u32 %v364, 4294901760
        %2797 = vmatprep.mubr.f32.mxu0 %v2796
        %v2798 = vand.u32 %v363, 4294901760
        %2799 = vmatmul.mubr.f32.gmra.mrb[0].mxu0 %v2798
        %v2800 = vpop.f32.mrb[0].mxu0
        %v2801 = vadd.f32 %v2392, %v2800
        %v2802 = vpop.f32.mrb[0].mxu0
        %v2803 = vand.u32 %v366, 4294901760
        %2804 = vmatprep.mubr.f32.mxu0 %v2803
        %v2805 = vand.u32 %v365, 4294901760
        %2806 = vmatmul.mubr.f32.gmra.mrb[0].mxu0 %v2805
        %v2807 = vpop.f32.mrb[0].mxu0
        %v2808 = vadd.f32 %v2403, %v2807
        %v2809 = vpop.f32.mrb[0].mxu0
        %v2810 = vand.u32 %v368, 4294901760
        %2811 = vmatprep.mubr.f32.mxu0 %v2810
        %v2812 = vand.u32 %v367, 4294901760
        %2813 = vmatmul.mubr.f32.gmra.mrb[0].mxu0 %v2812
        %v2814 = vpop.f32.mrb[0].mxu0
        %v2815 = vadd.f32 %v2414, %v2814
        %v2816 = vpop.f32.mrb[0].mxu0
        %v2817 = vand.u32 %v370, 4294901760
        %2818 = vmatprep.mubr.f32.mxu0 %v2817
        %v2819 = vand.u32 %v369, 4294901760
        %2820 = vmatmul.mubr.f32.gmra.mrb[0].mxu0 %v2819
        %v2821 = vpop.f32.mrb[0].mxu0
        %v2822 = vadd.f32 %v2425, %v2821
        %v2823 = vpop.f32.mrb[0].mxu0
        %v2824 = vand.u32 %v372, 4294901760
        %2825 = vmatprep.mubr.f32.mxu0 %v2824
        %v2826 = vand.u32 %v371, 4294901760
        %2827 = vmatmul.mubr.f32.gmra.mrb[0].mxu0 %v2826
        %v2828 = vpop.f32.mrb[0].mxu0
        %v2829 = vadd.f32 %v2436, %v2828
        %v2830 = vpop.f32.mrb[0].mxu0
        %v2831 = vand.u32 %v374, 4294901760
        %2832 = vmatprep.mubr.f32.mxu0 %v2831
        %v2833 = vand.u32 %v373, 4294901760
        %2834 = vmatmul.mubr.f32.gmra.mrb[0].mxu0 %v2833
        %v2835 = vpop.f32.mrb[0].mxu0
        %v2836 = vadd.f32 %v2447, %v2835
        %v2837 = vpop.f32.mrb[0].mxu0
        %v2838 = vand.u32 %v376, 4294901760
        %2839 = vmatprep.mubr.f32.mxu0 %v2838
        %v2840 = vand.u32 %v375, 4294901760
        %2841 = vmatmul.mubr.f32.gmra.mrb[0].mxu0 %v2840
        %v2842 = vpop.f32.mrb[0].mxu0
        %v2843 = vadd.f32 %v2458, %v2842
        %v2844 = vpop.f32.mrb[0].mxu0
        %2845 = vdwg.mxu0
        %2846 = vmatprep.subr.mxu0 0.0
        %v2847 = vand.u32 %v281, 4294901760
        %2848 = vmatpush1.msra.mxu0 %v2847
        %2849 = vmatprep.subr.mxu0 0.0
        %v2850 = vand.u32 %v282, 4294901760
        %2851 = vmatpush1.msra.mxu0 %v2850
        %2852 = vmatprep.subr.mxu0 0.0
        %v2853 = vand.u32 %v283, 4294901760
        %2854 = vmatpush1.msra.mxu0 %v2853
        %2855 = vmatprep.subr.mxu0 0.0
        %v2856 = vand.u32 %v284, 4294901760
        %2857 = vmatpush1.msra.mxu0 %v2856
        %2858 = vmatprep.subr.mxu0 0.0
        %v2859 = vand.u32 %v285, 4294901760
        %2860 = vmatpush1.msra.mxu0 %v2859
        %2861 = vmatprep.subr.mxu0 0.0
        %v2862 = vand.u32 %v286, 4294901760
        %2863 = vmatpush1.msra.mxu0 %v2862
        %2864 = vmatprep.subr.mxu0 0.0
        %v2865 = vand.u32 %v287, 4294901760
        %2866 = vmatpush1.msra.mxu0 %v2865
        %2867 = vmatprep.subr.mxu0 0.0
        %v2868 = vand.u32 %v288, 4294901760
        %2869 = vmatpush1.msra.mxu0 %v2868
        %2870 = vmatprep.subr.mxu0 0.0
        %v2871 = vand.u32 %v289, 4294901760
        %2872 = vmatpush1.msra.mxu0 %v2871
        %2873 = vmatprep.subr.mxu0 0.0
        %v2874 = vand.u32 %v290, 4294901760
        %2875 = vmatpush1.msra.mxu0 %v2874
        %2876 = vmatprep.subr.mxu0 0.0
        %v2877 = vand.u32 %v291, 4294901760
        %2878 = vmatpush1.msra.mxu0 %v2877
        %2879 = vmatprep.subr.mxu0 0.0
        %v2880 = vand.u32 %v292, 4294901760
        %2881 = vmatpush1.msra.mxu0 %v2880
        %2882 = vmatprep.subr.mxu0 0.0
        %v2883 = vand.u32 %v293, 4294901760
        %2884 = vmatpush1.msra.mxu0 %v2883
        %2885 = vmatprep.subr.mxu0 0.0
        %v2886 = vand.u32 %v294, 4294901760
        %2887 = vmatpush1.msra.mxu0 %v2886
        %2888 = vmatprep.subr.mxu0 0.0
        %v2889 = vand.u32 %v295, 4294901760
        %2890 = vmatpush1.msra.mxu0 %v2889
        %2891 = vmatprep.subr.mxu0 0.0
        %v2892 = vand.u32 %v296, 4294901760
        %2893 = vmatpush1.msra.mxu0 %v2892
        %2894 = vmatprep.subr.mxu0 0.0
        %v2895 = vand.u32 %v297, 4294901760
        %2896 = vmatpush1.msra.mxu0 %v2895
        %2897 = vmatprep.subr.mxu0 0.0
        %v2898 = vand.u32 %v298, 4294901760
        %2899 = vmatpush1.msra.mxu0 %v2898
        %2900 = vmatprep.subr.mxu0 0.0
        %v2901 = vand.u32 %v299, 4294901760
        %2902 = vmatpush1.msra.mxu0 %v2901
        %2903 = vmatprep.subr.mxu0 0.0
        %v2904 = vand.u32 %v300, 4294901760
        %2905 = vmatpush1.msra.mxu0 %v2904
        %2906 = vmatprep.subr.mxu0 0.0
        %v2907 = vand.u32 %v301, 4294901760
        %2908 = vmatpush1.msra.mxu0 %v2907
        %2909 = vmatprep.subr.mxu0 0.0
        %v2910 = vand.u32 %v302, 4294901760
        %2911 = vmatpush1.msra.mxu0 %v2910
        %2912 = vmatprep.subr.mxu0 0.0
        %v2913 = vand.u32 %v303, 4294901760
        %2914 = vmatpush1.msra.mxu0 %v2913
        %2915 = vmatprep.subr.mxu0 0.0
        %v2916 = vand.u32 %v304, 4294901760
        %2917 = vmatpush1.msra.mxu0 %v2916
        %2918 = vmatprep.subr.mxu0 0.0
        %v2919 = vand.u32 %v305, 4294901760
        %2920 = vmatpush1.msra.mxu0 %v2919
        %2921 = vmatprep.subr.mxu0 0.0
        %v2922 = vand.u32 %v306, 4294901760
        %2923 = vmatpush1.msra.mxu0 %v2922
        %2924 = vmatprep.subr.mxu0 0.0
        %v2925 = vand.u32 %v307, 4294901760
        %2926 = vmatpush1.msra.mxu0 %v2925
        %2927 = vmatprep.subr.mxu0 0.0
        %v2928 = vand.u32 %v308, 4294901760
        %2929 = vmatpush1.msra.mxu0 %v2928
        %2930 = vmatprep.subr.mxu0 0.0
        %v2931 = vand.u32 %v309, 4294901760
        %2932 = vmatpush1.msra.mxu0 %v2931
        %2933 = vmatprep.subr.mxu0 0.0
        %v2934 = vand.u32 %v310, 4294901760
        %2935 = vmatpush1.msra.mxu0 %v2934
        %2936 = vmatprep.subr.mxu0 0.0
        %v2937 = vand.u32 %v311, 4294901760
        %2938 = vmatpush1.msra.mxu0 %v2937
        %2939 = vmatprep.subr.mxu0 0.0
        %v2940 = vand.u32 %v312, 4294901760
        %2941 = vmatpush1.msra.mxu0 %v2940
        %v2942 = vand.u32 %v314, 4294901760
        %2943 = vmatprep.mubr.f32.mxu0 %v2942
        %v2944 = vand.u32 %v313, 4294901760
        %2945 = vmatmul.mubr.f32.gmra.mrb[0].mxu0 %v2944
        %v2946 = vpop.f32.mrb[0].mxu0
        %v2947 = vadd.f32 %v2626, %v2946
        %v2948 = vpop.f32.mrb[0].mxu0
        %v2949 = vand.u32 %v316, 4294901760
        %2950 = vmatprep.mubr.f32.mxu0 %v2949
        %v2951 = vand.u32 %v315, 4294901760
        %2952 = vmatmul.mubr.f32.gmra.mrb[0].mxu0 %v2951
        %v2953 = vpop.f32.mrb[0].mxu0
        %v2954 = vadd.f32 %v2633, %v2953
        %v2955 = vpop.f32.mrb[0].mxu0
        %v2956 = vand.u32 %v318, 4294901760
        %2957 = vmatprep.mubr.f32.mxu0 %v2956
        %v2958 = vand.u32 %v317, 4294901760
        %2959 = vmatmul.mubr.f32.gmra.mrb[0].mxu0 %v2958
        %v2960 = vpop.f32.mrb[0].mxu0
        %v2961 = vadd.f32 %v2640, %v2960
        %v2962 = vpop.f32.mrb[0].mxu0
        %v2963 = vand.u32 %v320, 4294901760
        %2964 = vmatprep.mubr.f32.mxu0 %v2963
        %v2965 = vand.u32 %v319, 4294901760
        %2966 = vmatmul.mubr.f32.gmra.mrb[0].mxu0 %v2965
        %v2967 = vpop.f32.mrb[0].mxu0
        %v2968 = vadd.f32 %v2647, %v2967
        %v2969 = vpop.f32.mrb[0].mxu0
        %v2970 = vand.u32 %v322, 4294901760
        %2971 = vmatprep.mubr.f32.mxu0 %v2970
        %v2972 = vand.u32 %v321, 4294901760
        %2973 = vmatmul.mubr.f32.gmra.mrb[0].mxu0 %v2972
        %v2974 = vpop.f32.mrb[0].mxu0
        %v2975 = vadd.f32 %v2654, %v2974
        %v2976 = vpop.f32.mrb[0].mxu0
        %v2977 = vand.u32 %v324, 4294901760
        %2978 = vmatprep.mubr.f32.mxu0 %v2977
        %v2979 = vand.u32 %v323, 4294901760
        %2980 = vmatmul.mubr.f32.gmra.mrb[0].mxu0 %v2979
        %v2981 = vpop.f32.mrb[0].mxu0
        %v2982 = vadd.f32 %v2661, %v2981
        %v2983 = vpop.f32.mrb[0].mxu0
        %v2984 = vand.u32 %v326, 4294901760
        %2985 = vmatprep.mubr.f32.mxu0 %v2984
        %v2986 = vand.u32 %v325, 4294901760
        %2987 = vmatmul.mubr.f32.gmra.mrb[0].mxu0 %v2986
        %v2988 = vpop.f32.mrb[0].mxu0
        %v2989 = vadd.f32 %v2668, %v2988
        %v2990 = vpop.f32.mrb[0].mxu0
        %v2991 = vand.u32 %v328, 4294901760
        %2992 = vmatprep.mubr.f32.mxu0 %v2991
        %v2993 = vand.u32 %v327, 4294901760
        %2994 = vmatmul.mubr.f32.gmra.mrb[0].mxu0 %v2993
        %v2995 = vpop.f32.mrb[0].mxu0
        %v2996 = vadd.f32 %v2675, %v2995
        %v2997 = vpop.f32.mrb[0].mxu0
        %v2998 = vand.u32 %v330, 4294901760
        %2999 = vmatprep.mubr.f32.mxu0 %v2998
        %v3000 = vand.u32 %v329, 4294901760
        %3001 = vmatmul.mubr.f32.gmra.mrb[0].mxu0 %v3000
        %v3002 = vpop.f32.mrb[0].mxu0
        %v3003 = vadd.f32 %v2682, %v3002
        %v3004 = vpop.f32.mrb[0].mxu0
        %v3005 = vand.u32 %v332, 4294901760
        %3006 = vmatprep.mubr.f32.mxu0 %v3005
        %v3007 = vand.u32 %v331, 4294901760
        %3008 = vmatmul.mubr.f32.gmra.mrb[0].mxu0 %v3007
        %v3009 = vpop.f32.mrb[0].mxu0
        %v3010 = vadd.f32 %v2689, %v3009
        %v3011 = vpop.f32.mrb[0].mxu0
        %v3012 = vand.u32 %v334, 4294901760
        %3013 = vmatprep.mubr.f32.mxu0 %v3012
        %v3014 = vand.u32 %v333, 4294901760
        %3015 = vmatmul.mubr.f32.gmra.mrb[0].mxu0 %v3014
        %v3016 = vpop.f32.mrb[0].mxu0
        %v3017 = vadd.f32 %v2696, %v3016
        %v3018 = vpop.f32.mrb[0].mxu0
        %v3019 = vand.u32 %v336, 4294901760
        %3020 = vmatprep.mubr.f32.mxu0 %v3019
        %v3021 = vand.u32 %v335, 4294901760
        %3022 = vmatmul.mubr.f32.gmra.mrb[0].mxu0 %v3021
        %v3023 = vpop.f32.mrb[0].mxu0
        %v3024 = vadd.f32 %v2703, %v3023
        %v3025 = vpop.f32.mrb[0].mxu0
        %v3026 = vand.u32 %v338, 4294901760
        %3027 = vmatprep.mubr.f32.mxu0 %v3026
        %v3028 = vand.u32 %v337, 4294901760
        %3029 = vmatmul.mubr.f32.gmra.mrb[0].mxu0 %v3028
        %v3030 = vpop.f32.mrb[0].mxu0
        %v3031 = vadd.f32 %v2710, %v3030
        %v3032 = vpop.f32.mrb[0].mxu0
        %v3033 = vand.u32 %v340, 4294901760
        %3034 = vmatprep.mubr.f32.mxu0 %v3033
        %v3035 = vand.u32 %v339, 4294901760
        %3036 = vmatmul.mubr.f32.gmra.mrb[0].mxu0 %v3035
        %v3037 = vpop.f32.mrb[0].mxu0
        %v3038 = vadd.f32 %v2717, %v3037
        %v3039 = vpop.f32.mrb[0].mxu0
        %v3040 = vand.u32 %v342, 4294901760
        %3041 = vmatprep.mubr.f32.mxu0 %v3040
        %v3042 = vand.u32 %v341, 4294901760
        %3043 = vmatmul.mubr.f32.gmra.mrb[0].mxu0 %v3042
        %v3044 = vpop.f32.mrb[0].mxu0
        %v3045 = vadd.f32 %v2724, %v3044
        %v3046 = vpop.f32.mrb[0].mxu0
        %v3047 = vand.u32 %v344, 4294901760
        %3048 = vmatprep.mubr.f32.mxu0 %v3047
        %v3049 = vand.u32 %v343, 4294901760
        %3050 = vmatmul.mubr.f32.gmra.mrb[0].mxu0 %v3049
        %v3051 = vpop.f32.mrb[0].mxu0
        %v3052 = vadd.f32 %v2731, %v3051
        %v3053 = vpop.f32.mrb[0].mxu0
        %v3054 = vand.u32 %v346, 4294901760
        %3055 = vmatprep.mubr.f32.mxu0 %v3054
        %v3056 = vand.u32 %v345, 4294901760
        %3057 = vmatmul.mubr.f32.gmra.mrb[0].mxu0 %v3056
        %v3058 = vpop.f32.mrb[0].mxu0
        %v3059 = vadd.f32 %v2738, %v3058
        %v3060 = vpop.f32.mrb[0].mxu0
        %v3061 = vand.u32 %v348, 4294901760
        %3062 = vmatprep.mubr.f32.mxu0 %v3061
        %v3063 = vand.u32 %v347, 4294901760
        %3064 = vmatmul.mubr.f32.gmra.mrb[0].mxu0 %v3063
        %v3065 = vpop.f32.mrb[0].mxu0
        %v3066 = vadd.f32 %v2745, %v3065
        %v3067 = vpop.f32.mrb[0].mxu0
        %v3068 = vand.u32 %v350, 4294901760
        %3069 = vmatprep.mubr.f32.mxu0 %v3068
        %v3070 = vand.u32 %v349, 4294901760
        %3071 = vmatmul.mubr.f32.gmra.mrb[0].mxu0 %v3070
        %v3072 = vpop.f32.mrb[0].mxu0
        %v3073 = vadd.f32 %v2752, %v3072
        %v3074 = vpop.f32.mrb[0].mxu0
        %v3075 = vand.u32 %v352, 4294901760
        %3076 = vmatprep.mubr.f32.mxu0 %v3075
        %v3077 = vand.u32 %v351, 4294901760
        %3078 = vmatmul.mubr.f32.gmra.mrb[0].mxu0 %v3077
        %v3079 = vpop.f32.mrb[0].mxu0
        %v3080 = vadd.f32 %v2759, %v3079
        %v3081 = vpop.f32.mrb[0].mxu0
        %v3082 = vand.u32 %v354, 4294901760
        %3083 = vmatprep.mubr.f32.mxu0 %v3082
        %v3084 = vand.u32 %v353, 4294901760
        %3085 = vmatmul.mubr.f32.gmra.mrb[0].mxu0 %v3084
        %v3086 = vpop.f32.mrb[0].mxu0
        %v3087 = vadd.f32 %v2766, %v3086
        %v3088 = vpop.f32.mrb[0].mxu0
        %v3089 = vand.u32 %v356, 4294901760
        %3090 = vmatprep.mubr.f32.mxu0 %v3089
        %v3091 = vand.u32 %v355, 4294901760
        %3092 = vmatmul.mubr.f32.gmra.mrb[0].mxu0 %v3091
        %v3093 = vpop.f32.mrb[0].mxu0
        %v3094 = vadd.f32 %v2773, %v3093
        %v3095 = vpop.f32.mrb[0].mxu0
        %v3096 = vand.u32 %v358, 4294901760
        %3097 = vmatprep.mubr.f32.mxu0 %v3096
        %v3098 = vand.u32 %v357, 4294901760
        %3099 = vmatmul.mubr.f32.gmra.mrb[0].mxu0 %v3098
        %v3100 = vpop.f32.mrb[0].mxu0
        %v3101 = vadd.f32 %v2780, %v3100
        %v3102 = vpop.f32.mrb[0].mxu0
        %v3103 = vand.u32 %v360, 4294901760
        %3104 = vmatprep.mubr.f32.mxu0 %v3103
        %v3105 = vand.u32 %v359, 4294901760
        %3106 = vmatmul.mubr.f32.gmra.mrb[0].mxu0 %v3105
        %v3107 = vpop.f32.mrb[0].mxu0
        %v3108 = vadd.f32 %v2787, %v3107
        %v3109 = vpop.f32.mrb[0].mxu0
        %v3110 = vand.u32 %v362, 4294901760
        %3111 = vmatprep.mubr.f32.mxu0 %v3110
        %v3112 = vand.u32 %v361, 4294901760
        %3113 = vmatmul.mubr.f32.gmra.mrb[0].mxu0 %v3112
        %v3114 = vpop.f32.mrb[0].mxu0
        %v3115 = vadd.f32 %v2794, %v3114
        %v3116 = vpop.f32.mrb[0].mxu0
        %v3117 = vand.u32 %v364, 4294901760
        %3118 = vmatprep.mubr.f32.mxu0 %v3117
        %v3119 = vand.u32 %v363, 4294901760
        %3120 = vmatmul.mubr.f32.gmra.mrb[0].mxu0 %v3119
        %v3121 = vpop.f32.mrb[0].mxu0
        %v3122 = vadd.f32 %v2801, %v3121
        %v3123 = vpop.f32.mrb[0].mxu0
        %v3124 = vand.u32 %v366, 4294901760
        %3125 = vmatprep.mubr.f32.mxu0 %v3124
        %v3126 = vand.u32 %v365, 4294901760
        %3127 = vmatmul.mubr.f32.gmra.mrb[0].mxu0 %v3126
        %v3128 = vpop.f32.mrb[0].mxu0
        %v3129 = vadd.f32 %v2808, %v3128
        %v3130 = vpop.f32.mrb[0].mxu0
        %v3131 = vand.u32 %v368, 4294901760
        %3132 = vmatprep.mubr.f32.mxu0 %v3131
        %v3133 = vand.u32 %v367, 4294901760
        %3134 = vmatmul.mubr.f32.gmra.mrb[0].mxu0 %v3133
        %v3135 = vpop.f32.mrb[0].mxu0
        %v3136 = vadd.f32 %v2815, %v3135
        %v3137 = vpop.f32.mrb[0].mxu0
        %v3138 = vand.u32 %v370, 4294901760
        %3139 = vmatprep.mubr.f32.mxu0 %v3138
        %v3140 = vand.u32 %v369, 4294901760
        %3141 = vmatmul.mubr.f32.gmra.mrb[0].mxu0 %v3140
        %v3142 = vpop.f32.mrb[0].mxu0
        %v3143 = vadd.f32 %v2822, %v3142
        %v3144 = vpop.f32.mrb[0].mxu0
        %v3145 = vand.u32 %v372, 4294901760
        %3146 = vmatprep.mubr.f32.mxu0 %v3145
        %v3147 = vand.u32 %v371, 4294901760
        %3148 = vmatmul.mubr.f32.gmra.mrb[0].mxu0 %v3147
        %v3149 = vpop.f32.mrb[0].mxu0
        %v3150 = vadd.f32 %v2829, %v3149
        %v3151 = vpop.f32.mrb[0].mxu0
        %v3152 = vand.u32 %v374, 4294901760
        %3153 = vmatprep.mubr.f32.mxu0 %v3152
        %v3154 = vand.u32 %v373, 4294901760
        %3155 = vmatmul.mubr.f32.gmra.mrb[0].mxu0 %v3154
        %v3156 = vpop.f32.mrb[0].mxu0
        %v3157 = vadd.f32 %v2836, %v3156
        %v3158 = vpop.f32.mrb[0].mxu0
        %v3159 = vand.u32 %v376, 4294901760
        %3160 = vmatprep.mubr.f32.mxu0 %v3159
        %v3161 = vand.u32 %v375, 4294901760
        %3162 = vmatmul.mubr.f32.gmra.mrb[0].mxu0 %v3161
        %v3163 = vpop.f32.mrb[0].mxu0
        %v3164 = vadd.f32 %v2843, %v3163
        %v3165 = vpop.f32.mrb[0].mxu0
        %3166 = vdwg.mxu0
        %3167 = vst [vmem:[%s271] sm:$0xff] %v2947
        %3168 = vst [vmem:[%s271 + $0x8] sm:$0xff] %v2954
        %3169 = vst [vmem:[%s271 + $0x10] sm:$0xff] %v2961
        %3170 = vst [vmem:[%s271 + $0x18] sm:$0xff] %v2968
        %3171 = vst [vmem:[%s271 + $0x20] sm:$0xff] %v2975
        %3172 = vst [vmem:[%s271 + $0x28] sm:$0xff] %v2982
        %3173 = vst [vmem:[%s271 + $0x30] sm:$0xff] %v2989
        %3174 = vst [vmem:[%s271 + $0x38] sm:$0xff] %v2996
        %3175 = vst [vmem:[%s271 + $0x40] sm:$0xff] %v3003
        %3176 = vst [vmem:[%s271 + $0x48] sm:$0xff] %v3010
        %3177 = vst [vmem:[%s271 + $0x50] sm:$0xff] %v3017
        %3178 = vst [vmem:[%s271 + $0x58] sm:$0xff] %v3024
        %3179 = vst [vmem:[%s271 + $0x60] sm:$0xff] %v3031
        %3180 = vst [vmem:[%s271 + $0x68] sm:$0xff] %v3038
        %3181 = vst [vmem:[%s271 + $0x70] sm:$0xff] %v3045
        %3182 = vst [vmem:[%s271 + $0x78] sm:$0xff] %v3052
        %3183 = vst [vmem:[%s271 + $0x80] sm:$0xff] %v3059
        %3184 = vst [vmem:[%s271 + $0x88] sm:$0xff] %v3066
        %3185 = vst [vmem:[%s271 + $0x90] sm:$0xff] %v3073
        %3186 = vst [vmem:[%s271 + $0x98] sm:$0xff] %v3080
        %3187 = vst [vmem:[%s271 + $0xa0] sm:$0xff] %v3087
        %3188 = vst [vmem:[%s271 + $0xa8] sm:$0xff] %v3094
        %3189 = vst [vmem:[%s271 + $0xb0] sm:$0xff] %v3101
        %3190 = vst [vmem:[%s271 + $0xb8] sm:$0xff] %v3108
        %3191 = vst [vmem:[%s271 + $0xc0] sm:$0xff] %v3115
        %3192 = vst [vmem:[%s271 + $0xc8] sm:$0xff] %v3122
        %3193 = vst [vmem:[%s271 + $0xd0] sm:$0xff] %v3129
        %3194 = vst [vmem:[%s271 + $0xd8] sm:$0xff] %v3136
        %3195 = vst [vmem:[%s271 + $0xe0] sm:$0xff] %v3143
        %3196 = vst [vmem:[%s271 + $0xe8] sm:$0xff] %v3150
        %3197 = vst [vmem:[%s271 + $0xf0] sm:$0xff] %v3157
        %3198 = vst [vmem:[%s271 + $0xf8] sm:$0xff] %v3164
        %v3199 = vld [vmem:[%s3] sm:$0xff]
        %v3200 = vld [vmem:[%s3 + $0x8] sm:$0xff]
        %v3201 = vld [vmem:[%s3 + $0x10] sm:$0xff]
        %v3202 = vld [vmem:[%s3 + $0x18] sm:$0xff]
        %v3203 = vld [vmem:[%s4] sm:$0xff]
        %v3204 = vld [vmem:[%s4 + $0x8] sm:$0xff]
        %3206 = vset.pattern.permute.xlu0 0
        %3207 = vperm.xlu0 %3206, %v3203
        %v3208 = vpop.permute.xlu0 %3207
        %3211 = vset.pattern.permute.xlu0 0
        %3212 = vperm.xlu0 %3211, %v3204
        %v3213 = vpop.permute.xlu0 %3212
        %3215 = vmatprep.subr.mxu0 0.0
        %v3216 = vand.u32 %v281, 4294901760
        %3217 = vmatpush1.msra.mxu0 %v3216
        %3218 = vmatprep.subr.mxu0 0.0
        %v3219 = vand.u32 %v282, 4294901760
        %3220 = vmatpush1.msra.mxu0 %v3219
        %3221 = vmatprep.subr.mxu0 0.0
        %v3222 = vand.u32 %v283, 4294901760
        %3223 = vmatpush1.msra.mxu0 %v3222
        %3224 = vmatprep.subr.mxu0 0.0
        %v3225 = vand.u32 %v284, 4294901760
        %3226 = vmatpush1.msra.mxu0 %v3225
        %3227 = vmatprep.subr.mxu0 0.0
        %v3228 = vand.u32 %v285, 4294901760
        %3229 = vmatpush1.msra.mxu0 %v3228
        %3230 = vmatprep.subr.mxu0 0.0
        %v3231 = vand.u32 %v286, 4294901760
        %3232 = vmatpush1.msra.mxu0 %v3231
        %3233 = vmatprep.subr.mxu0 0.0
        %v3234 = vand.u32 %v287, 4294901760
        %3235 = vmatpush1.msra.mxu0 %v3234
        %3236 = vmatprep.subr.mxu0 0.0
        %v3237 = vand.u32 %v288, 4294901760
        %3238 = vmatpush1.msra.mxu0 %v3237
        %3239 = vmatprep.subr.mxu0 0.0
        %v3240 = vand.u32 %v289, 4294901760
        %3241 = vmatpush1.msra.mxu0 %v3240
        %3242 = vmatprep.subr.mxu0 0.0
        %v3243 = vand.u32 %v290, 4294901760
        %3244 = vmatpush1.msra.mxu0 %v3243
        %3245 = vmatprep.subr.mxu0 0.0
        %v3246 = vand.u32 %v291, 4294901760
        %3247 = vmatpush1.msra.mxu0 %v3246
        %3248 = vmatprep.subr.mxu0 0.0
        %v3249 = vand.u32 %v292, 4294901760
        %3250 = vmatpush1.msra.mxu0 %v3249
        %3251 = vmatprep.subr.mxu0 0.0
        %v3252 = vand.u32 %v293, 4294901760
        %3253 = vmatpush1.msra.mxu0 %v3252
        %3254 = vmatprep.subr.mxu0 0.0
        %v3255 = vand.u32 %v294, 4294901760
        %3256 = vmatpush1.msra.mxu0 %v3255
        %3257 = vmatprep.subr.mxu0 0.0
        %v3258 = vand.u32 %v295, 4294901760
        %3259 = vmatpush1.msra.mxu0 %v3258
        %3260 = vmatprep.subr.mxu0 0.0
        %v3261 = vand.u32 %v296, 4294901760
        %3262 = vmatpush1.msra.mxu0 %v3261
        %3263 = vmatprep.subr.mxu0 0.0
        %v3264 = vand.u32 %v297, 4294901760
        %3265 = vmatpush1.msra.mxu0 %v3264
        %3266 = vmatprep.subr.mxu0 0.0
        %v3267 = vand.u32 %v298, 4294901760
        %3268 = vmatpush1.msra.mxu0 %v3267
        %3269 = vmatprep.subr.mxu0 0.0
        %v3270 = vand.u32 %v299, 4294901760
        %3271 = vmatpush1.msra.mxu0 %v3270
        %3272 = vmatprep.subr.mxu0 0.0
        %v3273 = vand.u32 %v300, 4294901760
        %3274 = vmatpush1.msra.mxu0 %v3273
        %3275 = vmatprep.subr.mxu0 0.0
        %v3276 = vand.u32 %v301, 4294901760
        %3277 = vmatpush1.msra.mxu0 %v3276
        %3278 = vmatprep.subr.mxu0 0.0
        %v3279 = vand.u32 %v302, 4294901760
        %3280 = vmatpush1.msra.mxu0 %v3279
        %3281 = vmatprep.subr.mxu0 0.0
        %v3282 = vand.u32 %v303, 4294901760
        %3283 = vmatpush1.msra.mxu0 %v3282
        %3284 = vmatprep.subr.mxu0 0.0
        %v3285 = vand.u32 %v304, 4294901760
        %3286 = vmatpush1.msra.mxu0 %v3285
        %3287 = vmatprep.subr.mxu0 0.0
        %v3288 = vand.u32 %v305, 4294901760
        %3289 = vmatpush1.msra.mxu0 %v3288
        %3290 = vmatprep.subr.mxu0 0.0
        %v3291 = vand.u32 %v306, 4294901760
        %3292 = vmatpush1.msra.mxu0 %v3291
        %3293 = vmatprep.subr.mxu0 0.0
        %v3294 = vand.u32 %v307, 4294901760
        %3295 = vmatpush1.msra.mxu0 %v3294
        %3296 = vmatprep.subr.mxu0 0.0
        %v3297 = vand.u32 %v308, 4294901760
        %3298 = vmatpush1.msra.mxu0 %v3297
        %3299 = vmatprep.subr.mxu0 0.0
        %v3300 = vand.u32 %v309, 4294901760
        %3301 = vmatpush1.msra.mxu0 %v3300
        %3302 = vmatprep.subr.mxu0 0.0
        %v3303 = vand.u32 %v310, 4294901760
        %3304 = vmatpush1.msra.mxu0 %v3303
        %3305 = vmatprep.subr.mxu0 0.0
        %v3306 = vand.u32 %v311, 4294901760
        %3307 = vmatpush1.msra.mxu0 %v3306
        %3308 = vmatprep.subr.mxu0 0.0
        %v3309 = vand.u32 %v312, 4294901760
        %3310 = vmatpush1.msra.mxu0 %v3309
        %v3311 = vand.u32 %v3200, 4294901760
        %v3312 = vsub.f32 %v3200, %v3311
        %v3313 = vand.u32 %v3312, 4294901760
        %v3314 = vsub.f32 %v3312, %v3313
        %v3315 = vand.u32 %v3314, 4294901760
        %3316 = vmatprep.mubr.f32.mxu0 %v3315
        %v3317 = vand.u32 %v3199, 4294901760
        %v3318 = vsub.f32 %v3199, %v3317
        %v3319 = vand.u32 %v3318, 4294901760
        %v3320 = vsub.f32 %v3318, %v3319
        %v3321 = vand.u32 %v3320, 4294901760
        %3322 = vmatmul.mubr.f32.gmra.mrb[0].mxu0 %v3321
        %v3323 = vpop.f32.mrb[0].mxu0
        %v3324 = vadd.f32 %v3208, %v3323
        %v3325 = vpop.f32.mrb[0].mxu0
        %v3326 = vand.u32 %v3202, 4294901760
        %v3327 = vsub.f32 %v3202, %v3326
        %v3328 = vand.u32 %v3327, 4294901760
        %v3329 = vsub.f32 %v3327, %v3328
        %v3330 = vand.u32 %v3329, 4294901760
        %3331 = vmatprep.mubr.f32.mxu0 %v3330
        %v3332 = vand.u32 %v3201, 4294901760
        %v3333 = vsub.f32 %v3201, %v3332
        %v3334 = vand.u32 %v3333, 4294901760
        %v3335 = vsub.f32 %v3333, %v3334
        %v3336 = vand.u32 %v3335, 4294901760
        %3337 = vmatmul.mubr.f32.gmra.mrb[0].mxu0 %v3336
        %v3338 = vpop.f32.mrb[0].mxu0
        %v3339 = vadd.f32 %v3213, %v3338
        %v3340 = vpop.f32.mrb[0].mxu0
        %3341 = vdwg.mxu0
        %3342 = vmatprep.subr.mxu0 0.0
        %v3343 = vand.u32 %v281, 4294901760
        %v3344 = vsub.f32 %v281, %v3343
        %v3345 = vand.u32 %v3344, 4294901760
        %v3346 = vsub.f32 %v3344, %v3345
        %v3347 = vand.u32 %v3346, 4294901760
        %3348 = vmatpush1.msra.mxu0 %v3347
        %3349 = vmatprep.subr.mxu0 0.0
        %v3350 = vand.u32 %v282, 4294901760
        %v3351 = vsub.f32 %v282, %v3350
        %v3352 = vand.u32 %v3351, 4294901760
        %v3353 = vsub.f32 %v3351, %v3352
        %v3354 = vand.u32 %v3353, 4294901760
        %3355 = vmatpush1.msra.mxu0 %v3354
        %3356 = vmatprep.subr.mxu0 0.0
        %v3357 = vand.u32 %v283, 4294901760
        %v3358 = vsub.f32 %v283, %v3357
        %v3359 = vand.u32 %v3358, 4294901760
        %v3360 = vsub.f32 %v3358, %v3359
        %v3361 = vand.u32 %v3360, 4294901760
        %3362 = vmatpush1.msra.mxu0 %v3361
        %3363 = vmatprep.subr.mxu0 0.0
        %v3364 = vand.u32 %v284, 4294901760
        %v3365 = vsub.f32 %v284, %v3364
        %v3366 = vand.u32 %v3365, 4294901760
        %v3367 = vsub.f32 %v3365, %v3366
        %v3368 = vand.u32 %v3367, 4294901760
        %3369 = vmatpush1.msra.mxu0 %v3368
        %3370 = vmatprep.subr.mxu0 0.0
        %v3371 = vand.u32 %v285, 4294901760
        %v3372 = vsub.f32 %v285, %v3371
        %v3373 = vand.u32 %v3372, 4294901760
        %v3374 = vsub.f32 %v3372, %v3373
        %v3375 = vand.u32 %v3374, 4294901760
        %3376 = vmatpush1.msra.mxu0 %v3375
        %3377 = vmatprep.subr.mxu0 0.0
        %v3378 = vand.u32 %v286, 4294901760
        %v3379 = vsub.f32 %v286, %v3378
        %v3380 = vand.u32 %v3379, 4294901760
        %v3381 = vsub.f32 %v3379, %v3380
        %v3382 = vand.u32 %v3381, 4294901760
        %3383 = vmatpush1.msra.mxu0 %v3382
        %3384 = vmatprep.subr.mxu0 0.0
        %v3385 = vand.u32 %v287, 4294901760
        %v3386 = vsub.f32 %v287, %v3385
        %v3387 = vand.u32 %v3386, 4294901760
        %v3388 = vsub.f32 %v3386, %v3387
        %v3389 = vand.u32 %v3388, 4294901760
        %3390 = vmatpush1.msra.mxu0 %v3389
        %3391 = vmatprep.subr.mxu0 0.0
        %v3392 = vand.u32 %v288, 4294901760
        %v3393 = vsub.f32 %v288, %v3392
        %v3394 = vand.u32 %v3393, 4294901760
        %v3395 = vsub.f32 %v3393, %v3394
        %v3396 = vand.u32 %v3395, 4294901760
        %3397 = vmatpush1.msra.mxu0 %v3396
        %3398 = vmatprep.subr.mxu0 0.0
        %v3399 = vand.u32 %v289, 4294901760
        %v3400 = vsub.f32 %v289, %v3399
        %v3401 = vand.u32 %v3400, 4294901760
        %v3402 = vsub.f32 %v3400, %v3401
        %v3403 = vand.u32 %v3402, 4294901760
        %3404 = vmatpush1.msra.mxu0 %v3403
        %3405 = vmatprep.subr.mxu0 0.0
        %v3406 = vand.u32 %v290, 4294901760
        %v3407 = vsub.f32 %v290, %v3406
        %v3408 = vand.u32 %v3407, 4294901760
        %v3409 = vsub.f32 %v3407, %v3408
        %v3410 = vand.u32 %v3409, 4294901760
        %3411 = vmatpush1.msra.mxu0 %v3410
        %3412 = vmatprep.subr.mxu0 0.0
        %v3413 = vand.u32 %v291, 4294901760
        %v3414 = vsub.f32 %v291, %v3413
        %v3415 = vand.u32 %v3414, 4294901760
        %v3416 = vsub.f32 %v3414, %v3415
        %v3417 = vand.u32 %v3416, 4294901760
        %3418 = vmatpush1.msra.mxu0 %v3417
        %3419 = vmatprep.subr.mxu0 0.0
        %v3420 = vand.u32 %v292, 4294901760
        %v3421 = vsub.f32 %v292, %v3420
        %v3422 = vand.u32 %v3421, 4294901760
        %v3423 = vsub.f32 %v3421, %v3422
        %v3424 = vand.u32 %v3423, 4294901760
        %3425 = vmatpush1.msra.mxu0 %v3424
        %3426 = vmatprep.subr.mxu0 0.0
        %v3427 = vand.u32 %v293, 4294901760
        %v3428 = vsub.f32 %v293, %v3427
        %v3429 = vand.u32 %v3428, 4294901760
        %v3430 = vsub.f32 %v3428, %v3429
        %v3431 = vand.u32 %v3430, 4294901760
        %3432 = vmatpush1.msra.mxu0 %v3431
        %3433 = vmatprep.subr.mxu0 0.0
        %v3434 = vand.u32 %v294, 4294901760
        %v3435 = vsub.f32 %v294, %v3434
        %v3436 = vand.u32 %v3435, 4294901760
        %v3437 = vsub.f32 %v3435, %v3436
        %v3438 = vand.u32 %v3437, 4294901760
        %3439 = vmatpush1.msra.mxu0 %v3438
        %3440 = vmatprep.subr.mxu0 0.0
        %v3441 = vand.u32 %v295, 4294901760
        %v3442 = vsub.f32 %v295, %v3441
        %v3443 = vand.u32 %v3442, 4294901760
        %v3444 = vsub.f32 %v3442, %v3443
        %v3445 = vand.u32 %v3444, 4294901760
        %3446 = vmatpush1.msra.mxu0 %v3445
        %3447 = vmatprep.subr.mxu0 0.0
        %v3448 = vand.u32 %v296, 4294901760
        %v3449 = vsub.f32 %v296, %v3448
        %v3450 = vand.u32 %v3449, 4294901760
        %v3451 = vsub.f32 %v3449, %v3450
        %v3452 = vand.u32 %v3451, 4294901760
        %3453 = vmatpush1.msra.mxu0 %v3452
        %3454 = vmatprep.subr.mxu0 0.0
        %v3455 = vand.u32 %v297, 4294901760
        %v3456 = vsub.f32 %v297, %v3455
        %v3457 = vand.u32 %v3456, 4294901760
        %v3458 = vsub.f32 %v3456, %v3457
        %v3459 = vand.u32 %v3458, 4294901760
        %3460 = vmatpush1.msra.mxu0 %v3459
        %3461 = vmatprep.subr.mxu0 0.0
        %v3462 = vand.u32 %v298, 4294901760
        %v3463 = vsub.f32 %v298, %v3462
        %v3464 = vand.u32 %v3463, 4294901760
        %v3465 = vsub.f32 %v3463, %v3464
        %v3466 = vand.u32 %v3465, 4294901760
        %3467 = vmatpush1.msra.mxu0 %v3466
        %3468 = vmatprep.subr.mxu0 0.0
        %v3469 = vand.u32 %v299, 4294901760
        %v3470 = vsub.f32 %v299, %v3469
        %v3471 = vand.u32 %v3470, 4294901760
        %v3472 = vsub.f32 %v3470, %v3471
        %v3473 = vand.u32 %v3472, 4294901760
        %3474 = vmatpush1.msra.mxu0 %v3473
        %3475 = vmatprep.subr.mxu0 0.0
        %v3476 = vand.u32 %v300, 4294901760
        %v3477 = vsub.f32 %v300, %v3476
        %v3478 = vand.u32 %v3477, 4294901760
        %v3479 = vsub.f32 %v3477, %v3478
        %v3480 = vand.u32 %v3479, 4294901760
        %3481 = vmatpush1.msra.mxu0 %v3480
        %3482 = vmatprep.subr.mxu0 0.0
        %v3483 = vand.u32 %v301, 4294901760
        %v3484 = vsub.f32 %v301, %v3483
        %v3485 = vand.u32 %v3484, 4294901760
        %v3486 = vsub.f32 %v3484, %v3485
        %v3487 = vand.u32 %v3486, 4294901760
        %3488 = vmatpush1.msra.mxu0 %v3487
        %3489 = vmatprep.subr.mxu0 0.0
        %v3490 = vand.u32 %v302, 4294901760
        %v3491 = vsub.f32 %v302, %v3490
        %v3492 = vand.u32 %v3491, 4294901760
        %v3493 = vsub.f32 %v3491, %v3492
        %v3494 = vand.u32 %v3493, 4294901760
        %3495 = vmatpush1.msra.mxu0 %v3494
        %3496 = vmatprep.subr.mxu0 0.0
        %v3497 = vand.u32 %v303, 4294901760
        %v3498 = vsub.f32 %v303, %v3497
        %v3499 = vand.u32 %v3498, 4294901760
        %v3500 = vsub.f32 %v3498, %v3499
        %v3501 = vand.u32 %v3500, 4294901760
        %3502 = vmatpush1.msra.mxu0 %v3501
        %3503 = vmatprep.subr.mxu0 0.0
        %v3504 = vand.u32 %v304, 4294901760
        %v3505 = vsub.f32 %v304, %v3504
        %v3506 = vand.u32 %v3505, 4294901760
        %v3507 = vsub.f32 %v3505, %v3506
        %v3508 = vand.u32 %v3507, 4294901760
        %3509 = vmatpush1.msra.mxu0 %v3508
        %3510 = vmatprep.subr.mxu0 0.0
        %v3511 = vand.u32 %v305, 4294901760
        %v3512 = vsub.f32 %v305, %v3511
        %v3513 = vand.u32 %v3512, 4294901760
        %v3514 = vsub.f32 %v3512, %v3513
        %v3515 = vand.u32 %v3514, 4294901760
        %3516 = vmatpush1.msra.mxu0 %v3515
        %3517 = vmatprep.subr.mxu0 0.0
        %v3518 = vand.u32 %v306, 4294901760
        %v3519 = vsub.f32 %v306, %v3518
        %v3520 = vand.u32 %v3519, 4294901760
        %v3521 = vsub.f32 %v3519, %v3520
        %v3522 = vand.u32 %v3521, 4294901760
        %3523 = vmatpush1.msra.mxu0 %v3522
        %3524 = vmatprep.subr.mxu0 0.0
        %v3525 = vand.u32 %v307, 4294901760
        %v3526 = vsub.f32 %v307, %v3525
        %v3527 = vand.u32 %v3526, 4294901760
        %v3528 = vsub.f32 %v3526, %v3527
        %v3529 = vand.u32 %v3528, 4294901760
        %3530 = vmatpush1.msra.mxu0 %v3529
        %3531 = vmatprep.subr.mxu0 0.0
        %v3532 = vand.u32 %v308, 4294901760
        %v3533 = vsub.f32 %v308, %v3532
        %v3534 = vand.u32 %v3533, 4294901760
        %v3535 = vsub.f32 %v3533, %v3534
        %v3536 = vand.u32 %v3535, 4294901760
        %3537 = vmatpush1.msra.mxu0 %v3536
        %3538 = vmatprep.subr.mxu0 0.0
        %v3539 = vand.u32 %v309, 4294901760
        %v3540 = vsub.f32 %v309, %v3539
        %v3541 = vand.u32 %v3540, 4294901760
        %v3542 = vsub.f32 %v3540, %v3541
        %v3543 = vand.u32 %v3542, 4294901760
        %3544 = vmatpush1.msra.mxu0 %v3543
        %3545 = vmatprep.subr.mxu0 0.0
        %v3546 = vand.u32 %v310, 4294901760
        %v3547 = vsub.f32 %v310, %v3546
        %v3548 = vand.u32 %v3547, 4294901760
        %v3549 = vsub.f32 %v3547, %v3548
        %v3550 = vand.u32 %v3549, 4294901760
        %3551 = vmatpush1.msra.mxu0 %v3550
        %3552 = vmatprep.subr.mxu0 0.0
        %v3553 = vand.u32 %v311, 4294901760
        %v3554 = vsub.f32 %v311, %v3553
        %v3555 = vand.u32 %v3554, 4294901760
        %v3556 = vsub.f32 %v3554, %v3555
        %v3557 = vand.u32 %v3556, 4294901760
        %3558 = vmatpush1.msra.mxu0 %v3557
        %3559 = vmatprep.subr.mxu0 0.0
        %v3560 = vand.u32 %v312, 4294901760
        %v3561 = vsub.f32 %v312, %v3560
        %v3562 = vand.u32 %v3561, 4294901760
        %v3563 = vsub.f32 %v3561, %v3562
        %v3564 = vand.u32 %v3563, 4294901760
        %3565 = vmatpush1.msra.mxu0 %v3564
        %v3566 = vand.u32 %v3200, 4294901760
        %3567 = vmatprep.mubr.f32.mxu0 %v3566
        %v3568 = vand.u32 %v3199, 4294901760
        %3569 = vmatmul.mubr.f32.gmra.mrb[0].mxu0 %v3568
        %v3570 = vpop.f32.mrb[0].mxu0
        %v3571 = vadd.f32 %v3324, %v3570
        %v3572 = vpop.f32.mrb[0].mxu0
        %v3573 = vand.u32 %v3202, 4294901760
        %3574 = vmatprep.mubr.f32.mxu0 %v3573
        %v3575 = vand.u32 %v3201, 4294901760
        %3576 = vmatmul.mubr.f32.gmra.mrb[0].mxu0 %v3575
        %v3577 = vpop.f32.mrb[0].mxu0
        %v3578 = vadd.f32 %v3339, %v3577
        %v3579 = vpop.f32.mrb[0].mxu0
        %3580 = vdwg.mxu0
        %3581 = vmatprep.subr.mxu0 0.0
        %v3582 = vand.u32 %v281, 4294901760
        %v3583 = vsub.f32 %v281, %v3582
        %3584 = vmatpush1.msra.mxu0 %v3583
        %3585 = vmatprep.subr.mxu0 0.0
        %v3586 = vand.u32 %v282, 4294901760
        %v3587 = vsub.f32 %v282, %v3586
        %3588 = vmatpush1.msra.mxu0 %v3587
        %3589 = vmatprep.subr.mxu0 0.0
        %v3590 = vand.u32 %v283, 4294901760
        %v3591 = vsub.f32 %v283, %v3590
        %3592 = vmatpush1.msra.mxu0 %v3591
        %3593 = vmatprep.subr.mxu0 0.0
        %v3594 = vand.u32 %v284, 4294901760
        %v3595 = vsub.f32 %v284, %v3594
        %3596 = vmatpush1.msra.mxu0 %v3595
        %3597 = vmatprep.subr.mxu0 0.0
        %v3598 = vand.u32 %v285, 4294901760
        %v3599 = vsub.f32 %v285, %v3598
        %3600 = vmatpush1.msra.mxu0 %v3599
        %3601 = vmatprep.subr.mxu0 0.0
        %v3602 = vand.u32 %v286, 4294901760
        %v3603 = vsub.f32 %v286, %v3602
        %3604 = vmatpush1.msra.mxu0 %v3603
        %3605 = vmatprep.subr.mxu0 0.0
        %v3606 = vand.u32 %v287, 4294901760
        %v3607 = vsub.f32 %v287, %v3606
        %3608 = vmatpush1.msra.mxu0 %v3607
        %3609 = vmatprep.subr.mxu0 0.0
        %v3610 = vand.u32 %v288, 4294901760
        %v3611 = vsub.f32 %v288, %v3610
        %3612 = vmatpush1.msra.mxu0 %v3611
        %3613 = vmatprep.subr.mxu0 0.0
        %v3614 = vand.u32 %v289, 4294901760
        %v3615 = vsub.f32 %v289, %v3614
        %3616 = vmatpush1.msra.mxu0 %v3615
        %3617 = vmatprep.subr.mxu0 0.0
        %v3618 = vand.u32 %v290, 4294901760
        %v3619 = vsub.f32 %v290, %v3618
        %3620 = vmatpush1.msra.mxu0 %v3619
        %3621 = vmatprep.subr.mxu0 0.0
        %v3622 = vand.u32 %v291, 4294901760
        %v3623 = vsub.f32 %v291, %v3622
        %3624 = vmatpush1.msra.mxu0 %v3623
        %3625 = vmatprep.subr.mxu0 0.0
        %v3626 = vand.u32 %v292, 4294901760
        %v3627 = vsub.f32 %v292, %v3626
        %3628 = vmatpush1.msra.mxu0 %v3627
        %3629 = vmatprep.subr.mxu0 0.0
        %v3630 = vand.u32 %v293, 4294901760
        %v3631 = vsub.f32 %v293, %v3630
        %3632 = vmatpush1.msra.mxu0 %v3631
        %3633 = vmatprep.subr.mxu0 0.0
        %v3634 = vand.u32 %v294, 4294901760
        %v3635 = vsub.f32 %v294, %v3634
        %3636 = vmatpush1.msra.mxu0 %v3635
        %3637 = vmatprep.subr.mxu0 0.0
        %v3638 = vand.u32 %v295, 4294901760
        %v3639 = vsub.f32 %v295, %v3638
        %3640 = vmatpush1.msra.mxu0 %v3639
        %3641 = vmatprep.subr.mxu0 0.0
        %v3642 = vand.u32 %v296, 4294901760
        %v3643 = vsub.f32 %v296, %v3642
        %3644 = vmatpush1.msra.mxu0 %v3643
        %3645 = vmatprep.subr.mxu0 0.0
        %v3646 = vand.u32 %v297, 4294901760
        %v3647 = vsub.f32 %v297, %v3646
        %3648 = vmatpush1.msra.mxu0 %v3647
        %3649 = vmatprep.subr.mxu0 0.0
        %v3650 = vand.u32 %v298, 4294901760
        %v3651 = vsub.f32 %v298, %v3650
        %3652 = vmatpush1.msra.mxu0 %v3651
        %3653 = vmatprep.subr.mxu0 0.0
        %v3654 = vand.u32 %v299, 4294901760
        %v3655 = vsub.f32 %v299, %v3654
        %3656 = vmatpush1.msra.mxu0 %v3655
        %3657 = vmatprep.subr.mxu0 0.0
        %v3658 = vand.u32 %v300, 4294901760
        %v3659 = vsub.f32 %v300, %v3658
        %3660 = vmatpush1.msra.mxu0 %v3659
        %3661 = vmatprep.subr.mxu0 0.0
        %v3662 = vand.u32 %v301, 4294901760
        %v3663 = vsub.f32 %v301, %v3662
        %3664 = vmatpush1.msra.mxu0 %v3663
        %3665 = vmatprep.subr.mxu0 0.0
        %v3666 = vand.u32 %v302, 4294901760
        %v3667 = vsub.f32 %v302, %v3666
        %3668 = vmatpush1.msra.mxu0 %v3667
        %3669 = vmatprep.subr.mxu0 0.0
        %v3670 = vand.u32 %v303, 4294901760
        %v3671 = vsub.f32 %v303, %v3670
        %3672 = vmatpush1.msra.mxu0 %v3671
        %3673 = vmatprep.subr.mxu0 0.0
        %v3674 = vand.u32 %v304, 4294901760
        %v3675 = vsub.f32 %v304, %v3674
        %3676 = vmatpush1.msra.mxu0 %v3675
        %3677 = vmatprep.subr.mxu0 0.0
        %v3678 = vand.u32 %v305, 4294901760
        %v3679 = vsub.f32 %v305, %v3678
        %3680 = vmatpush1.msra.mxu0 %v3679
        %3681 = vmatprep.subr.mxu0 0.0
        %v3682 = vand.u32 %v306, 4294901760
        %v3683 = vsub.f32 %v306, %v3682
        %3684 = vmatpush1.msra.mxu0 %v3683
        %3685 = vmatprep.subr.mxu0 0.0
        %v3686 = vand.u32 %v307, 4294901760
        %v3687 = vsub.f32 %v307, %v3686
        %3688 = vmatpush1.msra.mxu0 %v3687
        %3689 = vmatprep.subr.mxu0 0.0
        %v3690 = vand.u32 %v308, 4294901760
        %v3691 = vsub.f32 %v308, %v3690
        %3692 = vmatpush1.msra.mxu0 %v3691
        %3693 = vmatprep.subr.mxu0 0.0
        %v3694 = vand.u32 %v309, 4294901760
        %v3695 = vsub.f32 %v309, %v3694
        %3696 = vmatpush1.msra.mxu0 %v3695
        %3697 = vmatprep.subr.mxu0 0.0
        %v3698 = vand.u32 %v310, 4294901760
        %v3699 = vsub.f32 %v310, %v3698
        %3700 = vmatpush1.msra.mxu0 %v3699
        %3701 = vmatprep.subr.mxu0 0.0
        %v3702 = vand.u32 %v311, 4294901760
        %v3703 = vsub.f32 %v311, %v3702
        %3704 = vmatpush1.msra.mxu0 %v3703
        %3705 = vmatprep.subr.mxu0 0.0
        %v3706 = vand.u32 %v312, 4294901760
        %v3707 = vsub.f32 %v312, %v3706
        %3708 = vmatpush1.msra.mxu0 %v3707
        %v3709 = vand.u32 %v3200, 4294901760
        %v3710 = vsub.f32 %v3200, %v3709
        %3711 = vmatprep.mubr.f32.mxu0 %v3710
        %v3712 = vand.u32 %v3199, 4294901760
        %v3713 = vsub.f32 %v3199, %v3712
        %3714 = vmatmul.mubr.f32.gmra.mrb[0].mxu0 %v3713
        %v3715 = vpop.f32.mrb[0].mxu0
        %v3716 = vadd.f32 %v3571, %v3715
        %v3717 = vpop.f32.mrb[0].mxu0
        %v3718 = vand.u32 %v3202, 4294901760
        %v3719 = vsub.f32 %v3202, %v3718
        %3720 = vmatprep.mubr.f32.mxu0 %v3719
        %v3721 = vand.u32 %v3201, 4294901760
        %v3722 = vsub.f32 %v3201, %v3721
        %3723 = vmatmul.mubr.f32.gmra.mrb[0].mxu0 %v3722
        %v3724 = vpop.f32.mrb[0].mxu0
        %v3725 = vadd.f32 %v3578, %v3724
        %v3726 = vpop.f32.mrb[0].mxu0
        %3727 = vdwg.mxu0
        %3728 = vmatprep.subr.mxu0 0.0
        %v3729 = vand.u32 %v281, 4294901760
        %3730 = vmatpush1.msra.mxu0 %v3729
        %3731 = vmatprep.subr.mxu0 0.0
        %v3732 = vand.u32 %v282, 4294901760
        %3733 = vmatpush1.msra.mxu0 %v3732
        %3734 = vmatprep.subr.mxu0 0.0
        %v3735 = vand.u32 %v283, 4294901760
        %3736 = vmatpush1.msra.mxu0 %v3735
        %3737 = vmatprep.subr.mxu0 0.0
        %v3738 = vand.u32 %v284, 4294901760
        %3739 = vmatpush1.msra.mxu0 %v3738
        %3740 = vmatprep.subr.mxu0 0.0
        %v3741 = vand.u32 %v285, 4294901760
        %3742 = vmatpush1.msra.mxu0 %v3741
        %3743 = vmatprep.subr.mxu0 0.0
        %v3744 = vand.u32 %v286, 4294901760
        %3745 = vmatpush1.msra.mxu0 %v3744
        %3746 = vmatprep.subr.mxu0 0.0
        %v3747 = vand.u32 %v287, 4294901760
        %3748 = vmatpush1.msra.mxu0 %v3747
        %3749 = vmatprep.subr.mxu0 0.0
        %v3750 = vand.u32 %v288, 4294901760
        %3751 = vmatpush1.msra.mxu0 %v3750
        %3752 = vmatprep.subr.mxu0 0.0
        %v3753 = vand.u32 %v289, 4294901760
        %3754 = vmatpush1.msra.mxu0 %v3753
        %3755 = vmatprep.subr.mxu0 0.0
        %v3756 = vand.u32 %v290, 4294901760
        %3757 = vmatpush1.msra.mxu0 %v3756
        %3758 = vmatprep.subr.mxu0 0.0
        %v3759 = vand.u32 %v291, 4294901760
        %3760 = vmatpush1.msra.mxu0 %v3759
        %3761 = vmatprep.subr.mxu0 0.0
        %v3762 = vand.u32 %v292, 4294901760
        %3763 = vmatpush1.msra.mxu0 %v3762
        %3764 = vmatprep.subr.mxu0 0.0
        %v3765 = vand.u32 %v293, 4294901760
        %3766 = vmatpush1.msra.mxu0 %v3765
        %3767 = vmatprep.subr.mxu0 0.0
        %v3768 = vand.u32 %v294, 4294901760
        %3769 = vmatpush1.msra.mxu0 %v3768
        %3770 = vmatprep.subr.mxu0 0.0
        %v3771 = vand.u32 %v295, 4294901760
        %3772 = vmatpush1.msra.mxu0 %v3771
        %3773 = vmatprep.subr.mxu0 0.0
        %v3774 = vand.u32 %v296, 4294901760
        %3775 = vmatpush1.msra.mxu0 %v3774
        %3776 = vmatprep.subr.mxu0 0.0
        %v3777 = vand.u32 %v297, 4294901760
        %3778 = vmatpush1.msra.mxu0 %v3777
        %3779 = vmatprep.subr.mxu0 0.0
        %v3780 = vand.u32 %v298, 4294901760
        %3781 = vmatpush1.msra.mxu0 %v3780
        %3782 = vmatprep.subr.mxu0 0.0
        %v3783 = vand.u32 %v299, 4294901760
        %3784 = vmatpush1.msra.mxu0 %v3783
        %3785 = vmatprep.subr.mxu0 0.0
        %v3786 = vand.u32 %v300, 4294901760
        %3787 = vmatpush1.msra.mxu0 %v3786
        %3788 = vmatprep.subr.mxu0 0.0
        %v3789 = vand.u32 %v301, 4294901760
        %3790 = vmatpush1.msra.mxu0 %v3789
        %3791 = vmatprep.subr.mxu0 0.0
        %v3792 = vand.u32 %v302, 4294901760
        %3793 = vmatpush1.msra.mxu0 %v3792
        %3794 = vmatprep.subr.mxu0 0.0
        %v3795 = vand.u32 %v303, 4294901760
        %3796 = vmatpush1.msra.mxu0 %v3795
        %3797 = vmatprep.subr.mxu0 0.0
        %v3798 = vand.u32 %v304, 4294901760
        %3799 = vmatpush1.msra.mxu0 %v3798
        %3800 = vmatprep.subr.mxu0 0.0
        %v3801 = vand.u32 %v305, 4294901760
        %3802 = vmatpush1.msra.mxu0 %v3801
        %3803 = vmatprep.subr.mxu0 0.0
        %v3804 = vand.u32 %v306, 4294901760
        %3805 = vmatpush1.msra.mxu0 %v3804
        %3806 = vmatprep.subr.mxu0 0.0
        %v3807 = vand.u32 %v307, 4294901760
        %3808 = vmatpush1.msra.mxu0 %v3807
        %3809 = vmatprep.subr.mxu0 0.0
        %v3810 = vand.u32 %v308, 4294901760
        %3811 = vmatpush1.msra.mxu0 %v3810
        %3812 = vmatprep.subr.mxu0 0.0
        %v3813 = vand.u32 %v309, 4294901760
        %3814 = vmatpush1.msra.mxu0 %v3813
        %3815 = vmatprep.subr.mxu0 0.0
        %v3816 = vand.u32 %v310, 4294901760
        %3817 = vmatpush1.msra.mxu0 %v3816
        %3818 = vmatprep.subr.mxu0 0.0
        %v3819 = vand.u32 %v311, 4294901760
        %3820 = vmatpush1.msra.mxu0 %v3819
        %3821 = vmatprep.subr.mxu0 0.0
        %v3822 = vand.u32 %v312, 4294901760
        %3823 = vmatpush1.msra.mxu0 %v3822
        %v3824 = vand.u32 %v3200, 4294901760
        %v3825 = vsub.f32 %v3200, %v3824
        %v3826 = vand.u32 %v3825, 4294901760
        %3827 = vmatprep.mubr.f32.mxu0 %v3826
        %v3828 = vand.u32 %v3199, 4294901760
        %v3829 = vsub.f32 %v3199, %v3828
        %v3830 = vand.u32 %v3829, 4294901760
        %3831 = vmatmul.mubr.f32.gmra.mrb[0].mxu0 %v3830
        %v3832 = vpop.f32.mrb[0].mxu0
        %v3833 = vadd.f32 %v3716, %v3832
        %v3834 = vpop.f32.mrb[0].mxu0
        %v3835 = vand.u32 %v3202, 4294901760
        %v3836 = vsub.f32 %v3202, %v3835
        %v3837 = vand.u32 %v3836, 4294901760
        %3838 = vmatprep.mubr.f32.mxu0 %v3837
        %v3839 = vand.u32 %v3201, 4294901760
        %v3840 = vsub.f32 %v3201, %v3839
        %v3841 = vand.u32 %v3840, 4294901760
        %3842 = vmatmul.mubr.f32.gmra.mrb[0].mxu0 %v3841
        %v3843 = vpop.f32.mrb[0].mxu0
        %v3844 = vadd.f32 %v3725, %v3843
        %v3845 = vpop.f32.mrb[0].mxu0
        %3846 = vdwg.mxu0
        %3847 = vmatprep.subr.mxu0 0.0
        %v3848 = vand.u32 %v281, 4294901760
        %v3849 = vsub.f32 %v281, %v3848
        %v3850 = vand.u32 %v3849, 4294901760
        %3851 = vmatpush1.msra.mxu0 %v3850
        %3852 = vmatprep.subr.mxu0 0.0
        %v3853 = vand.u32 %v282, 4294901760
        %v3854 = vsub.f32 %v282, %v3853
        %v3855 = vand.u32 %v3854, 4294901760
        %3856 = vmatpush1.msra.mxu0 %v3855
        %3857 = vmatprep.subr.mxu0 0.0
        %v3858 = vand.u32 %v283, 4294901760
        %v3859 = vsub.f32 %v283, %v3858
        %v3860 = vand.u32 %v3859, 4294901760
        %3861 = vmatpush1.msra.mxu0 %v3860
        %3862 = vmatprep.subr.mxu0 0.0
        %v3863 = vand.u32 %v284, 4294901760
        %v3864 = vsub.f32 %v284, %v3863
        %v3865 = vand.u32 %v3864, 4294901760
        %3866 = vmatpush1.msra.mxu0 %v3865
        %3867 = vmatprep.subr.mxu0 0.0
        %v3868 = vand.u32 %v285, 4294901760
        %v3869 = vsub.f32 %v285, %v3868
        %v3870 = vand.u32 %v3869, 4294901760
        %3871 = vmatpush1.msra.mxu0 %v3870
        %3872 = vmatprep.subr.mxu0 0.0
        %v3873 = vand.u32 %v286, 4294901760
        %v3874 = vsub.f32 %v286, %v3873
        %v3875 = vand.u32 %v3874, 4294901760
        %3876 = vmatpush1.msra.mxu0 %v3875
        %3877 = vmatprep.subr.mxu0 0.0
        %v3878 = vand.u32 %v287, 4294901760
        %v3879 = vsub.f32 %v287, %v3878
        %v3880 = vand.u32 %v3879, 4294901760
        %3881 = vmatpush1.msra.mxu0 %v3880
        %3882 = vmatprep.subr.mxu0 0.0
        %v3883 = vand.u32 %v288, 4294901760
        %v3884 = vsub.f32 %v288, %v3883
        %v3885 = vand.u32 %v3884, 4294901760
        %3886 = vmatpush1.msra.mxu0 %v3885
        %3887 = vmatprep.subr.mxu0 0.0
        %v3888 = vand.u32 %v289, 4294901760
        %v3889 = vsub.f32 %v289, %v3888
        %v3890 = vand.u32 %v3889, 4294901760
        %3891 = vmatpush1.msra.mxu0 %v3890
        %3892 = vmatprep.subr.mxu0 0.0
        %v3893 = vand.u32 %v290, 4294901760
        %v3894 = vsub.f32 %v290, %v3893
        %v3895 = vand.u32 %v3894, 4294901760
        %3896 = vmatpush1.msra.mxu0 %v3895
        %3897 = vmatprep.subr.mxu0 0.0
        %v3898 = vand.u32 %v291, 4294901760
        %v3899 = vsub.f32 %v291, %v3898
        %v3900 = vand.u32 %v3899, 4294901760
        %3901 = vmatpush1.msra.mxu0 %v3900
        %3902 = vmatprep.subr.mxu0 0.0
        %v3903 = vand.u32 %v292, 4294901760
        %v3904 = vsub.f32 %v292, %v3903
        %v3905 = vand.u32 %v3904, 4294901760
        %3906 = vmatpush1.msra.mxu0 %v3905
        %3907 = vmatprep.subr.mxu0 0.0
        %v3908 = vand.u32 %v293, 4294901760
        %v3909 = vsub.f32 %v293, %v3908
        %v3910 = vand.u32 %v3909, 4294901760
        %3911 = vmatpush1.msra.mxu0 %v3910
        %3912 = vmatprep.subr.mxu0 0.0
        %v3913 = vand.u32 %v294, 4294901760
        %v3914 = vsub.f32 %v294, %v3913
        %v3915 = vand.u32 %v3914, 4294901760
        %3916 = vmatpush1.msra.mxu0 %v3915
        %3917 = vmatprep.subr.mxu0 0.0
        %v3918 = vand.u32 %v295, 4294901760
        %v3919 = vsub.f32 %v295, %v3918
        %v3920 = vand.u32 %v3919, 4294901760
        %3921 = vmatpush1.msra.mxu0 %v3920
        %3922 = vmatprep.subr.mxu0 0.0
        %v3923 = vand.u32 %v296, 4294901760
        %v3924 = vsub.f32 %v296, %v3923
        %v3925 = vand.u32 %v3924, 4294901760
        %3926 = vmatpush1.msra.mxu0 %v3925
        %3927 = vmatprep.subr.mxu0 0.0
        %v3928 = vand.u32 %v297, 4294901760
        %v3929 = vsub.f32 %v297, %v3928
        %v3930 = vand.u32 %v3929, 4294901760
        %3931 = vmatpush1.msra.mxu0 %v3930
        %3932 = vmatprep.subr.mxu0 0.0
        %v3933 = vand.u32 %v298, 4294901760
        %v3934 = vsub.f32 %v298, %v3933
        %v3935 = vand.u32 %v3934, 4294901760
        %3936 = vmatpush1.msra.mxu0 %v3935
        %3937 = vmatprep.subr.mxu0 0.0
        %v3938 = vand.u32 %v299, 4294901760
        %v3939 = vsub.f32 %v299, %v3938
        %v3940 = vand.u32 %v3939, 4294901760
        %3941 = vmatpush1.msra.mxu0 %v3940
        %3942 = vmatprep.subr.mxu0 0.0
        %v3943 = vand.u32 %v300, 4294901760
        %v3944 = vsub.f32 %v300, %v3943
        %v3945 = vand.u32 %v3944, 4294901760
        %3946 = vmatpush1.msra.mxu0 %v3945
        %3947 = vmatprep.subr.mxu0 0.0
        %v3948 = vand.u32 %v301, 4294901760
        %v3949 = vsub.f32 %v301, %v3948
        %v3950 = vand.u32 %v3949, 4294901760
        %3951 = vmatpush1.msra.mxu0 %v3950
        %3952 = vmatprep.subr.mxu0 0.0
        %v3953 = vand.u32 %v302, 4294901760
        %v3954 = vsub.f32 %v302, %v3953
        %v3955 = vand.u32 %v3954, 4294901760
        %3956 = vmatpush1.msra.mxu0 %v3955
        %3957 = vmatprep.subr.mxu0 0.0
        %v3958 = vand.u32 %v303, 4294901760
        %v3959 = vsub.f32 %v303, %v3958
        %v3960 = vand.u32 %v3959, 4294901760
        %3961 = vmatpush1.msra.mxu0 %v3960
        %3962 = vmatprep.subr.mxu0 0.0
        %v3963 = vand.u32 %v304, 4294901760
        %v3964 = vsub.f32 %v304, %v3963
        %v3965 = vand.u32 %v3964, 4294901760
        %3966 = vmatpush1.msra.mxu0 %v3965
        %3967 = vmatprep.subr.mxu0 0.0
        %v3968 = vand.u32 %v305, 4294901760
        %v3969 = vsub.f32 %v305, %v3968
        %v3970 = vand.u32 %v3969, 4294901760
        %3971 = vmatpush1.msra.mxu0 %v3970
        %3972 = vmatprep.subr.mxu0 0.0
        %v3973 = vand.u32 %v306, 4294901760
        %v3974 = vsub.f32 %v306, %v3973
        %v3975 = vand.u32 %v3974, 4294901760
        %3976 = vmatpush1.msra.mxu0 %v3975
        %3977 = vmatprep.subr.mxu0 0.0
        %v3978 = vand.u32 %v307, 4294901760
        %v3979 = vsub.f32 %v307, %v3978
        %v3980 = vand.u32 %v3979, 4294901760
        %3981 = vmatpush1.msra.mxu0 %v3980
        %3982 = vmatprep.subr.mxu0 0.0
        %v3983 = vand.u32 %v308, 4294901760
        %v3984 = vsub.f32 %v308, %v3983
        %v3985 = vand.u32 %v3984, 4294901760
        %3986 = vmatpush1.msra.mxu0 %v3985
        %3987 = vmatprep.subr.mxu0 0.0
        %v3988 = vand.u32 %v309, 4294901760
        %v3989 = vsub.f32 %v309, %v3988
        %v3990 = vand.u32 %v3989, 4294901760
        %3991 = vmatpush1.msra.mxu0 %v3990
        %3992 = vmatprep.subr.mxu0 0.0
        %v3993 = vand.u32 %v310, 4294901760
        %v3994 = vsub.f32 %v310, %v3993
        %v3995 = vand.u32 %v3994, 4294901760
        %3996 = vmatpush1.msra.mxu0 %v3995
        %3997 = vmatprep.subr.mxu0 0.0
        %v3998 = vand.u32 %v311, 4294901760
        %v3999 = vsub.f32 %v311, %v3998
        %v4000 = vand.u32 %v3999, 4294901760
        %4001 = vmatpush1.msra.mxu0 %v4000
        %4002 = vmatprep.subr.mxu0 0.0
        %v4003 = vand.u32 %v312, 4294901760
        %v4004 = vsub.f32 %v312, %v4003
        %v4005 = vand.u32 %v4004, 4294901760
        %4006 = vmatpush1.msra.mxu0 %v4005
        %v4007 = vand.u32 %v3200, 4294901760
        %4008 = vmatprep.mubr.f32.mxu0 %v4007
        %v4009 = vand.u32 %v3199, 4294901760
        %4010 = vmatmul.mubr.f32.gmra.mrb[0].mxu0 %v4009
        %v4011 = vpop.f32.mrb[0].mxu0
        %v4012 = vadd.f32 %v3833, %v4011
        %v4013 = vpop.f32.mrb[0].mxu0
        %v4014 = vand.u32 %v3202, 4294901760
        %4015 = vmatprep.mubr.f32.mxu0 %v4014
        %v4016 = vand.u32 %v3201, 4294901760
        %4017 = vmatmul.mubr.f32.gmra.mrb[0].mxu0 %v4016
        %v4018 = vpop.f32.mrb[0].mxu0
        %v4019 = vadd.f32 %v3844, %v4018
        %v4020 = vpop.f32.mrb[0].mxu0
        %4021 = vdwg.mxu0
        %4022 = vmatprep.subr.mxu0 0.0
        %v4023 = vand.u32 %v281, 4294901760
        %4024 = vmatpush1.msra.mxu0 %v4023
        %4025 = vmatprep.subr.mxu0 0.0
        %v4026 = vand.u32 %v282, 4294901760
        %4027 = vmatpush1.msra.mxu0 %v4026
        %4028 = vmatprep.subr.mxu0 0.0
        %v4029 = vand.u32 %v283, 4294901760
        %4030 = vmatpush1.msra.mxu0 %v4029
        %4031 = vmatprep.subr.mxu0 0.0
        %v4032 = vand.u32 %v284, 4294901760
        %4033 = vmatpush1.msra.mxu0 %v4032
        %4034 = vmatprep.subr.mxu0 0.0
        %v4035 = vand.u32 %v285, 4294901760
        %4036 = vmatpush1.msra.mxu0 %v4035
        %4037 = vmatprep.subr.mxu0 0.0
        %v4038 = vand.u32 %v286, 4294901760
        %4039 = vmatpush1.msra.mxu0 %v4038
        %4040 = vmatprep.subr.mxu0 0.0
        %v4041 = vand.u32 %v287, 4294901760
        %4042 = vmatpush1.msra.mxu0 %v4041
        %4043 = vmatprep.subr.mxu0 0.0
        %v4044 = vand.u32 %v288, 4294901760
        %4045 = vmatpush1.msra.mxu0 %v4044
        %4046 = vmatprep.subr.mxu0 0.0
        %v4047 = vand.u32 %v289, 4294901760
        %4048 = vmatpush1.msra.mxu0 %v4047
        %4049 = vmatprep.subr.mxu0 0.0
        %v4050 = vand.u32 %v290, 4294901760
        %4051 = vmatpush1.msra.mxu0 %v4050
        %4052 = vmatprep.subr.mxu0 0.0
        %v4053 = vand.u32 %v291, 4294901760
        %4054 = vmatpush1.msra.mxu0 %v4053
        %4055 = vmatprep.subr.mxu0 0.0
        %v4056 = vand.u32 %v292, 4294901760
        %4057 = vmatpush1.msra.mxu0 %v4056
        %4058 = vmatprep.subr.mxu0 0.0
        %v4059 = vand.u32 %v293, 4294901760
        %4060 = vmatpush1.msra.mxu0 %v4059
        %4061 = vmatprep.subr.mxu0 0.0
        %v4062 = vand.u32 %v294, 4294901760
        %4063 = vmatpush1.msra.mxu0 %v4062
        %4064 = vmatprep.subr.mxu0 0.0
        %v4065 = vand.u32 %v295, 4294901760
        %4066 = vmatpush1.msra.mxu0 %v4065
        %4067 = vmatprep.subr.mxu0 0.0
        %v4068 = vand.u32 %v296, 4294901760
        %4069 = vmatpush1.msra.mxu0 %v4068
        %4070 = vmatprep.subr.mxu0 0.0
        %v4071 = vand.u32 %v297, 4294901760
        %4072 = vmatpush1.msra.mxu0 %v4071
        %4073 = vmatprep.subr.mxu0 0.0
        %v4074 = vand.u32 %v298, 4294901760
        %4075 = vmatpush1.msra.mxu0 %v4074
        %4076 = vmatprep.subr.mxu0 0.0
        %v4077 = vand.u32 %v299, 4294901760
        %4078 = vmatpush1.msra.mxu0 %v4077
        %4079 = vmatprep.subr.mxu0 0.0
        %v4080 = vand.u32 %v300, 4294901760
        %4081 = vmatpush1.msra.mxu0 %v4080
        %4082 = vmatprep.subr.mxu0 0.0
        %v4083 = vand.u32 %v301, 4294901760
        %4084 = vmatpush1.msra.mxu0 %v4083
        %4085 = vmatprep.subr.mxu0 0.0
        %v4086 = vand.u32 %v302, 4294901760
        %4087 = vmatpush1.msra.mxu0 %v4086
        %4088 = vmatprep.subr.mxu0 0.0
        %v4089 = vand.u32 %v303, 4294901760
        %4090 = vmatpush1.msra.mxu0 %v4089
        %4091 = vmatprep.subr.mxu0 0.0
        %v4092 = vand.u32 %v304, 4294901760
        %4093 = vmatpush1.msra.mxu0 %v4092
        %4094 = vmatprep.subr.mxu0 0.0
        %v4095 = vand.u32 %v305, 4294901760
        %4096 = vmatpush1.msra.mxu0 %v4095
        %4097 = vmatprep.subr.mxu0 0.0
        %v4098 = vand.u32 %v306, 4294901760
        %4099 = vmatpush1.msra.mxu0 %v4098
        %4100 = vmatprep.subr.mxu0 0.0
        %v4101 = vand.u32 %v307, 4294901760
        %4102 = vmatpush1.msra.mxu0 %v4101
        %4103 = vmatprep.subr.mxu0 0.0
        %v4104 = vand.u32 %v308, 4294901760
        %4105 = vmatpush1.msra.mxu0 %v4104
        %4106 = vmatprep.subr.mxu0 0.0
        %v4107 = vand.u32 %v309, 4294901760
        %4108 = vmatpush1.msra.mxu0 %v4107
        %4109 = vmatprep.subr.mxu0 0.0
        %v4110 = vand.u32 %v310, 4294901760
        %4111 = vmatpush1.msra.mxu0 %v4110
        %4112 = vmatprep.subr.mxu0 0.0
        %v4113 = vand.u32 %v311, 4294901760
        %4114 = vmatpush1.msra.mxu0 %v4113
        %4115 = vmatprep.subr.mxu0 0.0
        %v4116 = vand.u32 %v312, 4294901760
        %4117 = vmatpush1.msra.mxu0 %v4116
        %v4118 = vand.u32 %v3200, 4294901760
        %4119 = vmatprep.mubr.f32.mxu0 %v4118
        %v4120 = vand.u32 %v3199, 4294901760
        %4121 = vmatmul.mubr.f32.gmra.mrb[0].mxu0 %v4120
        %v4122 = vpop.f32.mrb[0].mxu0
        %v4123 = vadd.f32 %v4012, %v4122
        %v4124 = vpop.f32.mrb[0].mxu0
        %v4125 = vand.u32 %v3202, 4294901760
        %4126 = vmatprep.mubr.f32.mxu0 %v4125
        %v4127 = vand.u32 %v3201, 4294901760
        %4128 = vmatmul.mubr.f32.gmra.mrb[0].mxu0 %v4127
        %v4129 = vpop.f32.mrb[0].mxu0
        %v4130 = vadd.f32 %v4019, %v4129
        %v4131 = vpop.f32.mrb[0].mxu0
        %4132 = vdwg.mxu0
        %4133 = vrot.lane.b32.xlu0 %v4123, 1
        %v4134 = vpop.permute.xlu0 %4133
        %v4135 = vsel %vm279, %v4134, 0.0
        %4136 = vrot.lane.b32.xlu0 %v4123, 127
        %v4137 = vpop.permute.xlu0 %4136
        %v4138 = vsel %vm280, %v4137, 0.0
        %v4140 = vrot.slane %v4123, 4
        %vm4142 = vcmask 1043456
        %v4143 = vsel %vm4142, %v4135, %v4140
        %v4144 = vsel %vm4142, %v4138, 0.0
        %v4145 = vld [vmem:[%s5] sm:$0xff]
        %v4146 = vld [vmem:[%s6] sm:$0xff]
        %4148 = vset.pattern.permute.xlu0 0
        %4149 = vperm.xlu0 %4148, %v4146
        %v4150 = vpop.permute.xlu0 %4149
        %vm4152 = vcmask 130048
        %v4154 = vsel %vm4152, %v4145, 0
        %4156 = vmatprep.subr.mxu0 0.0
        %v4157 = vand.u32 %v4143, 4294901760
        %4158 = vmatpush1.msra.mxu0 %v4157
        %4159 = vmatprep.subr.mxu0 0.0
        %v4160 = vand.u32 %v4144, 4294901760
        %4161 = vmatpush1.msra.mxu0 %v4160
        %4162 = vmatprep.subr.mxu0 0.0
        %4163 = vmatpush1.msra.mxu0 0.0
        %4164 = vmatprep.subr.mxu0 0.0
        %4165 = vmatpush1.msra.mxu0 0.0
        %4166 = vmatprep.subr.mxu0 0.0
        %4167 = vmatpush1.msra.mxu0 0.0
        %4168 = vmatprep.subr.mxu0 0.0
        %4169 = vmatpush1.msra.mxu0 0.0
        %4170 = vmatprep.subr.mxu0 0.0
        %4171 = vmatpush1.msra.mxu0 0.0
        %4172 = vmatprep.subr.mxu0 0.0
        %4173 = vmatpush1.msra.mxu0 0.0
        %4174 = vmatprep.subr.mxu0 0.0
        %4175 = vmatpush1.msra.mxu0 0.0
        %4176 = vmatprep.subr.mxu0 0.0
        %4177 = vmatpush1.msra.mxu0 0.0
        %4178 = vmatprep.subr.mxu0 0.0
        %4179 = vmatpush1.msra.mxu0 0.0
        %4180 = vmatprep.subr.mxu0 0.0
        %4181 = vmatpush1.msra.mxu0 0.0
        %4182 = vmatprep.subr.mxu0 0.0
        %4183 = vmatpush1.msra.mxu0 0.0
        %4184 = vmatprep.subr.mxu0 0.0
        %4185 = vmatpush1.msra.mxu0 0.0
        %4186 = vmatprep.subr.mxu0 0.0
        %4187 = vmatpush1.msra.mxu0 0.0
        %4188 = vmatprep.subr.mxu0 0.0
        %4189 = vmatpush1.msra.mxu0 0.0
        %4190 = vmatprep.subr.mxu0 0.0
        %4191 = vmatpush1.msra.mxu0 0.0
        %4192 = vmatprep.subr.mxu0 0.0
        %4193 = vmatpush1.msra.mxu0 0.0
        %4194 = vmatprep.subr.mxu0 0.0
        %4195 = vmatpush1.msra.mxu0 0.0
        %4196 = vmatprep.subr.mxu0 0.0
        %4197 = vmatpush1.msra.mxu0 0.0
        %4198 = vmatprep.subr.mxu0 0.0
        %4199 = vmatpush1.msra.mxu0 0.0
        %4200 = vmatprep.subr.mxu0 0.0
        %4201 = vmatpush1.msra.mxu0 0.0
        %4202 = vmatprep.subr.mxu0 0.0
        %4203 = vmatpush1.msra.mxu0 0.0
        %4204 = vmatprep.subr.mxu0 0.0
        %4205 = vmatpush1.msra.mxu0 0.0
        %4206 = vmatprep.subr.mxu0 0.0
        %4207 = vmatpush1.msra.mxu0 0.0
        %4208 = vmatprep.subr.mxu0 0.0
        %4209 = vmatpush1.msra.mxu0 0.0
        %4210 = vmatprep.subr.mxu0 0.0
        %4211 = vmatpush1.msra.mxu0 0.0
        %4212 = vmatprep.subr.mxu0 0.0
        %4213 = vmatpush1.msra.mxu0 0.0
        %4214 = vmatprep.subr.mxu0 0.0
        %4215 = vmatpush1.msra.mxu0 0.0
        %4216 = vmatprep.subr.mxu0 0.0
        %4217 = vmatpush1.msra.mxu0 0.0
        %4218 = vmatprep.subr.mxu0 0.0
        %4219 = vmatpush1.msra.mxu0 0.0
        %4220 = vmatprep.subr.mxu0 0.0
        %4221 = vmatpush1.msra.mxu0 0.0
        %4222 = vmatprep.mubr.f32.mxu0 0.0
        %v4223 = vand.u32 %v4154, 4294901760
        %v4224 = vsub.f32 %v4154, %v4223
        %v4225 = vand.u32 %v4224, 4294901760
        %v4226 = vsub.f32 %v4224, %v4225
        %v4227 = vand.u32 %v4226, 4294901760
        %4228 = vmatmul.mubr.f32.gmra.mrb[0].mxu0 %v4227
        %v4229 = vpop.f32.mrb[0].mxu0
        %v4230 = vadd.f32 %v4150, %v4229
        %v4231 = vpop.f32.mrb[0].mxu0
        %4232 = vdwg.mxu0
        %4233 = vmatprep.subr.mxu0 0.0
        %v4234 = vand.u32 %v4143, 4294901760
        %v4235 = vsub.f32 %v4143, %v4234
        %v4236 = vand.u32 %v4235, 4294901760
        %v4237 = vsub.f32 %v4235, %v4236
        %v4238 = vand.u32 %v4237, 4294901760
        %4239 = vmatpush1.msra.mxu0 %v4238
        %4240 = vmatprep.subr.mxu0 0.0
        %v4241 = vand.u32 %v4144, 4294901760
        %v4242 = vsub.f32 %v4144, %v4241
        %v4243 = vand.u32 %v4242, 4294901760
        %v4244 = vsub.f32 %v4242, %v4243
        %v4245 = vand.u32 %v4244, 4294901760
        %4246 = vmatpush1.msra.mxu0 %v4245
        %4247 = vmatprep.subr.mxu0 0.0
        %4248 = vmatpush1.msra.mxu0 0.0
        %4249 = vmatprep.subr.mxu0 0.0
        %4250 = vmatpush1.msra.mxu0 0.0
        %4251 = vmatprep.subr.mxu0 0.0
        %4252 = vmatpush1.msra.mxu0 0.0
        %4253 = vmatprep.subr.mxu0 0.0
        %4254 = vmatpush1.msra.mxu0 0.0
        %4255 = vmatprep.subr.mxu0 0.0
        %4256 = vmatpush1.msra.mxu0 0.0
        %4257 = vmatprep.subr.mxu0 0.0
        %4258 = vmatpush1.msra.mxu0 0.0
        %4259 = vmatprep.subr.mxu0 0.0
        %4260 = vmatpush1.msra.mxu0 0.0
        %4261 = vmatprep.subr.mxu0 0.0
        %4262 = vmatpush1.msra.mxu0 0.0
        %4263 = vmatprep.subr.mxu0 0.0
        %4264 = vmatpush1.msra.mxu0 0.0
        %4265 = vmatprep.subr.mxu0 0.0
        %4266 = vmatpush1.msra.mxu0 0.0
        %4267 = vmatprep.subr.mxu0 0.0
        %4268 = vmatpush1.msra.mxu0 0.0
        %4269 = vmatprep.subr.mxu0 0.0
        %4270 = vmatpush1.msra.mxu0 0.0
        %4271 = vmatprep.subr.mxu0 0.0
        %4272 = vmatpush1.msra.mxu0 0.0
        %4273 = vmatprep.subr.mxu0 0.0
        %4274 = vmatpush1.msra.mxu0 0.0
        %4275 = vmatprep.subr.mxu0 0.0
        %4276 = vmatpush1.msra.mxu0 0.0
        %4277 = vmatprep.subr.mxu0 0.0
        %4278 = vmatpush1.msra.mxu0 0.0
        %4279 = vmatprep.subr.mxu0 0.0
        %4280 = vmatpush1.msra.mxu0 0.0
        %4281 = vmatprep.subr.mxu0 0.0
        %4282 = vmatpush1.msra.mxu0 0.0
        %4283 = vmatprep.subr.mxu0 0.0
        %4284 = vmatpush1.msra.mxu0 0.0
        %4285 = vmatprep.subr.mxu0 0.0
        %4286 = vmatpush1.msra.mxu0 0.0
        %4287 = vmatprep.subr.mxu0 0.0
        %4288 = vmatpush1.msra.mxu0 0.0
        %4289 = vmatprep.subr.mxu0 0.0
        %4290 = vmatpush1.msra.mxu0 0.0
        %4291 = vmatprep.subr.mxu0 0.0
        %4292 = vmatpush1.msra.mxu0 0.0
        %4293 = vmatprep.subr.mxu0 0.0
        %4294 = vmatpush1.msra.mxu0 0.0
        %4295 = vmatprep.subr.mxu0 0.0
        %4296 = vmatpush1.msra.mxu0 0.0
        %4297 = vmatprep.subr.mxu0 0.0
        %4298 = vmatpush1.msra.mxu0 0.0
        %4299 = vmatprep.subr.mxu0 0.0
        %4300 = vmatpush1.msra.mxu0 0.0
        %4301 = vmatprep.subr.mxu0 0.0
        %4302 = vmatpush1.msra.mxu0 0.0
        %4303 = vmatprep.subr.mxu0 0.0
        %4304 = vmatpush1.msra.mxu0 0.0
        %4305 = vmatprep.subr.mxu0 0.0
        %4306 = vmatpush1.msra.mxu0 0.0
        %4307 = vmatprep.mubr.f32.mxu0 0.0
        %v4308 = vand.u32 %v4154, 4294901760
        %4309 = vmatmul.mubr.f32.gmra.mrb[0].mxu0 %v4308
        %v4310 = vpop.f32.mrb[0].mxu0
        %v4311 = vadd.f32 %v4230, %v4310
        %v4312 = vpop.f32.mrb[0].mxu0
        %4313 = vdwg.mxu0
        %4314 = vmatprep.subr.mxu0 0.0
        %v4315 = vand.u32 %v4143, 4294901760
        %v4316 = vsub.f32 %v4143, %v4315
        %4317 = vmatpush1.msra.mxu0 %v4316
        %4318 = vmatprep.subr.mxu0 0.0
        %v4319 = vand.u32 %v4144, 4294901760
        %v4320 = vsub.f32 %v4144, %v4319
        %4321 = vmatpush1.msra.mxu0 %v4320
        %4322 = vmatprep.subr.mxu0 0.0
        %4323 = vmatpush1.msra.mxu0 0.0
        %4324 = vmatprep.subr.mxu0 0.0
        %4325 = vmatpush1.msra.mxu0 0.0
        %4326 = vmatprep.subr.mxu0 0.0
        %4327 = vmatpush1.msra.mxu0 0.0
        %4328 = vmatprep.subr.mxu0 0.0
        %4329 = vmatpush1.msra.mxu0 0.0
        %4330 = vmatprep.subr.mxu0 0.0
        %4331 = vmatpush1.msra.mxu0 0.0
        %4332 = vmatprep.subr.mxu0 0.0
        %4333 = vmatpush1.msra.mxu0 0.0
        %4334 = vmatprep.subr.mxu0 0.0
        %4335 = vmatpush1.msra.mxu0 0.0
        %4336 = vmatprep.subr.mxu0 0.0
        %4337 = vmatpush1.msra.mxu0 0.0
        %4338 = vmatprep.subr.mxu0 0.0
        %4339 = vmatpush1.msra.mxu0 0.0
        %4340 = vmatprep.subr.mxu0 0.0
        %4341 = vmatpush1.msra.mxu0 0.0
        %4342 = vmatprep.subr.mxu0 0.0
        %4343 = vmatpush1.msra.mxu0 0.0
        %4344 = vmatprep.subr.mxu0 0.0
        %4345 = vmatpush1.msra.mxu0 0.0
        %4346 = vmatprep.subr.mxu0 0.0
        %4347 = vmatpush1.msra.mxu0 0.0
        %4348 = vmatprep.subr.mxu0 0.0
        %4349 = vmatpush1.msra.mxu0 0.0
        %4350 = vmatprep.subr.mxu0 0.0
        %4351 = vmatpush1.msra.mxu0 0.0
        %4352 = vmatprep.subr.mxu0 0.0
        %4353 = vmatpush1.msra.mxu0 0.0
        %4354 = vmatprep.subr.mxu0 0.0
        %4355 = vmatpush1.msra.mxu0 0.0
        %4356 = vmatprep.subr.mxu0 0.0
        %4357 = vmatpush1.msra.mxu0 0.0
        %4358 = vmatprep.subr.mxu0 0.0
        %4359 = vmatpush1.msra.mxu0 0.0
        %4360 = vmatprep.subr.mxu0 0.0
        %4361 = vmatpush1.msra.mxu0 0.0
        %4362 = vmatprep.subr.mxu0 0.0
        %4363 = vmatpush1.msra.mxu0 0.0
        %4364 = vmatprep.subr.mxu0 0.0
        %4365 = vmatpush1.msra.mxu0 0.0
        %4366 = vmatprep.subr.mxu0 0.0
        %4367 = vmatpush1.msra.mxu0 0.0
        %4368 = vmatprep.subr.mxu0 0.0
        %4369 = vmatpush1.msra.mxu0 0.0
        %4370 = vmatprep.subr.mxu0 0.0
        %4371 = vmatpush1.msra.mxu0 0.0
        %4372 = vmatprep.subr.mxu0 0.0
        %4373 = vmatpush1.msra.mxu0 0.0
        %4374 = vmatprep.subr.mxu0 0.0
        %4375 = vmatpush1.msra.mxu0 0.0
        %4376 = vmatprep.subr.mxu0 0.0
        %4377 = vmatpush1.msra.mxu0 0.0
        %4378 = vmatprep.subr.mxu0 0.0
        %4379 = vmatpush1.msra.mxu0 0.0
        %4380 = vmatprep.subr.mxu0 0.0
        %4381 = vmatpush1.msra.mxu0 0.0
        %4382 = vmatprep.mubr.f32.mxu0 0.0
        %v4383 = vand.u32 %v4154, 4294901760
        %v4384 = vsub.f32 %v4154, %v4383
        %4385 = vmatmul.mubr.f32.gmra.mrb[0].mxu0 %v4384
        %v4386 = vpop.f32.mrb[0].mxu0
        %v4387 = vadd.f32 %v4311, %v4386
        %v4388 = vpop.f32.mrb[0].mxu0
        %4389 = vdwg.mxu0
        %4390 = vmatprep.subr.mxu0 0.0
        %v4391 = vand.u32 %v4143, 4294901760
        %4392 = vmatpush1.msra.mxu0 %v4391
        %4393 = vmatprep.subr.mxu0 0.0
        %v4394 = vand.u32 %v4144, 4294901760
        %4395 = vmatpush1.msra.mxu0 %v4394
        %4396 = vmatprep.subr.mxu0 0.0
        %4397 = vmatpush1.msra.mxu0 0.0
        %4398 = vmatprep.subr.mxu0 0.0
        %4399 = vmatpush1.msra.mxu0 0.0
        %4400 = vmatprep.subr.mxu0 0.0
        %4401 = vmatpush1.msra.mxu0 0.0
        %4402 = vmatprep.subr.mxu0 0.0
        %4403 = vmatpush1.msra.mxu0 0.0
        %4404 = vmatprep.subr.mxu0 0.0
        %4405 = vmatpush1.msra.mxu0 0.0
        %4406 = vmatprep.subr.mxu0 0.0
        %4407 = vmatpush1.msra.mxu0 0.0
        %4408 = vmatprep.subr.mxu0 0.0
        %4409 = vmatpush1.msra.mxu0 0.0
        %4410 = vmatprep.subr.mxu0 0.0
        %4411 = vmatpush1.msra.mxu0 0.0
        %4412 = vmatprep.subr.mxu0 0.0
        %4413 = vmatpush1.msra.mxu0 0.0
        %4414 = vmatprep.subr.mxu0 0.0
        %4415 = vmatpush1.msra.mxu0 0.0
        %4416 = vmatprep.subr.mxu0 0.0
        %4417 = vmatpush1.msra.mxu0 0.0
        %4418 = vmatprep.subr.mxu0 0.0
        %4419 = vmatpush1.msra.mxu0 0.0
        %4420 = vmatprep.subr.mxu0 0.0
        %4421 = vmatpush1.msra.mxu0 0.0
        %4422 = vmatprep.subr.mxu0 0.0
        %4423 = vmatpush1.msra.mxu0 0.0
        %4424 = vmatprep.subr.mxu0 0.0
        %4425 = vmatpush1.msra.mxu0 0.0
        %4426 = vmatprep.subr.mxu0 0.0
        %4427 = vmatpush1.msra.mxu0 0.0
        %4428 = vmatprep.subr.mxu0 0.0
        %4429 = vmatpush1.msra.mxu0 0.0
        %4430 = vmatprep.subr.mxu0 0.0
        %4431 = vmatpush1.msra.mxu0 0.0
        %4432 = vmatprep.subr.mxu0 0.0
        %4433 = vmatpush1.msra.mxu0 0.0
        %4434 = vmatprep.subr.mxu0 0.0
        %4435 = vmatpush1.msra.mxu0 0.0
        %4436 = vmatprep.subr.mxu0 0.0
        %4437 = vmatpush1.msra.mxu0 0.0
        %4438 = vmatprep.subr.mxu0 0.0
        %4439 = vmatpush1.msra.mxu0 0.0
        %4440 = vmatprep.subr.mxu0 0.0
        %4441 = vmatpush1.msra.mxu0 0.0
        %4442 = vmatprep.subr.mxu0 0.0
        %4443 = vmatpush1.msra.mxu0 0.0
        %4444 = vmatprep.subr.mxu0 0.0
        %4445 = vmatpush1.msra.mxu0 0.0
        %4446 = vmatprep.subr.mxu0 0.0
        %4447 = vmatpush1.msra.mxu0 0.0
        %4448 = vmatprep.subr.mxu0 0.0
        %4449 = vmatpush1.msra.mxu0 0.0
        %4450 = vmatprep.subr.mxu0 0.0
        %4451 = vmatpush1.msra.mxu0 0.0
        %4452 = vmatprep.subr.mxu0 0.0
        %4453 = vmatpush1.msra.mxu0 0.0
        %4454 = vmatprep.subr.mxu0 0.0
        %4455 = vmatpush1.msra.mxu0 0.0
        %4456 = vmatprep.mubr.f32.mxu0 0.0
        %v4457 = vand.u32 %v4154, 4294901760
        %v4458 = vsub.f32 %v4154, %v4457
        %v4459 = vand.u32 %v4458, 4294901760
        %4460 = vmatmul.mubr.f32.gmra.mrb[0].mxu0 %v4459
        %v4461 = vpop.f32.mrb[0].mxu0
        %v4462 = vadd.f32 %v4387, %v4461
        %v4463 = vpop.f32.mrb[0].mxu0
        %4464 = vdwg.mxu0
        %4465 = vmatprep.subr.mxu0 0.0
        %v4466 = vand.u32 %v4143, 4294901760
        %v4467 = vsub.f32 %v4143, %v4466
        %v4468 = vand.u32 %v4467, 4294901760
        %4469 = vmatpush1.msra.mxu0 %v4468
        %4470 = vmatprep.subr.mxu0 0.0
        %v4471 = vand.u32 %v4144, 4294901760
        %v4472 = vsub.f32 %v4144, %v4471
        %v4473 = vand.u32 %v4472, 4294901760
        %4474 = vmatpush1.msra.mxu0 %v4473
        %4475 = vmatprep.subr.mxu0 0.0
        %4476 = vmatpush1.msra.mxu0 0.0
        %4477 = vmatprep.subr.mxu0 0.0
        %4478 = vmatpush1.msra.mxu0 0.0
        %4479 = vmatprep.subr.mxu0 0.0
        %4480 = vmatpush1.msra.mxu0 0.0
        %4481 = vmatprep.subr.mxu0 0.0
        %4482 = vmatpush1.msra.mxu0 0.0
        %4483 = vmatprep.subr.mxu0 0.0
        %4484 = vmatpush1.msra.mxu0 0.0
        %4485 = vmatprep.subr.mxu0 0.0
        %4486 = vmatpush1.msra.mxu0 0.0
        %4487 = vmatprep.subr.mxu0 0.0
        %4488 = vmatpush1.msra.mxu0 0.0
        %4489 = vmatprep.subr.mxu0 0.0
        %4490 = vmatpush1.msra.mxu0 0.0
        %4491 = vmatprep.subr.mxu0 0.0
        %4492 = vmatpush1.msra.mxu0 0.0
        %4493 = vmatprep.subr.mxu0 0.0
        %4494 = vmatpush1.msra.mxu0 0.0
        %4495 = vmatprep.subr.mxu0 0.0
        %4496 = vmatpush1.msra.mxu0 0.0
        %4497 = vmatprep.subr.mxu0 0.0
        %4498 = vmatpush1.msra.mxu0 0.0
        %4499 = vmatprep.subr.mxu0 0.0
        %4500 = vmatpush1.msra.mxu0 0.0
        %4501 = vmatprep.subr.mxu0 0.0
        %4502 = vmatpush1.msra.mxu0 0.0
        %4503 = vmatprep.subr.mxu0 0.0
        %4504 = vmatpush1.msra.mxu0 0.0
        %4505 = vmatprep.subr.mxu0 0.0
        %4506 = vmatpush1.msra.mxu0 0.0
        %4507 = vmatprep.subr.mxu0 0.0
        %4508 = vmatpush1.msra.mxu0 0.0
        %4509 = vmatprep.subr.mxu0 0.0
        %4510 = vmatpush1.msra.mxu0 0.0
        %4511 = vmatprep.subr.mxu0 0.0
        %4512 = vmatpush1.msra.mxu0 0.0
        %4513 = vmatprep.subr.mxu0 0.0
        %4514 = vmatpush1.msra.mxu0 0.0
        %4515 = vmatprep.subr.mxu0 0.0
        %4516 = vmatpush1.msra.mxu0 0.0
        %4517 = vmatprep.subr.mxu0 0.0
        %4518 = vmatpush1.msra.mxu0 0.0
        %4519 = vmatprep.subr.mxu0 0.0
        %4520 = vmatpush1.msra.mxu0 0.0
        %4521 = vmatprep.subr.mxu0 0.0
        %4522 = vmatpush1.msra.mxu0 0.0
        %4523 = vmatprep.subr.mxu0 0.0
        %4524 = vmatpush1.msra.mxu0 0.0
        %4525 = vmatprep.subr.mxu0 0.0
        %4526 = vmatpush1.msra.mxu0 0.0
        %4527 = vmatprep.subr.mxu0 0.0
        %4528 = vmatpush1.msra.mxu0 0.0
        %4529 = vmatprep.subr.mxu0 0.0
        %4530 = vmatpush1.msra.mxu0 0.0
        %4531 = vmatprep.subr.mxu0 0.0
        %4532 = vmatpush1.msra.mxu0 0.0
        %4533 = vmatprep.subr.mxu0 0.0
        %4534 = vmatpush1.msra.mxu0 0.0
        %4535 = vmatprep.mubr.f32.mxu0 0.0
        %v4536 = vand.u32 %v4154, 4294901760
        %4537 = vmatmul.mubr.f32.gmra.mrb[0].mxu0 %v4536
        %v4538 = vpop.f32.mrb[0].mxu0
        %v4539 = vadd.f32 %v4462, %v4538
        %v4540 = vpop.f32.mrb[0].mxu0
        %4541 = vdwg.mxu0
        %4542 = vmatprep.subr.mxu0 0.0
        %v4543 = vand.u32 %v4143, 4294901760
        %4544 = vmatpush1.msra.mxu0 %v4543
        %4545 = vmatprep.subr.mxu0 0.0
        %v4546 = vand.u32 %v4144, 4294901760
        %4547 = vmatpush1.msra.mxu0 %v4546
        %4548 = vmatprep.subr.mxu0 0.0
        %4549 = vmatpush1.msra.mxu0 0.0
        %4550 = vmatprep.subr.mxu0 0.0
        %4551 = vmatpush1.msra.mxu0 0.0
        %4552 = vmatprep.subr.mxu0 0.0
        %4553 = vmatpush1.msra.mxu0 0.0
        %4554 = vmatprep.subr.mxu0 0.0
        %4555 = vmatpush1.msra.mxu0 0.0
        %4556 = vmatprep.subr.mxu0 0.0
        %4557 = vmatpush1.msra.mxu0 0.0
        %4558 = vmatprep.subr.mxu0 0.0
        %4559 = vmatpush1.msra.mxu0 0.0
        %4560 = vmatprep.subr.mxu0 0.0
        %4561 = vmatpush1.msra.mxu0 0.0
        %4562 = vmatprep.subr.mxu0 0.0
        %4563 = vmatpush1.msra.mxu0 0.0
        %4564 = vmatprep.subr.mxu0 0.0
        %4565 = vmatpush1.msra.mxu0 0.0
        %4566 = vmatprep.subr.mxu0 0.0
        %4567 = vmatpush1.msra.mxu0 0.0
        %4568 = vmatprep.subr.mxu0 0.0
        %4569 = vmatpush1.msra.mxu0 0.0
        %4570 = vmatprep.subr.mxu0 0.0
        %4571 = vmatpush1.msra.mxu0 0.0
        %4572 = vmatprep.subr.mxu0 0.0
        %4573 = vmatpush1.msra.mxu0 0.0
        %4574 = vmatprep.subr.mxu0 0.0
        %4575 = vmatpush1.msra.mxu0 0.0
        %4576 = vmatprep.subr.mxu0 0.0
        %4577 = vmatpush1.msra.mxu0 0.0
        %4578 = vmatprep.subr.mxu0 0.0
        %4579 = vmatpush1.msra.mxu0 0.0
        %4580 = vmatprep.subr.mxu0 0.0
        %4581 = vmatpush1.msra.mxu0 0.0
        %4582 = vmatprep.subr.mxu0 0.0
        %4583 = vmatpush1.msra.mxu0 0.0
        %4584 = vmatprep.subr.mxu0 0.0
        %4585 = vmatpush1.msra.mxu0 0.0
        %4586 = vmatprep.subr.mxu0 0.0
        %4587 = vmatpush1.msra.mxu0 0.0
        %4588 = vmatprep.subr.mxu0 0.0
        %4589 = vmatpush1.msra.mxu0 0.0
        %4590 = vmatprep.subr.mxu0 0.0
        %4591 = vmatpush1.msra.mxu0 0.0
        %4592 = vmatprep.subr.mxu0 0.0
        %4593 = vmatpush1.msra.mxu0 0.0
        %4594 = vmatprep.subr.mxu0 0.0
        %4595 = vmatpush1.msra.mxu0 0.0
        %4596 = vmatprep.subr.mxu0 0.0
        %4597 = vmatpush1.msra.mxu0 0.0
        %4598 = vmatprep.subr.mxu0 0.0
        %4599 = vmatpush1.msra.mxu0 0.0
        %4600 = vmatprep.subr.mxu0 0.0
        %4601 = vmatpush1.msra.mxu0 0.0
        %4602 = vmatprep.subr.mxu0 0.0
        %4603 = vmatpush1.msra.mxu0 0.0
        %4604 = vmatprep.subr.mxu0 0.0
        %4605 = vmatpush1.msra.mxu0 0.0
        %4606 = vmatprep.subr.mxu0 0.0
        %4607 = vmatpush1.msra.mxu0 0.0
        %4608 = vmatprep.mubr.f32.mxu0 0.0
        %v4609 = vand.u32 %v4154, 4294901760
        %4610 = vmatmul.mubr.f32.gmra.mrb[0].mxu0 %v4609
        %v4611 = vpop.f32.mrb[0].mxu0
        %v4612 = vadd.f32 %v4539, %v4611
        %v4613 = vpop.f32.mrb[0].mxu0
        %4614 = vdwg.mxu0
        %v4615 = vmax.f32 %v4612, 0.0
        %v4617 = vrot.slane %v4615, 4
        %v4619 = vadd.f32 %v4123, %v4617
        %v4621 = vrot.slane %v4619, 4
        %4623 = vrot.lane.b32.xlu0 %v4621, 1
        %v4624 = vpop.permute.xlu0 %4623
        %v4625 = vsel %vm279, %v4624, 0.0
        %4626 = vrot.lane.b32.xlu0 %v4621, 127
        %v4627 = vpop.permute.xlu0 %4626
        %v4628 = vsel %vm280, %v4627, 0.0
        %v4629 = vsel %vm4142, %v4625, %v4619
        %v4630 = vsel %vm4142, %v4628, 0.0
        %s4631 = scalar_lea.vmem %s5, 8
        %v4632 = vld [vmem:[%s4631] sm:$0xff]
        %s4633 = scalar_lea.vmem %s6, 8
        %v4634 = vld [vmem:[%s4633] sm:$0xff]
        %4636 = vset.pattern.permute.xlu0 0
        %4637 = vperm.xlu0 %4636, %v4634
        %v4638 = vpop.permute.xlu0 %4637
        %v4641 = vsel %vm4152, %v4632, 0
        %4643 = vmatprep.subr.mxu0 0.0
        %v4644 = vand.u32 %v4629, 4294901760
        %4645 = vmatpush1.msra.mxu0 %v4644
        %4646 = vmatprep.subr.mxu0 0.0
        %v4647 = vand.u32 %v4630, 4294901760
        %4648 = vmatpush1.msra.mxu0 %v4647
        %4649 = vmatprep.subr.mxu0 0.0
        %4650 = vmatpush1.msra.mxu0 0.0
        %4651 = vmatprep.subr.mxu0 0.0
        %4652 = vmatpush1.msra.mxu0 0.0
        %4653 = vmatprep.subr.mxu0 0.0
        %4654 = vmatpush1.msra.mxu0 0.0
        %4655 = vmatprep.subr.mxu0 0.0
        %4656 = vmatpush1.msra.mxu0 0.0
        %4657 = vmatprep.subr.mxu0 0.0
        %4658 = vmatpush1.msra.mxu0 0.0
        %4659 = vmatprep.subr.mxu0 0.0
        %4660 = vmatpush1.msra.mxu0 0.0
        %4661 = vmatprep.subr.mxu0 0.0
        %4662 = vmatpush1.msra.mxu0 0.0
        %4663 = vmatprep.subr.mxu0 0.0
        %4664 = vmatpush1.msra.mxu0 0.0
        %4665 = vmatprep.subr.mxu0 0.0
        %4666 = vmatpush1.msra.mxu0 0.0
        %4667 = vmatprep.subr.mxu0 0.0
        %4668 = vmatpush1.msra.mxu0 0.0
        %4669 = vmatprep.subr.mxu0 0.0
        %4670 = vmatpush1.msra.mxu0 0.0
        %4671 = vmatprep.subr.mxu0 0.0
        %4672 = vmatpush1.msra.mxu0 0.0
        %4673 = vmatprep.subr.mxu0 0.0
        %4674 = vmatpush1.msra.mxu0 0.0
        %4675 = vmatprep.subr.mxu0 0.0
        %4676 = vmatpush1.msra.mxu0 0.0
        %4677 = vmatprep.subr.mxu0 0.0
        %4678 = vmatpush1.msra.mxu0 0.0
        %4679 = vmatprep.subr.mxu0 0.0
        %4680 = vmatpush1.msra.mxu0 0.0
        %4681 = vmatprep.subr.mxu0 0.0
        %4682 = vmatpush1.msra.mxu0 0.0
        %4683 = vmatprep.subr.mxu0 0.0
        %4684 = vmatpush1.msra.mxu0 0.0
        %4685 = vmatprep.subr.mxu0 0.0
        %4686 = vmatpush1.msra.mxu0 0.0
        %4687 = vmatprep.subr.mxu0 0.0
        %4688 = vmatpush1.msra.mxu0 0.0
        %4689 = vmatprep.subr.mxu0 0.0
        %4690 = vmatpush1.msra.mxu0 0.0
        %4691 = vmatprep.subr.mxu0 0.0
        %4692 = vmatpush1.msra.mxu0 0.0
        %4693 = vmatprep.subr.mxu0 0.0
        %4694 = vmatpush1.msra.mxu0 0.0
        %4695 = vmatprep.subr.mxu0 0.0
        %4696 = vmatpush1.msra.mxu0 0.0
        %4697 = vmatprep.subr.mxu0 0.0
        %4698 = vmatpush1.msra.mxu0 0.0
        %4699 = vmatprep.subr.mxu0 0.0
        %4700 = vmatpush1.msra.mxu0 0.0
        %4701 = vmatprep.subr.mxu0 0.0
        %4702 = vmatpush1.msra.mxu0 0.0
        %4703 = vmatprep.subr.mxu0 0.0
        %4704 = vmatpush1.msra.mxu0 0.0
        %4705 = vmatprep.subr.mxu0 0.0
        %4706 = vmatpush1.msra.mxu0 0.0
        %4707 = vmatprep.subr.mxu0 0.0
        %4708 = vmatpush1.msra.mxu0 0.0
        %4709 = vmatprep.mubr.f32.mxu0 0.0
        %v4710 = vand.u32 %v4641, 4294901760
        %v4711 = vsub.f32 %v4641, %v4710
        %v4712 = vand.u32 %v4711, 4294901760
        %v4713 = vsub.f32 %v4711, %v4712
        %v4714 = vand.u32 %v4713, 4294901760
        %4715 = vmatmul.mubr.f32.gmra.mrb[0].mxu0 %v4714
        %v4716 = vpop.f32.mrb[0].mxu0
        %v4717 = vadd.f32 %v4638, %v4716
        %v4718 = vpop.f32.mrb[0].mxu0
        %4719 = vdwg.mxu0
        %4720 = vmatprep.subr.mxu0 0.0
        %v4721 = vand.u32 %v4629, 4294901760
        %v4722 = vsub.f32 %v4629, %v4721
        %v4723 = vand.u32 %v4722, 4294901760
        %v4724 = vsub.f32 %v4722, %v4723
        %v4725 = vand.u32 %v4724, 4294901760
        %4726 = vmatpush1.msra.mxu0 %v4725
        %4727 = vmatprep.subr.mxu0 0.0
        %v4728 = vand.u32 %v4630, 4294901760
        %v4729 = vsub.f32 %v4630, %v4728
        %v4730 = vand.u32 %v4729, 4294901760
        %v4731 = vsub.f32 %v4729, %v4730
        %v4732 = vand.u32 %v4731, 4294901760
        %4733 = vmatpush1.msra.mxu0 %v4732
        %4734 = vmatprep.subr.mxu0 0.0
        %4735 = vmatpush1.msra.mxu0 0.0
        %4736 = vmatprep.subr.mxu0 0.0
        %4737 = vmatpush1.msra.mxu0 0.0
        %4738 = vmatprep.subr.mxu0 0.0
        %4739 = vmatpush1.msra.mxu0 0.0
        %4740 = vmatprep.subr.mxu0 0.0
        %4741 = vmatpush1.msra.mxu0 0.0
        %4742 = vmatprep.subr.mxu0 0.0
        %4743 = vmatpush1.msra.mxu0 0.0
        %4744 = vmatprep.subr.mxu0 0.0
        %4745 = vmatpush1.msra.mxu0 0.0
        %4746 = vmatprep.subr.mxu0 0.0
        %4747 = vmatpush1.msra.mxu0 0.0
        %4748 = vmatprep.subr.mxu0 0.0
        %4749 = vmatpush1.msra.mxu0 0.0
        %4750 = vmatprep.subr.mxu0 0.0
        %4751 = vmatpush1.msra.mxu0 0.0
        %4752 = vmatprep.subr.mxu0 0.0
        %4753 = vmatpush1.msra.mxu0 0.0
        %4754 = vmatprep.subr.mxu0 0.0
        %4755 = vmatpush1.msra.mxu0 0.0
        %4756 = vmatprep.subr.mxu0 0.0
        %4757 = vmatpush1.msra.mxu0 0.0
        %4758 = vmatprep.subr.mxu0 0.0
        %4759 = vmatpush1.msra.mxu0 0.0
        %4760 = vmatprep.subr.mxu0 0.0
        %4761 = vmatpush1.msra.mxu0 0.0
        %4762 = vmatprep.subr.mxu0 0.0
        %4763 = vmatpush1.msra.mxu0 0.0
        %4764 = vmatprep.subr.mxu0 0.0
        %4765 = vmatpush1.msra.mxu0 0.0
        %4766 = vmatprep.subr.mxu0 0.0
        %4767 = vmatpush1.msra.mxu0 0.0
        %4768 = vmatprep.subr.mxu0 0.0
        %4769 = vmatpush1.msra.mxu0 0.0
        %4770 = vmatprep.subr.mxu0 0.0
        %4771 = vmatpush1.msra.mxu0 0.0
        %4772 = vmatprep.subr.mxu0 0.0
        %4773 = vmatpush1.msra.mxu0 0.0
        %4774 = vmatprep.subr.mxu0 0.0
        %4775 = vmatpush1.msra.mxu0 0.0
        %4776 = vmatprep.subr.mxu0 0.0
        %4777 = vmatpush1.msra.mxu0 0.0
        %4778 = vmatprep.subr.mxu0 0.0
        %4779 = vmatpush1.msra.mxu0 0.0
        %4780 = vmatprep.subr.mxu0 0.0
        %4781 = vmatpush1.msra.mxu0 0.0
        %4782 = vmatprep.subr.mxu0 0.0
        %4783 = vmatpush1.msra.mxu0 0.0
        %4784 = vmatprep.subr.mxu0 0.0
        %4785 = vmatpush1.msra.mxu0 0.0
        %4786 = vmatprep.subr.mxu0 0.0
        %4787 = vmatpush1.msra.mxu0 0.0
        %4788 = vmatprep.subr.mxu0 0.0
        %4789 = vmatpush1.msra.mxu0 0.0
        %4790 = vmatprep.subr.mxu0 0.0
        %4791 = vmatpush1.msra.mxu0 0.0
        %4792 = vmatprep.subr.mxu0 0.0
        %4793 = vmatpush1.msra.mxu0 0.0
        %4794 = vmatprep.mubr.f32.mxu0 0.0
        %v4795 = vand.u32 %v4641, 4294901760
        %4796 = vmatmul.mubr.f32.gmra.mrb[0].mxu0 %v4795
        %v4797 = vpop.f32.mrb[0].mxu0
        %v4798 = vadd.f32 %v4717, %v4797
        %v4799 = vpop.f32.mrb[0].mxu0
        %4800 = vdwg.mxu0
        %4801 = vmatprep.subr.mxu0 0.0
        %v4802 = vand.u32 %v4629, 4294901760
        %v4803 = vsub.f32 %v4629, %v4802
        %4804 = vmatpush1.msra.mxu0 %v4803
        %4805 = vmatprep.subr.mxu0 0.0
        %v4806 = vand.u32 %v4630, 4294901760
        %v4807 = vsub.f32 %v4630, %v4806
        %4808 = vmatpush1.msra.mxu0 %v4807
        %4809 = vmatprep.subr.mxu0 0.0
        %4810 = vmatpush1.msra.mxu0 0.0
        %4811 = vmatprep.subr.mxu0 0.0
        %4812 = vmatpush1.msra.mxu0 0.0
        %4813 = vmatprep.subr.mxu0 0.0
        %4814 = vmatpush1.msra.mxu0 0.0
        %4815 = vmatprep.subr.mxu0 0.0
        %4816 = vmatpush1.msra.mxu0 0.0
        %4817 = vmatprep.subr.mxu0 0.0
        %4818 = vmatpush1.msra.mxu0 0.0
        %4819 = vmatprep.subr.mxu0 0.0
        %4820 = vmatpush1.msra.mxu0 0.0
        %4821 = vmatprep.subr.mxu0 0.0
        %4822 = vmatpush1.msra.mxu0 0.0
        %4823 = vmatprep.subr.mxu0 0.0
        %4824 = vmatpush1.msra.mxu0 0.0
        %4825 = vmatprep.subr.mxu0 0.0
        %4826 = vmatpush1.msra.mxu0 0.0
        %4827 = vmatprep.subr.mxu0 0.0
        %4828 = vmatpush1.msra.mxu0 0.0
        %4829 = vmatprep.subr.mxu0 0.0
        %4830 = vmatpush1.msra.mxu0 0.0
        %4831 = vmatprep.subr.mxu0 0.0
        %4832 = vmatpush1.msra.mxu0 0.0
        %4833 = vmatprep.subr.mxu0 0.0
        %4834 = vmatpush1.msra.mxu0 0.0
        %4835 = vmatprep.subr.mxu0 0.0
        %4836 = vmatpush1.msra.mxu0 0.0
        %4837 = vmatprep.subr.mxu0 0.0
        %4838 = vmatpush1.msra.mxu0 0.0
        %4839 = vmatprep.subr.mxu0 0.0
        %4840 = vmatpush1.msra.mxu0 0.0
        %4841 = vmatprep.subr.mxu0 0.0
        %4842 = vmatpush1.msra.mxu0 0.0
        %4843 = vmatprep.subr.mxu0 0.0
        %4844 = vmatpush1.msra.mxu0 0.0
        %4845 = vmatprep.subr.mxu0 0.0
        %4846 = vmatpush1.msra.mxu0 0.0
        %4847 = vmatprep.subr.mxu0 0.0
        %4848 = vmatpush1.msra.mxu0 0.0
        %4849 = vmatprep.subr.mxu0 0.0
        %4850 = vmatpush1.msra.mxu0 0.0
        %4851 = vmatprep.subr.mxu0 0.0
        %4852 = vmatpush1.msra.mxu0 0.0
        %4853 = vmatprep.subr.mxu0 0.0
        %4854 = vmatpush1.msra.mxu0 0.0
        %4855 = vmatprep.subr.mxu0 0.0
        %4856 = vmatpush1.msra.mxu0 0.0
        %4857 = vmatprep.subr.mxu0 0.0
        %4858 = vmatpush1.msra.mxu0 0.0
        %4859 = vmatprep.subr.mxu0 0.0
        %4860 = vmatpush1.msra.mxu0 0.0
        %4861 = vmatprep.subr.mxu0 0.0
        %4862 = vmatpush1.msra.mxu0 0.0
        %4863 = vmatprep.subr.mxu0 0.0
        %4864 = vmatpush1.msra.mxu0 0.0
        %4865 = vmatprep.subr.mxu0 0.0
        %4866 = vmatpush1.msra.mxu0 0.0
        %4867 = vmatprep.subr.mxu0 0.0
        %4868 = vmatpush1.msra.mxu0 0.0
        %4869 = vmatprep.mubr.f32.mxu0 0.0
        %v4870 = vand.u32 %v4641, 4294901760
        %v4871 = vsub.f32 %v4641, %v4870
        %4872 = vmatmul.mubr.f32.gmra.mrb[0].mxu0 %v4871
        %v4873 = vpop.f32.mrb[0].mxu0
        %v4874 = vadd.f32 %v4798, %v4873
        %v4875 = vpop.f32.mrb[0].mxu0
        %4876 = vdwg.mxu0
        %4877 = vmatprep.subr.mxu0 0.0
        %v4878 = vand.u32 %v4629, 4294901760
        %4879 = vmatpush1.msra.mxu0 %v4878
        %4880 = vmatprep.subr.mxu0 0.0
        %v4881 = vand.u32 %v4630, 4294901760
        %4882 = vmatpush1.msra.mxu0 %v4881
        %4883 = vmatprep.subr.mxu0 0.0
        %4884 = vmatpush1.msra.mxu0 0.0
        %4885 = vmatprep.subr.mxu0 0.0
        %4886 = vmatpush1.msra.mxu0 0.0
        %4887 = vmatprep.subr.mxu0 0.0
        %4888 = vmatpush1.msra.mxu0 0.0
        %4889 = vmatprep.subr.mxu0 0.0
        %4890 = vmatpush1.msra.mxu0 0.0
        %4891 = vmatprep.subr.mxu0 0.0
        %4892 = vmatpush1.msra.mxu0 0.0
        %4893 = vmatprep.subr.mxu0 0.0
        %4894 = vmatpush1.msra.mxu0 0.0
        %4895 = vmatprep.subr.mxu0 0.0
        %4896 = vmatpush1.msra.mxu0 0.0
        %4897 = vmatprep.subr.mxu0 0.0
        %4898 = vmatpush1.msra.mxu0 0.0
        %4899 = vmatprep.subr.mxu0 0.0
        %4900 = vmatpush1.msra.mxu0 0.0
        %4901 = vmatprep.subr.mxu0 0.0
        %4902 = vmatpush1.msra.mxu0 0.0
        %4903 = vmatprep.subr.mxu0 0.0
        %4904 = vmatpush1.msra.mxu0 0.0
        %4905 = vmatprep.subr.mxu0 0.0
        %4906 = vmatpush1.msra.mxu0 0.0
        %4907 = vmatprep.subr.mxu0 0.0
        %4908 = vmatpush1.msra.mxu0 0.0
        %4909 = vmatprep.subr.mxu0 0.0
        %4910 = vmatpush1.msra.mxu0 0.0
        %4911 = vmatprep.subr.mxu0 0.0
        %4912 = vmatpush1.msra.mxu0 0.0
        %4913 = vmatprep.subr.mxu0 0.0
        %4914 = vmatpush1.msra.mxu0 0.0
        %4915 = vmatprep.subr.mxu0 0.0
        %4916 = vmatpush1.msra.mxu0 0.0
        %4917 = vmatprep.subr.mxu0 0.0
        %4918 = vmatpush1.msra.mxu0 0.0
        %4919 = vmatprep.subr.mxu0 0.0
        %4920 = vmatpush1.msra.mxu0 0.0
        %4921 = vmatprep.subr.mxu0 0.0
        %4922 = vmatpush1.msra.mxu0 0.0
        %4923 = vmatprep.subr.mxu0 0.0
        %4924 = vmatpush1.msra.mxu0 0.0
        %4925 = vmatprep.subr.mxu0 0.0
        %4926 = vmatpush1.msra.mxu0 0.0
        %4927 = vmatprep.subr.mxu0 0.0
        %4928 = vmatpush1.msra.mxu0 0.0
        %4929 = vmatprep.subr.mxu0 0.0
        %4930 = vmatpush1.msra.mxu0 0.0
        %4931 = vmatprep.subr.mxu0 0.0
        %4932 = vmatpush1.msra.mxu0 0.0
        %4933 = vmatprep.subr.mxu0 0.0
        %4934 = vmatpush1.msra.mxu0 0.0
        %4935 = vmatprep.subr.mxu0 0.0
        %4936 = vmatpush1.msra.mxu0 0.0
        %4937 = vmatprep.subr.mxu0 0.0
        %4938 = vmatpush1.msra.mxu0 0.0
        %4939 = vmatprep.subr.mxu0 0.0
        %4940 = vmatpush1.msra.mxu0 0.0
        %4941 = vmatprep.subr.mxu0 0.0
        %4942 = vmatpush1.msra.mxu0 0.0
        %4943 = vmatprep.mubr.f32.mxu0 0.0
        %v4944 = vand.u32 %v4641, 4294901760
        %v4945 = vsub.f32 %v4641, %v4944
        %v4946 = vand.u32 %v4945, 4294901760
        %4947 = vmatmul.mubr.f32.gmra.mrb[0].mxu0 %v4946
        %v4948 = vpop.f32.mrb[0].mxu0
        %v4949 = vadd.f32 %v4874, %v4948
        %v4950 = vpop.f32.mrb[0].mxu0
        %4951 = vdwg.mxu0
        %4952 = vmatprep.subr.mxu0 0.0
        %v4953 = vand.u32 %v4629, 4294901760
        %v4954 = vsub.f32 %v4629, %v4953
        %v4955 = vand.u32 %v4954, 4294901760
        %4956 = vmatpush1.msra.mxu0 %v4955
        %4957 = vmatprep.subr.mxu0 0.0
        %v4958 = vand.u32 %v4630, 4294901760
        %v4959 = vsub.f32 %v4630, %v4958
        %v4960 = vand.u32 %v4959, 4294901760
        %4961 = vmatpush1.msra.mxu0 %v4960
        %4962 = vmatprep.subr.mxu0 0.0
        %4963 = vmatpush1.msra.mxu0 0.0
        %4964 = vmatprep.subr.mxu0 0.0
        %4965 = vmatpush1.msra.mxu0 0.0
        %4966 = vmatprep.subr.mxu0 0.0
        %4967 = vmatpush1.msra.mxu0 0.0
        %4968 = vmatprep.subr.mxu0 0.0
        %4969 = vmatpush1.msra.mxu0 0.0
        %4970 = vmatprep.subr.mxu0 0.0
        %4971 = vmatpush1.msra.mxu0 0.0
        %4972 = vmatprep.subr.mxu0 0.0
        %4973 = vmatpush1.msra.mxu0 0.0
        %4974 = vmatprep.subr.mxu0 0.0
        %4975 = vmatpush1.msra.mxu0 0.0
        %4976 = vmatprep.subr.mxu0 0.0
        %4977 = vmatpush1.msra.mxu0 0.0
        %4978 = vmatprep.subr.mxu0 0.0
        %4979 = vmatpush1.msra.mxu0 0.0
        %4980 = vmatprep.subr.mxu0 0.0
        %4981 = vmatpush1.msra.mxu0 0.0
        %4982 = vmatprep.subr.mxu0 0.0
        %4983 = vmatpush1.msra.mxu0 0.0
        %4984 = vmatprep.subr.mxu0 0.0
        %4985 = vmatpush1.msra.mxu0 0.0
        %4986 = vmatprep.subr.mxu0 0.0
        %4987 = vmatpush1.msra.mxu0 0.0
        %4988 = vmatprep.subr.mxu0 0.0
        %4989 = vmatpush1.msra.mxu0 0.0
        %4990 = vmatprep.subr.mxu0 0.0
        %4991 = vmatpush1.msra.mxu0 0.0
        %4992 = vmatprep.subr.mxu0 0.0
        %4993 = vmatpush1.msra.mxu0 0.0
        %4994 = vmatprep.subr.mxu0 0.0
        %4995 = vmatpush1.msra.mxu0 0.0
        %4996 = vmatprep.subr.mxu0 0.0
        %4997 = vmatpush1.msra.mxu0 0.0
        %4998 = vmatprep.subr.mxu0 0.0
        %4999 = vmatpush1.msra.mxu0 0.0
        %5000 = vmatprep.subr.mxu0 0.0
        %5001 = vmatpush1.msra.mxu0 0.0
        %5002 = vmatprep.subr.mxu0 0.0
        %5003 = vmatpush1.msra.mxu0 0.0
        %5004 = vmatprep.subr.mxu0 0.0
        %5005 = vmatpush1.msra.mxu0 0.0
        %5006 = vmatprep.subr.mxu0 0.0
        %5007 = vmatpush1.msra.mxu0 0.0
        %5008 = vmatprep.subr.mxu0 0.0
        %5009 = vmatpush1.msra.mxu0 0.0
        %5010 = vmatprep.subr.mxu0 0.0
        %5011 = vmatpush1.msra.mxu0 0.0
        %5012 = vmatprep.subr.mxu0 0.0
        %5013 = vmatpush1.msra.mxu0 0.0
        %5014 = vmatprep.subr.mxu0 0.0
        %5015 = vmatpush1.msra.mxu0 0.0
        %5016 = vmatprep.subr.mxu0 0.0
        %5017 = vmatpush1.msra.mxu0 0.0
        %5018 = vmatprep.subr.mxu0 0.0
        %5019 = vmatpush1.msra.mxu0 0.0
        %5020 = vmatprep.subr.mxu0 0.0
        %5021 = vmatpush1.msra.mxu0 0.0
        %5022 = vmatprep.mubr.f32.mxu0 0.0
        %v5023 = vand.u32 %v4641, 4294901760
        %5024 = vmatmul.mubr.f32.gmra.mrb[0].mxu0 %v5023
        %v5025 = vpop.f32.mrb[0].mxu0
        %v5026 = vadd.f32 %v4949, %v5025
        %v5027 = vpop.f32.mrb[0].mxu0
        %5028 = vdwg.mxu0
        %5029 = vmatprep.subr.mxu0 0.0
        %v5030 = vand.u32 %v4629, 4294901760
        %5031 = vmatpush1.msra.mxu0 %v5030
        %5032 = vmatprep.subr.mxu0 0.0
        %v5033 = vand.u32 %v4630, 4294901760
        %5034 = vmatpush1.msra.mxu0 %v5033
        %5035 = vmatprep.subr.mxu0 0.0
        %5036 = vmatpush1.msra.mxu0 0.0
        %5037 = vmatprep.subr.mxu0 0.0
        %5038 = vmatpush1.msra.mxu0 0.0
        %5039 = vmatprep.subr.mxu0 0.0
        %5040 = vmatpush1.msra.mxu0 0.0
        %5041 = vmatprep.subr.mxu0 0.0
        %5042 = vmatpush1.msra.mxu0 0.0
        %5043 = vmatprep.subr.mxu0 0.0
        %5044 = vmatpush1.msra.mxu0 0.0
        %5045 = vmatprep.subr.mxu0 0.0
        %5046 = vmatpush1.msra.mxu0 0.0
        %5047 = vmatprep.subr.mxu0 0.0
        %5048 = vmatpush1.msra.mxu0 0.0
        %5049 = vmatprep.subr.mxu0 0.0
        %5050 = vmatpush1.msra.mxu0 0.0
        %5051 = vmatprep.subr.mxu0 0.0
        %5052 = vmatpush1.msra.mxu0 0.0
        %5053 = vmatprep.subr.mxu0 0.0
        %5054 = vmatpush1.msra.mxu0 0.0
        %5055 = vmatprep.subr.mxu0 0.0
        %5056 = vmatpush1.msra.mxu0 0.0
        %5057 = vmatprep.subr.mxu0 0.0
        %5058 = vmatpush1.msra.mxu0 0.0
        %5059 = vmatprep.subr.mxu0 0.0
        %5060 = vmatpush1.msra.mxu0 0.0
        %5061 = vmatprep.subr.mxu0 0.0
        %5062 = vmatpush1.msra.mxu0 0.0
        %5063 = vmatprep.subr.mxu0 0.0
        %5064 = vmatpush1.msra.mxu0 0.0
        %5065 = vmatprep.subr.mxu0 0.0
        %5066 = vmatpush1.msra.mxu0 0.0
        %5067 = vmatprep.subr.mxu0 0.0
        %5068 = vmatpush1.msra.mxu0 0.0
        %5069 = vmatprep.subr.mxu0 0.0
        %5070 = vmatpush1.msra.mxu0 0.0
        %5071 = vmatprep.subr.mxu0 0.0
        %5072 = vmatpush1.msra.mxu0 0.0
        %5073 = vmatprep.subr.mxu0 0.0
        %5074 = vmatpush1.msra.mxu0 0.0
        %5075 = vmatprep.subr.mxu0 0.0
        %5076 = vmatpush1.msra.mxu0 0.0
        %5077 = vmatprep.subr.mxu0 0.0
        %5078 = vmatpush1.msra.mxu0 0.0
        %5079 = vmatprep.subr.mxu0 0.0
        %5080 = vmatpush1.msra.mxu0 0.0
        %5081 = vmatprep.subr.mxu0 0.0
        %5082 = vmatpush1.msra.mxu0 0.0
        %5083 = vmatprep.subr.mxu0 0.0
        %5084 = vmatpush1.msra.mxu0 0.0
        %5085 = vmatprep.subr.mxu0 0.0
        %5086 = vmatpush1.msra.mxu0 0.0
        %5087 = vmatprep.subr.mxu0 0.0
        %5088 = vmatpush1.msra.mxu0 0.0
        %5089 = vmatprep.subr.mxu0 0.0
        %5090 = vmatpush1.msra.mxu0 0.0
        %5091 = vmatprep.subr.mxu0 0.0
        %5092 = vmatpush1.msra.mxu0 0.0
        %5093 = vmatprep.subr.mxu0 0.0
        %5094 = vmatpush1.msra.mxu0 0.0
        %5095 = vmatprep.mubr.f32.mxu0 0.0
        %v5096 = vand.u32 %v4641, 4294901760
        %5097 = vmatmul.mubr.f32.gmra.mrb[0].mxu0 %v5096
        %v5098 = vpop.f32.mrb[0].mxu0
        %v5099 = vadd.f32 %v5026, %v5098
        %v5100 = vpop.f32.mrb[0].mxu0
        %5101 = vdwg.mxu0
        %v5102 = vmax.f32 %v5099, 0.0
        %v5103 = vadd.f32 %v4130, %v5102
        %5104 = vrot.lane.b32.xlu0 %v5103, 1
        %v5105 = vpop.permute.xlu0 %5104
        %v5106 = vsel %vm279, %v5105, 0.0
        %5107 = vrot.lane.b32.xlu0 %v5103, 127
        %v5108 = vpop.permute.xlu0 %5107
        %v5109 = vsel %vm280, %v5108, 0.0
        %v5111 = vrot.slane %v5103, 4
        %v5113 = vsel %vm4142, %v5106, %v5111
        %v5114 = vsel %vm4142, %v5109, 0.0
        %s5115 = scalar_lea.vmem %s5, 16
        %v5116 = vld [vmem:[%s5115] sm:$0xff]
        %s5117 = scalar_lea.vmem %s6, 16
        %v5118 = vld [vmem:[%s5117] sm:$0xff]
        %5120 = vset.pattern.permute.xlu0 0
        %5121 = vperm.xlu0 %5120, %v5118
        %v5122 = vpop.permute.xlu0 %5121
        %v5125 = vsel %vm4152, %v5116, 0
        %5127 = vmatprep.subr.mxu0 0.0
        %v5128 = vand.u32 %v5113, 4294901760
        %5129 = vmatpush1.msra.mxu0 %v5128
        %5130 = vmatprep.subr.mxu0 0.0
        %v5131 = vand.u32 %v5114, 4294901760
        %5132 = vmatpush1.msra.mxu0 %v5131
        %5133 = vmatprep.subr.mxu0 0.0
        %5134 = vmatpush1.msra.mxu0 0.0
        %5135 = vmatprep.subr.mxu0 0.0
        %5136 = vmatpush1.msra.mxu0 0.0
        %5137 = vmatprep.subr.mxu0 0.0
        %5138 = vmatpush1.msra.mxu0 0.0
        %5139 = vmatprep.subr.mxu0 0.0
        %5140 = vmatpush1.msra.mxu0 0.0
        %5141 = vmatprep.subr.mxu0 0.0
        %5142 = vmatpush1.msra.mxu0 0.0
        %5143 = vmatprep.subr.mxu0 0.0
        %5144 = vmatpush1.msra.mxu0 0.0
        %5145 = vmatprep.subr.mxu0 0.0
        %5146 = vmatpush1.msra.mxu0 0.0
        %5147 = vmatprep.subr.mxu0 0.0
        %5148 = vmatpush1.msra.mxu0 0.0
        %5149 = vmatprep.subr.mxu0 0.0
        %5150 = vmatpush1.msra.mxu0 0.0
        %5151 = vmatprep.subr.mxu0 0.0
        %5152 = vmatpush1.msra.mxu0 0.0
        %5153 = vmatprep.subr.mxu0 0.0
        %5154 = vmatpush1.msra.mxu0 0.0
        %5155 = vmatprep.subr.mxu0 0.0
        %5156 = vmatpush1.msra.mxu0 0.0
        %5157 = vmatprep.subr.mxu0 0.0
        %5158 = vmatpush1.msra.mxu0 0.0
        %5159 = vmatprep.subr.mxu0 0.0
        %5160 = vmatpush1.msra.mxu0 0.0
        %5161 = vmatprep.subr.mxu0 0.0
        %5162 = vmatpush1.msra.mxu0 0.0
        %5163 = vmatprep.subr.mxu0 0.0
        %5164 = vmatpush1.msra.mxu0 0.0
        %5165 = vmatprep.subr.mxu0 0.0
        %5166 = vmatpush1.msra.mxu0 0.0
        %5167 = vmatprep.subr.mxu0 0.0
        %5168 = vmatpush1.msra.mxu0 0.0
        %5169 = vmatprep.subr.mxu0 0.0
        %5170 = vmatpush1.msra.mxu0 0.0
        %5171 = vmatprep.subr.mxu0 0.0
        %5172 = vmatpush1.msra.mxu0 0.0
        %5173 = vmatprep.subr.mxu0 0.0
        %5174 = vmatpush1.msra.mxu0 0.0
        %5175 = vmatprep.subr.mxu0 0.0
        %5176 = vmatpush1.msra.mxu0 0.0
        %5177 = vmatprep.subr.mxu0 0.0
        %5178 = vmatpush1.msra.mxu0 0.0
        %5179 = vmatprep.subr.mxu0 0.0
        %5180 = vmatpush1.msra.mxu0 0.0
        %5181 = vmatprep.subr.mxu0 0.0
        %5182 = vmatpush1.msra.mxu0 0.0
        %5183 = vmatprep.subr.mxu0 0.0
        %5184 = vmatpush1.msra.mxu0 0.0
        %5185 = vmatprep.subr.mxu0 0.0
        %5186 = vmatpush1.msra.mxu0 0.0
        %5187 = vmatprep.subr.mxu0 0.0
        %5188 = vmatpush1.msra.mxu0 0.0
        %5189 = vmatprep.subr.mxu0 0.0
        %5190 = vmatpush1.msra.mxu0 0.0
        %5191 = vmatprep.subr.mxu0 0.0
        %5192 = vmatpush1.msra.mxu0 0.0
        %5193 = vmatprep.mubr.f32.mxu0 0.0
        %v5194 = vand.u32 %v5125, 4294901760
        %v5195 = vsub.f32 %v5125, %v5194
        %v5196 = vand.u32 %v5195, 4294901760
        %v5197 = vsub.f32 %v5195, %v5196
        %v5198 = vand.u32 %v5197, 4294901760
        %5199 = vmatmul.mubr.f32.gmra.mrb[0].mxu0 %v5198
        %v5200 = vpop.f32.mrb[0].mxu0
        %v5201 = vadd.f32 %v5122, %v5200
        %v5202 = vpop.f32.mrb[0].mxu0
        %5203 = vdwg.mxu0
        %5204 = vmatprep.subr.mxu0 0.0
        %v5205 = vand.u32 %v5113, 4294901760
        %v5206 = vsub.f32 %v5113, %v5205
        %v5207 = vand.u32 %v5206, 4294901760
        %v5208 = vsub.f32 %v5206, %v5207
        %v5209 = vand.u32 %v5208, 4294901760
        %5210 = vmatpush1.msra.mxu0 %v5209
        %5211 = vmatprep.subr.mxu0 0.0
        %v5212 = vand.u32 %v5114, 4294901760
        %v5213 = vsub.f32 %v5114, %v5212
        %v5214 = vand.u32 %v5213, 4294901760
        %v5215 = vsub.f32 %v5213, %v5214
        %v5216 = vand.u32 %v5215, 4294901760
        %5217 = vmatpush1.msra.mxu0 %v5216
        %5218 = vmatprep.subr.mxu0 0.0
        %5219 = vmatpush1.msra.mxu0 0.0
        %5220 = vmatprep.subr.mxu0 0.0
        %5221 = vmatpush1.msra.mxu0 0.0
        %5222 = vmatprep.subr.mxu0 0.0
        %5223 = vmatpush1.msra.mxu0 0.0
        %5224 = vmatprep.subr.mxu0 0.0
        %5225 = vmatpush1.msra.mxu0 0.0
        %5226 = vmatprep.subr.mxu0 0.0
        %5227 = vmatpush1.msra.mxu0 0.0
        %5228 = vmatprep.subr.mxu0 0.0
        %5229 = vmatpush1.msra.mxu0 0.0
        %5230 = vmatprep.subr.mxu0 0.0
        %5231 = vmatpush1.msra.mxu0 0.0
        %5232 = vmatprep.subr.mxu0 0.0
        %5233 = vmatpush1.msra.mxu0 0.0
        %5234 = vmatprep.subr.mxu0 0.0
        %5235 = vmatpush1.msra.mxu0 0.0
        %5236 = vmatprep.subr.mxu0 0.0
        %5237 = vmatpush1.msra.mxu0 0.0
        %5238 = vmatprep.subr.mxu0 0.0
        %5239 = vmatpush1.msra.mxu0 0.0
        %5240 = vmatprep.subr.mxu0 0.0
        %5241 = vmatpush1.msra.mxu0 0.0
        %5242 = vmatprep.subr.mxu0 0.0
        %5243 = vmatpush1.msra.mxu0 0.0
        %5244 = vmatprep.subr.mxu0 0.0
        %5245 = vmatpush1.msra.mxu0 0.0
        %5246 = vmatprep.subr.mxu0 0.0
        %5247 = vmatpush1.msra.mxu0 0.0
        %5248 = vmatprep.subr.mxu0 0.0
        %5249 = vmatpush1.msra.mxu0 0.0
        %5250 = vmatprep.subr.mxu0 0.0
        %5251 = vmatpush1.msra.mxu0 0.0
        %5252 = vmatprep.subr.mxu0 0.0
        %5253 = vmatpush1.msra.mxu0 0.0
        %5254 = vmatprep.subr.mxu0 0.0
        %5255 = vmatpush1.msra.mxu0 0.0
        %5256 = vmatprep.subr.mxu0 0.0
        %5257 = vmatpush1.msra.mxu0 0.0
        %5258 = vmatprep.subr.mxu0 0.0
        %5259 = vmatpush1.msra.mxu0 0.0
        %5260 = vmatprep.subr.mxu0 0.0
        %5261 = vmatpush1.msra.mxu0 0.0
        %5262 = vmatprep.subr.mxu0 0.0
        %5263 = vmatpush1.msra.mxu0 0.0
        %5264 = vmatprep.subr.mxu0 0.0
        %5265 = vmatpush1.msra.mxu0 0.0
        %5266 = vmatprep.subr.mxu0 0.0
        %5267 = vmatpush1.msra.mxu0 0.0
        %5268 = vmatprep.subr.mxu0 0.0
        %5269 = vmatpush1.msra.mxu0 0.0
        %5270 = vmatprep.subr.mxu0 0.0
        %5271 = vmatpush1.msra.mxu0 0.0
        %5272 = vmatprep.subr.mxu0 0.0
        %5273 = vmatpush1.msra.mxu0 0.0
        %5274 = vmatprep.subr.mxu0 0.0
        %5275 = vmatpush1.msra.mxu0 0.0
        %5276 = vmatprep.subr.mxu0 0.0
        %5277 = vmatpush1.msra.mxu0 0.0
        %5278 = vmatprep.mubr.f32.mxu0 0.0
        %v5279 = vand.u32 %v5125, 4294901760
        %5280 = vmatmul.mubr.f32.gmra.mrb[0].mxu0 %v5279
        %v5281 = vpop.f32.mrb[0].mxu0
        %v5282 = vadd.f32 %v5201, %v5281
        %v5283 = vpop.f32.mrb[0].mxu0
        %5284 = vdwg.mxu0
        %5285 = vmatprep.subr.mxu0 0.0
        %v5286 = vand.u32 %v5113, 4294901760
        %v5287 = vsub.f32 %v5113, %v5286
        %5288 = vmatpush1.msra.mxu0 %v5287
        %5289 = vmatprep.subr.mxu0 0.0
        %v5290 = vand.u32 %v5114, 4294901760
        %v5291 = vsub.f32 %v5114, %v5290
        %5292 = vmatpush1.msra.mxu0 %v5291
        %5293 = vmatprep.subr.mxu0 0.0
        %5294 = vmatpush1.msra.mxu0 0.0
        %5295 = vmatprep.subr.mxu0 0.0
        %5296 = vmatpush1.msra.mxu0 0.0
        %5297 = vmatprep.subr.mxu0 0.0
        %5298 = vmatpush1.msra.mxu0 0.0
        %5299 = vmatprep.subr.mxu0 0.0
        %5300 = vmatpush1.msra.mxu0 0.0
        %5301 = vmatprep.subr.mxu0 0.0
        %5302 = vmatpush1.msra.mxu0 0.0
        %5303 = vmatprep.subr.mxu0 0.0
        %5304 = vmatpush1.msra.mxu0 0.0
        %5305 = vmatprep.subr.mxu0 0.0
        %5306 = vmatpush1.msra.mxu0 0.0
        %5307 = vmatprep.subr.mxu0 0.0
        %5308 = vmatpush1.msra.mxu0 0.0
        %5309 = vmatprep.subr.mxu0 0.0
        %5310 = vmatpush1.msra.mxu0 0.0
        %5311 = vmatprep.subr.mxu0 0.0
        %5312 = vmatpush1.msra.mxu0 0.0
        %5313 = vmatprep.subr.mxu0 0.0
        %5314 = vmatpush1.msra.mxu0 0.0
        %5315 = vmatprep.subr.mxu0 0.0
        %5316 = vmatpush1.msra.mxu0 0.0
        %5317 = vmatprep.subr.mxu0 0.0
        %5318 = vmatpush1.msra.mxu0 0.0
        %5319 = vmatprep.subr.mxu0 0.0
        %5320 = vmatpush1.msra.mxu0 0.0
        %5321 = vmatprep.subr.mxu0 0.0
        %5322 = vmatpush1.msra.mxu0 0.0
        %5323 = vmatprep.subr.mxu0 0.0
        %5324 = vmatpush1.msra.mxu0 0.0
        %5325 = vmatprep.subr.mxu0 0.0
        %5326 = vmatpush1.msra.mxu0 0.0
        %5327 = vmatprep.subr.mxu0 0.0
        %5328 = vmatpush1.msra.mxu0 0.0
        %5329 = vmatprep.subr.mxu0 0.0
        %5330 = vmatpush1.msra.mxu0 0.0
        %5331 = vmatprep.subr.mxu0 0.0
        %5332 = vmatpush1.msra.mxu0 0.0
        %5333 = vmatprep.subr.mxu0 0.0
        %5334 = vmatpush1.msra.mxu0 0.0
        %5335 = vmatprep.subr.mxu0 0.0
        %5336 = vmatpush1.msra.mxu0 0.0
        %5337 = vmatprep.subr.mxu0 0.0
        %5338 = vmatpush1.msra.mxu0 0.0
        %5339 = vmatprep.subr.mxu0 0.0
        %5340 = vmatpush1.msra.mxu0 0.0
        %5341 = vmatprep.subr.mxu0 0.0
        %5342 = vmatpush1.msra.mxu0 0.0
        %5343 = vmatprep.subr.mxu0 0.0
        %5344 = vmatpush1.msra.mxu0 0.0
        %5345 = vmatprep.subr.mxu0 0.0
        %5346 = vmatpush1.msra.mxu0 0.0
        %5347 = vmatprep.subr.mxu0 0.0
        %5348 = vmatpush1.msra.mxu0 0.0
        %5349 = vmatprep.subr.mxu0 0.0
        %5350 = vmatpush1.msra.mxu0 0.0
        %5351 = vmatprep.subr.mxu0 0.0
        %5352 = vmatpush1.msra.mxu0 0.0
        %5353 = vmatprep.mubr.f32.mxu0 0.0
        %v5354 = vand.u32 %v5125, 4294901760
        %v5355 = vsub.f32 %v5125, %v5354
        %5356 = vmatmul.mubr.f32.gmra.mrb[0].mxu0 %v5355
        %v5357 = vpop.f32.mrb[0].mxu0
        %v5358 = vadd.f32 %v5282, %v5357
        %v5359 = vpop.f32.mrb[0].mxu0
        %5360 = vdwg.mxu0
        %5361 = vmatprep.subr.mxu0 0.0
        %v5362 = vand.u32 %v5113, 4294901760
        %5363 = vmatpush1.msra.mxu0 %v5362
        %5364 = vmatprep.subr.mxu0 0.0
        %v5365 = vand.u32 %v5114, 4294901760
        %5366 = vmatpush1.msra.mxu0 %v5365
        %5367 = vmatprep.subr.mxu0 0.0
        %5368 = vmatpush1.msra.mxu0 0.0
        %5369 = vmatprep.subr.mxu0 0.0
        %5370 = vmatpush1.msra.mxu0 0.0
        %5371 = vmatprep.subr.mxu0 0.0
        %5372 = vmatpush1.msra.mxu0 0.0
        %5373 = vmatprep.subr.mxu0 0.0
        %5374 = vmatpush1.msra.mxu0 0.0
        %5375 = vmatprep.subr.mxu0 0.0
        %5376 = vmatpush1.msra.mxu0 0.0
        %5377 = vmatprep.subr.mxu0 0.0
        %5378 = vmatpush1.msra.mxu0 0.0
        %5379 = vmatprep.subr.mxu0 0.0
        %5380 = vmatpush1.msra.mxu0 0.0
        %5381 = vmatprep.subr.mxu0 0.0
        %5382 = vmatpush1.msra.mxu0 0.0
        %5383 = vmatprep.subr.mxu0 0.0
        %5384 = vmatpush1.msra.mxu0 0.0
        %5385 = vmatprep.subr.mxu0 0.0
        %5386 = vmatpush1.msra.mxu0 0.0
        %5387 = vmatprep.subr.mxu0 0.0
        %5388 = vmatpush1.msra.mxu0 0.0
        %5389 = vmatprep.subr.mxu0 0.0
        %5390 = vmatpush1.msra.mxu0 0.0
        %5391 = vmatprep.subr.mxu0 0.0
        %5392 = vmatpush1.msra.mxu0 0.0
        %5393 = vmatprep.subr.mxu0 0.0
        %5394 = vmatpush1.msra.mxu0 0.0
        %5395 = vmatprep.subr.mxu0 0.0
        %5396 = vmatpush1.msra.mxu0 0.0
        %5397 = vmatprep.subr.mxu0 0.0
        %5398 = vmatpush1.msra.mxu0 0.0
        %5399 = vmatprep.subr.mxu0 0.0
        %5400 = vmatpush1.msra.mxu0 0.0
        %5401 = vmatprep.subr.mxu0 0.0
        %5402 = vmatpush1.msra.mxu0 0.0
        %5403 = vmatprep.subr.mxu0 0.0
        %5404 = vmatpush1.msra.mxu0 0.0
        %5405 = vmatprep.subr.mxu0 0.0
        %5406 = vmatpush1.msra.mxu0 0.0
        %5407 = vmatprep.subr.mxu0 0.0
        %5408 = vmatpush1.msra.mxu0 0.0
        %5409 = vmatprep.subr.mxu0 0.0
        %5410 = vmatpush1.msra.mxu0 0.0
        %5411 = vmatprep.subr.mxu0 0.0
        %5412 = vmatpush1.msra.mxu0 0.0
        %5413 = vmatprep.subr.mxu0 0.0
        %5414 = vmatpush1.msra.mxu0 0.0
        %5415 = vmatprep.subr.mxu0 0.0
        %5416 = vmatpush1.msra.mxu0 0.0
        %5417 = vmatprep.subr.mxu0 0.0
        %5418 = vmatpush1.msra.mxu0 0.0
        %5419 = vmatprep.subr.mxu0 0.0
        %5420 = vmatpush1.msra.mxu0 0.0
        %5421 = vmatprep.subr.mxu0 0.0
        %5422 = vmatpush1.msra.mxu0 0.0
        %5423 = vmatprep.subr.mxu0 0.0
        %5424 = vmatpush1.msra.mxu0 0.0
        %5425 = vmatprep.subr.mxu0 0.0
        %5426 = vmatpush1.msra.mxu0 0.0
        %5427 = vmatprep.mubr.f32.mxu0 0.0
        %v5428 = vand.u32 %v5125, 4294901760
        %v5429 = vsub.f32 %v5125, %v5428
        %v5430 = vand.u32 %v5429, 4294901760
        %5431 = vmatmul.mubr.f32.gmra.mrb[0].mxu0 %v5430
        %v5432 = vpop.f32.mrb[0].mxu0
        %v5433 = vadd.f32 %v5358, %v5432
        %v5434 = vpop.f32.mrb[0].mxu0
        %5435 = vdwg.mxu0
        %5436 = vmatprep.subr.mxu0 0.0
        %v5437 = vand.u32 %v5113, 4294901760
        %v5438 = vsub.f32 %v5113, %v5437
        %v5439 = vand.u32 %v5438, 4294901760
        %5440 = vmatpush1.msra.mxu0 %v5439
        %5441 = vmatprep.subr.mxu0 0.0
        %v5442 = vand.u32 %v5114, 4294901760
        %v5443 = vsub.f32 %v5114, %v5442
        %v5444 = vand.u32 %v5443, 4294901760
        %5445 = vmatpush1.msra.mxu0 %v5444
        %5446 = vmatprep.subr.mxu0 0.0
        %5447 = vmatpush1.msra.mxu0 0.0
        %5448 = vmatprep.subr.mxu0 0.0
        %5449 = vmatpush1.msra.mxu0 0.0
        %5450 = vmatprep.subr.mxu0 0.0
        %5451 = vmatpush1.msra.mxu0 0.0
        %5452 = vmatprep.subr.mxu0 0.0
        %5453 = vmatpush1.msra.mxu0 0.0
        %5454 = vmatprep.subr.mxu0 0.0
        %5455 = vmatpush1.msra.mxu0 0.0
        %5456 = vmatprep.subr.mxu0 0.0
        %5457 = vmatpush1.msra.mxu0 0.0
        %5458 = vmatprep.subr.mxu0 0.0
        %5459 = vmatpush1.msra.mxu0 0.0
        %5460 = vmatprep.subr.mxu0 0.0
        %5461 = vmatpush1.msra.mxu0 0.0
        %5462 = vmatprep.subr.mxu0 0.0
        %5463 = vmatpush1.msra.mxu0 0.0
        %5464 = vmatprep.subr.mxu0 0.0
        %5465 = vmatpush1.msra.mxu0 0.0
        %5466 = vmatprep.subr.mxu0 0.0
        %5467 = vmatpush1.msra.mxu0 0.0
        %5468 = vmatprep.subr.mxu0 0.0
        %5469 = vmatpush1.msra.mxu0 0.0
        %5470 = vmatprep.subr.mxu0 0.0
        %5471 = vmatpush1.msra.mxu0 0.0
        %5472 = vmatprep.subr.mxu0 0.0
        %5473 = vmatpush1.msra.mxu0 0.0
        %5474 = vmatprep.subr.mxu0 0.0
        %5475 = vmatpush1.msra.mxu0 0.0
        %5476 = vmatprep.subr.mxu0 0.0
        %5477 = vmatpush1.msra.mxu0 0.0
        %5478 = vmatprep.subr.mxu0 0.0
        %5479 = vmatpush1.msra.mxu0 0.0
        %5480 = vmatprep.subr.mxu0 0.0
        %5481 = vmatpush1.msra.mxu0 0.0
        %5482 = vmatprep.subr.mxu0 0.0
        %5483 = vmatpush1.msra.mxu0 0.0
        %5484 = vmatprep.subr.mxu0 0.0
        %5485 = vmatpush1.msra.mxu0 0.0
        %5486 = vmatprep.subr.mxu0 0.0
        %5487 = vmatpush1.msra.mxu0 0.0
        %5488 = vmatprep.subr.mxu0 0.0
        %5489 = vmatpush1.msra.mxu0 0.0
        %5490 = vmatprep.subr.mxu0 0.0
        %5491 = vmatpush1.msra.mxu0 0.0
        %5492 = vmatprep.subr.mxu0 0.0
        %5493 = vmatpush1.msra.mxu0 0.0
        %5494 = vmatprep.subr.mxu0 0.0
        %5495 = vmatpush1.msra.mxu0 0.0
        %5496 = vmatprep.subr.mxu0 0.0
        %5497 = vmatpush1.msra.mxu0 0.0
        %5498 = vmatprep.subr.mxu0 0.0
        %5499 = vmatpush1.msra.mxu0 0.0
        %5500 = vmatprep.subr.mxu0 0.0
        %5501 = vmatpush1.msra.mxu0 0.0
        %5502 = vmatprep.subr.mxu0 0.0
        %5503 = vmatpush1.msra.mxu0 0.0
        %5504 = vmatprep.subr.mxu0 0.0
        %5505 = vmatpush1.msra.mxu0 0.0
        %5506 = vmatprep.mubr.f32.mxu0 0.0
        %v5507 = vand.u32 %v5125, 4294901760
        %5508 = vmatmul.mubr.f32.gmra.mrb[0].mxu0 %v5507
        %v5509 = vpop.f32.mrb[0].mxu0
        %v5510 = vadd.f32 %v5433, %v5509
        %v5511 = vpop.f32.mrb[0].mxu0
        %5512 = vdwg.mxu0
        %5513 = vmatprep.subr.mxu0 0.0
        %v5514 = vand.u32 %v5113, 4294901760
        %5515 = vmatpush1.msra.mxu0 %v5514
        %5516 = vmatprep.subr.mxu0 0.0
        %v5517 = vand.u32 %v5114, 4294901760
        %5518 = vmatpush1.msra.mxu0 %v5517
        %5519 = vmatprep.subr.mxu0 0.0
        %5520 = vmatpush1.msra.mxu0 0.0
        %5521 = vmatprep.subr.mxu0 0.0
        %5522 = vmatpush1.msra.mxu0 0.0
        %5523 = vmatprep.subr.mxu0 0.0
        %5524 = vmatpush1.msra.mxu0 0.0
        %5525 = vmatprep.subr.mxu0 0.0
        %5526 = vmatpush1.msra.mxu0 0.0
        %5527 = vmatprep.subr.mxu0 0.0
        %5528 = vmatpush1.msra.mxu0 0.0
        %5529 = vmatprep.subr.mxu0 0.0
        %5530 = vmatpush1.msra.mxu0 0.0
        %5531 = vmatprep.subr.mxu0 0.0
        %5532 = vmatpush1.msra.mxu0 0.0
        %5533 = vmatprep.subr.mxu0 0.0
        %5534 = vmatpush1.msra.mxu0 0.0
        %5535 = vmatprep.subr.mxu0 0.0
        %5536 = vmatpush1.msra.mxu0 0.0
        %5537 = vmatprep.subr.mxu0 0.0
        %5538 = vmatpush1.msra.mxu0 0.0
        %5539 = vmatprep.subr.mxu0 0.0
        %5540 = vmatpush1.msra.mxu0 0.0
        %5541 = vmatprep.subr.mxu0 0.0
        %5542 = vmatpush1.msra.mxu0 0.0
        %5543 = vmatprep.subr.mxu0 0.0
        %5544 = vmatpush1.msra.mxu0 0.0
        %5545 = vmatprep.subr.mxu0 0.0
        %5546 = vmatpush1.msra.mxu0 0.0
        %5547 = vmatprep.subr.mxu0 0.0
        %5548 = vmatpush1.msra.mxu0 0.0
        %5549 = vmatprep.subr.mxu0 0.0
        %5550 = vmatpush1.msra.mxu0 0.0
        %5551 = vmatprep.subr.mxu0 0.0
        %5552 = vmatpush1.msra.mxu0 0.0
        %5553 = vmatprep.subr.mxu0 0.0
        %5554 = vmatpush1.msra.mxu0 0.0
        %5555 = vmatprep.subr.mxu0 0.0
        %5556 = vmatpush1.msra.mxu0 0.0
        %5557 = vmatprep.subr.mxu0 0.0
        %5558 = vmatpush1.msra.mxu0 0.0
        %5559 = vmatprep.subr.mxu0 0.0
        %5560 = vmatpush1.msra.mxu0 0.0
        %5561 = vmatprep.subr.mxu0 0.0
        %5562 = vmatpush1.msra.mxu0 0.0
        %5563 = vmatprep.subr.mxu0 0.0
        %5564 = vmatpush1.msra.mxu0 0.0
        %5565 = vmatprep.subr.mxu0 0.0
        %5566 = vmatpush1.msra.mxu0 0.0
        %5567 = vmatprep.subr.mxu0 0.0
        %5568 = vmatpush1.msra.mxu0 0.0
        %5569 = vmatprep.subr.mxu0 0.0
        %5570 = vmatpush1.msra.mxu0 0.0
        %5571 = vmatprep.subr.mxu0 0.0
        %5572 = vmatpush1.msra.mxu0 0.0
        %5573 = vmatprep.subr.mxu0 0.0
        %5574 = vmatpush1.msra.mxu0 0.0
        %5575 = vmatprep.subr.mxu0 0.0
        %5576 = vmatpush1.msra.mxu0 0.0
        %5577 = vmatprep.subr.mxu0 0.0
        %5578 = vmatpush1.msra.mxu0 0.0
        %5579 = vmatprep.mubr.f32.mxu0 0.0
        %v5580 = vand.u32 %v5125, 4294901760
        %5581 = vmatmul.mubr.f32.gmra.mrb[0].mxu0 %v5580
        %v5582 = vpop.f32.mrb[0].mxu0
        %v5583 = vadd.f32 %v5510, %v5582
        %v5584 = vpop.f32.mrb[0].mxu0
        %5585 = vdwg.mxu0
        %v5586 = vmax.f32 %v5583, 0.0
        %v5588 = vrot.slane %v5586, 4
        %v5590 = vadd.f32 %v4130, %v5588
        %v5592 = vrot.slane %v5590, 4
        %5594 = vrot.lane.b32.xlu0 %v5592, 1
        %v5595 = vpop.permute.xlu0 %5594
        %v5596 = vsel %vm279, %v5595, 0.0
        %5597 = vrot.lane.b32.xlu0 %v5592, 127
        %v5598 = vpop.permute.xlu0 %5597
        %v5599 = vsel %vm280, %v5598, 0.0
        %v5600 = vsel %vm4142, %v5596, %v5590
        %v5601 = vsel %vm4142, %v5599, 0.0
        %s5602 = scalar_lea.vmem %s5, 24
        %v5603 = vld [vmem:[%s5602] sm:$0xff]
        %s5604 = scalar_lea.vmem %s6, 24
        %v5605 = vld [vmem:[%s5604] sm:$0xff]
        %5607 = vset.pattern.permute.xlu0 0
        %5608 = vperm.xlu0 %5607, %v5605
        %v5609 = vpop.permute.xlu0 %5608
        %v5612 = vsel %vm4152, %v5603, 0
        %5614 = vmatprep.subr.mxu0 0.0
        %v5615 = vand.u32 %v5600, 4294901760
        %5616 = vmatpush1.msra.mxu0 %v5615
        %5617 = vmatprep.subr.mxu0 0.0
        %v5618 = vand.u32 %v5601, 4294901760
        %5619 = vmatpush1.msra.mxu0 %v5618
        %5620 = vmatprep.subr.mxu0 0.0
        %5621 = vmatpush1.msra.mxu0 0.0
        %5622 = vmatprep.subr.mxu0 0.0
        %5623 = vmatpush1.msra.mxu0 0.0
        %5624 = vmatprep.subr.mxu0 0.0
        %5625 = vmatpush1.msra.mxu0 0.0
        %5626 = vmatprep.subr.mxu0 0.0
        %5627 = vmatpush1.msra.mxu0 0.0
        %5628 = vmatprep.subr.mxu0 0.0
        %5629 = vmatpush1.msra.mxu0 0.0
        %5630 = vmatprep.subr.mxu0 0.0
        %5631 = vmatpush1.msra.mxu0 0.0
        %5632 = vmatprep.subr.mxu0 0.0
        %5633 = vmatpush1.msra.mxu0 0.0
        %5634 = vmatprep.subr.mxu0 0.0
        %5635 = vmatpush1.msra.mxu0 0.0
        %5636 = vmatprep.subr.mxu0 0.0
        %5637 = vmatpush1.msra.mxu0 0.0
        %5638 = vmatprep.subr.mxu0 0.0
        %5639 = vmatpush1.msra.mxu0 0.0
        %5640 = vmatprep.subr.mxu0 0.0
        %5641 = vmatpush1.msra.mxu0 0.0
        %5642 = vmatprep.subr.mxu0 0.0
        %5643 = vmatpush1.msra.mxu0 0.0
        %5644 = vmatprep.subr.mxu0 0.0
        %5645 = vmatpush1.msra.mxu0 0.0
        %5646 = vmatprep.subr.mxu0 0.0
        %5647 = vmatpush1.msra.mxu0 0.0
        %5648 = vmatprep.subr.mxu0 0.0
        %5649 = vmatpush1.msra.mxu0 0.0
        %5650 = vmatprep.subr.mxu0 0.0
        %5651 = vmatpush1.msra.mxu0 0.0
        %5652 = vmatprep.subr.mxu0 0.0
        %5653 = vmatpush1.msra.mxu0 0.0
        %5654 = vmatprep.subr.mxu0 0.0
        %5655 = vmatpush1.msra.mxu0 0.0
        %5656 = vmatprep.subr.mxu0 0.0
        %5657 = vmatpush1.msra.mxu0 0.0
        %5658 = vmatprep.subr.mxu0 0.0
        %5659 = vmatpush1.msra.mxu0 0.0
        %5660 = vmatprep.subr.mxu0 0.0
        %5661 = vmatpush1.msra.mxu0 0.0
        %5662 = vmatprep.subr.mxu0 0.0
        %5663 = vmatpush1.msra.mxu0 0.0
        %5664 = vmatprep.subr.mxu0 0.0
        %5665 = vmatpush1.msra.mxu0 0.0
        %5666 = vmatprep.subr.mxu0 0.0
        %5667 = vmatpush1.msra.mxu0 0.0
        %5668 = vmatprep.subr.mxu0 0.0
        %5669 = vmatpush1.msra.mxu0 0.0
        %5670 = vmatprep.subr.mxu0 0.0
        %5671 = vmatpush1.msra.mxu0 0.0
        %5672 = vmatprep.subr.mxu0 0.0
        %5673 = vmatpush1.msra.mxu0 0.0
        %5674 = vmatprep.subr.mxu0 0.0
        %5675 = vmatpush1.msra.mxu0 0.0
        %5676 = vmatprep.subr.mxu0 0.0
        %5677 = vmatpush1.msra.mxu0 0.0
        %5678 = vmatprep.subr.mxu0 0.0
        %5679 = vmatpush1.msra.mxu0 0.0
        %5680 = vmatprep.mubr.f32.mxu0 0.0
        %v5681 = vand.u32 %v5612, 4294901760
        %v5682 = vsub.f32 %v5612, %v5681
        %v5683 = vand.u32 %v5682, 4294901760
        %v5684 = vsub.f32 %v5682, %v5683
        %v5685 = vand.u32 %v5684, 4294901760
        %5686 = vmatmul.mubr.f32.gmra.mrb[0].mxu0 %v5685
        %v5687 = vpop.f32.mrb[0].mxu0
        %v5688 = vadd.f32 %v5609, %v5687
        %v5689 = vpop.f32.mrb[0].mxu0
        %5690 = vdwg.mxu0
        %5691 = vmatprep.subr.mxu0 0.0
        %v5692 = vand.u32 %v5600, 4294901760
        %v5693 = vsub.f32 %v5600, %v5692
        %v5694 = vand.u32 %v5693, 4294901760
        %v5695 = vsub.f32 %v5693, %v5694
        %v5696 = vand.u32 %v5695, 4294901760
        %5697 = vmatpush1.msra.mxu0 %v5696
        %5698 = vmatprep.subr.mxu0 0.0
        %v5699 = vand.u32 %v5601, 4294901760
        %v5700 = vsub.f32 %v5601, %v5699
        %v5701 = vand.u32 %v5700, 4294901760
        %v5702 = vsub.f32 %v5700, %v5701
        %v5703 = vand.u32 %v5702, 4294901760
        %5704 = vmatpush1.msra.mxu0 %v5703
        %5705 = vmatprep.subr.mxu0 0.0
        %5706 = vmatpush1.msra.mxu0 0.0
        %5707 = vmatprep.subr.mxu0 0.0
        %5708 = vmatpush1.msra.mxu0 0.0
        %5709 = vmatprep.subr.mxu0 0.0
        %5710 = vmatpush1.msra.mxu0 0.0
        %5711 = vmatprep.subr.mxu0 0.0
        %5712 = vmatpush1.msra.mxu0 0.0
        %5713 = vmatprep.subr.mxu0 0.0
        %5714 = vmatpush1.msra.mxu0 0.0
        %5715 = vmatprep.subr.mxu0 0.0
        %5716 = vmatpush1.msra.mxu0 0.0
        %5717 = vmatprep.subr.mxu0 0.0
        %5718 = vmatpush1.msra.mxu0 0.0
        %5719 = vmatprep.subr.mxu0 0.0
        %5720 = vmatpush1.msra.mxu0 0.0
        %5721 = vmatprep.subr.mxu0 0.0
        %5722 = vmatpush1.msra.mxu0 0.0
        %5723 = vmatprep.subr.mxu0 0.0
        %5724 = vmatpush1.msra.mxu0 0.0
        %5725 = vmatprep.subr.mxu0 0.0
        %5726 = vmatpush1.msra.mxu0 0.0
        %5727 = vmatprep.subr.mxu0 0.0
        %5728 = vmatpush1.msra.mxu0 0.0
        %5729 = vmatprep.subr.mxu0 0.0
        %5730 = vmatpush1.msra.mxu0 0.0
        %5731 = vmatprep.subr.mxu0 0.0
        %5732 = vmatpush1.msra.mxu0 0.0
        %5733 = vmatprep.subr.mxu0 0.0
        %5734 = vmatpush1.msra.mxu0 0.0
        %5735 = vmatprep.subr.mxu0 0.0
        %5736 = vmatpush1.msra.mxu0 0.0
        %5737 = vmatprep.subr.mxu0 0.0
        %5738 = vmatpush1.msra.mxu0 0.0
        %5739 = vmatprep.subr.mxu0 0.0
        %5740 = vmatpush1.msra.mxu0 0.0
        %5741 = vmatprep.subr.mxu0 0.0
        %5742 = vmatpush1.msra.mxu0 0.0
        %5743 = vmatprep.subr.mxu0 0.0
        %5744 = vmatpush1.msra.mxu0 0.0
        %5745 = vmatprep.subr.mxu0 0.0
        %5746 = vmatpush1.msra.mxu0 0.0
        %5747 = vmatprep.subr.mxu0 0.0
        %5748 = vmatpush1.msra.mxu0 0.0
        %5749 = vmatprep.subr.mxu0 0.0
        %5750 = vmatpush1.msra.mxu0 0.0
        %5751 = vmatprep.subr.mxu0 0.0
        %5752 = vmatpush1.msra.mxu0 0.0
        %5753 = vmatprep.subr.mxu0 0.0
        %5754 = vmatpush1.msra.mxu0 0.0
        %5755 = vmatprep.subr.mxu0 0.0
        %5756 = vmatpush1.msra.mxu0 0.0
        %5757 = vmatprep.subr.mxu0 0.0
        %5758 = vmatpush1.msra.mxu0 0.0
        %5759 = vmatprep.subr.mxu0 0.0
        %5760 = vmatpush1.msra.mxu0 0.0
        %5761 = vmatprep.subr.mxu0 0.0
        %5762 = vmatpush1.msra.mxu0 0.0
        %5763 = vmatprep.subr.mxu0 0.0
        %5764 = vmatpush1.msra.mxu0 0.0
        %5765 = vmatprep.mubr.f32.mxu0 0.0
        %v5766 = vand.u32 %v5612, 4294901760
        %5767 = vmatmul.mubr.f32.gmra.mrb[0].mxu0 %v5766
        %v5768 = vpop.f32.mrb[0].mxu0
        %v5769 = vadd.f32 %v5688, %v5768
        %v5770 = vpop.f32.mrb[0].mxu0
        %5771 = vdwg.mxu0
        %5772 = vmatprep.subr.mxu0 0.0
        %v5773 = vand.u32 %v5600, 4294901760
        %v5774 = vsub.f32 %v5600, %v5773
        %5775 = vmatpush1.msra.mxu0 %v5774
        %5776 = vmatprep.subr.mxu0 0.0
        %v5777 = vand.u32 %v5601, 4294901760
        %v5778 = vsub.f32 %v5601, %v5777
        %5779 = vmatpush1.msra.mxu0 %v5778
        %5780 = vmatprep.subr.mxu0 0.0
        %5781 = vmatpush1.msra.mxu0 0.0
        %5782 = vmatprep.subr.mxu0 0.0
        %5783 = vmatpush1.msra.mxu0 0.0
        %5784 = vmatprep.subr.mxu0 0.0
        %5785 = vmatpush1.msra.mxu0 0.0
        %5786 = vmatprep.subr.mxu0 0.0
        %5787 = vmatpush1.msra.mxu0 0.0
        %5788 = vmatprep.subr.mxu0 0.0
        %5789 = vmatpush1.msra.mxu0 0.0
        %5790 = vmatprep.subr.mxu0 0.0
        %5791 = vmatpush1.msra.mxu0 0.0
        %5792 = vmatprep.subr.mxu0 0.0
        %5793 = vmatpush1.msra.mxu0 0.0
        %5794 = vmatprep.subr.mxu0 0.0
        %5795 = vmatpush1.msra.mxu0 0.0
        %5796 = vmatprep.subr.mxu0 0.0
        %5797 = vmatpush1.msra.mxu0 0.0
        %5798 = vmatprep.subr.mxu0 0.0
        %5799 = vmatpush1.msra.mxu0 0.0
        %5800 = vmatprep.subr.mxu0 0.0
        %5801 = vmatpush1.msra.mxu0 0.0
        %5802 = vmatprep.subr.mxu0 0.0
        %5803 = vmatpush1.msra.mxu0 0.0
        %5804 = vmatprep.subr.mxu0 0.0
        %5805 = vmatpush1.msra.mxu0 0.0
        %5806 = vmatprep.subr.mxu0 0.0
        %5807 = vmatpush1.msra.mxu0 0.0
        %5808 = vmatprep.subr.mxu0 0.0
        %5809 = vmatpush1.msra.mxu0 0.0
        %5810 = vmatprep.subr.mxu0 0.0
        %5811 = vmatpush1.msra.mxu0 0.0
        %5812 = vmatprep.subr.mxu0 0.0
        %5813 = vmatpush1.msra.mxu0 0.0
        %5814 = vmatprep.subr.mxu0 0.0
        %5815 = vmatpush1.msra.mxu0 0.0
        %5816 = vmatprep.subr.mxu0 0.0
        %5817 = vmatpush1.msra.mxu0 0.0
        %5818 = vmatprep.subr.mxu0 0.0
        %5819 = vmatpush1.msra.mxu0 0.0
        %5820 = vmatprep.subr.mxu0 0.0
        %5821 = vmatpush1.msra.mxu0 0.0
        %5822 = vmatprep.subr.mxu0 0.0
        %5823 = vmatpush1.msra.mxu0 0.0
        %5824 = vmatprep.subr.mxu0 0.0
        %5825 = vmatpush1.msra.mxu0 0.0
        %5826 = vmatprep.subr.mxu0 0.0
        %5827 = vmatpush1.msra.mxu0 0.0
        %5828 = vmatprep.subr.mxu0 0.0
        %5829 = vmatpush1.msra.mxu0 0.0
        %5830 = vmatprep.subr.mxu0 0.0
        %5831 = vmatpush1.msra.mxu0 0.0
        %5832 = vmatprep.subr.mxu0 0.0
        %5833 = vmatpush1.msra.mxu0 0.0
        %5834 = vmatprep.subr.mxu0 0.0
        %5835 = vmatpush1.msra.mxu0 0.0
        %5836 = vmatprep.subr.mxu0 0.0
        %5837 = vmatpush1.msra.mxu0 0.0
        %5838 = vmatprep.subr.mxu0 0.0
        %5839 = vmatpush1.msra.mxu0 0.0
        %5840 = vmatprep.mubr.f32.mxu0 0.0
        %v5841 = vand.u32 %v5612, 4294901760
        %v5842 = vsub.f32 %v5612, %v5841
        %5843 = vmatmul.mubr.f32.gmra.mrb[0].mxu0 %v5842
        %v5844 = vpop.f32.mrb[0].mxu0
        %v5845 = vadd.f32 %v5769, %v5844
        %v5846 = vpop.f32.mrb[0].mxu0
        %5847 = vdwg.mxu0
        %5848 = vmatprep.subr.mxu0 0.0
        %v5849 = vand.u32 %v5600, 4294901760
        %5850 = vmatpush1.msra.mxu0 %v5849
        %5851 = vmatprep.subr.mxu0 0.0
        %v5852 = vand.u32 %v5601, 4294901760
        %5853 = vmatpush1.msra.mxu0 %v5852
        %5854 = vmatprep.subr.mxu0 0.0
        %5855 = vmatpush1.msra.mxu0 0.0
        %5856 = vmatprep.subr.mxu0 0.0
        %5857 = vmatpush1.msra.mxu0 0.0
        %5858 = vmatprep.subr.mxu0 0.0
        %5859 = vmatpush1.msra.mxu0 0.0
        %5860 = vmatprep.subr.mxu0 0.0
        %5861 = vmatpush1.msra.mxu0 0.0
        %5862 = vmatprep.subr.mxu0 0.0
        %5863 = vmatpush1.msra.mxu0 0.0
        %5864 = vmatprep.subr.mxu0 0.0
        %5865 = vmatpush1.msra.mxu0 0.0
        %5866 = vmatprep.subr.mxu0 0.0
        %5867 = vmatpush1.msra.mxu0 0.0
        %5868 = vmatprep.subr.mxu0 0.0
        %5869 = vmatpush1.msra.mxu0 0.0
        %5870 = vmatprep.subr.mxu0 0.0
        %5871 = vmatpush1.msra.mxu0 0.0
        %5872 = vmatprep.subr.mxu0 0.0
        %5873 = vmatpush1.msra.mxu0 0.0
        %5874 = vmatprep.subr.mxu0 0.0
        %5875 = vmatpush1.msra.mxu0 0.0
        %5876 = vmatprep.subr.mxu0 0.0
        %5877 = vmatpush1.msra.mxu0 0.0
        %5878 = vmatprep.subr.mxu0 0.0
        %5879 = vmatpush1.msra.mxu0 0.0
        %5880 = vmatprep.subr.mxu0 0.0
        %5881 = vmatpush1.msra.mxu0 0.0
        %5882 = vmatprep.subr.mxu0 0.0
        %5883 = vmatpush1.msra.mxu0 0.0
        %5884 = vmatprep.subr.mxu0 0.0
        %5885 = vmatpush1.msra.mxu0 0.0
        %5886 = vmatprep.subr.mxu0 0.0
        %5887 = vmatpush1.msra.mxu0 0.0
        %5888 = vmatprep.subr.mxu0 0.0
        %5889 = vmatpush1.msra.mxu0 0.0
        %5890 = vmatprep.subr.mxu0 0.0
        %5891 = vmatpush1.msra.mxu0 0.0
        %5892 = vmatprep.subr.mxu0 0.0
        %5893 = vmatpush1.msra.mxu0 0.0
        %5894 = vmatprep.subr.mxu0 0.0
        %5895 = vmatpush1.msra.mxu0 0.0
        %5896 = vmatprep.subr.mxu0 0.0
        %5897 = vmatpush1.msra.mxu0 0.0
        %5898 = vmatprep.subr.mxu0 0.0
        %5899 = vmatpush1.msra.mxu0 0.0
        %5900 = vmatprep.subr.mxu0 0.0
        %5901 = vmatpush1.msra.mxu0 0.0
        %5902 = vmatprep.subr.mxu0 0.0
        %5903 = vmatpush1.msra.mxu0 0.0
        %5904 = vmatprep.subr.mxu0 0.0
        %5905 = vmatpush1.msra.mxu0 0.0
        %5906 = vmatprep.subr.mxu0 0.0
        %5907 = vmatpush1.msra.mxu0 0.0
        %5908 = vmatprep.subr.mxu0 0.0
        %5909 = vmatpush1.msra.mxu0 0.0
        %5910 = vmatprep.subr.mxu0 0.0
        %5911 = vmatpush1.msra.mxu0 0.0
        %5912 = vmatprep.subr.mxu0 0.0
        %5913 = vmatpush1.msra.mxu0 0.0
        %5914 = vmatprep.mubr.f32.mxu0 0.0
        %v5915 = vand.u32 %v5612, 4294901760
        %v5916 = vsub.f32 %v5612, %v5915
        %v5917 = vand.u32 %v5916, 4294901760
        %5918 = vmatmul.mubr.f32.gmra.mrb[0].mxu0 %v5917
        %v5919 = vpop.f32.mrb[0].mxu0
        %v5920 = vadd.f32 %v5845, %v5919
        %v5921 = vpop.f32.mrb[0].mxu0
        %5922 = vdwg.mxu0
        %5923 = vmatprep.subr.mxu0 0.0
        %v5924 = vand.u32 %v5600, 4294901760
        %v5925 = vsub.f32 %v5600, %v5924
        %v5926 = vand.u32 %v5925, 4294901760
        %5927 = vmatpush1.msra.mxu0 %v5926
        %5928 = vmatprep.subr.mxu0 0.0
        %v5929 = vand.u32 %v5601, 4294901760
        %v5930 = vsub.f32 %v5601, %v5929
        %v5931 = vand.u32 %v5930, 4294901760
        %5932 = vmatpush1.msra.mxu0 %v5931
        %5933 = vmatprep.subr.mxu0 0.0
        %5934 = vmatpush1.msra.mxu0 0.0
        %5935 = vmatprep.subr.mxu0 0.0
        %5936 = vmatpush1.msra.mxu0 0.0
        %5937 = vmatprep.subr.mxu0 0.0
        %5938 = vmatpush1.msra.mxu0 0.0
        %5939 = vmatprep.subr.mxu0 0.0
        %5940 = vmatpush1.msra.mxu0 0.0
        %5941 = vmatprep.subr.mxu0 0.0
        %5942 = vmatpush1.msra.mxu0 0.0
        %5943 = vmatprep.subr.mxu0 0.0
        %5944 = vmatpush1.msra.mxu0 0.0
        %5945 = vmatprep.subr.mxu0 0.0
        %5946 = vmatpush1.msra.mxu0 0.0
        %5947 = vmatprep.subr.mxu0 0.0
        %5948 = vmatpush1.msra.mxu0 0.0
        %5949 = vmatprep.subr.mxu0 0.0
        %5950 = vmatpush1.msra.mxu0 0.0
        %5951 = vmatprep.subr.mxu0 0.0
        %5952 = vmatpush1.msra.mxu0 0.0
        %5953 = vmatprep.subr.mxu0 0.0
        %5954 = vmatpush1.msra.mxu0 0.0
        %5955 = vmatprep.subr.mxu0 0.0
        %5956 = vmatpush1.msra.mxu0 0.0
        %5957 = vmatprep.subr.mxu0 0.0
        %5958 = vmatpush1.msra.mxu0 0.0
        %5959 = vmatprep.subr.mxu0 0.0
        %5960 = vmatpush1.msra.mxu0 0.0
        %5961 = vmatprep.subr.mxu0 0.0
        %5962 = vmatpush1.msra.mxu0 0.0
        %5963 = vmatprep.subr.mxu0 0.0
        %5964 = vmatpush1.msra.mxu0 0.0
        %5965 = vmatprep.subr.mxu0 0.0
        %5966 = vmatpush1.msra.mxu0 0.0
        %5967 = vmatprep.subr.mxu0 0.0
        %5968 = vmatpush1.msra.mxu0 0.0
        %5969 = vmatprep.subr.mxu0 0.0
        %5970 = vmatpush1.msra.mxu0 0.0
        %5971 = vmatprep.subr.mxu0 0.0
        %5972 = vmatpush1.msra.mxu0 0.0
        %5973 = vmatprep.subr.mxu0 0.0
        %5974 = vmatpush1.msra.mxu0 0.0
        %5975 = vmatprep.subr.mxu0 0.0
        %5976 = vmatpush1.msra.mxu0 0.0
        %5977 = vmatprep.subr.mxu0 0.0
        %5978 = vmatpush1.msra.mxu0 0.0
        %5979 = vmatprep.subr.mxu0 0.0
        %5980 = vmatpush1.msra.mxu0 0.0
        %5981 = vmatprep.subr.mxu0 0.0
        %5982 = vmatpush1.msra.mxu0 0.0
        %5983 = vmatprep.subr.mxu0 0.0
        %5984 = vmatpush1.msra.mxu0 0.0
        %5985 = vmatprep.subr.mxu0 0.0
        %5986 = vmatpush1.msra.mxu0 0.0
        %5987 = vmatprep.subr.mxu0 0.0
        %5988 = vmatpush1.msra.mxu0 0.0
        %5989 = vmatprep.subr.mxu0 0.0
        %5990 = vmatpush1.msra.mxu0 0.0
        %5991 = vmatprep.subr.mxu0 0.0
        %5992 = vmatpush1.msra.mxu0 0.0
        %5993 = vmatprep.mubr.f32.mxu0 0.0
        %v5994 = vand.u32 %v5612, 4294901760
        %5995 = vmatmul.mubr.f32.gmra.mrb[0].mxu0 %v5994
        %v5996 = vpop.f32.mrb[0].mxu0
        %v5997 = vadd.f32 %v5920, %v5996
        %v5998 = vpop.f32.mrb[0].mxu0
        %5999 = vdwg.mxu0
        %6000 = vmatprep.subr.mxu0 0.0
        %v6001 = vand.u32 %v5600, 4294901760
        %6002 = vmatpush1.msra.mxu0 %v6001
        %6003 = vmatprep.subr.mxu0 0.0
        %v6004 = vand.u32 %v5601, 4294901760
        %6005 = vmatpush1.msra.mxu0 %v6004
        %6006 = vmatprep.subr.mxu0 0.0
        %6007 = vmatpush1.msra.mxu0 0.0
        %6008 = vmatprep.subr.mxu0 0.0
        %6009 = vmatpush1.msra.mxu0 0.0
        %6010 = vmatprep.subr.mxu0 0.0
        %6011 = vmatpush1.msra.mxu0 0.0
        %6012 = vmatprep.subr.mxu0 0.0
        %6013 = vmatpush1.msra.mxu0 0.0
        %6014 = vmatprep.subr.mxu0 0.0
        %6015 = vmatpush1.msra.mxu0 0.0
        %6016 = vmatprep.subr.mxu0 0.0
        %6017 = vmatpush1.msra.mxu0 0.0
        %6018 = vmatprep.subr.mxu0 0.0
        %6019 = vmatpush1.msra.mxu0 0.0
        %6020 = vmatprep.subr.mxu0 0.0
        %6021 = vmatpush1.msra.mxu0 0.0
        %6022 = vmatprep.subr.mxu0 0.0
        %6023 = vmatpush1.msra.mxu0 0.0
        %6024 = vmatprep.subr.mxu0 0.0
        %6025 = vmatpush1.msra.mxu0 0.0
        %6026 = vmatprep.subr.mxu0 0.0
        %6027 = vmatpush1.msra.mxu0 0.0
        %6028 = vmatprep.subr.mxu0 0.0
        %6029 = vmatpush1.msra.mxu0 0.0
        %6030 = vmatprep.subr.mxu0 0.0
        %6031 = vmatpush1.msra.mxu0 0.0
        %6032 = vmatprep.subr.mxu0 0.0
        %6033 = vmatpush1.msra.mxu0 0.0
        %6034 = vmatprep.subr.mxu0 0.0
        %6035 = vmatpush1.msra.mxu0 0.0
        %6036 = vmatprep.subr.mxu0 0.0
        %6037 = vmatpush1.msra.mxu0 0.0
        %6038 = vmatprep.subr.mxu0 0.0
        %6039 = vmatpush1.msra.mxu0 0.0
        %6040 = vmatprep.subr.mxu0 0.0
        %6041 = vmatpush1.msra.mxu0 0.0
        %6042 = vmatprep.subr.mxu0 0.0
        %6043 = vmatpush1.msra.mxu0 0.0
        %6044 = vmatprep.subr.mxu0 0.0
        %6045 = vmatpush1.msra.mxu0 0.0
        %6046 = vmatprep.subr.mxu0 0.0
        %6047 = vmatpush1.msra.mxu0 0.0
        %6048 = vmatprep.subr.mxu0 0.0
        %6049 = vmatpush1.msra.mxu0 0.0
        %6050 = vmatprep.subr.mxu0 0.0
        %6051 = vmatpush1.msra.mxu0 0.0
        %6052 = vmatprep.subr.mxu0 0.0
        %6053 = vmatpush1.msra.mxu0 0.0
        %6054 = vmatprep.subr.mxu0 0.0
        %6055 = vmatpush1.msra.mxu0 0.0
        %6056 = vmatprep.subr.mxu0 0.0
        %6057 = vmatpush1.msra.mxu0 0.0
        %6058 = vmatprep.subr.mxu0 0.0
        %6059 = vmatpush1.msra.mxu0 0.0
        %6060 = vmatprep.subr.mxu0 0.0
        %6061 = vmatpush1.msra.mxu0 0.0
        %6062 = vmatprep.subr.mxu0 0.0
        %6063 = vmatpush1.msra.mxu0 0.0
        %6064 = vmatprep.subr.mxu0 0.0
        %6065 = vmatpush1.msra.mxu0 0.0
        %6066 = vmatprep.mubr.f32.mxu0 0.0
        %v6067 = vand.u32 %v5612, 4294901760
        %6068 = vmatmul.mubr.f32.gmra.mrb[0].mxu0 %v6067
        %v6069 = vpop.f32.mrb[0].mxu0
        %v6070 = vadd.f32 %v5997, %v6069
        %v6071 = vpop.f32.mrb[0].mxu0
        %6072 = vdwg.mxu0
        %v6073 = vmax.f32 %v6070, 0.0
        %v6075 = vrot.slane %v5102, 4
        %v6078 = vrot.slane %v6073, 4
        %v6080 = vsel %vm4142, %v4615, %v6075
        %v6081 = vsel %vm4142, %v5586, %v6078
        %v6082 = vld [vmem:[%s271] sm:$0xff]
        %v6083 = vld [vmem:[%s271 + $0x8] sm:$0xff]
        %v6084 = vld [vmem:[%s271 + $0x10] sm:$0xff]
        %v6085 = vld [vmem:[%s271 + $0x18] sm:$0xff]
        %v6086 = vld [vmem:[%s271 + $0x20] sm:$0xff]
        %v6087 = vld [vmem:[%s271 + $0x28] sm:$0xff]
        %v6088 = vld [vmem:[%s271 + $0x30] sm:$0xff]
        %v6089 = vld [vmem:[%s271 + $0x38] sm:$0xff]
        %v6090 = vld [vmem:[%s271 + $0x40] sm:$0xff]
        %v6091 = vld [vmem:[%s271 + $0x48] sm:$0xff]
        %v6092 = vld [vmem:[%s271 + $0x50] sm:$0xff]
        %v6093 = vld [vmem:[%s271 + $0x58] sm:$0xff]
        %v6094 = vld [vmem:[%s271 + $0x60] sm:$0xff]
        %v6095 = vld [vmem:[%s271 + $0x68] sm:$0xff]
        %v6096 = vld [vmem:[%s271 + $0x70] sm:$0xff]
        %v6097 = vld [vmem:[%s271 + $0x78] sm:$0xff]
        %v6098 = vld [vmem:[%s271 + $0x80] sm:$0xff]
        %v6099 = vld [vmem:[%s271 + $0x88] sm:$0xff]
        %v6100 = vld [vmem:[%s271 + $0x90] sm:$0xff]
        %v6101 = vld [vmem:[%s271 + $0x98] sm:$0xff]
        %v6102 = vld [vmem:[%s271 + $0xa0] sm:$0xff]
        %v6103 = vld [vmem:[%s271 + $0xa8] sm:$0xff]
        %v6104 = vld [vmem:[%s271 + $0xb0] sm:$0xff]
        %v6105 = vld [vmem:[%s271 + $0xb8] sm:$0xff]
        %v6106 = vld [vmem:[%s271 + $0xc0] sm:$0xff]
        %v6107 = vld [vmem:[%s271 + $0xc8] sm:$0xff]
        %v6108 = vld [vmem:[%s271 + $0xd0] sm:$0xff]
        %v6109 = vld [vmem:[%s271 + $0xd8] sm:$0xff]
        %v6110 = vld [vmem:[%s271 + $0xe0] sm:$0xff]
        %v6111 = vld [vmem:[%s271 + $0xe8] sm:$0xff]
        %v6112 = vld [vmem:[%s271 + $0xf0] sm:$0xff]
        %v6113 = vld [vmem:[%s271 + $0xf8] sm:$0xff]
        %v6116 = vcombine.high %v6080, %v6080
        %v6118 = vunpack.c.l.s4 1966171168
        %v6119 = vunpack.c.0.s8 %v6118
        %v6120 = vlaneseq
        %v6121 = vshrl.u32 %v6120, 7
        %v6122 = vsub.s32 %v6119, %v6121
        %v6123 = vrot.slane %v6080, %v6122
        %v6125 = vunpack.c.l.s4 1966171168
        %v6126 = vunpack.c.0.s8 %v6125
        %v6127 = vlaneseq
        %v6128 = vshrl.u32 %v6127, 7
        %v6129 = vsub.s32 %v6126, %v6128
        %v6130 = vrot.slane %v6116, %v6129
        %v6131 = vcombine.high %v6123, %v6123
        %v6132 = vcombine.high %v6130, %v6130
        %v6134 = vunpack.c.l.s4 1966171168
        %v6135 = vunpack.c.0.s8 %v6134
        %v6136 = vlaneseq
        %v6137 = vshrl.u32 %v6136, 7
        %v6138 = vsub.s32 %v6135, %v6137
        %v6139 = vrot.slane %v6123, %v6138
        %v6141 = vunpack.c.l.s4 1966171168
        %v6142 = vunpack.c.0.s8 %v6141
        %v6143 = vlaneseq
        %v6144 = vshrl.u32 %v6143, 7
        %v6145 = vsub.s32 %v6142, %v6144
        %v6146 = vrot.slane %v6130, %v6145
        %v6148 = vunpack.c.l.s4 1966171168
        %v6149 = vunpack.c.0.s8 %v6148
        %v6150 = vlaneseq
        %v6151 = vshrl.u32 %v6150, 7
        %v6152 = vsub.s32 %v6149, %v6151
        %v6153 = vrot.slane %v6131, %v6152
        %v6155 = vunpack.c.l.s4 1966171168
        %v6156 = vunpack.c.0.s8 %v6155
        %v6157 = vlaneseq
        %v6158 = vshrl.u32 %v6157, 7
        %v6159 = vsub.s32 %v6156, %v6158
        %v6160 = vrot.slane %v6132, %v6159
        %v6161 = vcombine.high %v6139, %v6139
        %v6162 = vcombine.high %v6146, %v6146
        %v6163 = vcombine.high %v6153, %v6153
        %v6164 = vcombine.high %v6160, %v6160
        %v6165 = vcombine.high %v6081, %v6081
        %v6167 = vunpack.c.l.s4 1966171168
        %v6168 = vunpack.c.0.s8 %v6167
        %v6169 = vlaneseq
        %v6170 = vshrl.u32 %v6169, 7
        %v6171 = vsub.s32 %v6168, %v6170
        %v6172 = vrot.slane %v6081, %v6171
        %v6174 = vunpack.c.l.s4 1966171168
        %v6175 = vunpack.c.0.s8 %v6174
        %v6176 = vlaneseq
        %v6177 = vshrl.u32 %v6176, 7
        %v6178 = vsub.s32 %v6175, %v6177
        %v6179 = vrot.slane %v6165, %v6178
        %v6180 = vcombine.high %v6172, %v6172
        %v6181 = vcombine.high %v6179, %v6179
        %v6183 = vunpack.c.l.s4 1966171168
        %v6184 = vunpack.c.0.s8 %v6183
        %v6185 = vlaneseq
        %v6186 = vshrl.u32 %v6185, 7
        %v6187 = vsub.s32 %v6184, %v6186
        %v6188 = vrot.slane %v6172, %v6187
        %v6190 = vunpack.c.l.s4 1966171168
        %v6191 = vunpack.c.0.s8 %v6190
        %v6192 = vlaneseq
        %v6193 = vshrl.u32 %v6192, 7
        %v6194 = vsub.s32 %v6191, %v6193
        %v6195 = vrot.slane %v6179, %v6194
        %v6197 = vunpack.c.l.s4 1966171168
        %v6198 = vunpack.c.0.s8 %v6197
        %v6199 = vlaneseq
        %v6200 = vshrl.u32 %v6199, 7
        %v6201 = vsub.s32 %v6198, %v6200
        %v6202 = vrot.slane %v6180, %v6201
        %v6204 = vunpack.c.l.s4 1966171168
        %v6205 = vunpack.c.0.s8 %v6204
        %v6206 = vlaneseq
        %v6207 = vshrl.u32 %v6206, 7
        %v6208 = vsub.s32 %v6205, %v6207
        %v6209 = vrot.slane %v6181, %v6208
        %v6210 = vcombine.high %v6188, %v6188
        %v6211 = vcombine.high %v6195, %v6195
        %v6212 = vcombine.high %v6202, %v6202
        %v6213 = vcombine.high %v6209, %v6209
        %v6214 = vlaneseq
        %v6215 = vshrl.u32 %v6214, 7
        %v6216 = vsub.s32 0, %v6215
        %v6217 = vrot.slane %v6139, %v6216
        %v6218 = vlaneseq
        %v6219 = vshrl.u32 %v6218, 7
        %v6220 = vsub.s32 0, %v6219
        %v6221 = vrot.slane %v6153, %v6220
        %v6222 = vlaneseq
        %v6223 = vshrl.u32 %v6222, 7
        %v6224 = vsub.s32 0, %v6223
        %v6225 = vrot.slane %v6161, %v6224
        %v6226 = vlaneseq
        %v6227 = vshrl.u32 %v6226, 7
        %v6228 = vsub.s32 0, %v6227
        %v6229 = vrot.slane %v6163, %v6228
        %v6230 = vlaneseq
        %v6231 = vshrl.u32 %v6230, 7
        %v6232 = vsub.s32 0, %v6231
        %v6233 = vrot.slane %v6146, %v6232
        %v6234 = vlaneseq
        %v6235 = vshrl.u32 %v6234, 7
        %v6236 = vsub.s32 0, %v6235
        %v6237 = vrot.slane %v6160, %v6236
        %v6238 = vlaneseq
        %v6239 = vshrl.u32 %v6238, 7
        %v6240 = vsub.s32 0, %v6239
        %v6241 = vrot.slane %v6162, %v6240
        %v6242 = vlaneseq
        %v6243 = vshrl.u32 %v6242, 7
        %v6244 = vsub.s32 0, %v6243
        %v6245 = vrot.slane %v6164, %v6244
        %v6246 = vlaneseq
        %v6247 = vshrl.u32 %v6246, 7
        %v6248 = vsub.s32 0, %v6247
        %v6249 = vrot.slane %v6188, %v6248
        %v6250 = vlaneseq
        %v6251 = vshrl.u32 %v6250, 7
        %v6252 = vsub.s32 0, %v6251
        %v6253 = vrot.slane %v6202, %v6252
        %v6254 = vlaneseq
        %v6255 = vshrl.u32 %v6254, 7
        %v6256 = vsub.s32 0, %v6255
        %v6257 = vrot.slane %v6210, %v6256
        %v6258 = vlaneseq
        %v6259 = vshrl.u32 %v6258, 7
        %v6260 = vsub.s32 0, %v6259
        %v6261 = vrot.slane %v6212, %v6260
        %v6262 = vlaneseq
        %v6263 = vshrl.u32 %v6262, 7
        %v6264 = vsub.s32 0, %v6263
        %v6265 = vrot.slane %v6195, %v6264
        %v6266 = vlaneseq
        %v6267 = vshrl.u32 %v6266, 7
        %v6268 = vsub.s32 0, %v6267
        %v6269 = vrot.slane %v6209, %v6268
        %v6270 = vlaneseq
        %v6271 = vshrl.u32 %v6270, 7
        %v6272 = vsub.s32 0, %v6271
        %v6273 = vrot.slane %v6211, %v6272
        %v6274 = vlaneseq
        %v6275 = vshrl.u32 %v6274, 7
        %v6276 = vsub.s32 0, %v6275
        %v6277 = vrot.slane %v6213, %v6276
        %v6294 = vadd.f32 %v6082, %v6217
        %v6295 = vadd.f32 %v6083, %v6217
        %v6296 = vadd.f32 %v6084, %v6221
        %v6297 = vadd.f32 %v6085, %v6221
        %v6298 = vadd.f32 %v6086, %v6225
        %v6299 = vadd.f32 %v6087, %v6225
        %v6300 = vadd.f32 %v6088, %v6229
        %v6301 = vadd.f32 %v6089, %v6229
        %v6302 = vadd.f32 %v6090, %v6233
        %v6303 = vadd.f32 %v6091, %v6233
        %v6304 = vadd.f32 %v6092, %v6237
        %v6305 = vadd.f32 %v6093, %v6237
        %v6306 = vadd.f32 %v6094, %v6241
        %v6307 = vadd.f32 %v6095, %v6241
        %v6308 = vadd.f32 %v6096, %v6245
        %v6309 = vadd.f32 %v6097, %v6245
        %v6310 = vadd.f32 %v6098, %v6249
        %v6311 = vadd.f32 %v6099, %v6249
        %v6312 = vadd.f32 %v6100, %v6253
        %v6313 = vadd.f32 %v6101, %v6253
        %v6314 = vadd.f32 %v6102, %v6257
        %v6315 = vadd.f32 %v6103, %v6257
        %v6316 = vadd.f32 %v6104, %v6261
        %v6317 = vadd.f32 %v6105, %v6261
        %v6318 = vadd.f32 %v6106, %v6265
        %v6319 = vadd.f32 %v6107, %v6265
        %v6320 = vadd.f32 %v6108, %v6269
        %v6321 = vadd.f32 %v6109, %v6269
        %v6322 = vadd.f32 %v6110, %v6273
        %v6323 = vadd.f32 %v6111, %v6273
        %v6324 = vadd.f32 %v6112, %v6277
        %v6325 = vadd.f32 %v6113, %v6277
        %v6326 = vmax.f32 %v6294, 0.0
        %v6327 = vmax.f32 %v6295, 0.0
        %v6328 = vmax.f32 %v6296, 0.0
        %v6329 = vmax.f32 %v6297, 0.0
        %v6330 = vmax.f32 %v6298, 0.0
        %v6331 = vmax.f32 %v6299, 0.0
        %v6332 = vmax.f32 %v6300, 0.0
        %v6333 = vmax.f32 %v6301, 0.0
        %v6334 = vmax.f32 %v6302, 0.0
        %v6335 = vmax.f32 %v6303, 0.0
        %v6336 = vmax.f32 %v6304, 0.0
        %v6337 = vmax.f32 %v6305, 0.0
        %v6338 = vmax.f32 %v6306, 0.0
        %v6339 = vmax.f32 %v6307, 0.0
        %v6340 = vmax.f32 %v6308, 0.0
        %v6341 = vmax.f32 %v6309, 0.0
        %v6342 = vmax.f32 %v6310, 0.0
        %v6343 = vmax.f32 %v6311, 0.0
        %v6344 = vmax.f32 %v6312, 0.0
        %v6345 = vmax.f32 %v6313, 0.0
        %v6346 = vmax.f32 %v6314, 0.0
        %v6347 = vmax.f32 %v6315, 0.0
        %v6348 = vmax.f32 %v6316, 0.0
        %v6349 = vmax.f32 %v6317, 0.0
        %v6350 = vmax.f32 %v6318, 0.0
        %v6351 = vmax.f32 %v6319, 0.0
        %v6352 = vmax.f32 %v6320, 0.0
        %v6353 = vmax.f32 %v6321, 0.0
        %v6354 = vmax.f32 %v6322, 0.0
        %v6355 = vmax.f32 %v6323, 0.0
        %v6356 = vmax.f32 %v6324, 0.0
        %v6357 = vmax.f32 %v6325, 0.0
        %6358 = vst [vmem:[%s271] sm:$0xff] %v6326
        %6359 = vst [vmem:[%s271 + $0x8] sm:$0xff] %v6327
        %6360 = vst [vmem:[%s271 + $0x10] sm:$0xff] %v6328
        %6361 = vst [vmem:[%s271 + $0x18] sm:$0xff] %v6329
        %6362 = vst [vmem:[%s271 + $0x20] sm:$0xff] %v6330
        %6363 = vst [vmem:[%s271 + $0x28] sm:$0xff] %v6331
        %6364 = vst [vmem:[%s271 + $0x30] sm:$0xff] %v6332
        %6365 = vst [vmem:[%s271 + $0x38] sm:$0xff] %v6333
        %6366 = vst [vmem:[%s271 + $0x40] sm:$0xff] %v6334
        %6367 = vst [vmem:[%s271 + $0x48] sm:$0xff] %v6335
        %6368 = vst [vmem:[%s271 + $0x50] sm:$0xff] %v6336
        %6369 = vst [vmem:[%s271 + $0x58] sm:$0xff] %v6337
        %6370 = vst [vmem:[%s271 + $0x60] sm:$0xff] %v6338
        %6371 = vst [vmem:[%s271 + $0x68] sm:$0xff] %v6339
        %6372 = vst [vmem:[%s271 + $0x70] sm:$0xff] %v6340
        %6373 = vst [vmem:[%s271 + $0x78] sm:$0xff] %v6341
        %6374 = vst [vmem:[%s271 + $0x80] sm:$0xff] %v6342
        %6375 = vst [vmem:[%s271 + $0x88] sm:$0xff] %v6343
        %6376 = vst [vmem:[%s271 + $0x90] sm:$0xff] %v6344
        %6377 = vst [vmem:[%s271 + $0x98] sm:$0xff] %v6345
        %6378 = vst [vmem:[%s271 + $0xa0] sm:$0xff] %v6346
        %6379 = vst [vmem:[%s271 + $0xa8] sm:$0xff] %v6347
        %6380 = vst [vmem:[%s271 + $0xb0] sm:$0xff] %v6348
        %6381 = vst [vmem:[%s271 + $0xb8] sm:$0xff] %v6349
        %6382 = vst [vmem:[%s271 + $0xc0] sm:$0xff] %v6350
        %6383 = vst [vmem:[%s271 + $0xc8] sm:$0xff] %v6351
        %6384 = vst [vmem:[%s271 + $0xd0] sm:$0xff] %v6352
        %6385 = vst [vmem:[%s271 + $0xd8] sm:$0xff] %v6353
        %6386 = vst [vmem:[%s271 + $0xe0] sm:$0xff] %v6354
        %6387 = vst [vmem:[%s271 + $0xe8] sm:$0xff] %v6355
        %6388 = vst [vmem:[%s271 + $0xf0] sm:$0xff] %v6356
        %6389 = vst [vmem:[%s271 + $0xf8] sm:$0xff] %v6357
        %s6390 = sand.u32 %s181, 1
        %s6391 = scalar_lea.sflag [#allocation3], %s6390
        %s6392 = sand.u32 %s181, 1
        %s6393 = smul.addr %s6392, 256
        %s6394 = scalar_lea.vmem [#allocation2], %s6393
        // Predicated region
        $region49: #{normal_block_res2.1} parent=47 // pred_check
          %p6395 = pneg %p191
        $region50: #{normal_block_res2.1} parent=47 // pred_check_branch
          %6397 = sbr.rel (%p6395) target = $region52
        $region51: #{normal_block_res2.1} parent=47 // pred_region
          %s6399 = ssub.s32 4096, 4096
          %6400 = vsyncadd %s6391, %s6399
          %s6401 = smul.addr %s21, 32
          %s6402 = smul.addr %s6401, 128
          %s6403 = scalar_lea.hbm %s7, %s6402
          %s6404 = sshll.u32 %s6394, 4
          %s6405 = int_to_ptr.vmem [resolvable:$true] %s6404
          %6410 = dma.vmem_to_hbm [thread:$0]  %s6405, 4096, %s6403, %s6391, 128, 128, 8
        $region52: #{normal_block_res2.1} parent=47 // pred_fallthru
          _
      $region48: #{normal_block_res2.1} parent=5 // pred_fallthru
        _
      %p6411 = scmp.le.s32.totalorder 2, %s16
      // Predicated region
      $region53: #{normal_block_res2.1} parent=5 // pred_check
        %p6412 = pneg %p6411
      $region54: #{normal_block_res2.1} parent=5 // pred_check_branch
        %6414 = sbr.rel (%p6412) target = $region56
      $region55: #{normal_block_res2.1} parent=5 // pred_region
        %s6415 = ssub.s32 %s16, 2
        // Predicated region
        $region57: #{normal_block_res2.1} parent=55 // pred_check
          %p6416 = pneg %p197
        $region58: #{normal_block_res2.1} parent=55 // pred_check_branch
          %6418 = sbr.rel (%p6416) target = $region60
        $region59: #{normal_block_res2.1} parent=55 // pred_region
          %s6419 = sand.u32 %s182, 1
          %s6420 = scalar_lea.sflag [#allocation3], %s6419
          %s6421 = sand.u32 %s182, 1
          %s6422 = smul.addr %s6421, 256
          %s6423 = scalar_lea.vmem [#allocation2], %s6422
          %6424 = dma.done %s6420, 4096
        $region60: #{normal_block_res2.1} parent=55 // pred_fallthru
          _
      $region56: #{normal_block_res2.1} parent=5 // pred_fallthru
        _
    $region6: #{normal_block_res2.1} parent=1 // loop_footer
      %s20 = sadd.s32 1, %s16
    $region7: #{normal_block_res2.1} parent=1 // loop_footer_branch
      %15 = sbr.rel target = $region3
    $region8: #{normal_block_res2.1} parent=1 // loop_exit
      _
    %6425 = vsyncpa [#allocation3], 1
    %s6426 = scalar_lea.sflag [#allocation3], 1
    %6427 = vsyncpa %s6426, 1

</llo_original>
